<compile_context>
chip_gen: v7x
topology: tpu7x:2x2x1
jax: 0.10.0
libtpu: 0.0.40
codegen_flags: <defaults>
</compile_context>

<pallas_src>
import functools
import math

import jax
import jax.numpy as jnp
import numpy as np
from jax.experimental import pallas as pl
from jax.experimental.pallas import tpu as pltpu


def _round_up(x, m):
    return (x + m - 1) // m * m


def _rpn_head_kernel(rows_ref, w_sh_ref, b_sh_ref, w_hd_ref, b_hd_ref,
                     out_ref, *, anchors_per_location, wo, n_taps):
    # rows_ref : (tile_h, W2, Kp)    bf16   W2 == wo + n_taps - 1
    # w_sh_ref : (n_taps, Kp, 512)   bf16   shared 3x3 conv weight, per dx tap
    # b_sh_ref : (1, 512)            f32
    # w_hd_ref : (512, 128)          bf16   fused heads [cls0 | cls1 | bbox | 0]
    # b_hd_ref : (1, 128)            f32
    # out_ref  : (tile_h*wo, 128)    f32    [l0 | l1 | bbox | p0 | p1 | 0]
    A = anchors_per_location
    tile_h = rows_ref.shape[0]
    kp = rows_ref.shape[2]
    t = tile_h * wo

    r = rows_ref[...]
    acc = None
    for dx in range(n_taps):                                  # static unroll (1 or 3)
        tap = r[:, dx:dx + wo, :].reshape(t, kp)
        part = jnp.dot(tap, w_sh_ref[dx], preferred_element_type=jnp.float32)
        acc = part if acc is None else acc + part
    shared = jnp.maximum(acc + b_sh_ref[...], 0.0)            # ReLU, f32

    # Fused 1x1 heads: single lane-dense matmul (N padded to 128).
    head = jnp.dot(shared.astype(w_hd_ref.dtype), w_hd_ref[...],
                   preferred_element_type=jnp.float32) + b_hd_ref[...]

    # 2-way softmax over (cls0, cls1), numerically stable, f32 elementwise.
    l0 = head[:, 0:A]
    l1 = head[:, A:2 * A]
    m = jnp.maximum(l0, l1)
    e0 = jnp.exp(l0 - m)
    e1 = jnp.exp(l1 - m)
    inv = pl.reciprocal(e0 + e1, approx=True)                 # EUP slot

    out_ref[...] = head                       # dense 128-lane store; pad lanes == 0
    out_ref[:, 6 * A:8 * A] = jnp.concatenate([e0 * inv, e1 * inv], axis=-1)


def init_params(key, input_dims, anchors_per_location):
    """Deterministic synthetic parameters (shapes match the nn.Module)."""
    A = anchors_per_location
    ks = jax.random.split(key, 6)
    return {
        # HWIO layout for the 3x3 conv weight (torch is OIHW: (512, Cin, 3, 3))
        "w_shared": 0.05 * jax.random.normal(ks[0], (3, 3, input_dims, 512), jnp.float32),
        "b_shared": 0.01 * jax.random.normal(ks[1], (512,), jnp.float32),
        # 1x1 convs stored as (in, out); out channel ordering = (anchor, cls/coord)
        "w_cls":    0.05 * jax.random.normal(ks[2], (512, 2 * A), jnp.float32),
        "b_cls":    0.01 * jax.random.normal(ks[3], (2 * A,), jnp.float32),
        "w_bbox":   0.05 * jax.random.normal(ks[4], (512, 4 * A), jnp.float32),
        "b_bbox":   0.01 * jax.random.normal(ks[5], (4 * A,), jnp.float32),
    }


def rpn_head_forward(x_nchw, params, anchors_per_location, anchor_stride,
                     *, target_rows=512, mxu_dtype=jnp.bfloat16):
    B, Cin, H, W = x_nchw.shape
    A = anchors_per_location
    s = anchor_stride
    Ho = (H + 2 - 3) // s + 1
    Wo = (W + 2 - 3) // s + 1
    assert 8 * A <= 128, "lane-padded head slab assumes 8*A <= 128"

    # --- glue (XLA side): NCHW -> NHWC, pad ---------------------------------
    x_nhwc = jnp.transpose(x_nchw, (0, 2, 3, 1))
    x_pad = jnp.pad(x_nhwc, ((0, 0), (1, 1), (1, 1), (0, 0)))

    if s == 1:
        # dy-only im2col: 3x channel expansion; dx taps handled in-kernel.
        n_taps = 3
        K = 3 * Cin
        W2 = W + 2
        rows = jnp.concatenate([x_pad[:, dy:dy + Ho, :, :] for dy in range(3)],
                               axis=-1)                           # (B, Ho, W+2, 3Cin)
        w_taps = jnp.stack(
            [params["w_shared"][:, dx, :, :].reshape(K, 512) for dx in range(3)],
            axis=0)                                               # (3, 3Cin, 512)
    else:
        # General stride: full 9x im2col (single in-kernel matmul).
        n_taps = 1
        K = 9 * Cin
        W2 = Wo
        cols = []
        for dy in range(3):
            for dx in range(3):
                cols.append(x_pad[:, dy:dy + (Ho - 1) * s + 1:s,
                                  dx:dx + (Wo - 1) * s + 1:s, :])
        rows = jnp.concatenate(cols, axis=-1)                     # (B, Ho, Wo, 9Cin)
        w_taps = params["w_shared"].reshape(1, K, 512)            # (dy,dx,cin) order

    # Zero-pad K to a lane multiple -> aligned DMAs / full-lane MXU pass.
    Kp = _round_up(K, 128)
    if Kp != K:
        rows = jnp.pad(rows, ((0, 0), (0, 0), (0, 0), (0, Kp - K)))
        w_taps = jnp.pad(w_taps, ((0, 0), (0, Kp - K), (0, 0)))
    rows = rows.astype(mxu_dtype)
    w_sh = w_taps.astype(mxu_dtype)
    b_sh = params["b_shared"].reshape(1, 512).astype(jnp.float32)

    # --- fused, lane-padded (512, 128) head weights -------------------------
    n_lanes = _round_up(8 * A, 128)
    w_cls = params["w_cls"]                                       # col = anchor*2 + cls
    w_hd = jnp.concatenate(
        [w_cls[:, 0::2], w_cls[:, 1::2], params["w_bbox"],
         jnp.zeros((512, n_lanes - 6 * A), jnp.float32)], axis=1).astype(mxu_dtype)
    b_hd = jnp.concatenate(
        [params["b_cls"][0::2], params["b_cls"][1::2], params["b_bbox"],
         jnp.zeros((n_lanes - 6 * A,), jnp.float32)]).reshape(1, n_lanes).astype(jnp.float32)

    # --- tile over output rows; ~target_rows output positions per grid step --
    lcm8 = 8 // math.gcd(Wo, 8)              # granule keeping tile_h*Wo % 8 == 0
    tile_h = max(lcm8, (max(1, target_rows // Wo) // lcm8) * lcm8)
    tile_h = min(tile_h, _round_up(Ho, lcm8))
    # v7x megacore: keep at least 2 parallel grid blocks when possible.
    if B == 1 and _round_up(Ho, tile_h) // tile_h < 2 and Ho > lcm8:
        tile_h = _round_up((Ho + 1) // 2, lcm8)
    Hop = _round_up(Ho, tile_h)
    if Hop != Ho:
        rows = jnp.pad(rows, ((0, 0), (0, Hop - Ho), (0, 0), (0, 0)))

    grid = (B, Hop // tile_h)
    tile_rows = tile_h * Wo

    # --- VMEM budget sized from the actual buffers ---------------------------
    rows_blk = tile_h * W2 * Kp * 2                              # bf16, double-buffered
    out_blk = tile_rows * n_lanes * 4                            # f32, double-buffered
    wgt = (n_taps * Kp * 512 + 512 * n_lanes) * 2 + (512 + n_lanes) * 4
    inter = tile_rows * (2 * 512 + n_lanes) * 4 + 2 * rows_blk   # acc/shared/head + taps
    vmem_limit = int(min(max(2 * rows_blk + 2 * out_blk + 2 * wgt + inter + (4 << 20),
                             16 << 20), 64 << 20))

    kernel = functools.partial(_rpn_head_kernel, anchors_per_location=A,
                               wo=Wo, n_taps=n_taps)

    def run(single_buffer_weights):
        def wspec(shape):
            rank = len(shape)

            def idx(b, t):
                return (0,) * rank

            kwargs = {}
            if single_buffer_weights:
                kwargs["pipeline_mode"] = pl.Buffered(buffer_count=1)
            return pl.BlockSpec(shape, idx, **kwargs)

        return pl.pallas_call(
            kernel,
            out_shape=jax.ShapeDtypeStruct((B, Hop * Wo, n_lanes), jnp.float32),
            grid=grid,
            in_specs=[
                pl.BlockSpec((None, tile_h, W2, Kp), lambda b, t: (b, t, 0, 0)),
                wspec((n_taps, Kp, 512)),        # resident across the whole grid
                wspec((1, 512)),
                wspec((512, n_lanes)),
                wspec((1, n_lanes)),
            ],
            out_specs=pl.BlockSpec((None, tile_rows, n_lanes), lambda b, t: (b, t, 0)),
            compiler_params=pltpu.CompilerParams(
                dimension_semantics=("parallel", "parallel"),
                vmem_limit_bytes=vmem_limit),
        )(rows, w_sh, b_sh, w_hd, b_hd)

    try:
        out = run(single_buffer_weights=True)
    except Exception:
        # pl.Buffered(1) not accepted by this Pallas build -> default buffering.
        out = run(single_buffer_weights=False)

    # --- glue: slice the lane-dense slab and rebuild torch's layouts ---------
    out = out[:, :Ho * Wo, :]
    l0 = out[..., 0:A]
    l1 = out[..., A:2 * A]
    bbox = out[..., 2 * A:6 * A]
    p0 = out[..., 6 * A:7 * A]
    p1 = out[..., 7 * A:8 * A]

    rpn_class_logits = jnp.stack([l0, l1], axis=-1).reshape(B, Ho * Wo * A, 2)
    rpn_probs = jnp.stack([p0, p1], axis=-1).reshape(B, Ho * Wo * A, 2)
    rpn_bbox = bbox.reshape(B, Ho * Wo * A, 4)
    return rpn_class_logits, rpn_probs, rpn_bbox


def _reference(x_nchw, p, anchors_per_location, s):
    """Pure-JAX f32 reference mirroring the PyTorch forward (NHWC formulation)."""
    B, Cin, H, W = x_nchw.shape
    x = jnp.transpose(x_nchw, (0, 2, 3, 1))
    xp = jnp.pad(x, ((0, 0), (1, 1), (1, 1), (0, 0)))
    Ho = (H + 2 - 3) // s + 1
    Wo = (W + 2 - 3) // s + 1
    acc = jnp.zeros((B, Ho, Wo, 512), jnp.float32)
    for dy in range(3):
        for dx in range(3):
            patch = xp[:, dy:dy + (Ho - 1) * s + 1:s, dx:dx + (Wo - 1) * s + 1:s, :]
            acc = acc + jnp.einsum("bhwc,co->bhwo", patch, p["w_shared"][dy, dx],
                                   precision=jax.lax.Precision.HIGHEST)
    shared = jax.nn.relu(acc + p["b_shared"])
    cls = jnp.einsum("bhwc,co->bhwo", shared, p["w_cls"],
                     precision=jax.lax.Precision.HIGHEST) + p["b_cls"]
    logits = cls.reshape(B, -1, 2)
    probs = jax.nn.softmax(logits, axis=-1)
    bb = jnp.einsum("bhwc,co->bhwo", shared, p["w_bbox"],
                    precision=jax.lax.Precision.HIGHEST) + p["b_bbox"]
    bbox = bb.reshape(B, -1, 4)
    return logits, probs, bbox


if __name__ == "__main__":
    key = jax.random.PRNGKey(0)
    B, Cin, H, W = 2, 4, 16, 16          # small NCHW input, like the torch module
    anchors_per_location = 3

    kx, kp = jax.random.split(key)
    x = jax.random.normal(kx, (B, Cin, H, W), jnp.float32)
    params = init_params(kp, Cin, anchors_per_location)

    for anchor_stride in (1, 2):         # exercises the 3-tap and full-im2col paths
        outs = rpn_head_forward(x, params, anchors_per_location, anchor_stride)
        outs = jax.block_until_ready(outs)

        # bf16 MXU inputs (f32 accumulation) vs f32 reference -> bf16-level tolerance.
        refs = _reference(x, params, anchors_per_location, anchor_stride)
        for got, want in zip(outs, refs):
            assert got.shape == want.shape, (got.shape, want.shape)
            np.testing.assert_allclose(np.asarray(got), np.asarray(want),
                                       rtol=2e-2, atol=2e-2)

    print("KERNEL_OK")
</pallas_src>

<mosaic_0001>
module attributes {stable_mosaic.version = 11 : i64} {
  func.func @_rpn_head_kernel(%arg0: i32, %arg1: i32, %arg2: memref<1x16x18x128xbf16, #tpu.memory_space<vmem>>, %arg3: memref<3x128x512xbf16, #tpu.memory_space<vmem>>, %arg4: memref<1x512xf32, #tpu.memory_space<vmem>>, %arg5: memref<512x128xbf16, #tpu.memory_space<vmem>>, %arg6: memref<1x128xf32, #tpu.memory_space<vmem>>, %arg7: memref<1x256x128xf32, #tpu.memory_space<vmem>>) attributes {dimension_semantics = [#tpu.dimension_semantics<parallel>, #tpu.dimension_semantics<parallel>], iteration_bounds = array<i64: 2, 1>, scalar_prefetch = 0 : i64, scratch_operands = 0 : i64, tpu.core_type = #tpu.core_type<tc>, window_params = [{transform_indices = @transform_0, window_bounds = array<i64: 1, 16, 18, 128>}, {pipeline_mode = #tpu.pipeline_mode<synchronous>, transform_indices = @transform_1, window_bounds = array<i64: 3, 128, 512>}, {pipeline_mode = #tpu.pipeline_mode<synchronous>, transform_indices = @transform_2, window_bounds = array<i64: 1, 512>}, {pipeline_mode = #tpu.pipeline_mode<synchronous>, transform_indices = @transform_3, window_bounds = array<i64: 512, 128>}, {pipeline_mode = #tpu.pipeline_mode<synchronous>, transform_indices = @transform_4, window_bounds = array<i64: 1, 128>}, {transform_indices = @transform_5, window_bounds = array<i64: 1, 256, 128>}]} {
    %c0 = arith.constant 0 : index
    %c0_0 = arith.constant 0 : index
    %c0_1 = arith.constant 0 : index
    %c0_2 = arith.constant 0 : index
    %0 = vector.load %arg2[%c0, %c0_0, %c0_1, %c0_2] : memref<1x16x18x128xbf16, #tpu.memory_space<vmem>>, vector<1x16x18x128xbf16>
    %1 = vector.shape_cast %0 : vector<1x16x18x128xbf16> to vector<16x18x128xbf16>
    %2 = vector.extract_strided_slice %1 {offsets = [0, 0, 0], sizes = [16, 16, 128], strides = [1, 1, 1]} : vector<16x18x128xbf16> to vector<16x16x128xbf16>
    %3 = vector.shape_cast %2 : vector<16x16x128xbf16> to vector<256x128xbf16>
    %c0_3 = arith.constant 0 : index
    %c0_4 = arith.constant 0 : index
    %c0_5 = arith.constant 0 : index
    %4 = vector.load %arg3[%c0_3, %c0_4, %c0_5] : memref<3x128x512xbf16, #tpu.memory_space<vmem>>, vector<1x128x512xbf16>
    %5 = vector.shape_cast %4 : vector<1x128x512xbf16> to vector<128x512xbf16>
    %cst = arith.constant dense<0.000000e+00> : vector<256x512xf32>
    %6 = tpu.matmul %3, %5, %cst {dimension_numbers = #tpu.dot_dimension_numbers<[1], [0], [0], [1], [0, 0, 1, 1], [], []>} : vector<256x128xbf16>, vector<128x512xbf16>, vector<256x512xf32> -> vector<256x512xf32>
    %7 = vector.extract_strided_slice %1 {offsets = [0, 1, 0], sizes = [16, 16, 128], strides = [1, 1, 1]} : vector<16x18x128xbf16> to vector<16x16x128xbf16>
    %8 = vector.shape_cast %7 : vector<16x16x128xbf16> to vector<256x128xbf16>
    %c1 = arith.constant 1 : index
    %c0_6 = arith.constant 0 : index
    %c0_7 = arith.constant 0 : index
    %9 = vector.load %arg3[%c1, %c0_6, %c0_7] : memref<3x128x512xbf16, #tpu.memory_space<vmem>>, vector<1x128x512xbf16>
    %10 = vector.shape_cast %9 : vector<1x128x512xbf16> to vector<128x512xbf16>
    %cst_8 = arith.constant dense<0.000000e+00> : vector<256x512xf32>
    %11 = tpu.matmul %8, %10, %cst_8 {dimension_numbers = #tpu.dot_dimension_numbers<[1], [0], [0], [1], [0, 0, 1, 1], [], []>} : vector<256x128xbf16>, vector<128x512xbf16>, vector<256x512xf32> -> vector<256x512xf32>
    %12 = arith.addf %6, %11 : vector<256x512xf32>
    %13 = vector.extract_strided_slice %1 {offsets = [0, 2, 0], sizes = [16, 16, 128], strides = [1, 1, 1]} : vector<16x18x128xbf16> to vector<16x16x128xbf16>
    %14 = vector.shape_cast %13 : vector<16x16x128xbf16> to vector<256x128xbf16>
    %c2 = arith.constant 2 : index
    %c0_9 = arith.constant 0 : index
    %c0_10 = arith.constant 0 : index
    %15 = vector.load %arg3[%c2, %c0_9, %c0_10] : memref<3x128x512xbf16, #tpu.memory_space<vmem>>, vector<1x128x512xbf16>
    %16 = vector.shape_cast %15 : vector<1x128x512xbf16> to vector<128x512xbf16>
    %cst_11 = arith.constant dense<0.000000e+00> : vector<256x512xf32>
    %17 = tpu.matmul %14, %16, %cst_11 {dimension_numbers = #tpu.dot_dimension_numbers<[1], [0], [0], [1], [0, 0, 1, 1], [], []>} : vector<256x128xbf16>, vector<128x512xbf16>, vector<256x512xf32> -> vector<256x512xf32>
    %18 = arith.addf %12, %17 : vector<256x512xf32>
    %c0_12 = arith.constant 0 : index
    %c0_13 = arith.constant 0 : index
    %19 = vector.load %arg4[%c0_12, %c0_13] : memref<1x512xf32, #tpu.memory_space<vmem>>, vector<1x512xf32>
    %20 = vector.broadcast %19 : vector<1x512xf32> to vector<256x512xf32>
    %21 = arith.addf %18, %20 : vector<256x512xf32>
    %cst_14 = arith.constant 0.000000e+00 : f32
    %22 = vector.broadcast %cst_14 : f32 to vector<256x512xf32>
    %23 = arith.maximumf %21, %22 : vector<256x512xf32>
    %24 = arith.truncf %23 : vector<256x512xf32> to vector<256x512xbf16>
    %c0_15 = arith.constant 0 : index
    %c0_16 = arith.constant 0 : index
    %25 = vector.load %arg5[%c0_15, %c0_16] : memref<512x128xbf16, #tpu.memory_space<vmem>>, vector<512x128xbf16>
    %cst_17 = arith.constant dense<0.000000e+00> : vector<256x128xf32>
    %26 = tpu.matmul %24, %25, %cst_17 {dimension_numbers = #tpu.dot_dimension_numbers<[1], [0], [0], [1], [0, 0, 1, 1], [], []>} : vector<256x512xbf16>, vector<512x128xbf16>, vector<256x128xf32> -> vector<256x128xf32>
    %c0_18 = arith.constant 0 : index
    %c0_19 = arith.constant 0 : index
    %27 = vector.load %arg6[%c0_18, %c0_19] : memref<1x128xf32, #tpu.memory_space<vmem>>, vector<1x128xf32>
    %28 = vector.broadcast %27 : vector<1x128xf32> to vector<256x128xf32>
    %29 = arith.addf %26, %28 : vector<256x128xf32>
    %30 = vector.extract_strided_slice %29 {offsets = [0, 0], sizes = [256, 3], strides = [1, 1]} : vector<256x128xf32> to vector<256x3xf32>
    %31 = vector.extract_strided_slice %29 {offsets = [0, 3], sizes = [256, 3], strides = [1, 1]} : vector<256x128xf32> to vector<256x3xf32>
    %32 = arith.maximumf %30, %31 : vector<256x3xf32>
    %33 = arith.subf %30, %32 : vector<256x3xf32>
    %34 = math.exp %33 : vector<256x3xf32>
    %35 = arith.subf %31, %32 : vector<256x3xf32>
    %36 = math.exp %35 : vector<256x3xf32>
    %37 = arith.addf %34, %36 : vector<256x3xf32>
    %38 = tpu.reciprocal %37 {approx = true} : vector<256x3xf32> -> vector<256x3xf32>
    %c0_20 = arith.constant 0 : index
    %c0_21 = arith.constant 0 : index
    %c0_22 = arith.constant 0 : index
    %39 = vector.load %arg7[%c0_20, %c0_21, %c0_22] : memref<1x256x128xf32, #tpu.memory_space<vmem>>, vector<1x256x128xf32>
    %40 = vector.shape_cast %39 : vector<1x256x128xf32> to vector<256x128xf32>
    %41 = vector.shape_cast %29 : vector<256x128xf32> to vector<1x256x128xf32>
    tpu.vector_store %arg7[%c0_20, %c0_21, %c0_22], %41 {strides = array<i32>} : memref<1x256x128xf32, #tpu.memory_space<vmem>>, vector<1x256x128xf32>,
    %42 = arith.mulf %34, %38 : vector<256x3xf32>
    %43 = arith.mulf %36, %38 : vector<256x3xf32>
    %44 = tpu.concatenate %42, %43 in 1 : vector<256x3xf32>, vector<256x3xf32> -> vector<256x6xf32>
    %c0_23 = arith.constant 0 : index
    %c0_24 = arith.constant 0 : index
    %c18 = arith.constant 18 : index
    %45 = vector.load %arg7[%c0_23, %c0_24, %c18] : memref<1x256x128xf32, #tpu.memory_space<vmem>>, vector<1x256x6xf32>
    %46 = vector.shape_cast %45 : vector<1x256x6xf32> to vector<256x6xf32>
    %47 = vector.shape_cast %44 : vector<256x6xf32> to vector<1x256x6xf32>
    tpu.vector_store %arg7[%c0_23, %c0_24, %c18], %47 {strides = array<i32>} : memref<1x256x128xf32, #tpu.memory_space<vmem>>, vector<1x256x6xf32>,
    return
  }
  func.func @transform_0(%arg0: i32, %arg1: i32) -> (i32, i32, i32, i32) {
    %c0_i32 = arith.constant 0 : i32
    %c0_i32_0 = arith.constant 0 : i32
    %c0_i32_1 = arith.constant 0 : i32
    return %arg0, %arg1, %c0_i32, %c0_i32_0 : i32, i32, i32, i32
  }
  func.func @transform_1(%arg0: i32, %arg1: i32) -> (i32, i32, i32) {
    %c0_i32 = arith.constant 0 : i32
    %c0_i32_0 = arith.constant 0 : i32
    %c0_i32_1 = arith.constant 0 : i32
    %c0_i32_2 = arith.constant 0 : i32
    return %c0_i32, %c0_i32_0, %c0_i32_1 : i32, i32, i32
  }
  func.func @transform_2(%arg0: i32, %arg1: i32) -> (i32, i32) {
    %c0_i32 = arith.constant 0 : i32
    %c0_i32_0 = arith.constant 0 : i32
    %c0_i32_1 = arith.constant 0 : i32
    return %c0_i32, %c0_i32_0 : i32, i32
  }
  func.func @transform_3(%arg0: i32, %arg1: i32) -> (i32, i32) {
    %c0_i32 = arith.constant 0 : i32
    %c0_i32_0 = arith.constant 0 : i32
    %c0_i32_1 = arith.constant 0 : i32
    return %c0_i32, %c0_i32_0 : i32, i32
  }
  func.func @transform_4(%arg0: i32, %arg1: i32) -> (i32, i32) {
    %c0_i32 = arith.constant 0 : i32
    %c0_i32_0 = arith.constant 0 : i32
    %c0_i32_1 = arith.constant 0 : i32
    return %c0_i32, %c0_i32_0 : i32, i32
  }
  func.func @transform_5(%arg0: i32, %arg1: i32) -> (i32, i32, i32) {
    %c0_i32 = arith.constant 0 : i32
    %c0_i32_0 = arith.constant 0 : i32
    return %arg0, %arg1, %c0_i32 : i32, i32, i32
  }
}

module attributes {stable_mosaic.version = 11 : i64} {
  func.func @_rpn_head_kernel(%arg0: i32, %arg1: i32, %arg2: memref<1x16x18x128xbf16, #tpu.memory_space<vmem>>, %arg3: memref<3x128x512xbf16, #tpu.memory_space<vmem>>, %arg4: memref<1x512xf32, #tpu.memory_space<vmem>>, %arg5: memref<512x128xbf16, #tpu.memory_space<vmem>>, %arg6: memref<1x128xf32, #tpu.memory_space<vmem>>, %arg7: memref<1x256x128xf32, #tpu.memory_space<vmem>>) attributes {dimension_semantics = [#tpu.dimension_semantics<parallel>, #tpu.dimension_semantics<parallel>], iteration_bounds = array<i64: 2, 1>, scalar_prefetch = 0 : i64, scratch_operands = 0 : i64, tpu.core_type = #tpu.core_type<tc>, window_params = [{transform_indices = @transform_0, window_bounds = array<i64: 1, 16, 18, 128>}, {pipeline_mode = #tpu.pipeline_mode<synchronous>, transform_indices = @transform_1, window_bounds = array<i64: 3, 128, 512>}, {pipeline_mode = #tpu.pipeline_mode<synchronous>, transform_indices = @transform_2, window_bounds = array<i64: 1, 512>}, {pipeline_mode = #tpu.pipeline_mode<synchronous>, transform_indices = @transform_3, window_bounds = array<i64: 512, 128>}, {pipeline_mode = #tpu.pipeline_mode<synchronous>, transform_indices = @transform_4, window_bounds = array<i64: 1, 128>}, {transform_indices = @transform_5, window_bounds = array<i64: 1, 256, 128>}]} {
    %c0 = arith.constant 0 : index
    %c0_0 = arith.constant 0 : index
    %c0_1 = arith.constant 0 : index
    %c0_2 = arith.constant 0 : index
    %0 = vector.load %arg2[%c0, %c0_0, %c0_1, %c0_2] : memref<1x16x18x128xbf16, #tpu.memory_space<vmem>>, vector<1x16x18x128xbf16>
    %1 = vector.shape_cast %0 : vector<1x16x18x128xbf16> to vector<16x18x128xbf16>
    %2 = vector.extract_strided_slice %1 {offsets = [0, 0, 0], sizes = [16, 16, 128], strides = [1, 1, 1]} : vector<16x18x128xbf16> to vector<16x16x128xbf16>
    %3 = vector.shape_cast %2 : vector<16x16x128xbf16> to vector<256x128xbf16>
    %c0_3 = arith.constant 0 : index
    %c0_4 = arith.constant 0 : index
    %c0_5 = arith.constant 0 : index
    %4 = vector.load %arg3[%c0_3, %c0_4, %c0_5] : memref<3x128x512xbf16, #tpu.memory_space<vmem>>, vector<1x128x512xbf16>
    %5 = vector.shape_cast %4 : vector<1x128x512xbf16> to vector<128x512xbf16>
    %cst = arith.constant dense<0.000000e+00> : vector<256x512xf32>
    %6 = tpu.matmul %3, %5, %cst {dimension_numbers = #tpu.dot_dimension_numbers<[1], [0], [0], [1], [0, 0, 1, 1], [], []>} : vector<256x128xbf16>, vector<128x512xbf16>, vector<256x512xf32> -> vector<256x512xf32>
    %7 = vector.extract_strided_slice %1 {offsets = [0, 1, 0], sizes = [16, 16, 128], strides = [1, 1, 1]} : vector<16x18x128xbf16> to vector<16x16x128xbf16>
    %8 = vector.shape_cast %7 : vector<16x16x128xbf16> to vector<256x128xbf16>
    %c1 = arith.constant 1 : index
    %c0_6 = arith.constant 0 : index
    %c0_7 = arith.constant 0 : index
    %9 = vector.load %arg3[%c1, %c0_6, %c0_7] : memref<3x128x512xbf16, #tpu.memory_space<vmem>>, vector<1x128x512xbf16>
    %10 = vector.shape_cast %9 : vector<1x128x512xbf16> to vector<128x512xbf16>
    %cst_8 = arith.constant dense<0.000000e+00> : vector<256x512xf32>
    %11 = tpu.matmul %8, %10, %cst_8 {dimension_numbers = #tpu.dot_dimension_numbers<[1], [0], [0], [1], [0, 0, 1, 1], [], []>} : vector<256x128xbf16>, vector<128x512xbf16>, vector<256x512xf32> -> vector<256x512xf32>
    %12 = arith.addf %6, %11 : vector<256x512xf32>
    %13 = vector.extract_strided_slice %1 {offsets = [0, 2, 0], sizes = [16, 16, 128], strides = [1, 1, 1]} : vector<16x18x128xbf16> to vector<16x16x128xbf16>
    %14 = vector.shape_cast %13 : vector<16x16x128xbf16> to vector<256x128xbf16>
    %c2 = arith.constant 2 : index
    %c0_9 = arith.constant 0 : index
    %c0_10 = arith.constant 0 : index
    %15 = vector.load %arg3[%c2, %c0_9, %c0_10] : memref<3x128x512xbf16, #tpu.memory_space<vmem>>, vector<1x128x512xbf16>
    %16 = vector.shape_cast %15 : vector<1x128x512xbf16> to vector<128x512xbf16>
    %cst_11 = arith.constant dense<0.000000e+00> : vector<256x512xf32>
    %17 = tpu.matmul %14, %16, %cst_11 {dimension_numbers = #tpu.dot_dimension_numbers<[1], [0], [0], [1], [0, 0, 1, 1], [], []>} : vector<256x128xbf16>, vector<128x512xbf16>, vector<256x512xf32> -> vector<256x512xf32>
    %18 = arith.addf %12, %17 : vector<256x512xf32>
    %c0_12 = arith.constant 0 : index
    %c0_13 = arith.constant 0 : index
    %19 = vector.load %arg4[%c0_12, %c0_13] : memref<1x512xf32, #tpu.memory_space<vmem>>, vector<1x512xf32>
    %20 = vector.broadcast %19 : vector<1x512xf32> to vector<256x512xf32>
    %21 = arith.addf %18, %20 : vector<256x512xf32>
    %cst_14 = arith.constant 0.000000e+00 : f32
    %22 = vector.broadcast %cst_14 : f32 to vector<256x512xf32>
    %23 = arith.maximumf %21, %22 : vector<256x512xf32>
    %24 = arith.truncf %23 : vector<256x512xf32> to vector<256x512xbf16>
    %c0_15 = arith.constant 0 : index
    %c0_16 = arith.constant 0 : index
    %25 = vector.load %arg5[%c0_15, %c0_16] : memref<512x128xbf16, #tpu.memory_space<vmem>>, vector<512x128xbf16>
    %cst_17 = arith.constant dense<0.000000e+00> : vector<256x128xf32>
    %26 = tpu.matmul %24, %25, %cst_17 {dimension_numbers = #tpu.dot_dimension_numbers<[1], [0], [0], [1], [0, 0, 1, 1], [], []>} : vector<256x512xbf16>, vector<512x128xbf16>, vector<256x128xf32> -> vector<256x128xf32>
    %c0_18 = arith.constant 0 : index
    %c0_19 = arith.constant 0 : index
    %27 = vector.load %arg6[%c0_18, %c0_19] : memref<1x128xf32, #tpu.memory_space<vmem>>, vector<1x128xf32>
    %28 = vector.broadcast %27 : vector<1x128xf32> to vector<256x128xf32>
    %29 = arith.addf %26, %28 : vector<256x128xf32>
    %30 = vector.extract_strided_slice %29 {offsets = [0, 0], sizes = [256, 3], strides = [1, 1]} : vector<256x128xf32> to vector<256x3xf32>
    %31 = vector.extract_strided_slice %29 {offsets = [0, 3], sizes = [256, 3], strides = [1, 1]} : vector<256x128xf32> to vector<256x3xf32>
    %32 = arith.maximumf %30, %31 : vector<256x3xf32>
    %33 = arith.subf %30, %32 : vector<256x3xf32>
    %34 = math.exp %33 : vector<256x3xf32>
    %35 = arith.subf %31, %32 : vector<256x3xf32>
    %36 = math.exp %35 : vector<256x3xf32>
    %37 = arith.addf %34, %36 : vector<256x3xf32>
    %38 = tpu.reciprocal %37 {approx = true} : vector<256x3xf32> -> vector<256x3xf32>
    %c0_20 = arith.constant 0 : index
    %c0_21 = arith.constant 0 : index
    %c0_22 = arith.constant 0 : index
    %39 = vector.load %arg7[%c0_20, %c0_21, %c0_22] : memref<1x256x128xf32, #tpu.memory_space<vmem>>, vector<1x256x128xf32>
    %40 = vector.shape_cast %39 : vector<1x256x128xf32> to vector<256x128xf32>
    %41 = vector.shape_cast %29 : vector<256x128xf32> to vector<1x256x128xf32>
    tpu.vector_store %arg7[%c0_20, %c0_21, %c0_22], %41 {strides = array<i32>} : memref<1x256x128xf32, #tpu.memory_space<vmem>>, vector<1x256x128xf32>,
    %42 = arith.mulf %34, %38 : vector<256x3xf32>
    %43 = arith.mulf %36, %38 : vector<256x3xf32>
    %44 = tpu.concatenate %42, %43 in 1 : vector<256x3xf32>, vector<256x3xf32> -> vector<256x6xf32>
    %c0_23 = arith.constant 0 : index
    %c0_24 = arith.constant 0 : index
    %c18 = arith.constant 18 : index
    %45 = vector.load %arg7[%c0_23, %c0_24, %c18] : memref<1x256x128xf32, #tpu.memory_space<vmem>>, vector<1x256x6xf32>
    %46 = vector.shape_cast %45 : vector<1x256x6xf32> to vector<256x6xf32>
    %47 = vector.shape_cast %44 : vector<256x6xf32> to vector<1x256x6xf32>
    tpu.vector_store %arg7[%c0_23, %c0_24, %c18], %47 {strides = array<i32>} : memref<1x256x128xf32, #tpu.memory_space<vmem>>, vector<1x256x6xf32>,
    return
  }
  func.func @transform_0(%arg0: i32, %arg1: i32) -> (i32, i32, i32, i32) {
    %c0_i32 = arith.constant 0 : i32
    %c0_i32_0 = arith.constant 0 : i32
    %c0_i32_1 = arith.constant 0 : i32
    return %arg0, %arg1, %c0_i32, %c0_i32_0 : i32, i32, i32, i32
  }
  func.func @transform_1(%arg0: i32, %arg1: i32) -> (i32, i32, i32) {
    %c0_i32 = arith.constant 0 : i32
    %c0_i32_0 = arith.constant 0 : i32
    %c0_i32_1 = arith.constant 0 : i32
    %c0_i32_2 = arith.constant 0 : i32
    return %c0_i32, %c0_i32_0, %c0_i32_1 : i32, i32, i32
  }
  func.func @transform_2(%arg0: i32, %arg1: i32) -> (i32, i32) {
    %c0_i32 = arith.constant 0 : i32
    %c0_i32_0 = arith.constant 0 : i32
    %c0_i32_1 = arith.constant 0 : i32
    return %c0_i32, %c0_i32_0 : i32, i32
  }
  func.func @transform_3(%arg0: i32, %arg1: i32) -> (i32, i32) {
    %c0_i32 = arith.constant 0 : i32
    %c0_i32_0 = arith.constant 0 : i32
    %c0_i32_1 = arith.constant 0 : i32
    return %c0_i32, %c0_i32_0 : i32, i32
  }
  func.func @transform_4(%arg0: i32, %arg1: i32) -> (i32, i32) {
    %c0_i32 = arith.constant 0 : i32
    %c0_i32_0 = arith.constant 0 : i32
    %c0_i32_1 = arith.constant 0 : i32
    return %c0_i32, %c0_i32_0 : i32, i32
  }
  func.func @transform_5(%arg0: i32, %arg1: i32) -> (i32, i32, i32) {
    %c0_i32 = arith.constant 0 : i32
    %c0_i32_0 = arith.constant 0 : i32
    return %arg0, %arg1, %c0_i32 : i32, i32, i32
  }
}

</mosaic_0001>

<llo_original>
// kernel: tpu_custom_call.1
$region0: #{tpu_custom_call.1}
  #allocation0 [shape = 'u32[]', space=smem, size = 0x4, offset = 0x4, fixed_abs, tag = 'smem constant byte address 0x4 - core index']
  #allocation1 [shape = 'u32[144,128]{1,0:T(1,128)}', space=vmem, size = 0x12000, scoped, tag = 'internal scratch']
  %s0 = inlined_call_operand.vmem [shape: bf16[2,16,18,128], index: 0, kind: input, shape index: {}]
  %s1 = inlined_call_operand.hbm [shape: bf16[3,128,512], index: 1, kind: input, shape index: {}]
  %s2 = inlined_call_operand.vmem [shape: f32[1,512], index: 2, kind: input, shape index: {}]
  %s3 = inlined_call_operand.vmem [shape: bf16[512,128], index: 3, kind: input, shape index: {}]
  %s4 = inlined_call_operand.vmem [shape: f32[1,128], index: 4, kind: input, shape index: {}]
  %s5 = inlined_call_operand.hbm [shape: f32[2,256,128], index: 5, kind: output, shape index: {}]
  %s6 = sld [smem:[#allocation0]]
  $region57: #{tpu_custom_call.1} parent=0
    _
  %s8 = ssub.s32 1, %s6
  %s9 = scalar_select 0, %s8, %s6
  $region1: #{tpu_custom_call.1} parent=0
    #allocation2 [shape = 'u8[393216]{0}', space=vmem, size = 0x60000, scoped, tag = 'input window, operand 1, single buffered']
    #allocation3 [shape = 's32[2]{0}', space=sflag, size = 0x8, scoped, tag = 'scoped memory for tpu_custom_call.1']
    #allocation4 [shape = 's32[2]{0}', space=sflag, size = 0x8, scoped, tag = 'scoped memory for tpu_custom_call.1']
    #allocation5 [shape = 'u8[262144]{0}', space=vmem, size = 0x40000, scoped, tag = 'output window, operand 0']
    %10 = vsyncpa [#allocation3], 0
    %11 = vsyncpa [#allocation4], 0
    %s12 = scalar_lea.sflag [#allocation4], 1
    %13 = vsyncpa %s12, 0
    loop: start=0, step=1, limit=4
    $region2: #{tpu_custom_call.1} parent=1 // loop_pre_header
      _
    $region3: #{tpu_custom_call.1} parent=1 // loop_header
      %s15 = sphi 0, %s19
      %p16 = scmp.ge.s32.totalorder %s15, 4
      %s22 = sphi 0, %s34
      %s23 = sphi 0, %s30
      %s24 = sphi 0, %s22
      %s25 = sphi 0, %s23
      %s26 = sphi 0, %s24
      %s27 = sphi 0, %s25
      %s39 = sphi 0, %s41
      %s42 = sphi 0, %s39
      %s43 = sphi 0, %s42
      %s59 = sphi 0, %s43
      %s63 = sphi 0, %s63
      %s65 = sphi 0, %s63
      %s66 = sphi 0, %s65
      %s80 = sphi 0, %s66
      %s84 = sphi 0, %s84
      %s86 = sphi 0, %s84
      %s87 = sphi 0, %s86
      %s101 = sphi 0, %s87
      %s105 = sphi 0, %s105
      %s107 = sphi 0, %s105
      %s108 = sphi 0, %s107
      %s122 = sphi 0, %s108
      %s126 = sphi 0, %s126
      %s128 = sphi 0, %s126
      %s129 = sphi 0, %s128
      %s143 = sphi 0, %s129
      %s151 = sphi 0, %s153
      %s154 = sphi 0, %s151
      %s155 = sphi 0, %s154
      %s171 = sphi 0, %s155
    $region4: #{tpu_custom_call.1} parent=1 // loop_header_branch
      %18 = sbr.rel (%p16) target = $region8
    $region5: #{tpu_custom_call.1} parent=1 // loop_body
      %s20 = ssub.s32 %s15, 1
      %s21 = ssub.s32 %s15, 2
      %s28 = sadd.s32 1, %s23
      %p29 = scmp.ge.s32.totalorder %s28, 1
      %s30 = scalar_select %p29, 0, %s28
      %s31 = sadd.s32 1, %s22
      %s32 = scalar_select %p29, %s31, %s22
      %p33 = scmp.ge.s32.totalorder %s32, 2
      %s34 = scalar_select %p33, 0, %s32
      %s35 = ssub.s32 %s22, %s34
      %s36 = ssub.s32 %s23, %s30
      %s37 = sor.u32 %s35, %s36
      %p38 = scmp.eq.s32.totalorder %s37, 0
      %s40 = sadd.s32 %s39, 1
      %s41 = scalar_select %p38, %s39, %s40
      %p44 = pneg %p38
      %p45 = scmp.eq.s32.totalorder %s15, 1
      %p46 = por %p44, %p45
      %p47 = scmp.ne.s32.totalorder %s39, %s42
      %p48 = scmp.eq.s32.totalorder %s15, 0
      %p49 = por %p47, %p48
      %p50 = scmp.ne.s32.totalorder %s39, %s42
      %p51 = scmp.eq.s32.totalorder %s20, 1
      %p52 = por %p50, %p51
      %p53 = scmp.ne.s32.totalorder %s42, %s43
      %p54 = scmp.eq.s32.totalorder %s20, 0
      %p55 = por %p53, %p54
      %p56 = scmp.ne.s32.totalorder %s42, %s43
      %p57 = scmp.eq.s32.totalorder %s21, 1
      %p58 = por %p56, %p57
      %p60 = scmp.ne.s32.totalorder %s43, %s59
      %p61 = scmp.eq.s32.totalorder %s21, 0
      %p62 = por %p60, %p61
      %s64 = sadd.s32 %s63, 1
      %p67 = scmp.eq.s32.totalorder %s15, 1
      %p68 = scmp.ne.s32.totalorder %s63, %s65
      %p69 = scmp.eq.s32.totalorder %s15, 0
      %p70 = por %p68, %p69
      %p71 = scmp.ne.s32.totalorder %s63, %s65
      %p72 = scmp.eq.s32.totalorder %s20, 1
      %p73 = por %p71, %p72
      %p74 = scmp.ne.s32.totalorder %s65, %s66
      %p75 = scmp.eq.s32.totalorder %s20, 0
      %p76 = por %p74, %p75
      %p77 = scmp.ne.s32.totalorder %s65, %s66
      %p78 = scmp.eq.s32.totalorder %s21, 1
      %p79 = por %p77, %p78
      %p81 = scmp.ne.s32.totalorder %s66, %s80
      %p82 = scmp.eq.s32.totalorder %s21, 0
      %p83 = por %p81, %p82
      %s85 = sadd.s32 %s84, 1
      %p88 = scmp.eq.s32.totalorder %s15, 1
      %p89 = scmp.ne.s32.totalorder %s84, %s86
      %p90 = scmp.eq.s32.totalorder %s15, 0
      %p91 = por %p89, %p90
      %p92 = scmp.ne.s32.totalorder %s84, %s86
      %p93 = scmp.eq.s32.totalorder %s20, 1
      %p94 = por %p92, %p93
      %p95 = scmp.ne.s32.totalorder %s86, %s87
      %p96 = scmp.eq.s32.totalorder %s20, 0
      %p97 = por %p95, %p96
      %p98 = scmp.ne.s32.totalorder %s86, %s87
      %p99 = scmp.eq.s32.totalorder %s21, 1
      %p100 = por %p98, %p99
      %p102 = scmp.ne.s32.totalorder %s87, %s101
      %p103 = scmp.eq.s32.totalorder %s21, 0
      %p104 = por %p102, %p103
      %s106 = sadd.s32 %s105, 1
      %p109 = scmp.eq.s32.totalorder %s15, 1
      %p110 = scmp.ne.s32.totalorder %s105, %s107
      %p111 = scmp.eq.s32.totalorder %s15, 0
      %p112 = por %p110, %p111
      %p113 = scmp.ne.s32.totalorder %s105, %s107
      %p114 = scmp.eq.s32.totalorder %s20, 1
      %p115 = por %p113, %p114
      %p116 = scmp.ne.s32.totalorder %s107, %s108
      %p117 = scmp.eq.s32.totalorder %s20, 0
      %p118 = por %p116, %p117
      %p119 = scmp.ne.s32.totalorder %s107, %s108
      %p120 = scmp.eq.s32.totalorder %s21, 1
      %p121 = por %p119, %p120
      %p123 = scmp.ne.s32.totalorder %s108, %s122
      %p124 = scmp.eq.s32.totalorder %s21, 0
      %p125 = por %p123, %p124
      %s127 = sadd.s32 %s126, 1
      %p130 = scmp.eq.s32.totalorder %s15, 1
      %p131 = scmp.ne.s32.totalorder %s126, %s128
      %p132 = scmp.eq.s32.totalorder %s15, 0
      %p133 = por %p131, %p132
      %p134 = scmp.ne.s32.totalorder %s126, %s128
      %p135 = scmp.eq.s32.totalorder %s20, 1
      %p136 = por %p134, %p135
      %p137 = scmp.ne.s32.totalorder %s128, %s129
      %p138 = scmp.eq.s32.totalorder %s20, 0
      %p139 = por %p137, %p138
      %p140 = scmp.ne.s32.totalorder %s128, %s129
      %p141 = scmp.eq.s32.totalorder %s21, 1
      %p142 = por %p140, %p141
      %p144 = scmp.ne.s32.totalorder %s129, %s143
      %p145 = scmp.eq.s32.totalorder %s21, 0
      %p146 = por %p144, %p145
      %s147 = ssub.s32 %s22, %s34
      %s148 = ssub.s32 %s23, %s30
      %s149 = sor.u32 %s147, %s148
      %p150 = scmp.eq.s32.totalorder %s149, 0
      %s152 = sadd.s32 %s151, 1
      %s153 = scalar_select %p150, %s151, %s152
      %p156 = pneg %p150
      %p157 = scmp.eq.s32.totalorder %s15, 1
      %p158 = por %p156, %p157
      %p159 = scmp.ne.s32.totalorder %s151, %s154
      %p160 = scmp.eq.s32.totalorder %s15, 0
      %p161 = por %p159, %p160
      %p162 = scmp.ne.s32.totalorder %s151, %s154
      %p163 = scmp.eq.s32.totalorder %s20, 1
      %p164 = por %p162, %p163
      %p165 = scmp.ne.s32.totalorder %s154, %s155
      %p166 = scmp.eq.s32.totalorder %s20, 0
      %p167 = por %p165, %p166
      %p168 = scmp.ne.s32.totalorder %s154, %s155
      %p169 = scmp.eq.s32.totalorder %s21, 1
      %p170 = por %p168, %p169
      %p172 = scmp.ne.s32.totalorder %s155, %s171
      %p173 = scmp.eq.s32.totalorder %s21, 0
      %p174 = por %p172, %p173
      %p175 = scmp.le.s32.totalorder 1, %s15
      %p176 = scmp.lt.s32.totalorder %s15, 3
      %p177 = pnand %p175, %p176
      %p178 = pneg %p177
      // Predicated region
      $region9: #{tpu_custom_call.1} parent=5 // pred_check
        _
      $region10: #{tpu_custom_call.1} parent=5 // pred_check_branch
        %180 = sbr.rel (%p177) target = $region12
      $region11: #{tpu_custom_call.1} parent=5 // pred_region
        %s181 = ssub.s32 %s15, 1
        // Predicated region
        $region13: #{tpu_custom_call.1} parent=11 // pred_check
          %p182 = pneg %p76
        $region14: #{tpu_custom_call.1} parent=11 // pred_check_branch
          %184 = sbr.rel (%p182) target = $region16
        $region15: #{tpu_custom_call.1} parent=11 // pred_region
          %s186 = ssub.s32 12288, 12288
          %187 = vsyncadd [#allocation3], %s186
          %s188 = sshll.u32 [#allocation2], 4
          %s189 = int_to_ptr.vmem [resolvable:$true] %s188
          %194 = dma.hbm_to_vmem [thread:$0]  %s1, 12288, %s189, [#allocation3], 256, 256, 16
        $region16: #{tpu_custom_call.1} parent=11 // pred_fallthru
          _
        // Predicated region
        $region17: #{tpu_custom_call.1} parent=11 // pred_check
          %p195 = pneg %p97
        $region18: #{tpu_custom_call.1} parent=11 // pred_check_branch
          %197 = sbr.rel (%p195) target = $region20
        $region19: #{tpu_custom_call.1} parent=11 // pred_region
          _
        $region20: #{tpu_custom_call.1} parent=11 // pred_fallthru
          _
        // Predicated region
        $region21: #{tpu_custom_call.1} parent=11 // pred_check
          %p198 = pneg %p118
        $region22: #{tpu_custom_call.1} parent=11 // pred_check_branch
          %200 = sbr.rel (%p198) target = $region24
        $region23: #{tpu_custom_call.1} parent=11 // pred_region
          _
        $region24: #{tpu_custom_call.1} parent=11 // pred_fallthru
          _
        // Predicated region
        $region25: #{tpu_custom_call.1} parent=11 // pred_check
          %p201 = pneg %p139
        $region26: #{tpu_custom_call.1} parent=11 // pred_check_branch
          %203 = sbr.rel (%p201) target = $region28
        $region27: #{tpu_custom_call.1} parent=11 // pred_region
          _
        $region28: #{tpu_custom_call.1} parent=11 // pred_fallthru
          _
      $region12: #{tpu_custom_call.1} parent=5 // pred_fallthru
        _
      %p204 = scmp.lt.s32.totalorder %s15, 2
      // Predicated region
      $region29: #{tpu_custom_call.1} parent=5 // pred_check
        %p205 = pneg %p204
      $region30: #{tpu_custom_call.1} parent=5 // pred_check_branch
        %207 = sbr.rel (%p205) target = $region32
      $region31: #{tpu_custom_call.1} parent=5 // pred_region
        // Predicated region
        $region33: #{tpu_custom_call.1} parent=31 // pred_check
          %p208 = pneg %p49
        $region34: #{tpu_custom_call.1} parent=31 // pred_check_branch
          %210 = sbr.rel (%p208) target = $region36
        $region35: #{tpu_custom_call.1} parent=31 // pred_region
          %s211 = smul.u32 16, %s23
          %p212 = scmp.lt.s32.totalorder %s22, 1
          %s213 = scalar_select %p212, %s22, 1
          %p214 = scmp.lt.s32.totalorder %s211, 15
          %s215 = scalar_select %p214, %s211, 15
          %s216 = smul.addr %s215, 3
          %s217 = smul.addr %s213, 48
          %s218 = sadd.s32 %s216, %s217
          %s219 = smul.addr %s218, 4
          %s220 = scalar_lea.vmem %s0, %s219
          %s221 = smul.u32 16, %s23
        $region36: #{tpu_custom_call.1} parent=31 // pred_fallthru
          _
      $region32: #{tpu_custom_call.1} parent=5 // pred_fallthru
        _
      %p222 = scmp.le.s32.totalorder 1, %s15
      %p223 = scmp.lt.s32.totalorder %s15, 3
      %p224 = pnand %p222, %p223
      %p225 = pneg %p224
      // Predicated region
      $region37: #{tpu_custom_call.1} parent=5 // pred_check
        _
      $region38: #{tpu_custom_call.1} parent=5 // pred_check_branch
        %227 = sbr.rel (%p224) target = $region40
      $region39: #{tpu_custom_call.1} parent=5 // pred_region
        %s228 = ssub.s32 %s15, 1
        // Predicated region
        $region41: #{tpu_custom_call.1} parent=39 // pred_check
          %p229 = pneg %p76
        $region42: #{tpu_custom_call.1} parent=39 // pred_check_branch
          %231 = sbr.rel (%p229) target = $region44
        $region43: #{tpu_custom_call.1} parent=39 // pred_region
          %232 = dma.done [#allocation3], 12288
        $region44: #{tpu_custom_call.1} parent=39 // pred_fallthru
          _
        %s233 = smul.u32 16, %s25
        %p234 = scmp.lt.s32.totalorder %s24, 1
        %s235 = scalar_select %p234, %s24, 1
        %p236 = scmp.lt.s32.totalorder %s233, 15
        %s237 = scalar_select %p236, %s233, 15
        %s238 = smul.addr %s237, 3
        %s239 = smul.addr %s235, 48
        %s240 = sadd.s32 %s238, %s239
        %s241 = smul.addr %s240, 4
        %s242 = scalar_lea.vmem %s0, %s241
        %p243 = pneg %p55
        %p244 = pneg %p52
        %p245 = pneg %p76
        %p246 = pneg %p73
        %p247 = pneg %p97
        %p248 = pneg %p94
        %p249 = pneg %p118
        %p250 = pneg %p115
        %p251 = pneg %p139
        %p252 = pneg %p136
        %p253 = pneg %p167
        %p254 = pneg %p164
        %s255 = sand.u32 %s154, 1
        %s256 = scalar_lea.sflag [#allocation4], %s255
        %s257 = sand.u32 %s154, 1
        %s258 = smul.addr %s257, 256
        %s259 = scalar_lea.vmem [#allocation5], %s258
        %s260 = smul.u32 16, %s25
        %p261 = scmp.lt.s32.totalorder %s24, 1
        %s262 = scalar_select %p261, %s24, 1
        %p263 = scmp.lt.s32.totalorder %s260, 15
        %s264 = scalar_select %p263, %s260, 15
        %s265 = smul.addr %s264, 3
        %s266 = smul.addr %s262, 48
        %s267 = sadd.s32 %s265, %s266
        %s268 = smul.addr %s267, 4
        %s269 = scalar_lea.vmem %s0, %s268
        %s270 = smul.u32 16, %s25
        %s271 = smul.u32 32, %s25
        %v273 = vld [vmem:[%s269] sm:$0xf]
        %v274 = vld [vmem:[%s269 + $0x4] sm:$0xf]
        %v275 = vld [vmem:[%s269 + $0x8] sm:$0x1]
        %v276 = vld [vmem:[%s269 + $0xc] sm:$0xf]
        %v277 = vld [vmem:[%s269 + $0x10] sm:$0xf]
        %v278 = vld [vmem:[%s269 + $0x14] sm:$0x1]
        %v279 = vld [vmem:[%s269 + $0x18] sm:$0xf]
        %v280 = vld [vmem:[%s269 + $0x1c] sm:$0xf]
        %v281 = vld [vmem:[%s269 + $0x20] sm:$0x1]
        %v282 = vld [vmem:[%s269 + $0x24] sm:$0xf]
        %v283 = vld [vmem:[%s269 + $0x28] sm:$0xf]
        %v284 = vld [vmem:[%s269 + $0x2c] sm:$0x1]
        %v285 = vld [vmem:[%s269 + $0x30] sm:$0xf]
        %v286 = vld [vmem:[%s269 + $0x34] sm:$0xf]
        %v287 = vld [vmem:[%s269 + $0x38] sm:$0x1]
        %v288 = vld [vmem:[%s269 + $0x3c] sm:$0xf]
        %v289 = vld [vmem:[%s269 + $0x40] sm:$0xf]
        %v290 = vld [vmem:[%s269 + $0x44] sm:$0x1]
        %v291 = vld [vmem:[%s269 + $0x48] sm:$0xf]
        %v292 = vld [vmem:[%s269 + $0x4c] sm:$0xf]
        %v293 = vld [vmem:[%s269 + $0x50] sm:$0x1]
        %v294 = vld [vmem:[%s269 + $0x54] sm:$0xf]
        %v295 = vld [vmem:[%s269 + $0x58] sm:$0xf]
        %v296 = vld [vmem:[%s269 + $0x5c] sm:$0x1]
        %v297 = vld [vmem:[%s269 + $0x60] sm:$0xf]
        %v298 = vld [vmem:[%s269 + $0x64] sm:$0xf]
        %v299 = vld [vmem:[%s269 + $0x68] sm:$0x1]
        %v300 = vld [vmem:[%s269 + $0x6c] sm:$0xf]
        %v301 = vld [vmem:[%s269 + $0x70] sm:$0xf]
        %v302 = vld [vmem:[%s269 + $0x74] sm:$0x1]
        %v303 = vld [vmem:[%s269 + $0x78] sm:$0xf]
        %v304 = vld [vmem:[%s269 + $0x7c] sm:$0xf]
        %v305 = vld [vmem:[%s269 + $0x80] sm:$0x1]
        %v306 = vld [vmem:[%s269 + $0x84] sm:$0xf]
        %v307 = vld [vmem:[%s269 + $0x88] sm:$0xf]
        %v308 = vld [vmem:[%s269 + $0x8c] sm:$0x1]
        %v309 = vld [vmem:[%s269 + $0x90] sm:$0xf]
        %v310 = vld [vmem:[%s269 + $0x94] sm:$0xf]
        %v311 = vld [vmem:[%s269 + $0x98] sm:$0x1]
        %v312 = vld [vmem:[%s269 + $0x9c] sm:$0xf]
        %v313 = vld [vmem:[%s269 + $0xa0] sm:$0xf]
        %v314 = vld [vmem:[%s269 + $0xa4] sm:$0x1]
        %v315 = vld [vmem:[%s269 + $0xa8] sm:$0xf]
        %v316 = vld [vmem:[%s269 + $0xac] sm:$0xf]
        %v317 = vld [vmem:[%s269 + $0xb0] sm:$0x1]
        %v318 = vld [vmem:[%s269 + $0xb4] sm:$0xf]
        %v319 = vld [vmem:[%s269 + $0xb8] sm:$0xf]
        %v320 = vld [vmem:[%s269 + $0xbc] sm:$0x1]
        %v321 = vld [vmem:[#allocation2] sm:$0xff]
        %v322 = vld [vmem:[#allocation2 + $0x8] sm:$0xff]
        %v323 = vld [vmem:[#allocation2 + $0x10] sm:$0xff]
        %v324 = vld [vmem:[#allocation2 + $0x18] sm:$0xff]
        %v325 = vld [vmem:[#allocation2 + $0x20] sm:$0xff]
        %v326 = vld [vmem:[#allocation2 + $0x28] sm:$0xff]
        %v327 = vld [vmem:[#allocation2 + $0x30] sm:$0xff]
        %v328 = vld [vmem:[#allocation2 + $0x38] sm:$0xff]
        %v329 = vld [vmem:[#allocation2 + $0x40] sm:$0xff]
        %v330 = vld [vmem:[#allocation2 + $0x48] sm:$0xff]
        %v331 = vld [vmem:[#allocation2 + $0x50] sm:$0xff]
        %v332 = vld [vmem:[#allocation2 + $0x58] sm:$0xff]
        %v333 = vld [vmem:[#allocation2 + $0x60] sm:$0xff]
        %v334 = vld [vmem:[#allocation2 + $0x68] sm:$0xff]
        %v335 = vld [vmem:[#allocation2 + $0x70] sm:$0xff]
        %v336 = vld [vmem:[#allocation2 + $0x78] sm:$0xff]
        %v337 = vld [vmem:[#allocation2 + $0x80] sm:$0xff]
        %v338 = vld [vmem:[#allocation2 + $0x88] sm:$0xff]
        %v339 = vld [vmem:[#allocation2 + $0x90] sm:$0xff]
        %v340 = vld [vmem:[#allocation2 + $0x98] sm:$0xff]
        %v341 = vld [vmem:[#allocation2 + $0xa0] sm:$0xff]
        %v342 = vld [vmem:[#allocation2 + $0xa8] sm:$0xff]
        %v343 = vld [vmem:[#allocation2 + $0xb0] sm:$0xff]
        %v344 = vld [vmem:[#allocation2 + $0xb8] sm:$0xff]
        %v345 = vld [vmem:[#allocation2 + $0xc0] sm:$0xff]
        %v346 = vld [vmem:[#allocation2 + $0xc8] sm:$0xff]
        %v347 = vld [vmem:[#allocation2 + $0xd0] sm:$0xff]
        %v348 = vld [vmem:[#allocation2 + $0xd8] sm:$0xff]
        %v349 = vld [vmem:[#allocation2 + $0xe0] sm:$0xff]
        %v350 = vld [vmem:[#allocation2 + $0xe8] sm:$0xff]
        %v351 = vld [vmem:[#allocation2 + $0xf0] sm:$0xff]
        %v352 = vld [vmem:[#allocation2 + $0xf8] sm:$0xff]
        %vm353 = vsmask.f32 3328
        %vm354 = vsmask.f32 7440
        %vm355 = vmor %vm353, %vm354
        %v357 = vshrl.u32 %v273, 16
        %v359 = vrot.slane %v357, 4
        %v360 = vshll.u32 %v273, 16
        %v362 = vrot.slane %v360, 5
        %v363 = vor.u32 %v359, %v362
        %v364 = vrot.slane %v363, 4
        %v366 = vshll.u32 %v274, 16
        %v368 = vrot.slane %v366, 5
        %v369 = vsel %vm355, %v364, %v368
        %v370 = vshrl.u32 %v274, 16
        %v372 = vrot.slane %v370, 4
        %v373 = vor.u32 %v372, %v368
        %v374 = vrot.slane %v373, 4
        %v376 = vshll.u32 %v275, 16
        %v378 = vrot.slane %v376, 5
        %v379 = vsel %vm355, %v374, %v378
        %v381 = vshrl.u32 %v276, 16
        %v383 = vrot.slane %v381, 4
        %v384 = vshll.u32 %v276, 16
        %v386 = vrot.slane %v384, 5
        %v387 = vor.u32 %v383, %v386
        %v388 = vrot.slane %v387, 4
        %v390 = vshll.u32 %v277, 16
        %v392 = vrot.slane %v390, 5
        %v393 = vsel %vm355, %v388, %v392
        %v394 = vshrl.u32 %v277, 16
        %v396 = vrot.slane %v394, 4
        %v397 = vor.u32 %v396, %v392
        %v398 = vrot.slane %v397, 4
        %v400 = vshll.u32 %v278, 16
        %v402 = vrot.slane %v400, 5
        %v403 = vsel %vm355, %v398, %v402
        %v405 = vshrl.u32 %v279, 16
        %v407 = vrot.slane %v405, 4
        %v408 = vshll.u32 %v279, 16
        %v410 = vrot.slane %v408, 5
        %v411 = vor.u32 %v407, %v410
        %v412 = vrot.slane %v411, 4
        %v414 = vshll.u32 %v280, 16
        %v416 = vrot.slane %v414, 5
        %v417 = vsel %vm355, %v412, %v416
        %v418 = vshrl.u32 %v280, 16
        %v420 = vrot.slane %v418, 4
        %v421 = vor.u32 %v420, %v416
        %v422 = vrot.slane %v421, 4
        %v424 = vshll.u32 %v281, 16
        %v426 = vrot.slane %v424, 5
        %v427 = vsel %vm355, %v422, %v426
        %v429 = vshrl.u32 %v282, 16
        %v431 = vrot.slane %v429, 4
        %v432 = vshll.u32 %v282, 16
        %v434 = vrot.slane %v432, 5
        %v435 = vor.u32 %v431, %v434
        %v436 = vrot.slane %v435, 4
        %v438 = vshll.u32 %v283, 16
        %v440 = vrot.slane %v438, 5
        %v441 = vsel %vm355, %v436, %v440
        %v442 = vshrl.u32 %v283, 16
        %v444 = vrot.slane %v442, 4
        %v445 = vor.u32 %v444, %v440
        %v446 = vrot.slane %v445, 4
        %v448 = vshll.u32 %v284, 16
        %v450 = vrot.slane %v448, 5
        %v451 = vsel %vm355, %v446, %v450
        %v453 = vshrl.u32 %v285, 16
        %v455 = vrot.slane %v453, 4
        %v456 = vshll.u32 %v285, 16
        %v458 = vrot.slane %v456, 5
        %v459 = vor.u32 %v455, %v458
        %v460 = vrot.slane %v459, 4
        %v462 = vshll.u32 %v286, 16
        %v464 = vrot.slane %v462, 5
        %v465 = vsel %vm355, %v460, %v464
        %v466 = vshrl.u32 %v286, 16
        %v468 = vrot.slane %v466, 4
        %v469 = vor.u32 %v468, %v464
        %v470 = vrot.slane %v469, 4
        %v472 = vshll.u32 %v287, 16
        %v474 = vrot.slane %v472, 5
        %v475 = vsel %vm355, %v470, %v474
        %v477 = vshrl.u32 %v288, 16
        %v479 = vrot.slane %v477, 4
        %v480 = vshll.u32 %v288, 16
        %v482 = vrot.slane %v480, 5
        %v483 = vor.u32 %v479, %v482
        %v484 = vrot.slane %v483, 4
        %v486 = vshll.u32 %v289, 16
        %v488 = vrot.slane %v486, 5
        %v489 = vsel %vm355, %v484, %v488
        %v490 = vshrl.u32 %v289, 16
        %v492 = vrot.slane %v490, 4
        %v493 = vor.u32 %v492, %v488
        %v494 = vrot.slane %v493, 4
        %v496 = vshll.u32 %v290, 16
        %v498 = vrot.slane %v496, 5
        %v499 = vsel %vm355, %v494, %v498
        %v501 = vshrl.u32 %v291, 16
        %v503 = vrot.slane %v501, 4
        %v504 = vshll.u32 %v291, 16
        %v506 = vrot.slane %v504, 5
        %v507 = vor.u32 %v503, %v506
        %v508 = vrot.slane %v507, 4
        %v510 = vshll.u32 %v292, 16
        %v512 = vrot.slane %v510, 5
        %v513 = vsel %vm355, %v508, %v512
        %v514 = vshrl.u32 %v292, 16
        %v516 = vrot.slane %v514, 4
        %v517 = vor.u32 %v516, %v512
        %v518 = vrot.slane %v517, 4
        %v520 = vshll.u32 %v293, 16
        %v522 = vrot.slane %v520, 5
        %v523 = vsel %vm355, %v518, %v522
        %v525 = vshrl.u32 %v294, 16
        %v527 = vrot.slane %v525, 4
        %v528 = vshll.u32 %v294, 16
        %v530 = vrot.slane %v528, 5
        %v531 = vor.u32 %v527, %v530
        %v532 = vrot.slane %v531, 4
        %v534 = vshll.u32 %v295, 16
        %v536 = vrot.slane %v534, 5
        %v537 = vsel %vm355, %v532, %v536
        %v538 = vshrl.u32 %v295, 16
        %v540 = vrot.slane %v538, 4
        %v541 = vor.u32 %v540, %v536
        %v542 = vrot.slane %v541, 4
        %v544 = vshll.u32 %v296, 16
        %v546 = vrot.slane %v544, 5
        %v547 = vsel %vm355, %v542, %v546
        %v549 = vshrl.u32 %v297, 16
        %v551 = vrot.slane %v549, 4
        %v552 = vshll.u32 %v297, 16
        %v554 = vrot.slane %v552, 5
        %v555 = vor.u32 %v551, %v554
        %v556 = vrot.slane %v555, 4
        %v558 = vshll.u32 %v298, 16
        %v560 = vrot.slane %v558, 5
        %v561 = vsel %vm355, %v556, %v560
        %v562 = vshrl.u32 %v298, 16
        %v564 = vrot.slane %v562, 4
        %v565 = vor.u32 %v564, %v560
        %v566 = vrot.slane %v565, 4
        %v568 = vshll.u32 %v299, 16
        %v570 = vrot.slane %v568, 5
        %v571 = vsel %vm355, %v566, %v570
        %v573 = vshrl.u32 %v300, 16
        %v575 = vrot.slane %v573, 4
        %v576 = vshll.u32 %v300, 16
        %v578 = vrot.slane %v576, 5
        %v579 = vor.u32 %v575, %v578
        %v580 = vrot.slane %v579, 4
        %v582 = vshll.u32 %v301, 16
        %v584 = vrot.slane %v582, 5
        %v585 = vsel %vm355, %v580, %v584
        %v586 = vshrl.u32 %v301, 16
        %v588 = vrot.slane %v586, 4
        %v589 = vor.u32 %v588, %v584
        %v590 = vrot.slane %v589, 4
        %v592 = vshll.u32 %v302, 16
        %v594 = vrot.slane %v592, 5
        %v595 = vsel %vm355, %v590, %v594
        %v597 = vshrl.u32 %v303, 16
        %v599 = vrot.slane %v597, 4
        %v600 = vshll.u32 %v303, 16
        %v602 = vrot.slane %v600, 5
        %v603 = vor.u32 %v599, %v602
        %v604 = vrot.slane %v603, 4
        %v606 = vshll.u32 %v304, 16
        %v608 = vrot.slane %v606, 5
        %v609 = vsel %vm355, %v604, %v608
        %v610 = vshrl.u32 %v304, 16
        %v612 = vrot.slane %v610, 4
        %v613 = vor.u32 %v612, %v608
        %v614 = vrot.slane %v613, 4
        %v616 = vshll.u32 %v305, 16
        %v618 = vrot.slane %v616, 5
        %v619 = vsel %vm355, %v614, %v618
        %v621 = vshrl.u32 %v306, 16
        %v623 = vrot.slane %v621, 4
        %v624 = vshll.u32 %v306, 16
        %v626 = vrot.slane %v624, 5
        %v627 = vor.u32 %v623, %v626
        %v628 = vrot.slane %v627, 4
        %v630 = vshll.u32 %v307, 16
        %v632 = vrot.slane %v630, 5
        %v633 = vsel %vm355, %v628, %v632
        %v634 = vshrl.u32 %v307, 16
        %v636 = vrot.slane %v634, 4
        %v637 = vor.u32 %v636, %v632
        %v638 = vrot.slane %v637, 4
        %v640 = vshll.u32 %v308, 16
        %v642 = vrot.slane %v640, 5
        %v643 = vsel %vm355, %v638, %v642
        %v645 = vshrl.u32 %v309, 16
        %v647 = vrot.slane %v645, 4
        %v648 = vshll.u32 %v309, 16
        %v650 = vrot.slane %v648, 5
        %v651 = vor.u32 %v647, %v650
        %v652 = vrot.slane %v651, 4
        %v654 = vshll.u32 %v310, 16
        %v656 = vrot.slane %v654, 5
        %v657 = vsel %vm355, %v652, %v656
        %v658 = vshrl.u32 %v310, 16
        %v660 = vrot.slane %v658, 4
        %v661 = vor.u32 %v660, %v656
        %v662 = vrot.slane %v661, 4
        %v664 = vshll.u32 %v311, 16
        %v666 = vrot.slane %v664, 5
        %v667 = vsel %vm355, %v662, %v666
        %v669 = vshrl.u32 %v312, 16
        %v671 = vrot.slane %v669, 4
        %v672 = vshll.u32 %v312, 16
        %v674 = vrot.slane %v672, 5
        %v675 = vor.u32 %v671, %v674
        %v676 = vrot.slane %v675, 4
        %v678 = vshll.u32 %v313, 16
        %v680 = vrot.slane %v678, 5
        %v681 = vsel %vm355, %v676, %v680
        %v682 = vshrl.u32 %v313, 16
        %v684 = vrot.slane %v682, 4
        %v685 = vor.u32 %v684, %v680
        %v686 = vrot.slane %v685, 4
        %v688 = vshll.u32 %v314, 16
        %v690 = vrot.slane %v688, 5
        %v691 = vsel %vm355, %v686, %v690
        %v693 = vshrl.u32 %v315, 16
        %v695 = vrot.slane %v693, 4
        %v696 = vshll.u32 %v315, 16
        %v698 = vrot.slane %v696, 5
        %v699 = vor.u32 %v695, %v698
        %v700 = vrot.slane %v699, 4
        %v702 = vshll.u32 %v316, 16
        %v704 = vrot.slane %v702, 5
        %v705 = vsel %vm355, %v700, %v704
        %v706 = vshrl.u32 %v316, 16
        %v708 = vrot.slane %v706, 4
        %v709 = vor.u32 %v708, %v704
        %v710 = vrot.slane %v709, 4
        %v712 = vshll.u32 %v317, 16
        %v714 = vrot.slane %v712, 5
        %v715 = vsel %vm355, %v710, %v714
        %v717 = vshrl.u32 %v318, 16
        %v719 = vrot.slane %v717, 4
        %v720 = vshll.u32 %v318, 16
        %v722 = vrot.slane %v720, 5
        %v723 = vor.u32 %v719, %v722
        %v724 = vrot.slane %v723, 4
        %v726 = vshll.u32 %v319, 16
        %v728 = vrot.slane %v726, 5
        %v729 = vsel %vm355, %v724, %v728
        %v730 = vshrl.u32 %v319, 16
        %v732 = vrot.slane %v730, 4
        %v733 = vor.u32 %v732, %v728
        %v734 = vrot.slane %v733, 4
        %v736 = vshll.u32 %v320, 16
        %v738 = vrot.slane %v736, 5
        %v739 = vsel %vm355, %v734, %v738
        %s740 = scalar_lea.vmem [#allocation2], 256
        %v741 = vld [vmem:[%s740] sm:$0xff]
        %v742 = vld [vmem:[%s740 + $0x8] sm:$0xff]
        %v743 = vld [vmem:[%s740 + $0x10] sm:$0xff]
        %v744 = vld [vmem:[%s740 + $0x18] sm:$0xff]
        %v745 = vld [vmem:[%s740 + $0x20] sm:$0xff]
        %v746 = vld [vmem:[%s740 + $0x28] sm:$0xff]
        %v747 = vld [vmem:[%s740 + $0x30] sm:$0xff]
        %v748 = vld [vmem:[%s740 + $0x38] sm:$0xff]
        %v749 = vld [vmem:[%s740 + $0x40] sm:$0xff]
        %v750 = vld [vmem:[%s740 + $0x48] sm:$0xff]
        %v751 = vld [vmem:[%s740 + $0x50] sm:$0xff]
        %v752 = vld [vmem:[%s740 + $0x58] sm:$0xff]
        %v753 = vld [vmem:[%s740 + $0x60] sm:$0xff]
        %v754 = vld [vmem:[%s740 + $0x68] sm:$0xff]
        %v755 = vld [vmem:[%s740 + $0x70] sm:$0xff]
        %v756 = vld [vmem:[%s740 + $0x78] sm:$0xff]
        %v757 = vld [vmem:[%s740 + $0x80] sm:$0xff]
        %v758 = vld [vmem:[%s740 + $0x88] sm:$0xff]
        %v759 = vld [vmem:[%s740 + $0x90] sm:$0xff]
        %v760 = vld [vmem:[%s740 + $0x98] sm:$0xff]
        %v761 = vld [vmem:[%s740 + $0xa0] sm:$0xff]
        %v762 = vld [vmem:[%s740 + $0xa8] sm:$0xff]
        %v763 = vld [vmem:[%s740 + $0xb0] sm:$0xff]
        %v764 = vld [vmem:[%s740 + $0xb8] sm:$0xff]
        %v765 = vld [vmem:[%s740 + $0xc0] sm:$0xff]
        %v766 = vld [vmem:[%s740 + $0xc8] sm:$0xff]
        %v767 = vld [vmem:[%s740 + $0xd0] sm:$0xff]
        %v768 = vld [vmem:[%s740 + $0xd8] sm:$0xff]
        %v769 = vld [vmem:[%s740 + $0xe0] sm:$0xff]
        %v770 = vld [vmem:[%s740 + $0xe8] sm:$0xff]
        %v771 = vld [vmem:[%s740 + $0xf0] sm:$0xff]
        %v772 = vld [vmem:[%s740 + $0xf8] sm:$0xff]
        %v773 = vunpack.c.l.b16 %v369
        %v774 = vunpack.c.l.b16 %v379
        %v775 = vunpack.c.l.b16 %v393
        %v776 = vunpack.c.l.b16 %v403
        %v777 = vunpack.c.l.b16 %v417
        %v778 = vunpack.c.l.b16 %v427
        %v779 = vunpack.c.l.b16 %v441
        %v780 = vunpack.c.l.b16 %v451
        %v781 = vunpack.c.l.b16 %v465
        %v782 = vunpack.c.l.b16 %v475
        %v783 = vunpack.c.l.b16 %v489
        %v784 = vunpack.c.l.b16 %v499
        %v785 = vunpack.c.l.b16 %v513
        %v786 = vunpack.c.l.b16 %v523
        %v787 = vunpack.c.l.b16 %v537
        %v788 = vunpack.c.l.b16 %v547
        %v789 = vunpack.c.l.b16 %v561
        %v790 = vunpack.c.l.b16 %v571
        %v791 = vunpack.c.l.b16 %v585
        %v792 = vunpack.c.l.b16 %v595
        %v793 = vunpack.c.l.b16 %v609
        %v794 = vunpack.c.l.b16 %v619
        %v795 = vunpack.c.l.b16 %v633
        %v796 = vunpack.c.l.b16 %v643
        %v797 = vunpack.c.l.b16 %v657
        %v798 = vunpack.c.l.b16 %v667
        %v799 = vunpack.c.l.b16 %v681
        %v800 = vunpack.c.l.b16 %v691
        %v801 = vunpack.c.l.b16 %v705
        %v802 = vunpack.c.l.b16 %v715
        %v803 = vunpack.c.l.b16 %v729
        %v804 = vunpack.c.l.b16 %v739
        %v805 = vpack.c.b16 %v774, %v773
        %v806 = vpack.c.b16 %v776, %v775
        %v807 = vpack.c.b16 %v778, %v777
        %v808 = vpack.c.b16 %v780, %v779
        %v809 = vpack.c.b16 %v782, %v781
        %v810 = vpack.c.b16 %v784, %v783
        %v811 = vpack.c.b16 %v786, %v785
        %v812 = vpack.c.b16 %v788, %v787
        %v813 = vpack.c.b16 %v790, %v789
        %v814 = vpack.c.b16 %v792, %v791
        %v815 = vpack.c.b16 %v794, %v793
        %v816 = vpack.c.b16 %v796, %v795
        %v817 = vpack.c.b16 %v798, %v797
        %v818 = vpack.c.b16 %v800, %v799
        %v819 = vpack.c.b16 %v802, %v801
        %v820 = vpack.c.b16 %v804, %v803
        %v869 = vunpack.c.l.b16 %v741
        %v870 = vunpack.c.h.b16 %v741
        %v871 = vunpack.c.l.b16 %v742
        %v872 = vunpack.c.h.b16 %v742
        %v873 = vunpack.c.l.b16 %v743
        %v874 = vunpack.c.h.b16 %v743
        %v875 = vunpack.c.l.b16 %v744
        %v876 = vunpack.c.h.b16 %v744
        %v877 = vunpack.c.l.b16 %v745
        %v878 = vunpack.c.h.b16 %v745
        %v879 = vunpack.c.l.b16 %v746
        %v880 = vunpack.c.h.b16 %v746
        %v881 = vunpack.c.l.b16 %v747
        %v882 = vunpack.c.h.b16 %v747
        %v883 = vunpack.c.l.b16 %v748
        %v884 = vunpack.c.h.b16 %v748
        %v885 = vunpack.c.l.b16 %v749
        %v886 = vunpack.c.h.b16 %v749
        %v887 = vunpack.c.l.b16 %v750
        %v888 = vunpack.c.h.b16 %v750
        %v889 = vunpack.c.l.b16 %v751
        %v890 = vunpack.c.h.b16 %v751
        %v891 = vunpack.c.l.b16 %v752
        %v892 = vunpack.c.h.b16 %v752
        %v893 = vunpack.c.l.b16 %v753
        %v894 = vunpack.c.h.b16 %v753
        %v895 = vunpack.c.l.b16 %v754
        %v896 = vunpack.c.h.b16 %v754
        %v897 = vunpack.c.l.b16 %v755
        %v898 = vunpack.c.h.b16 %v755
        %v899 = vunpack.c.l.b16 %v756
        %v900 = vunpack.c.h.b16 %v756
        %v901 = vunpack.c.l.b16 %v757
        %v902 = vunpack.c.h.b16 %v757
        %v903 = vunpack.c.l.b16 %v758
        %v904 = vunpack.c.h.b16 %v758
        %v905 = vunpack.c.l.b16 %v759
        %v906 = vunpack.c.h.b16 %v759
        %v907 = vunpack.c.l.b16 %v760
        %v908 = vunpack.c.h.b16 %v760
        %v909 = vunpack.c.l.b16 %v761
        %v910 = vunpack.c.h.b16 %v761
        %v911 = vunpack.c.l.b16 %v762
        %v912 = vunpack.c.h.b16 %v762
        %v913 = vunpack.c.l.b16 %v763
        %v914 = vunpack.c.h.b16 %v763
        %v915 = vunpack.c.l.b16 %v764
        %v916 = vunpack.c.h.b16 %v764
        %v917 = vunpack.c.l.b16 %v765
        %v918 = vunpack.c.h.b16 %v765
        %v919 = vunpack.c.l.b16 %v766
        %v920 = vunpack.c.h.b16 %v766
        %v921 = vunpack.c.l.b16 %v767
        %v922 = vunpack.c.h.b16 %v767
        %v923 = vunpack.c.l.b16 %v768
        %v924 = vunpack.c.h.b16 %v768
        %v925 = vunpack.c.l.b16 %v769
        %v926 = vunpack.c.h.b16 %v769
        %v927 = vunpack.c.l.b16 %v770
        %v928 = vunpack.c.h.b16 %v770
        %v929 = vunpack.c.l.b16 %v771
        %v930 = vunpack.c.h.b16 %v771
        %v931 = vunpack.c.l.b16 %v772
        %v932 = vunpack.c.h.b16 %v772
        %v933 = vpack.c.b16 %v873, %v869
        %v934 = vpack.c.b16 %v874, %v870
        %v935 = vpack.c.b16 %v875, %v871
        %v936 = vpack.c.b16 %v876, %v872
        %v937 = vpack.c.b16 %v881, %v877
        %v938 = vpack.c.b16 %v882, %v878
        %v939 = vpack.c.b16 %v883, %v879
        %v940 = vpack.c.b16 %v884, %v880
        %v941 = vpack.c.b16 %v889, %v885
        %v942 = vpack.c.b16 %v890, %v886
        %v943 = vpack.c.b16 %v891, %v887
        %v944 = vpack.c.b16 %v892, %v888
        %v945 = vpack.c.b16 %v897, %v893
        %v946 = vpack.c.b16 %v898, %v894
        %v947 = vpack.c.b16 %v899, %v895
        %v948 = vpack.c.b16 %v900, %v896
        %v949 = vpack.c.b16 %v905, %v901
        %v950 = vpack.c.b16 %v906, %v902
        %v951 = vpack.c.b16 %v907, %v903
        %v952 = vpack.c.b16 %v908, %v904
        %v953 = vpack.c.b16 %v913, %v909
        %v954 = vpack.c.b16 %v914, %v910
        %v955 = vpack.c.b16 %v915, %v911
        %v956 = vpack.c.b16 %v916, %v912
        %v957 = vpack.c.b16 %v921, %v917
        %v958 = vpack.c.b16 %v922, %v918
        %v959 = vpack.c.b16 %v923, %v919
        %v960 = vpack.c.b16 %v924, %v920
        %v961 = vpack.c.b16 %v929, %v925
        %v962 = vpack.c.b16 %v930, %v926
        %v963 = vpack.c.b16 %v931, %v927
        %v964 = vpack.c.b16 %v932, %v928
        %997 = vmatprep.subr.bf16.mxu0 %v934
        %998 = vmatpush1.bf16.msra.mxu0 %v933
        %999 = vmatprep.subr.bf16.mxu0 %v938
        %1000 = vmatpush1.bf16.msra.mxu0 %v937
        %1001 = vmatprep.subr.bf16.mxu0 %v942
        %1002 = vmatpush1.bf16.msra.mxu0 %v941
        %1003 = vmatprep.subr.bf16.mxu0 %v946
        %1004 = vmatpush1.bf16.msra.mxu0 %v945
        %1005 = vmatprep.subr.bf16.mxu0 %v950
        %1006 = vmatpush1.bf16.msra.mxu0 %v949
        %1007 = vmatprep.subr.bf16.mxu0 %v954
        %1008 = vmatpush1.bf16.msra.mxu0 %v953
        %1009 = vmatprep.subr.bf16.mxu0 %v958
        %1010 = vmatpush1.bf16.msra.mxu0 %v957
        %1011 = vmatprep.subr.bf16.mxu0 %v962
        %1012 = vmatpush1.bf16.msra.mxu0 %v961
        %1013 = vmatprep.subr.bf16.mxu0 0
        %1014 = vmatpush1.bf16.msra.mxu0 0
        %1015 = vmatprep.subr.bf16.mxu0 0
        %1016 = vmatpush1.bf16.msra.mxu0 0
        %1017 = vmatprep.subr.bf16.mxu0 0
        %1018 = vmatpush1.bf16.msra.mxu0 0
        %1019 = vmatprep.subr.bf16.mxu0 0
        %1020 = vmatpush1.bf16.msra.mxu0 0
        %1021 = vmatprep.subr.bf16.mxu0 0
        %1022 = vmatpush1.bf16.msra.mxu0 0
        %1023 = vmatprep.subr.bf16.mxu0 0
        %1024 = vmatpush1.bf16.msra.mxu0 0
        %1025 = vmatprep.subr.bf16.mxu0 0
        %1026 = vmatpush1.bf16.msra.mxu0 0
        %1027 = vmatprep.subr.bf16.mxu0 0
        %1028 = vmatpush1.bf16.msra.mxu0 0
        %1029 = vmatprep.mubr.bf16.mxu0 0
        %1030 = vmatmul.mubr.bf16.gmra.mrb[0].mxu0 %v805
        %v1031 = vpop.f32.mrb[0].mxu0
        %v1032 = vadd.f32 0.0, %v1031
        %v1033 = vpop.f32.mrb[0].mxu0
        %v1034 = vadd.f32 0.0, %v1033
        %v1035 = vpop.f32.mrb[0].mxu0
        %v1036 = vadd.f32 0.0, %v1035
        %v1037 = vpop.f32.mrb[0].mxu0
        %v1038 = vadd.f32 0.0, %v1037
        %1039 = vmatprep.mubr.bf16.mxu0 0
        %1040 = vmatmul.mubr.bf16.gmra.mrb[0].mxu0 %v806
        %v1041 = vpop.f32.mrb[0].mxu0
        %v1042 = vadd.f32 0.0, %v1041
        %v1043 = vpop.f32.mrb[0].mxu0
        %v1044 = vadd.f32 0.0, %v1043
        %v1045 = vpop.f32.mrb[0].mxu0
        %v1046 = vadd.f32 0.0, %v1045
        %v1047 = vpop.f32.mrb[0].mxu0
        %v1048 = vadd.f32 0.0, %v1047
        %1049 = vmatprep.mubr.bf16.mxu0 0
        %1050 = vmatmul.mubr.bf16.gmra.mrb[0].mxu0 %v807
        %v1051 = vpop.f32.mrb[0].mxu0
        %v1052 = vadd.f32 0.0, %v1051
        %v1053 = vpop.f32.mrb[0].mxu0
        %v1054 = vadd.f32 0.0, %v1053
        %v1055 = vpop.f32.mrb[0].mxu0
        %v1056 = vadd.f32 0.0, %v1055
        %v1057 = vpop.f32.mrb[0].mxu0
        %v1058 = vadd.f32 0.0, %v1057
        %1059 = vmatprep.mubr.bf16.mxu0 0
        %1060 = vmatmul.mubr.bf16.gmra.mrb[0].mxu0 %v808
        %v1061 = vpop.f32.mrb[0].mxu0
        %v1062 = vadd.f32 0.0, %v1061
        %v1063 = vpop.f32.mrb[0].mxu0
        %v1064 = vadd.f32 0.0, %v1063
        %v1065 = vpop.f32.mrb[0].mxu0
        %v1066 = vadd.f32 0.0, %v1065
        %v1067 = vpop.f32.mrb[0].mxu0
        %v1068 = vadd.f32 0.0, %v1067
        %1069 = vmatprep.mubr.bf16.mxu0 0
        %1070 = vmatmul.mubr.bf16.gmra.mrb[0].mxu0 %v809
        %v1071 = vpop.f32.mrb[0].mxu0
        %v1072 = vadd.f32 0.0, %v1071
        %v1073 = vpop.f32.mrb[0].mxu0
        %v1074 = vadd.f32 0.0, %v1073
        %v1075 = vpop.f32.mrb[0].mxu0
        %v1076 = vadd.f32 0.0, %v1075
        %v1077 = vpop.f32.mrb[0].mxu0
        %v1078 = vadd.f32 0.0, %v1077
        %1079 = vmatprep.mubr.bf16.mxu0 0
        %1080 = vmatmul.mubr.bf16.gmra.mrb[0].mxu0 %v810
        %v1081 = vpop.f32.mrb[0].mxu0
        %v1082 = vadd.f32 0.0, %v1081
        %v1083 = vpop.f32.mrb[0].mxu0
        %v1084 = vadd.f32 0.0, %v1083
        %v1085 = vpop.f32.mrb[0].mxu0
        %v1086 = vadd.f32 0.0, %v1085
        %v1087 = vpop.f32.mrb[0].mxu0
        %v1088 = vadd.f32 0.0, %v1087
        %1089 = vmatprep.mubr.bf16.mxu0 0
        %1090 = vmatmul.mubr.bf16.gmra.mrb[0].mxu0 %v811
        %v1091 = vpop.f32.mrb[0].mxu0
        %v1092 = vadd.f32 0.0, %v1091
        %v1093 = vpop.f32.mrb[0].mxu0
        %v1094 = vadd.f32 0.0, %v1093
        %v1095 = vpop.f32.mrb[0].mxu0
        %v1096 = vadd.f32 0.0, %v1095
        %v1097 = vpop.f32.mrb[0].mxu0
        %v1098 = vadd.f32 0.0, %v1097
        %1099 = vmatprep.mubr.bf16.mxu0 0
        %1100 = vmatmul.mubr.bf16.gmra.mrb[0].mxu0 %v812
        %v1101 = vpop.f32.mrb[0].mxu0
        %v1102 = vadd.f32 0.0, %v1101
        %v1103 = vpop.f32.mrb[0].mxu0
        %v1104 = vadd.f32 0.0, %v1103
        %v1105 = vpop.f32.mrb[0].mxu0
        %v1106 = vadd.f32 0.0, %v1105
        %v1107 = vpop.f32.mrb[0].mxu0
        %v1108 = vadd.f32 0.0, %v1107
        %1109 = vmatprep.mubr.bf16.mxu0 0
        %1110 = vmatmul.mubr.bf16.gmra.mrb[0].mxu0 %v813
        %v1111 = vpop.f32.mrb[0].mxu0
        %v1112 = vadd.f32 0.0, %v1111
        %v1113 = vpop.f32.mrb[0].mxu0
        %v1114 = vadd.f32 0.0, %v1113
        %v1115 = vpop.f32.mrb[0].mxu0
        %v1116 = vadd.f32 0.0, %v1115
        %v1117 = vpop.f32.mrb[0].mxu0
        %v1118 = vadd.f32 0.0, %v1117
        %1119 = vmatprep.mubr.bf16.mxu0 0
        %1120 = vmatmul.mubr.bf16.gmra.mrb[0].mxu0 %v814
        %v1121 = vpop.f32.mrb[0].mxu0
        %v1122 = vadd.f32 0.0, %v1121
        %v1123 = vpop.f32.mrb[0].mxu0
        %v1124 = vadd.f32 0.0, %v1123
        %v1125 = vpop.f32.mrb[0].mxu0
        %v1126 = vadd.f32 0.0, %v1125
        %v1127 = vpop.f32.mrb[0].mxu0
        %v1128 = vadd.f32 0.0, %v1127
        %1129 = vmatprep.mubr.bf16.mxu0 0
        %1130 = vmatmul.mubr.bf16.gmra.mrb[0].mxu0 %v815
        %v1131 = vpop.f32.mrb[0].mxu0
        %v1132 = vadd.f32 0.0, %v1131
        %v1133 = vpop.f32.mrb[0].mxu0
        %v1134 = vadd.f32 0.0, %v1133
        %v1135 = vpop.f32.mrb[0].mxu0
        %v1136 = vadd.f32 0.0, %v1135
        %v1137 = vpop.f32.mrb[0].mxu0
        %v1138 = vadd.f32 0.0, %v1137
        %1139 = vmatprep.mubr.bf16.mxu0 0
        %1140 = vmatmul.mubr.bf16.gmra.mrb[0].mxu0 %v816
        %v1141 = vpop.f32.mrb[0].mxu0
        %v1142 = vadd.f32 0.0, %v1141
        %v1143 = vpop.f32.mrb[0].mxu0
        %v1144 = vadd.f32 0.0, %v1143
        %v1145 = vpop.f32.mrb[0].mxu0
        %v1146 = vadd.f32 0.0, %v1145
        %v1147 = vpop.f32.mrb[0].mxu0
        %v1148 = vadd.f32 0.0, %v1147
        %1149 = vmatprep.mubr.bf16.mxu0 0
        %1150 = vmatmul.mubr.bf16.gmra.mrb[0].mxu0 %v817
        %v1151 = vpop.f32.mrb[0].mxu0
        %v1152 = vadd.f32 0.0, %v1151
        %v1153 = vpop.f32.mrb[0].mxu0
        %v1154 = vadd.f32 0.0, %v1153
        %v1155 = vpop.f32.mrb[0].mxu0
        %v1156 = vadd.f32 0.0, %v1155
        %v1157 = vpop.f32.mrb[0].mxu0
        %v1158 = vadd.f32 0.0, %v1157
        %1159 = vmatprep.mubr.bf16.mxu0 0
        %1160 = vmatmul.mubr.bf16.gmra.mrb[0].mxu0 %v818
        %v1161 = vpop.f32.mrb[0].mxu0
        %v1162 = vadd.f32 0.0, %v1161
        %v1163 = vpop.f32.mrb[0].mxu0
        %v1164 = vadd.f32 0.0, %v1163
        %v1165 = vpop.f32.mrb[0].mxu0
        %v1166 = vadd.f32 0.0, %v1165
        %v1167 = vpop.f32.mrb[0].mxu0
        %v1168 = vadd.f32 0.0, %v1167
        %1169 = vmatprep.mubr.bf16.mxu0 0
        %1170 = vmatmul.mubr.bf16.gmra.mrb[0].mxu0 %v819
        %v1171 = vpop.f32.mrb[0].mxu0
        %v1172 = vadd.f32 0.0, %v1171
        %v1173 = vpop.f32.mrb[0].mxu0
        %v1174 = vadd.f32 0.0, %v1173
        %v1175 = vpop.f32.mrb[0].mxu0
        %v1176 = vadd.f32 0.0, %v1175
        %v1177 = vpop.f32.mrb[0].mxu0
        %v1178 = vadd.f32 0.0, %v1177
        %1179 = vmatprep.mubr.bf16.mxu0 0
        %1180 = vmatmul.mubr.bf16.gmra.mrb[0].mxu0 %v820
        %v1181 = vpop.f32.mrb[0].mxu0
        %v1182 = vadd.f32 0.0, %v1181
        %v1183 = vpop.f32.mrb[0].mxu0
        %v1184 = vadd.f32 0.0, %v1183
        %v1185 = vpop.f32.mrb[0].mxu0
        %v1186 = vadd.f32 0.0, %v1185
        %v1187 = vpop.f32.mrb[0].mxu0
        %v1188 = vadd.f32 0.0, %v1187
        %1189 = vdwg.mxu0
        %1190 = vmatprep.subr.bf16.mxu0 %v936
        %1191 = vmatpush1.bf16.msra.mxu0 %v935
        %1192 = vmatprep.subr.bf16.mxu0 %v940
        %1193 = vmatpush1.bf16.msra.mxu0 %v939
        %1194 = vmatprep.subr.bf16.mxu0 %v944
        %1195 = vmatpush1.bf16.msra.mxu0 %v943
        %1196 = vmatprep.subr.bf16.mxu0 %v948
        %1197 = vmatpush1.bf16.msra.mxu0 %v947
        %1198 = vmatprep.subr.bf16.mxu0 %v952
        %1199 = vmatpush1.bf16.msra.mxu0 %v951
        %1200 = vmatprep.subr.bf16.mxu0 %v956
        %1201 = vmatpush1.bf16.msra.mxu0 %v955
        %1202 = vmatprep.subr.bf16.mxu0 %v960
        %1203 = vmatpush1.bf16.msra.mxu0 %v959
        %1204 = vmatprep.subr.bf16.mxu0 %v964
        %1205 = vmatpush1.bf16.msra.mxu0 %v963
        %1206 = vmatprep.subr.bf16.mxu0 0
        %1207 = vmatpush1.bf16.msra.mxu0 0
        %1208 = vmatprep.subr.bf16.mxu0 0
        %1209 = vmatpush1.bf16.msra.mxu0 0
        %1210 = vmatprep.subr.bf16.mxu0 0
        %1211 = vmatpush1.bf16.msra.mxu0 0
        %1212 = vmatprep.subr.bf16.mxu0 0
        %1213 = vmatpush1.bf16.msra.mxu0 0
        %1214 = vmatprep.subr.bf16.mxu0 0
        %1215 = vmatpush1.bf16.msra.mxu0 0
        %1216 = vmatprep.subr.bf16.mxu0 0
        %1217 = vmatpush1.bf16.msra.mxu0 0
        %1218 = vmatprep.subr.bf16.mxu0 0
        %1219 = vmatpush1.bf16.msra.mxu0 0
        %1220 = vmatprep.subr.bf16.mxu0 0
        %1221 = vmatpush1.bf16.msra.mxu0 0
        %1222 = vmatprep.mubr.bf16.mxu0 0
        %1223 = vmatmul.mubr.bf16.gmra.mrb[0].mxu0 %v805
        %v1224 = vpop.f32.mrb[0].mxu0
        %v1225 = vadd.f32 0.0, %v1224
        %v1226 = vpop.f32.mrb[0].mxu0
        %v1227 = vadd.f32 0.0, %v1226
        %v1228 = vpop.f32.mrb[0].mxu0
        %v1229 = vadd.f32 0.0, %v1228
        %v1230 = vpop.f32.mrb[0].mxu0
        %v1231 = vadd.f32 0.0, %v1230
        %1232 = vmatprep.mubr.bf16.mxu0 0
        %1233 = vmatmul.mubr.bf16.gmra.mrb[0].mxu0 %v806
        %v1234 = vpop.f32.mrb[0].mxu0
        %v1235 = vadd.f32 0.0, %v1234
        %v1236 = vpop.f32.mrb[0].mxu0
        %v1237 = vadd.f32 0.0, %v1236
        %v1238 = vpop.f32.mrb[0].mxu0
        %v1239 = vadd.f32 0.0, %v1238
        %v1240 = vpop.f32.mrb[0].mxu0
        %v1241 = vadd.f32 0.0, %v1240
        %1242 = vmatprep.mubr.bf16.mxu0 0
        %1243 = vmatmul.mubr.bf16.gmra.mrb[0].mxu0 %v807
        %v1244 = vpop.f32.mrb[0].mxu0
        %v1245 = vadd.f32 0.0, %v1244
        %v1246 = vpop.f32.mrb[0].mxu0
        %v1247 = vadd.f32 0.0, %v1246
        %v1248 = vpop.f32.mrb[0].mxu0
        %v1249 = vadd.f32 0.0, %v1248
        %v1250 = vpop.f32.mrb[0].mxu0
        %v1251 = vadd.f32 0.0, %v1250
        %1252 = vmatprep.mubr.bf16.mxu0 0
        %1253 = vmatmul.mubr.bf16.gmra.mrb[0].mxu0 %v808
        %v1254 = vpop.f32.mrb[0].mxu0
        %v1255 = vadd.f32 0.0, %v1254
        %v1256 = vpop.f32.mrb[0].mxu0
        %v1257 = vadd.f32 0.0, %v1256
        %v1258 = vpop.f32.mrb[0].mxu0
        %v1259 = vadd.f32 0.0, %v1258
        %v1260 = vpop.f32.mrb[0].mxu0
        %v1261 = vadd.f32 0.0, %v1260
        %1262 = vmatprep.mubr.bf16.mxu0 0
        %1263 = vmatmul.mubr.bf16.gmra.mrb[0].mxu0 %v809
        %v1264 = vpop.f32.mrb[0].mxu0
        %v1265 = vadd.f32 0.0, %v1264
        %v1266 = vpop.f32.mrb[0].mxu0
        %v1267 = vadd.f32 0.0, %v1266
        %v1268 = vpop.f32.mrb[0].mxu0
        %v1269 = vadd.f32 0.0, %v1268
        %v1270 = vpop.f32.mrb[0].mxu0
        %v1271 = vadd.f32 0.0, %v1270
        %1272 = vmatprep.mubr.bf16.mxu0 0
        %1273 = vmatmul.mubr.bf16.gmra.mrb[0].mxu0 %v810
        %v1274 = vpop.f32.mrb[0].mxu0
        %v1275 = vadd.f32 0.0, %v1274
        %v1276 = vpop.f32.mrb[0].mxu0
        %v1277 = vadd.f32 0.0, %v1276
        %v1278 = vpop.f32.mrb[0].mxu0
        %v1279 = vadd.f32 0.0, %v1278
        %v1280 = vpop.f32.mrb[0].mxu0
        %v1281 = vadd.f32 0.0, %v1280
        %1282 = vmatprep.mubr.bf16.mxu0 0
        %1283 = vmatmul.mubr.bf16.gmra.mrb[0].mxu0 %v811
        %v1284 = vpop.f32.mrb[0].mxu0
        %v1285 = vadd.f32 0.0, %v1284
        %v1286 = vpop.f32.mrb[0].mxu0
        %v1287 = vadd.f32 0.0, %v1286
        %v1288 = vpop.f32.mrb[0].mxu0
        %v1289 = vadd.f32 0.0, %v1288
        %v1290 = vpop.f32.mrb[0].mxu0
        %v1291 = vadd.f32 0.0, %v1290
        %1292 = vmatprep.mubr.bf16.mxu0 0
        %1293 = vmatmul.mubr.bf16.gmra.mrb[0].mxu0 %v812
        %v1294 = vpop.f32.mrb[0].mxu0
        %v1295 = vadd.f32 0.0, %v1294
        %v1296 = vpop.f32.mrb[0].mxu0
        %v1297 = vadd.f32 0.0, %v1296
        %v1298 = vpop.f32.mrb[0].mxu0
        %v1299 = vadd.f32 0.0, %v1298
        %v1300 = vpop.f32.mrb[0].mxu0
        %v1301 = vadd.f32 0.0, %v1300
        %1302 = vmatprep.mubr.bf16.mxu0 0
        %1303 = vmatmul.mubr.bf16.gmra.mrb[0].mxu0 %v813
        %v1304 = vpop.f32.mrb[0].mxu0
        %v1305 = vadd.f32 0.0, %v1304
        %v1306 = vpop.f32.mrb[0].mxu0
        %v1307 = vadd.f32 0.0, %v1306
        %v1308 = vpop.f32.mrb[0].mxu0
        %v1309 = vadd.f32 0.0, %v1308
        %v1310 = vpop.f32.mrb[0].mxu0
        %v1311 = vadd.f32 0.0, %v1310
        %1312 = vmatprep.mubr.bf16.mxu0 0
        %1313 = vmatmul.mubr.bf16.gmra.mrb[0].mxu0 %v814
        %v1314 = vpop.f32.mrb[0].mxu0
        %v1315 = vadd.f32 0.0, %v1314
        %v1316 = vpop.f32.mrb[0].mxu0
        %v1317 = vadd.f32 0.0, %v1316
        %v1318 = vpop.f32.mrb[0].mxu0
        %v1319 = vadd.f32 0.0, %v1318
        %v1320 = vpop.f32.mrb[0].mxu0
        %v1321 = vadd.f32 0.0, %v1320
        %1322 = vmatprep.mubr.bf16.mxu0 0
        %1323 = vmatmul.mubr.bf16.gmra.mrb[0].mxu0 %v815
        %v1324 = vpop.f32.mrb[0].mxu0
        %v1325 = vadd.f32 0.0, %v1324
        %v1326 = vpop.f32.mrb[0].mxu0
        %v1327 = vadd.f32 0.0, %v1326
        %v1328 = vpop.f32.mrb[0].mxu0
        %v1329 = vadd.f32 0.0, %v1328
        %v1330 = vpop.f32.mrb[0].mxu0
        %v1331 = vadd.f32 0.0, %v1330
        %1332 = vmatprep.mubr.bf16.mxu0 0
        %1333 = vmatmul.mubr.bf16.gmra.mrb[0].mxu0 %v816
        %v1334 = vpop.f32.mrb[0].mxu0
        %v1335 = vadd.f32 0.0, %v1334
        %v1336 = vpop.f32.mrb[0].mxu0
        %v1337 = vadd.f32 0.0, %v1336
        %v1338 = vpop.f32.mrb[0].mxu0
        %v1339 = vadd.f32 0.0, %v1338
        %v1340 = vpop.f32.mrb[0].mxu0
        %v1341 = vadd.f32 0.0, %v1340
        %1342 = vmatprep.mubr.bf16.mxu0 0
        %1343 = vmatmul.mubr.bf16.gmra.mrb[0].mxu0 %v817
        %v1344 = vpop.f32.mrb[0].mxu0
        %v1345 = vadd.f32 0.0, %v1344
        %v1346 = vpop.f32.mrb[0].mxu0
        %v1347 = vadd.f32 0.0, %v1346
        %v1348 = vpop.f32.mrb[0].mxu0
        %v1349 = vadd.f32 0.0, %v1348
        %v1350 = vpop.f32.mrb[0].mxu0
        %v1351 = vadd.f32 0.0, %v1350
        %1352 = vmatprep.mubr.bf16.mxu0 0
        %1353 = vmatmul.mubr.bf16.gmra.mrb[0].mxu0 %v818
        %v1354 = vpop.f32.mrb[0].mxu0
        %v1355 = vadd.f32 0.0, %v1354
        %v1356 = vpop.f32.mrb[0].mxu0
        %v1357 = vadd.f32 0.0, %v1356
        %v1358 = vpop.f32.mrb[0].mxu0
        %v1359 = vadd.f32 0.0, %v1358
        %v1360 = vpop.f32.mrb[0].mxu0
        %v1361 = vadd.f32 0.0, %v1360
        %1362 = vmatprep.mubr.bf16.mxu0 0
        %1363 = vmatmul.mubr.bf16.gmra.mrb[0].mxu0 %v819
        %v1364 = vpop.f32.mrb[0].mxu0
        %v1365 = vadd.f32 0.0, %v1364
        %v1366 = vpop.f32.mrb[0].mxu0
        %v1367 = vadd.f32 0.0, %v1366
        %v1368 = vpop.f32.mrb[0].mxu0
        %v1369 = vadd.f32 0.0, %v1368
        %v1370 = vpop.f32.mrb[0].mxu0
        %v1371 = vadd.f32 0.0, %v1370
        %1372 = vmatprep.mubr.bf16.mxu0 0
        %1373 = vmatmul.mubr.bf16.gmra.mrb[0].mxu0 %v820
        %v1374 = vpop.f32.mrb[0].mxu0
        %v1375 = vadd.f32 0.0, %v1374
        %v1376 = vpop.f32.mrb[0].mxu0
        %v1377 = vadd.f32 0.0, %v1376
        %v1378 = vpop.f32.mrb[0].mxu0
        %v1379 = vadd.f32 0.0, %v1378
        %v1380 = vpop.f32.mrb[0].mxu0
        %v1381 = vadd.f32 0.0, %v1380
        %1382 = vdwg.mxu0
        %v1415 = vunpack.c.l.b16 %v273
        %v1416 = vunpack.c.l.b16 %v274
        %v1417 = vunpack.c.l.b16 %v276
        %v1418 = vunpack.c.l.b16 %v277
        %v1419 = vunpack.c.l.b16 %v279
        %v1420 = vunpack.c.l.b16 %v280
        %v1421 = vunpack.c.l.b16 %v282
        %v1422 = vunpack.c.l.b16 %v283
        %v1423 = vunpack.c.l.b16 %v285
        %v1424 = vunpack.c.l.b16 %v286
        %v1425 = vunpack.c.l.b16 %v288
        %v1426 = vunpack.c.l.b16 %v289
        %v1427 = vunpack.c.l.b16 %v291
        %v1428 = vunpack.c.l.b16 %v292
        %v1429 = vunpack.c.l.b16 %v294
        %v1430 = vunpack.c.l.b16 %v295
        %v1431 = vunpack.c.l.b16 %v297
        %v1432 = vunpack.c.l.b16 %v298
        %v1433 = vunpack.c.l.b16 %v300
        %v1434 = vunpack.c.l.b16 %v301
        %v1435 = vunpack.c.l.b16 %v303
        %v1436 = vunpack.c.l.b16 %v304
        %v1437 = vunpack.c.l.b16 %v306
        %v1438 = vunpack.c.l.b16 %v307
        %v1439 = vunpack.c.l.b16 %v309
        %v1440 = vunpack.c.l.b16 %v310
        %v1441 = vunpack.c.l.b16 %v312
        %v1442 = vunpack.c.l.b16 %v313
        %v1443 = vunpack.c.l.b16 %v315
        %v1444 = vunpack.c.l.b16 %v316
        %v1445 = vunpack.c.l.b16 %v318
        %v1446 = vunpack.c.l.b16 %v319
        %v1447 = vpack.c.b16 %v1416, %v1415
        %v1448 = vpack.c.b16 %v1418, %v1417
        %v1449 = vpack.c.b16 %v1420, %v1419
        %v1450 = vpack.c.b16 %v1422, %v1421
        %v1451 = vpack.c.b16 %v1424, %v1423
        %v1452 = vpack.c.b16 %v1426, %v1425
        %v1453 = vpack.c.b16 %v1428, %v1427
        %v1454 = vpack.c.b16 %v1430, %v1429
        %v1455 = vpack.c.b16 %v1432, %v1431
        %v1456 = vpack.c.b16 %v1434, %v1433
        %v1457 = vpack.c.b16 %v1436, %v1435
        %v1458 = vpack.c.b16 %v1438, %v1437
        %v1459 = vpack.c.b16 %v1440, %v1439
        %v1460 = vpack.c.b16 %v1442, %v1441
        %v1461 = vpack.c.b16 %v1444, %v1443
        %v1462 = vpack.c.b16 %v1446, %v1445
        %v1511 = vunpack.c.l.b16 %v321
        %v1512 = vunpack.c.h.b16 %v321
        %v1513 = vunpack.c.l.b16 %v322
        %v1514 = vunpack.c.h.b16 %v322
        %v1515 = vunpack.c.l.b16 %v323
        %v1516 = vunpack.c.h.b16 %v323
        %v1517 = vunpack.c.l.b16 %v324
        %v1518 = vunpack.c.h.b16 %v324
        %v1519 = vunpack.c.l.b16 %v325
        %v1520 = vunpack.c.h.b16 %v325
        %v1521 = vunpack.c.l.b16 %v326
        %v1522 = vunpack.c.h.b16 %v326
        %v1523 = vunpack.c.l.b16 %v327
        %v1524 = vunpack.c.h.b16 %v327
        %v1525 = vunpack.c.l.b16 %v328
        %v1526 = vunpack.c.h.b16 %v328
        %v1527 = vunpack.c.l.b16 %v329
        %v1528 = vunpack.c.h.b16 %v329
        %v1529 = vunpack.c.l.b16 %v330
        %v1530 = vunpack.c.h.b16 %v330
        %v1531 = vunpack.c.l.b16 %v331
        %v1532 = vunpack.c.h.b16 %v331
        %v1533 = vunpack.c.l.b16 %v332
        %v1534 = vunpack.c.h.b16 %v332
        %v1535 = vunpack.c.l.b16 %v333
        %v1536 = vunpack.c.h.b16 %v333
        %v1537 = vunpack.c.l.b16 %v334
        %v1538 = vunpack.c.h.b16 %v334
        %v1539 = vunpack.c.l.b16 %v335
        %v1540 = vunpack.c.h.b16 %v335
        %v1541 = vunpack.c.l.b16 %v336
        %v1542 = vunpack.c.h.b16 %v336
        %v1543 = vunpack.c.l.b16 %v337
        %v1544 = vunpack.c.h.b16 %v337
        %v1545 = vunpack.c.l.b16 %v338
        %v1546 = vunpack.c.h.b16 %v338
        %v1547 = vunpack.c.l.b16 %v339
        %v1548 = vunpack.c.h.b16 %v339
        %v1549 = vunpack.c.l.b16 %v340
        %v1550 = vunpack.c.h.b16 %v340
        %v1551 = vunpack.c.l.b16 %v341
        %v1552 = vunpack.c.h.b16 %v341
        %v1553 = vunpack.c.l.b16 %v342
        %v1554 = vunpack.c.h.b16 %v342
        %v1555 = vunpack.c.l.b16 %v343
        %v1556 = vunpack.c.h.b16 %v343
        %v1557 = vunpack.c.l.b16 %v344
        %v1558 = vunpack.c.h.b16 %v344
        %v1559 = vunpack.c.l.b16 %v345
        %v1560 = vunpack.c.h.b16 %v345
        %v1561 = vunpack.c.l.b16 %v346
        %v1562 = vunpack.c.h.b16 %v346
        %v1563 = vunpack.c.l.b16 %v347
        %v1564 = vunpack.c.h.b16 %v347
        %v1565 = vunpack.c.l.b16 %v348
        %v1566 = vunpack.c.h.b16 %v348
        %v1567 = vunpack.c.l.b16 %v349
        %v1568 = vunpack.c.h.b16 %v349
        %v1569 = vunpack.c.l.b16 %v350
        %v1570 = vunpack.c.h.b16 %v350
        %v1571 = vunpack.c.l.b16 %v351
        %v1572 = vunpack.c.h.b16 %v351
        %v1573 = vunpack.c.l.b16 %v352
        %v1574 = vunpack.c.h.b16 %v352
        %v1575 = vpack.c.b16 %v1515, %v1511
        %v1576 = vpack.c.b16 %v1516, %v1512
        %v1577 = vpack.c.b16 %v1517, %v1513
        %v1578 = vpack.c.b16 %v1518, %v1514
        %v1579 = vpack.c.b16 %v1523, %v1519
        %v1580 = vpack.c.b16 %v1524, %v1520
        %v1581 = vpack.c.b16 %v1525, %v1521
        %v1582 = vpack.c.b16 %v1526, %v1522
        %v1583 = vpack.c.b16 %v1531, %v1527
        %v1584 = vpack.c.b16 %v1532, %v1528
        %v1585 = vpack.c.b16 %v1533, %v1529
        %v1586 = vpack.c.b16 %v1534, %v1530
        %v1587 = vpack.c.b16 %v1539, %v1535
        %v1588 = vpack.c.b16 %v1540, %v1536
        %v1589 = vpack.c.b16 %v1541, %v1537
        %v1590 = vpack.c.b16 %v1542, %v1538
        %v1591 = vpack.c.b16 %v1547, %v1543
        %v1592 = vpack.c.b16 %v1548, %v1544
        %v1593 = vpack.c.b16 %v1549, %v1545
        %v1594 = vpack.c.b16 %v1550, %v1546
        %v1595 = vpack.c.b16 %v1555, %v1551
        %v1596 = vpack.c.b16 %v1556, %v1552
        %v1597 = vpack.c.b16 %v1557, %v1553
        %v1598 = vpack.c.b16 %v1558, %v1554
        %v1599 = vpack.c.b16 %v1563, %v1559
        %v1600 = vpack.c.b16 %v1564, %v1560
        %v1601 = vpack.c.b16 %v1565, %v1561
        %v1602 = vpack.c.b16 %v1566, %v1562
        %v1603 = vpack.c.b16 %v1571, %v1567
        %v1604 = vpack.c.b16 %v1572, %v1568
        %v1605 = vpack.c.b16 %v1573, %v1569
        %v1606 = vpack.c.b16 %v1574, %v1570
        %1639 = vmatprep.subr.bf16.mxu0 %v1576
        %1640 = vmatpush1.bf16.msra.mxu0 %v1575
        %1641 = vmatprep.subr.bf16.mxu0 %v1580
        %1642 = vmatpush1.bf16.msra.mxu0 %v1579
        %1643 = vmatprep.subr.bf16.mxu0 %v1584
        %1644 = vmatpush1.bf16.msra.mxu0 %v1583
        %1645 = vmatprep.subr.bf16.mxu0 %v1588
        %1646 = vmatpush1.bf16.msra.mxu0 %v1587
        %1647 = vmatprep.subr.bf16.mxu0 %v1592
        %1648 = vmatpush1.bf16.msra.mxu0 %v1591
        %1649 = vmatprep.subr.bf16.mxu0 %v1596
        %1650 = vmatpush1.bf16.msra.mxu0 %v1595
        %1651 = vmatprep.subr.bf16.mxu0 %v1600
        %1652 = vmatpush1.bf16.msra.mxu0 %v1599
        %1653 = vmatprep.subr.bf16.mxu0 %v1604
        %1654 = vmatpush1.bf16.msra.mxu0 %v1603
        %1655 = vmatprep.subr.bf16.mxu0 0
        %1656 = vmatpush1.bf16.msra.mxu0 0
        %1657 = vmatprep.subr.bf16.mxu0 0
        %1658 = vmatpush1.bf16.msra.mxu0 0
        %1659 = vmatprep.subr.bf16.mxu0 0
        %1660 = vmatpush1.bf16.msra.mxu0 0
        %1661 = vmatprep.subr.bf16.mxu0 0
        %1662 = vmatpush1.bf16.msra.mxu0 0
        %1663 = vmatprep.subr.bf16.mxu0 0
        %1664 = vmatpush1.bf16.msra.mxu0 0
        %1665 = vmatprep.subr.bf16.mxu0 0
        %1666 = vmatpush1.bf16.msra.mxu0 0
        %1667 = vmatprep.subr.bf16.mxu0 0
        %1668 = vmatpush1.bf16.msra.mxu0 0
        %1669 = vmatprep.subr.bf16.mxu0 0
        %1670 = vmatpush1.bf16.msra.mxu0 0
        %1671 = vmatprep.mubr.bf16.mxu0 0
        %1672 = vmatmul.mubr.bf16.gmra.mrb[0].mxu0 %v1447
        %v1673 = vpop.f32.mrb[0].mxu0
        %v1674 = vadd.f32 %v1032, %v1673
        %v1675 = vpop.f32.mrb[0].mxu0
        %v1676 = vadd.f32 %v1034, %v1675
        %v1677 = vpop.f32.mrb[0].mxu0
        %v1678 = vadd.f32 %v1036, %v1677
        %v1679 = vpop.f32.mrb[0].mxu0
        %v1680 = vadd.f32 %v1038, %v1679
        %1681 = vmatprep.mubr.bf16.mxu0 0
        %1682 = vmatmul.mubr.bf16.gmra.mrb[0].mxu0 %v1448
        %v1683 = vpop.f32.mrb[0].mxu0
        %v1684 = vadd.f32 %v1042, %v1683
        %v1685 = vpop.f32.mrb[0].mxu0
        %v1686 = vadd.f32 %v1044, %v1685
        %v1687 = vpop.f32.mrb[0].mxu0
        %v1688 = vadd.f32 %v1046, %v1687
        %v1689 = vpop.f32.mrb[0].mxu0
        %v1690 = vadd.f32 %v1048, %v1689
        %1691 = vmatprep.mubr.bf16.mxu0 0
        %1692 = vmatmul.mubr.bf16.gmra.mrb[0].mxu0 %v1449
        %v1693 = vpop.f32.mrb[0].mxu0
        %v1694 = vadd.f32 %v1052, %v1693
        %v1695 = vpop.f32.mrb[0].mxu0
        %v1696 = vadd.f32 %v1054, %v1695
        %v1697 = vpop.f32.mrb[0].mxu0
        %v1698 = vadd.f32 %v1056, %v1697
        %v1699 = vpop.f32.mrb[0].mxu0
        %v1700 = vadd.f32 %v1058, %v1699
        %1701 = vmatprep.mubr.bf16.mxu0 0
        %1702 = vmatmul.mubr.bf16.gmra.mrb[0].mxu0 %v1450
        %v1703 = vpop.f32.mrb[0].mxu0
        %v1704 = vadd.f32 %v1062, %v1703
        %v1705 = vpop.f32.mrb[0].mxu0
        %v1706 = vadd.f32 %v1064, %v1705
        %v1707 = vpop.f32.mrb[0].mxu0
        %v1708 = vadd.f32 %v1066, %v1707
        %v1709 = vpop.f32.mrb[0].mxu0
        %v1710 = vadd.f32 %v1068, %v1709
        %1711 = vmatprep.mubr.bf16.mxu0 0
        %1712 = vmatmul.mubr.bf16.gmra.mrb[0].mxu0 %v1451
        %v1713 = vpop.f32.mrb[0].mxu0
        %v1714 = vadd.f32 %v1072, %v1713
        %v1715 = vpop.f32.mrb[0].mxu0
        %v1716 = vadd.f32 %v1074, %v1715
        %v1717 = vpop.f32.mrb[0].mxu0
        %v1718 = vadd.f32 %v1076, %v1717
        %v1719 = vpop.f32.mrb[0].mxu0
        %v1720 = vadd.f32 %v1078, %v1719
        %1721 = vmatprep.mubr.bf16.mxu0 0
        %1722 = vmatmul.mubr.bf16.gmra.mrb[0].mxu0 %v1452
        %v1723 = vpop.f32.mrb[0].mxu0
        %v1724 = vadd.f32 %v1082, %v1723
        %v1725 = vpop.f32.mrb[0].mxu0
        %v1726 = vadd.f32 %v1084, %v1725
        %v1727 = vpop.f32.mrb[0].mxu0
        %v1728 = vadd.f32 %v1086, %v1727
        %v1729 = vpop.f32.mrb[0].mxu0
        %v1730 = vadd.f32 %v1088, %v1729
        %1731 = vmatprep.mubr.bf16.mxu0 0
        %1732 = vmatmul.mubr.bf16.gmra.mrb[0].mxu0 %v1453
        %v1733 = vpop.f32.mrb[0].mxu0
        %v1734 = vadd.f32 %v1092, %v1733
        %v1735 = vpop.f32.mrb[0].mxu0
        %v1736 = vadd.f32 %v1094, %v1735
        %v1737 = vpop.f32.mrb[0].mxu0
        %v1738 = vadd.f32 %v1096, %v1737
        %v1739 = vpop.f32.mrb[0].mxu0
        %v1740 = vadd.f32 %v1098, %v1739
        %1741 = vmatprep.mubr.bf16.mxu0 0
        %1742 = vmatmul.mubr.bf16.gmra.mrb[0].mxu0 %v1454
        %v1743 = vpop.f32.mrb[0].mxu0
        %v1744 = vadd.f32 %v1102, %v1743
        %v1745 = vpop.f32.mrb[0].mxu0
        %v1746 = vadd.f32 %v1104, %v1745
        %v1747 = vpop.f32.mrb[0].mxu0
        %v1748 = vadd.f32 %v1106, %v1747
        %v1749 = vpop.f32.mrb[0].mxu0
        %v1750 = vadd.f32 %v1108, %v1749
        %1751 = vmatprep.mubr.bf16.mxu0 0
        %1752 = vmatmul.mubr.bf16.gmra.mrb[0].mxu0 %v1455
        %v1753 = vpop.f32.mrb[0].mxu0
        %v1754 = vadd.f32 %v1112, %v1753
        %v1755 = vpop.f32.mrb[0].mxu0
        %v1756 = vadd.f32 %v1114, %v1755
        %v1757 = vpop.f32.mrb[0].mxu0
        %v1758 = vadd.f32 %v1116, %v1757
        %v1759 = vpop.f32.mrb[0].mxu0
        %v1760 = vadd.f32 %v1118, %v1759
        %1761 = vmatprep.mubr.bf16.mxu0 0
        %1762 = vmatmul.mubr.bf16.gmra.mrb[0].mxu0 %v1456
        %v1763 = vpop.f32.mrb[0].mxu0
        %v1764 = vadd.f32 %v1122, %v1763
        %v1765 = vpop.f32.mrb[0].mxu0
        %v1766 = vadd.f32 %v1124, %v1765
        %v1767 = vpop.f32.mrb[0].mxu0
        %v1768 = vadd.f32 %v1126, %v1767
        %v1769 = vpop.f32.mrb[0].mxu0
        %v1770 = vadd.f32 %v1128, %v1769
        %1771 = vmatprep.mubr.bf16.mxu0 0
        %1772 = vmatmul.mubr.bf16.gmra.mrb[0].mxu0 %v1457
        %v1773 = vpop.f32.mrb[0].mxu0
        %v1774 = vadd.f32 %v1132, %v1773
        %v1775 = vpop.f32.mrb[0].mxu0
        %v1776 = vadd.f32 %v1134, %v1775
        %v1777 = vpop.f32.mrb[0].mxu0
        %v1778 = vadd.f32 %v1136, %v1777
        %v1779 = vpop.f32.mrb[0].mxu0
        %v1780 = vadd.f32 %v1138, %v1779
        %1781 = vmatprep.mubr.bf16.mxu0 0
        %1782 = vmatmul.mubr.bf16.gmra.mrb[0].mxu0 %v1458
        %v1783 = vpop.f32.mrb[0].mxu0
        %v1784 = vadd.f32 %v1142, %v1783
        %v1785 = vpop.f32.mrb[0].mxu0
        %v1786 = vadd.f32 %v1144, %v1785
        %v1787 = vpop.f32.mrb[0].mxu0
        %v1788 = vadd.f32 %v1146, %v1787
        %v1789 = vpop.f32.mrb[0].mxu0
        %v1790 = vadd.f32 %v1148, %v1789
        %1791 = vmatprep.mubr.bf16.mxu0 0
        %1792 = vmatmul.mubr.bf16.gmra.mrb[0].mxu0 %v1459
        %v1793 = vpop.f32.mrb[0].mxu0
        %v1794 = vadd.f32 %v1152, %v1793
        %v1795 = vpop.f32.mrb[0].mxu0
        %v1796 = vadd.f32 %v1154, %v1795
        %v1797 = vpop.f32.mrb[0].mxu0
        %v1798 = vadd.f32 %v1156, %v1797
        %v1799 = vpop.f32.mrb[0].mxu0
        %v1800 = vadd.f32 %v1158, %v1799
        %1801 = vmatprep.mubr.bf16.mxu0 0
        %1802 = vmatmul.mubr.bf16.gmra.mrb[0].mxu0 %v1460
        %v1803 = vpop.f32.mrb[0].mxu0
        %v1804 = vadd.f32 %v1162, %v1803
        %v1805 = vpop.f32.mrb[0].mxu0
        %v1806 = vadd.f32 %v1164, %v1805
        %v1807 = vpop.f32.mrb[0].mxu0
        %v1808 = vadd.f32 %v1166, %v1807
        %v1809 = vpop.f32.mrb[0].mxu0
        %v1810 = vadd.f32 %v1168, %v1809
        %1811 = vmatprep.mubr.bf16.mxu0 0
        %1812 = vmatmul.mubr.bf16.gmra.mrb[0].mxu0 %v1461
        %v1813 = vpop.f32.mrb[0].mxu0
        %v1814 = vadd.f32 %v1172, %v1813
        %v1815 = vpop.f32.mrb[0].mxu0
        %v1816 = vadd.f32 %v1174, %v1815
        %v1817 = vpop.f32.mrb[0].mxu0
        %v1818 = vadd.f32 %v1176, %v1817
        %v1819 = vpop.f32.mrb[0].mxu0
        %v1820 = vadd.f32 %v1178, %v1819
        %1821 = vmatprep.mubr.bf16.mxu0 0
        %1822 = vmatmul.mubr.bf16.gmra.mrb[0].mxu0 %v1462
        %v1823 = vpop.f32.mrb[0].mxu0
        %v1824 = vadd.f32 %v1182, %v1823
        %v1825 = vpop.f32.mrb[0].mxu0
        %v1826 = vadd.f32 %v1184, %v1825
        %v1827 = vpop.f32.mrb[0].mxu0
        %v1828 = vadd.f32 %v1186, %v1827
        %v1829 = vpop.f32.mrb[0].mxu0
        %v1830 = vadd.f32 %v1188, %v1829
        %1831 = vdwg.mxu0
        %1832 = vmatprep.subr.bf16.mxu0 %v1578
        %1833 = vmatpush1.bf16.msra.mxu0 %v1577
        %1834 = vmatprep.subr.bf16.mxu0 %v1582
        %1835 = vmatpush1.bf16.msra.mxu0 %v1581
        %1836 = vmatprep.subr.bf16.mxu0 %v1586
        %1837 = vmatpush1.bf16.msra.mxu0 %v1585
        %1838 = vmatprep.subr.bf16.mxu0 %v1590
        %1839 = vmatpush1.bf16.msra.mxu0 %v1589
        %1840 = vmatprep.subr.bf16.mxu0 %v1594
        %1841 = vmatpush1.bf16.msra.mxu0 %v1593
        %1842 = vmatprep.subr.bf16.mxu0 %v1598
        %1843 = vmatpush1.bf16.msra.mxu0 %v1597
        %1844 = vmatprep.subr.bf16.mxu0 %v1602
        %1845 = vmatpush1.bf16.msra.mxu0 %v1601
        %1846 = vmatprep.subr.bf16.mxu0 %v1606
        %1847 = vmatpush1.bf16.msra.mxu0 %v1605
        %1848 = vmatprep.subr.bf16.mxu0 0
        %1849 = vmatpush1.bf16.msra.mxu0 0
        %1850 = vmatprep.subr.bf16.mxu0 0
        %1851 = vmatpush1.bf16.msra.mxu0 0
        %1852 = vmatprep.subr.bf16.mxu0 0
        %1853 = vmatpush1.bf16.msra.mxu0 0
        %1854 = vmatprep.subr.bf16.mxu0 0
        %1855 = vmatpush1.bf16.msra.mxu0 0
        %1856 = vmatprep.subr.bf16.mxu0 0
        %1857 = vmatpush1.bf16.msra.mxu0 0
        %1858 = vmatprep.subr.bf16.mxu0 0
        %1859 = vmatpush1.bf16.msra.mxu0 0
        %1860 = vmatprep.subr.bf16.mxu0 0
        %1861 = vmatpush1.bf16.msra.mxu0 0
        %1862 = vmatprep.subr.bf16.mxu0 0
        %1863 = vmatpush1.bf16.msra.mxu0 0
        %1864 = vmatprep.mubr.bf16.mxu0 0
        %1865 = vmatmul.mubr.bf16.gmra.mrb[0].mxu0 %v1447
        %v1866 = vpop.f32.mrb[0].mxu0
        %v1867 = vadd.f32 %v1225, %v1866
        %v1868 = vpop.f32.mrb[0].mxu0
        %v1869 = vadd.f32 %v1227, %v1868
        %v1870 = vpop.f32.mrb[0].mxu0
        %v1871 = vadd.f32 %v1229, %v1870
        %v1872 = vpop.f32.mrb[0].mxu0
        %v1873 = vadd.f32 %v1231, %v1872
        %1874 = vmatprep.mubr.bf16.mxu0 0
        %1875 = vmatmul.mubr.bf16.gmra.mrb[0].mxu0 %v1448
        %v1876 = vpop.f32.mrb[0].mxu0
        %v1877 = vadd.f32 %v1235, %v1876
        %v1878 = vpop.f32.mrb[0].mxu0
        %v1879 = vadd.f32 %v1237, %v1878
        %v1880 = vpop.f32.mrb[0].mxu0
        %v1881 = vadd.f32 %v1239, %v1880
        %v1882 = vpop.f32.mrb[0].mxu0
        %v1883 = vadd.f32 %v1241, %v1882
        %1884 = vmatprep.mubr.bf16.mxu0 0
        %1885 = vmatmul.mubr.bf16.gmra.mrb[0].mxu0 %v1449
        %v1886 = vpop.f32.mrb[0].mxu0
        %v1887 = vadd.f32 %v1245, %v1886
        %v1888 = vpop.f32.mrb[0].mxu0
        %v1889 = vadd.f32 %v1247, %v1888
        %v1890 = vpop.f32.mrb[0].mxu0
        %v1891 = vadd.f32 %v1249, %v1890
        %v1892 = vpop.f32.mrb[0].mxu0
        %v1893 = vadd.f32 %v1251, %v1892
        %1894 = vmatprep.mubr.bf16.mxu0 0
        %1895 = vmatmul.mubr.bf16.gmra.mrb[0].mxu0 %v1450
        %v1896 = vpop.f32.mrb[0].mxu0
        %v1897 = vadd.f32 %v1255, %v1896
        %v1898 = vpop.f32.mrb[0].mxu0
        %v1899 = vadd.f32 %v1257, %v1898
        %v1900 = vpop.f32.mrb[0].mxu0
        %v1901 = vadd.f32 %v1259, %v1900
        %v1902 = vpop.f32.mrb[0].mxu0
        %v1903 = vadd.f32 %v1261, %v1902
        %1904 = vmatprep.mubr.bf16.mxu0 0
        %1905 = vmatmul.mubr.bf16.gmra.mrb[0].mxu0 %v1451
        %v1906 = vpop.f32.mrb[0].mxu0
        %v1907 = vadd.f32 %v1265, %v1906
        %v1908 = vpop.f32.mrb[0].mxu0
        %v1909 = vadd.f32 %v1267, %v1908
        %v1910 = vpop.f32.mrb[0].mxu0
        %v1911 = vadd.f32 %v1269, %v1910
        %v1912 = vpop.f32.mrb[0].mxu0
        %v1913 = vadd.f32 %v1271, %v1912
        %1914 = vmatprep.mubr.bf16.mxu0 0
        %1915 = vmatmul.mubr.bf16.gmra.mrb[0].mxu0 %v1452
        %v1916 = vpop.f32.mrb[0].mxu0
        %v1917 = vadd.f32 %v1275, %v1916
        %v1918 = vpop.f32.mrb[0].mxu0
        %v1919 = vadd.f32 %v1277, %v1918
        %v1920 = vpop.f32.mrb[0].mxu0
        %v1921 = vadd.f32 %v1279, %v1920
        %v1922 = vpop.f32.mrb[0].mxu0
        %v1923 = vadd.f32 %v1281, %v1922
        %1924 = vmatprep.mubr.bf16.mxu0 0
        %1925 = vmatmul.mubr.bf16.gmra.mrb[0].mxu0 %v1453
        %v1926 = vpop.f32.mrb[0].mxu0
        %v1927 = vadd.f32 %v1285, %v1926
        %v1928 = vpop.f32.mrb[0].mxu0
        %v1929 = vadd.f32 %v1287, %v1928
        %v1930 = vpop.f32.mrb[0].mxu0
        %v1931 = vadd.f32 %v1289, %v1930
        %v1932 = vpop.f32.mrb[0].mxu0
        %v1933 = vadd.f32 %v1291, %v1932
        %1934 = vmatprep.mubr.bf16.mxu0 0
        %1935 = vmatmul.mubr.bf16.gmra.mrb[0].mxu0 %v1454
        %v1936 = vpop.f32.mrb[0].mxu0
        %v1937 = vadd.f32 %v1295, %v1936
        %v1938 = vpop.f32.mrb[0].mxu0
        %v1939 = vadd.f32 %v1297, %v1938
        %v1940 = vpop.f32.mrb[0].mxu0
        %v1941 = vadd.f32 %v1299, %v1940
        %v1942 = vpop.f32.mrb[0].mxu0
        %v1943 = vadd.f32 %v1301, %v1942
        %1944 = vmatprep.mubr.bf16.mxu0 0
        %1945 = vmatmul.mubr.bf16.gmra.mrb[0].mxu0 %v1455
        %v1946 = vpop.f32.mrb[0].mxu0
        %v1947 = vadd.f32 %v1305, %v1946
        %v1948 = vpop.f32.mrb[0].mxu0
        %v1949 = vadd.f32 %v1307, %v1948
        %v1950 = vpop.f32.mrb[0].mxu0
        %v1951 = vadd.f32 %v1309, %v1950
        %v1952 = vpop.f32.mrb[0].mxu0
        %v1953 = vadd.f32 %v1311, %v1952
        %1954 = vmatprep.mubr.bf16.mxu0 0
        %1955 = vmatmul.mubr.bf16.gmra.mrb[0].mxu0 %v1456
        %v1956 = vpop.f32.mrb[0].mxu0
        %v1957 = vadd.f32 %v1315, %v1956
        %v1958 = vpop.f32.mrb[0].mxu0
        %v1959 = vadd.f32 %v1317, %v1958
        %v1960 = vpop.f32.mrb[0].mxu0
        %v1961 = vadd.f32 %v1319, %v1960
        %v1962 = vpop.f32.mrb[0].mxu0
        %v1963 = vadd.f32 %v1321, %v1962
        %1964 = vmatprep.mubr.bf16.mxu0 0
        %1965 = vmatmul.mubr.bf16.gmra.mrb[0].mxu0 %v1457
        %v1966 = vpop.f32.mrb[0].mxu0
        %v1967 = vadd.f32 %v1325, %v1966
        %v1968 = vpop.f32.mrb[0].mxu0
        %v1969 = vadd.f32 %v1327, %v1968
        %v1970 = vpop.f32.mrb[0].mxu0
        %v1971 = vadd.f32 %v1329, %v1970
        %v1972 = vpop.f32.mrb[0].mxu0
        %v1973 = vadd.f32 %v1331, %v1972
        %1974 = vmatprep.mubr.bf16.mxu0 0
        %1975 = vmatmul.mubr.bf16.gmra.mrb[0].mxu0 %v1458
        %v1976 = vpop.f32.mrb[0].mxu0
        %v1977 = vadd.f32 %v1335, %v1976
        %v1978 = vpop.f32.mrb[0].mxu0
        %v1979 = vadd.f32 %v1337, %v1978
        %v1980 = vpop.f32.mrb[0].mxu0
        %v1981 = vadd.f32 %v1339, %v1980
        %v1982 = vpop.f32.mrb[0].mxu0
        %v1983 = vadd.f32 %v1341, %v1982
        %1984 = vmatprep.mubr.bf16.mxu0 0
        %1985 = vmatmul.mubr.bf16.gmra.mrb[0].mxu0 %v1459
        %v1986 = vpop.f32.mrb[0].mxu0
        %v1987 = vadd.f32 %v1345, %v1986
        %v1988 = vpop.f32.mrb[0].mxu0
        %v1989 = vadd.f32 %v1347, %v1988
        %v1990 = vpop.f32.mrb[0].mxu0
        %v1991 = vadd.f32 %v1349, %v1990
        %v1992 = vpop.f32.mrb[0].mxu0
        %v1993 = vadd.f32 %v1351, %v1992
        %1994 = vmatprep.mubr.bf16.mxu0 0
        %1995 = vmatmul.mubr.bf16.gmra.mrb[0].mxu0 %v1460
        %v1996 = vpop.f32.mrb[0].mxu0
        %v1997 = vadd.f32 %v1355, %v1996
        %v1998 = vpop.f32.mrb[0].mxu0
        %v1999 = vadd.f32 %v1357, %v1998
        %v2000 = vpop.f32.mrb[0].mxu0
        %v2001 = vadd.f32 %v1359, %v2000
        %v2002 = vpop.f32.mrb[0].mxu0
        %v2003 = vadd.f32 %v1361, %v2002
        %2004 = vmatprep.mubr.bf16.mxu0 0
        %2005 = vmatmul.mubr.bf16.gmra.mrb[0].mxu0 %v1461
        %v2006 = vpop.f32.mrb[0].mxu0
        %v2007 = vadd.f32 %v1365, %v2006
        %v2008 = vpop.f32.mrb[0].mxu0
        %v2009 = vadd.f32 %v1367, %v2008
        %v2010 = vpop.f32.mrb[0].mxu0
        %v2011 = vadd.f32 %v1369, %v2010
        %v2012 = vpop.f32.mrb[0].mxu0
        %v2013 = vadd.f32 %v1371, %v2012
        %2014 = vmatprep.mubr.bf16.mxu0 0
        %2015 = vmatmul.mubr.bf16.gmra.mrb[0].mxu0 %v1462
        %v2016 = vpop.f32.mrb[0].mxu0
        %v2017 = vadd.f32 %v1375, %v2016
        %v2018 = vpop.f32.mrb[0].mxu0
        %v2019 = vadd.f32 %v1377, %v2018
        %v2020 = vpop.f32.mrb[0].mxu0
        %v2021 = vadd.f32 %v1379, %v2020
        %v2022 = vpop.f32.mrb[0].mxu0
        %v2023 = vadd.f32 %v1381, %v2022
        %2024 = vdwg.mxu0
        %vm2041 = vcmask 1042432
        %vm2042 = vcmask 1046532
        %vm2043 = vmor %vm2041, %vm2042
        %v2044 = vrot.slane %v273, 5
        %v2045 = vrot.slane %v2044, 4
        %v2046 = vrot.slane %v274, 5
        %v2047 = vsel %vm2043, %v2045, %v2046
        %v2048 = vrot.slane %v2046, 4
        %v2049 = vrot.slane %v275, 5
        %v2050 = vsel %vm2043, %v2048, %v2049
        %v2051 = vrot.slane %v276, 5
        %v2052 = vrot.slane %v2051, 4
        %v2053 = vrot.slane %v277, 5
        %v2054 = vsel %vm2043, %v2052, %v2053
        %v2055 = vrot.slane %v2053, 4
        %v2056 = vrot.slane %v278, 5
        %v2057 = vsel %vm2043, %v2055, %v2056
        %v2058 = vrot.slane %v279, 5
        %v2059 = vrot.slane %v2058, 4
        %v2060 = vrot.slane %v280, 5
        %v2061 = vsel %vm2043, %v2059, %v2060
        %v2062 = vrot.slane %v2060, 4
        %v2063 = vrot.slane %v281, 5
        %v2064 = vsel %vm2043, %v2062, %v2063
        %v2065 = vrot.slane %v282, 5
        %v2066 = vrot.slane %v2065, 4
        %v2067 = vrot.slane %v283, 5
        %v2068 = vsel %vm2043, %v2066, %v2067
        %v2069 = vrot.slane %v2067, 4
        %v2070 = vrot.slane %v284, 5
        %v2071 = vsel %vm2043, %v2069, %v2070
        %v2072 = vrot.slane %v285, 5
        %v2073 = vrot.slane %v2072, 4
        %v2074 = vrot.slane %v286, 5
        %v2075 = vsel %vm2043, %v2073, %v2074
        %v2076 = vrot.slane %v2074, 4
        %v2077 = vrot.slane %v287, 5
        %v2078 = vsel %vm2043, %v2076, %v2077
        %v2079 = vrot.slane %v288, 5
        %v2080 = vrot.slane %v2079, 4
        %v2081 = vrot.slane %v289, 5
        %v2082 = vsel %vm2043, %v2080, %v2081
        %v2083 = vrot.slane %v2081, 4
        %v2084 = vrot.slane %v290, 5
        %v2085 = vsel %vm2043, %v2083, %v2084
        %v2086 = vrot.slane %v291, 5
        %v2087 = vrot.slane %v2086, 4
        %v2088 = vrot.slane %v292, 5
        %v2089 = vsel %vm2043, %v2087, %v2088
        %v2090 = vrot.slane %v2088, 4
        %v2091 = vrot.slane %v293, 5
        %v2092 = vsel %vm2043, %v2090, %v2091
        %v2093 = vrot.slane %v294, 5
        %v2094 = vrot.slane %v2093, 4
        %v2095 = vrot.slane %v295, 5
        %v2096 = vsel %vm2043, %v2094, %v2095
        %v2097 = vrot.slane %v2095, 4
        %v2098 = vrot.slane %v296, 5
        %v2099 = vsel %vm2043, %v2097, %v2098
        %v2100 = vrot.slane %v297, 5
        %v2101 = vrot.slane %v2100, 4
        %v2102 = vrot.slane %v298, 5
        %v2103 = vsel %vm2043, %v2101, %v2102
        %v2104 = vrot.slane %v2102, 4
        %v2105 = vrot.slane %v299, 5
        %v2106 = vsel %vm2043, %v2104, %v2105
        %v2107 = vrot.slane %v300, 5
        %v2108 = vrot.slane %v2107, 4
        %v2109 = vrot.slane %v301, 5
        %v2110 = vsel %vm2043, %v2108, %v2109
        %v2111 = vrot.slane %v2109, 4
        %v2112 = vrot.slane %v302, 5
        %v2113 = vsel %vm2043, %v2111, %v2112
        %v2114 = vrot.slane %v303, 5
        %v2115 = vrot.slane %v2114, 4
        %v2116 = vrot.slane %v304, 5
        %v2117 = vsel %vm2043, %v2115, %v2116
        %v2118 = vrot.slane %v2116, 4
        %v2119 = vrot.slane %v305, 5
        %v2120 = vsel %vm2043, %v2118, %v2119
        %v2121 = vrot.slane %v306, 5
        %v2122 = vrot.slane %v2121, 4
        %v2123 = vrot.slane %v307, 5
        %v2124 = vsel %vm2043, %v2122, %v2123
        %v2125 = vrot.slane %v2123, 4
        %v2126 = vrot.slane %v308, 5
        %v2127 = vsel %vm2043, %v2125, %v2126
        %v2128 = vrot.slane %v309, 5
        %v2129 = vrot.slane %v2128, 4
        %v2130 = vrot.slane %v310, 5
        %v2131 = vsel %vm2043, %v2129, %v2130
        %v2132 = vrot.slane %v2130, 4
        %v2133 = vrot.slane %v311, 5
        %v2134 = vsel %vm2043, %v2132, %v2133
        %v2135 = vrot.slane %v312, 5
        %v2136 = vrot.slane %v2135, 4
        %v2137 = vrot.slane %v313, 5
        %v2138 = vsel %vm2043, %v2136, %v2137
        %v2139 = vrot.slane %v2137, 4
        %v2140 = vrot.slane %v314, 5
        %v2141 = vsel %vm2043, %v2139, %v2140
        %v2142 = vrot.slane %v315, 5
        %v2143 = vrot.slane %v2142, 4
        %v2144 = vrot.slane %v316, 5
        %v2145 = vsel %vm2043, %v2143, %v2144
        %v2146 = vrot.slane %v2144, 4
        %v2147 = vrot.slane %v317, 5
        %v2148 = vsel %vm2043, %v2146, %v2147
        %v2149 = vrot.slane %v318, 5
        %v2150 = vrot.slane %v2149, 4
        %v2151 = vrot.slane %v319, 5
        %v2152 = vsel %vm2043, %v2150, %v2151
        %v2153 = vrot.slane %v2151, 4
        %v2154 = vrot.slane %v320, 5
        %v2155 = vsel %vm2043, %v2153, %v2154
        %s2156 = scalar_lea.vmem [#allocation2], 512
        %v2157 = vld [vmem:[%s2156] sm:$0xff]
        %v2158 = vld [vmem:[%s2156 + $0x8] sm:$0xff]
        %v2159 = vld [vmem:[%s2156 + $0x10] sm:$0xff]
        %v2160 = vld [vmem:[%s2156 + $0x18] sm:$0xff]
        %v2161 = vld [vmem:[%s2156 + $0x20] sm:$0xff]
        %v2162 = vld [vmem:[%s2156 + $0x28] sm:$0xff]
        %v2163 = vld [vmem:[%s2156 + $0x30] sm:$0xff]
        %v2164 = vld [vmem:[%s2156 + $0x38] sm:$0xff]
        %v2165 = vld [vmem:[%s2156 + $0x40] sm:$0xff]
        %v2166 = vld [vmem:[%s2156 + $0x48] sm:$0xff]
        %v2167 = vld [vmem:[%s2156 + $0x50] sm:$0xff]
        %v2168 = vld [vmem:[%s2156 + $0x58] sm:$0xff]
        %v2169 = vld [vmem:[%s2156 + $0x60] sm:$0xff]
        %v2170 = vld [vmem:[%s2156 + $0x68] sm:$0xff]
        %v2171 = vld [vmem:[%s2156 + $0x70] sm:$0xff]
        %v2172 = vld [vmem:[%s2156 + $0x78] sm:$0xff]
        %v2173 = vld [vmem:[%s2156 + $0x80] sm:$0xff]
        %v2174 = vld [vmem:[%s2156 + $0x88] sm:$0xff]
        %v2175 = vld [vmem:[%s2156 + $0x90] sm:$0xff]
        %v2176 = vld [vmem:[%s2156 + $0x98] sm:$0xff]
        %v2177 = vld [vmem:[%s2156 + $0xa0] sm:$0xff]
        %v2178 = vld [vmem:[%s2156 + $0xa8] sm:$0xff]
        %v2179 = vld [vmem:[%s2156 + $0xb0] sm:$0xff]
        %v2180 = vld [vmem:[%s2156 + $0xb8] sm:$0xff]
        %v2181 = vld [vmem:[%s2156 + $0xc0] sm:$0xff]
        %v2182 = vld [vmem:[%s2156 + $0xc8] sm:$0xff]
        %v2183 = vld [vmem:[%s2156 + $0xd0] sm:$0xff]
        %v2184 = vld [vmem:[%s2156 + $0xd8] sm:$0xff]
        %v2185 = vld [vmem:[%s2156 + $0xe0] sm:$0xff]
        %v2186 = vld [vmem:[%s2156 + $0xe8] sm:$0xff]
        %v2187 = vld [vmem:[%s2156 + $0xf0] sm:$0xff]
        %v2188 = vld [vmem:[%s2156 + $0xf8] sm:$0xff]
        %v2189 = vunpack.c.l.b16 %v2047
        %v2190 = vunpack.c.l.b16 %v2050
        %v2191 = vunpack.c.l.b16 %v2054
        %v2192 = vunpack.c.l.b16 %v2057
        %v2193 = vunpack.c.l.b16 %v2061
        %v2194 = vunpack.c.l.b16 %v2064
        %v2195 = vunpack.c.l.b16 %v2068
        %v2196 = vunpack.c.l.b16 %v2071
        %v2197 = vunpack.c.l.b16 %v2075
        %v2198 = vunpack.c.l.b16 %v2078
        %v2199 = vunpack.c.l.b16 %v2082
        %v2200 = vunpack.c.l.b16 %v2085
        %v2201 = vunpack.c.l.b16 %v2089
        %v2202 = vunpack.c.l.b16 %v2092
        %v2203 = vunpack.c.l.b16 %v2096
        %v2204 = vunpack.c.l.b16 %v2099
        %v2205 = vunpack.c.l.b16 %v2103
        %v2206 = vunpack.c.l.b16 %v2106
        %v2207 = vunpack.c.l.b16 %v2110
        %v2208 = vunpack.c.l.b16 %v2113
        %v2209 = vunpack.c.l.b16 %v2117
        %v2210 = vunpack.c.l.b16 %v2120
        %v2211 = vunpack.c.l.b16 %v2124
        %v2212 = vunpack.c.l.b16 %v2127
        %v2213 = vunpack.c.l.b16 %v2131
        %v2214 = vunpack.c.l.b16 %v2134
        %v2215 = vunpack.c.l.b16 %v2138
        %v2216 = vunpack.c.l.b16 %v2141
        %v2217 = vunpack.c.l.b16 %v2145
        %v2218 = vunpack.c.l.b16 %v2148
        %v2219 = vunpack.c.l.b16 %v2152
        %v2220 = vunpack.c.l.b16 %v2155
        %v2221 = vpack.c.b16 %v2190, %v2189
        %v2222 = vpack.c.b16 %v2192, %v2191
        %v2223 = vpack.c.b16 %v2194, %v2193
        %v2224 = vpack.c.b16 %v2196, %v2195
        %v2225 = vpack.c.b16 %v2198, %v2197
        %v2226 = vpack.c.b16 %v2200, %v2199
        %v2227 = vpack.c.b16 %v2202, %v2201
        %v2228 = vpack.c.b16 %v2204, %v2203
        %v2229 = vpack.c.b16 %v2206, %v2205
        %v2230 = vpack.c.b16 %v2208, %v2207
        %v2231 = vpack.c.b16 %v2210, %v2209
        %v2232 = vpack.c.b16 %v2212, %v2211
        %v2233 = vpack.c.b16 %v2214, %v2213
        %v2234 = vpack.c.b16 %v2216, %v2215
        %v2235 = vpack.c.b16 %v2218, %v2217
        %v2236 = vpack.c.b16 %v2220, %v2219
        %v2285 = vunpack.c.l.b16 %v2157
        %v2286 = vunpack.c.h.b16 %v2157
        %v2287 = vunpack.c.l.b16 %v2158
        %v2288 = vunpack.c.h.b16 %v2158
        %v2289 = vunpack.c.l.b16 %v2159
        %v2290 = vunpack.c.h.b16 %v2159
        %v2291 = vunpack.c.l.b16 %v2160
        %v2292 = vunpack.c.h.b16 %v2160
        %v2293 = vunpack.c.l.b16 %v2161
        %v2294 = vunpack.c.h.b16 %v2161
        %v2295 = vunpack.c.l.b16 %v2162
        %v2296 = vunpack.c.h.b16 %v2162
        %v2297 = vunpack.c.l.b16 %v2163
        %v2298 = vunpack.c.h.b16 %v2163
        %v2299 = vunpack.c.l.b16 %v2164
        %v2300 = vunpack.c.h.b16 %v2164
        %v2301 = vunpack.c.l.b16 %v2165
        %v2302 = vunpack.c.h.b16 %v2165
        %v2303 = vunpack.c.l.b16 %v2166
        %v2304 = vunpack.c.h.b16 %v2166
        %v2305 = vunpack.c.l.b16 %v2167
        %v2306 = vunpack.c.h.b16 %v2167
        %v2307 = vunpack.c.l.b16 %v2168
        %v2308 = vunpack.c.h.b16 %v2168
        %v2309 = vunpack.c.l.b16 %v2169
        %v2310 = vunpack.c.h.b16 %v2169
        %v2311 = vunpack.c.l.b16 %v2170
        %v2312 = vunpack.c.h.b16 %v2170
        %v2313 = vunpack.c.l.b16 %v2171
        %v2314 = vunpack.c.h.b16 %v2171
        %v2315 = vunpack.c.l.b16 %v2172
        %v2316 = vunpack.c.h.b16 %v2172
        %v2317 = vunpack.c.l.b16 %v2173
        %v2318 = vunpack.c.h.b16 %v2173
        %v2319 = vunpack.c.l.b16 %v2174
        %v2320 = vunpack.c.h.b16 %v2174
        %v2321 = vunpack.c.l.b16 %v2175
        %v2322 = vunpack.c.h.b16 %v2175
        %v2323 = vunpack.c.l.b16 %v2176
        %v2324 = vunpack.c.h.b16 %v2176
        %v2325 = vunpack.c.l.b16 %v2177
        %v2326 = vunpack.c.h.b16 %v2177
        %v2327 = vunpack.c.l.b16 %v2178
        %v2328 = vunpack.c.h.b16 %v2178
        %v2329 = vunpack.c.l.b16 %v2179
        %v2330 = vunpack.c.h.b16 %v2179
        %v2331 = vunpack.c.l.b16 %v2180
        %v2332 = vunpack.c.h.b16 %v2180
        %v2333 = vunpack.c.l.b16 %v2181
        %v2334 = vunpack.c.h.b16 %v2181
        %v2335 = vunpack.c.l.b16 %v2182
        %v2336 = vunpack.c.h.b16 %v2182
        %v2337 = vunpack.c.l.b16 %v2183
        %v2338 = vunpack.c.h.b16 %v2183
        %v2339 = vunpack.c.l.b16 %v2184
        %v2340 = vunpack.c.h.b16 %v2184
        %v2341 = vunpack.c.l.b16 %v2185
        %v2342 = vunpack.c.h.b16 %v2185
        %v2343 = vunpack.c.l.b16 %v2186
        %v2344 = vunpack.c.h.b16 %v2186
        %v2345 = vunpack.c.l.b16 %v2187
        %v2346 = vunpack.c.h.b16 %v2187
        %v2347 = vunpack.c.l.b16 %v2188
        %v2348 = vunpack.c.h.b16 %v2188
        %v2349 = vpack.c.b16 %v2289, %v2285
        %v2350 = vpack.c.b16 %v2290, %v2286
        %v2351 = vpack.c.b16 %v2291, %v2287
        %v2352 = vpack.c.b16 %v2292, %v2288
        %v2353 = vpack.c.b16 %v2297, %v2293
        %v2354 = vpack.c.b16 %v2298, %v2294
        %v2355 = vpack.c.b16 %v2299, %v2295
        %v2356 = vpack.c.b16 %v2300, %v2296
        %v2357 = vpack.c.b16 %v2305, %v2301
        %v2358 = vpack.c.b16 %v2306, %v2302
        %v2359 = vpack.c.b16 %v2307, %v2303
        %v2360 = vpack.c.b16 %v2308, %v2304
        %v2361 = vpack.c.b16 %v2313, %v2309
        %v2362 = vpack.c.b16 %v2314, %v2310
        %v2363 = vpack.c.b16 %v2315, %v2311
        %v2364 = vpack.c.b16 %v2316, %v2312
        %v2365 = vpack.c.b16 %v2321, %v2317
        %v2366 = vpack.c.b16 %v2322, %v2318
        %v2367 = vpack.c.b16 %v2323, %v2319
        %v2368 = vpack.c.b16 %v2324, %v2320
        %v2369 = vpack.c.b16 %v2329, %v2325
        %v2370 = vpack.c.b16 %v2330, %v2326
        %v2371 = vpack.c.b16 %v2331, %v2327
        %v2372 = vpack.c.b16 %v2332, %v2328
        %v2373 = vpack.c.b16 %v2337, %v2333
        %v2374 = vpack.c.b16 %v2338, %v2334
        %v2375 = vpack.c.b16 %v2339, %v2335
        %v2376 = vpack.c.b16 %v2340, %v2336
        %v2377 = vpack.c.b16 %v2345, %v2341
        %v2378 = vpack.c.b16 %v2346, %v2342
        %v2379 = vpack.c.b16 %v2347, %v2343
        %v2380 = vpack.c.b16 %v2348, %v2344
        %2413 = vmatprep.subr.bf16.mxu0 %v2350
        %2414 = vmatpush1.bf16.msra.mxu0 %v2349
        %2415 = vmatprep.subr.bf16.mxu0 %v2354
        %2416 = vmatpush1.bf16.msra.mxu0 %v2353
        %2417 = vmatprep.subr.bf16.mxu0 %v2358
        %2418 = vmatpush1.bf16.msra.mxu0 %v2357
        %2419 = vmatprep.subr.bf16.mxu0 %v2362
        %2420 = vmatpush1.bf16.msra.mxu0 %v2361
        %2421 = vmatprep.subr.bf16.mxu0 %v2366
        %2422 = vmatpush1.bf16.msra.mxu0 %v2365
        %2423 = vmatprep.subr.bf16.mxu0 %v2370
        %2424 = vmatpush1.bf16.msra.mxu0 %v2369
        %2425 = vmatprep.subr.bf16.mxu0 %v2374
        %2426 = vmatpush1.bf16.msra.mxu0 %v2373
        %2427 = vmatprep.subr.bf16.mxu0 %v2378
        %2428 = vmatpush1.bf16.msra.mxu0 %v2377
        %2429 = vmatprep.subr.bf16.mxu0 0
        %2430 = vmatpush1.bf16.msra.mxu0 0
        %2431 = vmatprep.subr.bf16.mxu0 0
        %2432 = vmatpush1.bf16.msra.mxu0 0
        %2433 = vmatprep.subr.bf16.mxu0 0
        %2434 = vmatpush1.bf16.msra.mxu0 0
        %2435 = vmatprep.subr.bf16.mxu0 0
        %2436 = vmatpush1.bf16.msra.mxu0 0
        %2437 = vmatprep.subr.bf16.mxu0 0
        %2438 = vmatpush1.bf16.msra.mxu0 0
        %2439 = vmatprep.subr.bf16.mxu0 0
        %2440 = vmatpush1.bf16.msra.mxu0 0
        %2441 = vmatprep.subr.bf16.mxu0 0
        %2442 = vmatpush1.bf16.msra.mxu0 0
        %2443 = vmatprep.subr.bf16.mxu0 0
        %2444 = vmatpush1.bf16.msra.mxu0 0
        %2445 = vmatprep.mubr.bf16.mxu0 0
        %2446 = vmatmul.mubr.bf16.gmra.mrb[0].mxu0 %v2221
        %v2447 = vpop.f32.mrb[0].mxu0
        %v2448 = vadd.f32 0.0, %v2447
        %v2449 = vpop.f32.mrb[0].mxu0
        %v2450 = vadd.f32 0.0, %v2449
        %v2451 = vpop.f32.mrb[0].mxu0
        %v2452 = vadd.f32 0.0, %v2451
        %v2453 = vpop.f32.mrb[0].mxu0
        %v2454 = vadd.f32 0.0, %v2453
        %2455 = vmatprep.mubr.bf16.mxu0 0
        %2456 = vmatmul.mubr.bf16.gmra.mrb[0].mxu0 %v2222
        %v2457 = vpop.f32.mrb[0].mxu0
        %v2458 = vadd.f32 0.0, %v2457
        %v2459 = vpop.f32.mrb[0].mxu0
        %v2460 = vadd.f32 0.0, %v2459
        %v2461 = vpop.f32.mrb[0].mxu0
        %v2462 = vadd.f32 0.0, %v2461
        %v2463 = vpop.f32.mrb[0].mxu0
        %v2464 = vadd.f32 0.0, %v2463
        %2465 = vmatprep.mubr.bf16.mxu0 0
        %2466 = vmatmul.mubr.bf16.gmra.mrb[0].mxu0 %v2223
        %v2467 = vpop.f32.mrb[0].mxu0
        %v2468 = vadd.f32 0.0, %v2467
        %v2469 = vpop.f32.mrb[0].mxu0
        %v2470 = vadd.f32 0.0, %v2469
        %v2471 = vpop.f32.mrb[0].mxu0
        %v2472 = vadd.f32 0.0, %v2471
        %v2473 = vpop.f32.mrb[0].mxu0
        %v2474 = vadd.f32 0.0, %v2473
        %2475 = vmatprep.mubr.bf16.mxu0 0
        %2476 = vmatmul.mubr.bf16.gmra.mrb[0].mxu0 %v2224
        %v2477 = vpop.f32.mrb[0].mxu0
        %v2478 = vadd.f32 0.0, %v2477
        %v2479 = vpop.f32.mrb[0].mxu0
        %v2480 = vadd.f32 0.0, %v2479
        %v2481 = vpop.f32.mrb[0].mxu0
        %v2482 = vadd.f32 0.0, %v2481
        %v2483 = vpop.f32.mrb[0].mxu0
        %v2484 = vadd.f32 0.0, %v2483
        %2485 = vmatprep.mubr.bf16.mxu0 0
        %2486 = vmatmul.mubr.bf16.gmra.mrb[0].mxu0 %v2225
        %v2487 = vpop.f32.mrb[0].mxu0
        %v2488 = vadd.f32 0.0, %v2487
        %v2489 = vpop.f32.mrb[0].mxu0
        %v2490 = vadd.f32 0.0, %v2489
        %v2491 = vpop.f32.mrb[0].mxu0
        %v2492 = vadd.f32 0.0, %v2491
        %v2493 = vpop.f32.mrb[0].mxu0
        %v2494 = vadd.f32 0.0, %v2493
        %2495 = vmatprep.mubr.bf16.mxu0 0
        %2496 = vmatmul.mubr.bf16.gmra.mrb[0].mxu0 %v2226
        %v2497 = vpop.f32.mrb[0].mxu0
        %v2498 = vadd.f32 0.0, %v2497
        %v2499 = vpop.f32.mrb[0].mxu0
        %v2500 = vadd.f32 0.0, %v2499
        %v2501 = vpop.f32.mrb[0].mxu0
        %v2502 = vadd.f32 0.0, %v2501
        %v2503 = vpop.f32.mrb[0].mxu0
        %v2504 = vadd.f32 0.0, %v2503
        %2505 = vmatprep.mubr.bf16.mxu0 0
        %2506 = vmatmul.mubr.bf16.gmra.mrb[0].mxu0 %v2227
        %v2507 = vpop.f32.mrb[0].mxu0
        %v2508 = vadd.f32 0.0, %v2507
        %v2509 = vpop.f32.mrb[0].mxu0
        %v2510 = vadd.f32 0.0, %v2509
        %v2511 = vpop.f32.mrb[0].mxu0
        %v2512 = vadd.f32 0.0, %v2511
        %v2513 = vpop.f32.mrb[0].mxu0
        %v2514 = vadd.f32 0.0, %v2513
        %2515 = vmatprep.mubr.bf16.mxu0 0
        %2516 = vmatmul.mubr.bf16.gmra.mrb[0].mxu0 %v2228
        %v2517 = vpop.f32.mrb[0].mxu0
        %v2518 = vadd.f32 0.0, %v2517
        %v2519 = vpop.f32.mrb[0].mxu0
        %v2520 = vadd.f32 0.0, %v2519
        %v2521 = vpop.f32.mrb[0].mxu0
        %v2522 = vadd.f32 0.0, %v2521
        %v2523 = vpop.f32.mrb[0].mxu0
        %v2524 = vadd.f32 0.0, %v2523
        %2525 = vmatprep.mubr.bf16.mxu0 0
        %2526 = vmatmul.mubr.bf16.gmra.mrb[0].mxu0 %v2229
        %v2527 = vpop.f32.mrb[0].mxu0
        %v2528 = vadd.f32 0.0, %v2527
        %v2529 = vpop.f32.mrb[0].mxu0
        %v2530 = vadd.f32 0.0, %v2529
        %v2531 = vpop.f32.mrb[0].mxu0
        %v2532 = vadd.f32 0.0, %v2531
        %v2533 = vpop.f32.mrb[0].mxu0
        %v2534 = vadd.f32 0.0, %v2533
        %2535 = vmatprep.mubr.bf16.mxu0 0
        %2536 = vmatmul.mubr.bf16.gmra.mrb[0].mxu0 %v2230
        %v2537 = vpop.f32.mrb[0].mxu0
        %v2538 = vadd.f32 0.0, %v2537
        %v2539 = vpop.f32.mrb[0].mxu0
        %v2540 = vadd.f32 0.0, %v2539
        %v2541 = vpop.f32.mrb[0].mxu0
        %v2542 = vadd.f32 0.0, %v2541
        %v2543 = vpop.f32.mrb[0].mxu0
        %v2544 = vadd.f32 0.0, %v2543
        %2545 = vmatprep.mubr.bf16.mxu0 0
        %2546 = vmatmul.mubr.bf16.gmra.mrb[0].mxu0 %v2231
        %v2547 = vpop.f32.mrb[0].mxu0
        %v2548 = vadd.f32 0.0, %v2547
        %v2549 = vpop.f32.mrb[0].mxu0
        %v2550 = vadd.f32 0.0, %v2549
        %v2551 = vpop.f32.mrb[0].mxu0
        %v2552 = vadd.f32 0.0, %v2551
        %v2553 = vpop.f32.mrb[0].mxu0
        %v2554 = vadd.f32 0.0, %v2553
        %2555 = vmatprep.mubr.bf16.mxu0 0
        %2556 = vmatmul.mubr.bf16.gmra.mrb[0].mxu0 %v2232
        %v2557 = vpop.f32.mrb[0].mxu0
        %v2558 = vadd.f32 0.0, %v2557
        %v2559 = vpop.f32.mrb[0].mxu0
        %v2560 = vadd.f32 0.0, %v2559
        %v2561 = vpop.f32.mrb[0].mxu0
        %v2562 = vadd.f32 0.0, %v2561
        %v2563 = vpop.f32.mrb[0].mxu0
        %v2564 = vadd.f32 0.0, %v2563
        %2565 = vmatprep.mubr.bf16.mxu0 0
        %2566 = vmatmul.mubr.bf16.gmra.mrb[0].mxu0 %v2233
        %v2567 = vpop.f32.mrb[0].mxu0
        %v2568 = vadd.f32 0.0, %v2567
        %v2569 = vpop.f32.mrb[0].mxu0
        %v2570 = vadd.f32 0.0, %v2569
        %v2571 = vpop.f32.mrb[0].mxu0
        %v2572 = vadd.f32 0.0, %v2571
        %v2573 = vpop.f32.mrb[0].mxu0
        %v2574 = vadd.f32 0.0, %v2573
        %2575 = vmatprep.mubr.bf16.mxu0 0
        %2576 = vmatmul.mubr.bf16.gmra.mrb[0].mxu0 %v2234
        %v2577 = vpop.f32.mrb[0].mxu0
        %v2578 = vadd.f32 0.0, %v2577
        %v2579 = vpop.f32.mrb[0].mxu0
        %v2580 = vadd.f32 0.0, %v2579
        %v2581 = vpop.f32.mrb[0].mxu0
        %v2582 = vadd.f32 0.0, %v2581
        %v2583 = vpop.f32.mrb[0].mxu0
        %v2584 = vadd.f32 0.0, %v2583
        %2585 = vmatprep.mubr.bf16.mxu0 0
        %2586 = vmatmul.mubr.bf16.gmra.mrb[0].mxu0 %v2235
        %v2587 = vpop.f32.mrb[0].mxu0
        %v2588 = vadd.f32 0.0, %v2587
        %v2589 = vpop.f32.mrb[0].mxu0
        %v2590 = vadd.f32 0.0, %v2589
        %v2591 = vpop.f32.mrb[0].mxu0
        %v2592 = vadd.f32 0.0, %v2591
        %v2593 = vpop.f32.mrb[0].mxu0
        %v2594 = vadd.f32 0.0, %v2593
        %2595 = vmatprep.mubr.bf16.mxu0 0
        %2596 = vmatmul.mubr.bf16.gmra.mrb[0].mxu0 %v2236
        %v2597 = vpop.f32.mrb[0].mxu0
        %v2598 = vadd.f32 0.0, %v2597
        %v2599 = vpop.f32.mrb[0].mxu0
        %v2600 = vadd.f32 0.0, %v2599
        %v2601 = vpop.f32.mrb[0].mxu0
        %v2602 = vadd.f32 0.0, %v2601
        %v2603 = vpop.f32.mrb[0].mxu0
        %v2604 = vadd.f32 0.0, %v2603
        %2605 = vdwg.mxu0
        %2606 = vmatprep.subr.bf16.mxu0 %v2352
        %2607 = vmatpush1.bf16.msra.mxu0 %v2351
        %2608 = vmatprep.subr.bf16.mxu0 %v2356
        %2609 = vmatpush1.bf16.msra.mxu0 %v2355
        %2610 = vmatprep.subr.bf16.mxu0 %v2360
        %2611 = vmatpush1.bf16.msra.mxu0 %v2359
        %2612 = vmatprep.subr.bf16.mxu0 %v2364
        %2613 = vmatpush1.bf16.msra.mxu0 %v2363
        %2614 = vmatprep.subr.bf16.mxu0 %v2368
        %2615 = vmatpush1.bf16.msra.mxu0 %v2367
        %2616 = vmatprep.subr.bf16.mxu0 %v2372
        %2617 = vmatpush1.bf16.msra.mxu0 %v2371
        %2618 = vmatprep.subr.bf16.mxu0 %v2376
        %2619 = vmatpush1.bf16.msra.mxu0 %v2375
        %2620 = vmatprep.subr.bf16.mxu0 %v2380
        %2621 = vmatpush1.bf16.msra.mxu0 %v2379
        %2622 = vmatprep.subr.bf16.mxu0 0
        %2623 = vmatpush1.bf16.msra.mxu0 0
        %2624 = vmatprep.subr.bf16.mxu0 0
        %2625 = vmatpush1.bf16.msra.mxu0 0
        %2626 = vmatprep.subr.bf16.mxu0 0
        %2627 = vmatpush1.bf16.msra.mxu0 0
        %2628 = vmatprep.subr.bf16.mxu0 0
        %2629 = vmatpush1.bf16.msra.mxu0 0
        %2630 = vmatprep.subr.bf16.mxu0 0
        %2631 = vmatpush1.bf16.msra.mxu0 0
        %2632 = vmatprep.subr.bf16.mxu0 0
        %2633 = vmatpush1.bf16.msra.mxu0 0
        %2634 = vmatprep.subr.bf16.mxu0 0
        %2635 = vmatpush1.bf16.msra.mxu0 0
        %2636 = vmatprep.subr.bf16.mxu0 0
        %2637 = vmatpush1.bf16.msra.mxu0 0
        %2638 = vmatprep.mubr.bf16.mxu0 0
        %2639 = vmatmul.mubr.bf16.gmra.mrb[0].mxu0 %v2221
        %v2640 = vpop.f32.mrb[0].mxu0
        %v2641 = vadd.f32 0.0, %v2640
        %v2642 = vpop.f32.mrb[0].mxu0
        %v2643 = vadd.f32 0.0, %v2642
        %v2644 = vpop.f32.mrb[0].mxu0
        %v2645 = vadd.f32 0.0, %v2644
        %v2646 = vpop.f32.mrb[0].mxu0
        %v2647 = vadd.f32 0.0, %v2646
        %2648 = vmatprep.mubr.bf16.mxu0 0
        %2649 = vmatmul.mubr.bf16.gmra.mrb[0].mxu0 %v2222
        %v2650 = vpop.f32.mrb[0].mxu0
        %v2651 = vadd.f32 0.0, %v2650
        %v2652 = vpop.f32.mrb[0].mxu0
        %v2653 = vadd.f32 0.0, %v2652
        %v2654 = vpop.f32.mrb[0].mxu0
        %v2655 = vadd.f32 0.0, %v2654
        %v2656 = vpop.f32.mrb[0].mxu0
        %v2657 = vadd.f32 0.0, %v2656
        %2658 = vmatprep.mubr.bf16.mxu0 0
        %2659 = vmatmul.mubr.bf16.gmra.mrb[0].mxu0 %v2223
        %v2660 = vpop.f32.mrb[0].mxu0
        %v2661 = vadd.f32 0.0, %v2660
        %v2662 = vpop.f32.mrb[0].mxu0
        %v2663 = vadd.f32 0.0, %v2662
        %v2664 = vpop.f32.mrb[0].mxu0
        %v2665 = vadd.f32 0.0, %v2664
        %v2666 = vpop.f32.mrb[0].mxu0
        %v2667 = vadd.f32 0.0, %v2666
        %2668 = vmatprep.mubr.bf16.mxu0 0
        %2669 = vmatmul.mubr.bf16.gmra.mrb[0].mxu0 %v2224
        %v2670 = vpop.f32.mrb[0].mxu0
        %v2671 = vadd.f32 0.0, %v2670
        %v2672 = vpop.f32.mrb[0].mxu0
        %v2673 = vadd.f32 0.0, %v2672
        %v2674 = vpop.f32.mrb[0].mxu0
        %v2675 = vadd.f32 0.0, %v2674
        %v2676 = vpop.f32.mrb[0].mxu0
        %v2677 = vadd.f32 0.0, %v2676
        %2678 = vmatprep.mubr.bf16.mxu0 0
        %2679 = vmatmul.mubr.bf16.gmra.mrb[0].mxu0 %v2225
        %v2680 = vpop.f32.mrb[0].mxu0
        %v2681 = vadd.f32 0.0, %v2680
        %v2682 = vpop.f32.mrb[0].mxu0
        %v2683 = vadd.f32 0.0, %v2682
        %v2684 = vpop.f32.mrb[0].mxu0
        %v2685 = vadd.f32 0.0, %v2684
        %v2686 = vpop.f32.mrb[0].mxu0
        %v2687 = vadd.f32 0.0, %v2686
        %2688 = vmatprep.mubr.bf16.mxu0 0
        %2689 = vmatmul.mubr.bf16.gmra.mrb[0].mxu0 %v2226
        %v2690 = vpop.f32.mrb[0].mxu0
        %v2691 = vadd.f32 0.0, %v2690
        %v2692 = vpop.f32.mrb[0].mxu0
        %v2693 = vadd.f32 0.0, %v2692
        %v2694 = vpop.f32.mrb[0].mxu0
        %v2695 = vadd.f32 0.0, %v2694
        %v2696 = vpop.f32.mrb[0].mxu0
        %v2697 = vadd.f32 0.0, %v2696
        %2698 = vmatprep.mubr.bf16.mxu0 0
        %2699 = vmatmul.mubr.bf16.gmra.mrb[0].mxu0 %v2227
        %v2700 = vpop.f32.mrb[0].mxu0
        %v2701 = vadd.f32 0.0, %v2700
        %v2702 = vpop.f32.mrb[0].mxu0
        %v2703 = vadd.f32 0.0, %v2702
        %v2704 = vpop.f32.mrb[0].mxu0
        %v2705 = vadd.f32 0.0, %v2704
        %v2706 = vpop.f32.mrb[0].mxu0
        %v2707 = vadd.f32 0.0, %v2706
        %2708 = vmatprep.mubr.bf16.mxu0 0
        %2709 = vmatmul.mubr.bf16.gmra.mrb[0].mxu0 %v2228
        %v2710 = vpop.f32.mrb[0].mxu0
        %v2711 = vadd.f32 0.0, %v2710
        %v2712 = vpop.f32.mrb[0].mxu0
        %v2713 = vadd.f32 0.0, %v2712
        %v2714 = vpop.f32.mrb[0].mxu0
        %v2715 = vadd.f32 0.0, %v2714
        %v2716 = vpop.f32.mrb[0].mxu0
        %v2717 = vadd.f32 0.0, %v2716
        %2718 = vmatprep.mubr.bf16.mxu0 0
        %2719 = vmatmul.mubr.bf16.gmra.mrb[0].mxu0 %v2229
        %v2720 = vpop.f32.mrb[0].mxu0
        %v2721 = vadd.f32 0.0, %v2720
        %v2722 = vpop.f32.mrb[0].mxu0
        %v2723 = vadd.f32 0.0, %v2722
        %v2724 = vpop.f32.mrb[0].mxu0
        %v2725 = vadd.f32 0.0, %v2724
        %v2726 = vpop.f32.mrb[0].mxu0
        %v2727 = vadd.f32 0.0, %v2726
        %2728 = vmatprep.mubr.bf16.mxu0 0
        %2729 = vmatmul.mubr.bf16.gmra.mrb[0].mxu0 %v2230
        %v2730 = vpop.f32.mrb[0].mxu0
        %v2731 = vadd.f32 0.0, %v2730
        %v2732 = vpop.f32.mrb[0].mxu0
        %v2733 = vadd.f32 0.0, %v2732
        %v2734 = vpop.f32.mrb[0].mxu0
        %v2735 = vadd.f32 0.0, %v2734
        %v2736 = vpop.f32.mrb[0].mxu0
        %v2737 = vadd.f32 0.0, %v2736
        %2738 = vmatprep.mubr.bf16.mxu0 0
        %2739 = vmatmul.mubr.bf16.gmra.mrb[0].mxu0 %v2231
        %v2740 = vpop.f32.mrb[0].mxu0
        %v2741 = vadd.f32 0.0, %v2740
        %v2742 = vpop.f32.mrb[0].mxu0
        %v2743 = vadd.f32 0.0, %v2742
        %v2744 = vpop.f32.mrb[0].mxu0
        %v2745 = vadd.f32 0.0, %v2744
        %v2746 = vpop.f32.mrb[0].mxu0
        %v2747 = vadd.f32 0.0, %v2746
        %2748 = vmatprep.mubr.bf16.mxu0 0
        %2749 = vmatmul.mubr.bf16.gmra.mrb[0].mxu0 %v2232
        %v2750 = vpop.f32.mrb[0].mxu0
        %v2751 = vadd.f32 0.0, %v2750
        %v2752 = vpop.f32.mrb[0].mxu0
        %v2753 = vadd.f32 0.0, %v2752
        %v2754 = vpop.f32.mrb[0].mxu0
        %v2755 = vadd.f32 0.0, %v2754
        %v2756 = vpop.f32.mrb[0].mxu0
        %v2757 = vadd.f32 0.0, %v2756
        %2758 = vmatprep.mubr.bf16.mxu0 0
        %2759 = vmatmul.mubr.bf16.gmra.mrb[0].mxu0 %v2233
        %v2760 = vpop.f32.mrb[0].mxu0
        %v2761 = vadd.f32 0.0, %v2760
        %v2762 = vpop.f32.mrb[0].mxu0
        %v2763 = vadd.f32 0.0, %v2762
        %v2764 = vpop.f32.mrb[0].mxu0
        %v2765 = vadd.f32 0.0, %v2764
        %v2766 = vpop.f32.mrb[0].mxu0
        %v2767 = vadd.f32 0.0, %v2766
        %2768 = vmatprep.mubr.bf16.mxu0 0
        %2769 = vmatmul.mubr.bf16.gmra.mrb[0].mxu0 %v2234
        %v2770 = vpop.f32.mrb[0].mxu0
        %v2771 = vadd.f32 0.0, %v2770
        %v2772 = vpop.f32.mrb[0].mxu0
        %v2773 = vadd.f32 0.0, %v2772
        %v2774 = vpop.f32.mrb[0].mxu0
        %v2775 = vadd.f32 0.0, %v2774
        %v2776 = vpop.f32.mrb[0].mxu0
        %v2777 = vadd.f32 0.0, %v2776
        %2778 = vmatprep.mubr.bf16.mxu0 0
        %2779 = vmatmul.mubr.bf16.gmra.mrb[0].mxu0 %v2235
        %v2780 = vpop.f32.mrb[0].mxu0
        %v2781 = vadd.f32 0.0, %v2780
        %v2782 = vpop.f32.mrb[0].mxu0
        %v2783 = vadd.f32 0.0, %v2782
        %v2784 = vpop.f32.mrb[0].mxu0
        %v2785 = vadd.f32 0.0, %v2784
        %v2786 = vpop.f32.mrb[0].mxu0
        %v2787 = vadd.f32 0.0, %v2786
        %2788 = vmatprep.mubr.bf16.mxu0 0
        %2789 = vmatmul.mubr.bf16.gmra.mrb[0].mxu0 %v2236
        %v2790 = vpop.f32.mrb[0].mxu0
        %v2791 = vadd.f32 0.0, %v2790
        %v2792 = vpop.f32.mrb[0].mxu0
        %v2793 = vadd.f32 0.0, %v2792
        %v2794 = vpop.f32.mrb[0].mxu0
        %v2795 = vadd.f32 0.0, %v2794
        %v2796 = vpop.f32.mrb[0].mxu0
        %v2797 = vadd.f32 0.0, %v2796
        %2798 = vdwg.mxu0
        %v2799 = vadd.f32 %v1674, %v2448
        %v2800 = vadd.f32 %v1676, %v2450
        %v2801 = vadd.f32 %v1867, %v2641
        %v2802 = vadd.f32 %v1869, %v2643
        %v2803 = vadd.f32 %v1678, %v2452
        %v2804 = vadd.f32 %v1680, %v2454
        %v2805 = vadd.f32 %v1871, %v2645
        %v2806 = vadd.f32 %v1873, %v2647
        %v2807 = vadd.f32 %v1684, %v2458
        %v2808 = vadd.f32 %v1686, %v2460
        %v2809 = vadd.f32 %v1877, %v2651
        %v2810 = vadd.f32 %v1879, %v2653
        %v2811 = vadd.f32 %v1688, %v2462
        %v2812 = vadd.f32 %v1690, %v2464
        %v2813 = vadd.f32 %v1881, %v2655
        %v2814 = vadd.f32 %v1883, %v2657
        %v2815 = vadd.f32 %v1694, %v2468
        %v2816 = vadd.f32 %v1696, %v2470
        %v2817 = vadd.f32 %v1887, %v2661
        %v2818 = vadd.f32 %v1889, %v2663
        %v2819 = vadd.f32 %v1698, %v2472
        %v2820 = vadd.f32 %v1700, %v2474
        %v2821 = vadd.f32 %v1891, %v2665
        %v2822 = vadd.f32 %v1893, %v2667
        %v2823 = vadd.f32 %v1704, %v2478
        %v2824 = vadd.f32 %v1706, %v2480
        %v2825 = vadd.f32 %v1897, %v2671
        %v2826 = vadd.f32 %v1899, %v2673
        %v2827 = vadd.f32 %v1708, %v2482
        %v2828 = vadd.f32 %v1710, %v2484
        %v2829 = vadd.f32 %v1901, %v2675
        %v2830 = vadd.f32 %v1903, %v2677
        %v2831 = vadd.f32 %v1714, %v2488
        %v2832 = vadd.f32 %v1716, %v2490
        %v2833 = vadd.f32 %v1907, %v2681
        %v2834 = vadd.f32 %v1909, %v2683
        %v2835 = vadd.f32 %v1718, %v2492
        %v2836 = vadd.f32 %v1720, %v2494
        %v2837 = vadd.f32 %v1911, %v2685
        %v2838 = vadd.f32 %v1913, %v2687
        %v2839 = vadd.f32 %v1724, %v2498
        %v2840 = vadd.f32 %v1726, %v2500
        %v2841 = vadd.f32 %v1917, %v2691
        %v2842 = vadd.f32 %v1919, %v2693
        %v2843 = vadd.f32 %v1728, %v2502
        %v2844 = vadd.f32 %v1730, %v2504
        %v2845 = vadd.f32 %v1921, %v2695
        %v2846 = vadd.f32 %v1923, %v2697
        %v2847 = vadd.f32 %v1734, %v2508
        %v2848 = vadd.f32 %v1736, %v2510
        %v2849 = vadd.f32 %v1927, %v2701
        %v2850 = vadd.f32 %v1929, %v2703
        %v2851 = vadd.f32 %v1738, %v2512
        %v2852 = vadd.f32 %v1740, %v2514
        %v2853 = vadd.f32 %v1931, %v2705
        %v2854 = vadd.f32 %v1933, %v2707
        %v2855 = vadd.f32 %v1744, %v2518
        %v2856 = vadd.f32 %v1746, %v2520
        %v2857 = vadd.f32 %v1937, %v2711
        %v2858 = vadd.f32 %v1939, %v2713
        %v2859 = vadd.f32 %v1748, %v2522
        %v2860 = vadd.f32 %v1750, %v2524
        %v2861 = vadd.f32 %v1941, %v2715
        %v2862 = vadd.f32 %v1943, %v2717
        %v2863 = vadd.f32 %v1754, %v2528
        %v2864 = vadd.f32 %v1756, %v2530
        %v2865 = vadd.f32 %v1947, %v2721
        %v2866 = vadd.f32 %v1949, %v2723
        %v2867 = vadd.f32 %v1758, %v2532
        %v2868 = vadd.f32 %v1760, %v2534
        %v2869 = vadd.f32 %v1951, %v2725
        %v2870 = vadd.f32 %v1953, %v2727
        %v2871 = vadd.f32 %v1764, %v2538
        %v2872 = vadd.f32 %v1766, %v2540
        %v2873 = vadd.f32 %v1957, %v2731
        %v2874 = vadd.f32 %v1959, %v2733
        %v2875 = vadd.f32 %v1768, %v2542
        %v2876 = vadd.f32 %v1770, %v2544
        %v2877 = vadd.f32 %v1961, %v2735
        %v2878 = vadd.f32 %v1963, %v2737
        %v2879 = vadd.f32 %v1774, %v2548
        %v2880 = vadd.f32 %v1776, %v2550
        %v2881 = vadd.f32 %v1967, %v2741
        %v2882 = vadd.f32 %v1969, %v2743
        %v2883 = vadd.f32 %v1778, %v2552
        %v2884 = vadd.f32 %v1780, %v2554
        %v2885 = vadd.f32 %v1971, %v2745
        %v2886 = vadd.f32 %v1973, %v2747
        %v2887 = vadd.f32 %v1784, %v2558
        %v2888 = vadd.f32 %v1786, %v2560
        %v2889 = vadd.f32 %v1977, %v2751
        %v2890 = vadd.f32 %v1979, %v2753
        %v2891 = vadd.f32 %v1788, %v2562
        %v2892 = vadd.f32 %v1790, %v2564
        %v2893 = vadd.f32 %v1981, %v2755
        %v2894 = vadd.f32 %v1983, %v2757
        %v2895 = vadd.f32 %v1794, %v2568
        %v2896 = vadd.f32 %v1796, %v2570
        %v2897 = vadd.f32 %v1987, %v2761
        %v2898 = vadd.f32 %v1989, %v2763
        %v2899 = vadd.f32 %v1798, %v2572
        %v2900 = vadd.f32 %v1800, %v2574
        %v2901 = vadd.f32 %v1991, %v2765
        %v2902 = vadd.f32 %v1993, %v2767
        %v2903 = vadd.f32 %v1804, %v2578
        %v2904 = vadd.f32 %v1806, %v2580
        %v2905 = vadd.f32 %v1997, %v2771
        %v2906 = vadd.f32 %v1999, %v2773
        %v2907 = vadd.f32 %v1808, %v2582
        %v2908 = vadd.f32 %v1810, %v2584
        %v2909 = vadd.f32 %v2001, %v2775
        %v2910 = vadd.f32 %v2003, %v2777
        %v2911 = vadd.f32 %v1814, %v2588
        %v2912 = vadd.f32 %v1816, %v2590
        %v2913 = vadd.f32 %v2007, %v2781
        %v2914 = vadd.f32 %v2009, %v2783
        %v2915 = vadd.f32 %v1818, %v2592
        %v2916 = vadd.f32 %v1820, %v2594
        %v2917 = vadd.f32 %v2011, %v2785
        %v2918 = vadd.f32 %v2013, %v2787
        %v2919 = vadd.f32 %v1824, %v2598
        %v2920 = vadd.f32 %v1826, %v2600
        %v2921 = vadd.f32 %v2017, %v2791
        %v2922 = vadd.f32 %v2019, %v2793
        %v2923 = vadd.f32 %v1828, %v2602
        %v2924 = vadd.f32 %v1830, %v2604
        %v2925 = vadd.f32 %v2021, %v2795
        %v2926 = vadd.f32 %v2023, %v2797
        %v2927 = vld [vmem:[%s2] sm:$0xf]
        %v2929 = vlaneseq
        %v2930 = vshrl.u32 %v2929, 7
        %v2931 = vsub.s32 0, %v2930
        %v2932 = vrot.slane %v2927, %v2931
        %v2933 = vlaneseq
        %v2934 = vshrl.u32 %v2933, 7
        %v2935 = vsub.s32 1, %v2934
        %v2936 = vrot.slane %v2927, %v2935
        %v2937 = vlaneseq
        %v2938 = vshrl.u32 %v2937, 7
        %v2939 = vsub.s32 2, %v2938
        %v2940 = vrot.slane %v2927, %v2939
        %v2941 = vlaneseq
        %v2942 = vshrl.u32 %v2941, 7
        %v2943 = vsub.s32 3, %v2942
        %v2944 = vrot.slane %v2927, %v2943
        %v2949 = vadd.f32 %v2799, %v2932
        %v2950 = vadd.f32 %v2800, %v2936
        %v2951 = vadd.f32 %v2801, %v2940
        %v2952 = vadd.f32 %v2802, %v2944
        %v2953 = vadd.f32 %v2803, %v2932
        %v2954 = vadd.f32 %v2804, %v2936
        %v2955 = vadd.f32 %v2805, %v2940
        %v2956 = vadd.f32 %v2806, %v2944
        %v2957 = vadd.f32 %v2807, %v2932
        %v2958 = vadd.f32 %v2808, %v2936
        %v2959 = vadd.f32 %v2809, %v2940
        %v2960 = vadd.f32 %v2810, %v2944
        %v2961 = vadd.f32 %v2811, %v2932
        %v2962 = vadd.f32 %v2812, %v2936
        %v2963 = vadd.f32 %v2813, %v2940
        %v2964 = vadd.f32 %v2814, %v2944
        %v2965 = vadd.f32 %v2815, %v2932
        %v2966 = vadd.f32 %v2816, %v2936
        %v2967 = vadd.f32 %v2817, %v2940
        %v2968 = vadd.f32 %v2818, %v2944
        %v2969 = vadd.f32 %v2819, %v2932
        %v2970 = vadd.f32 %v2820, %v2936
        %v2971 = vadd.f32 %v2821, %v2940
        %v2972 = vadd.f32 %v2822, %v2944
        %v2973 = vadd.f32 %v2823, %v2932
        %v2974 = vadd.f32 %v2824, %v2936
        %v2975 = vadd.f32 %v2825, %v2940
        %v2976 = vadd.f32 %v2826, %v2944
        %v2977 = vadd.f32 %v2827, %v2932
        %v2978 = vadd.f32 %v2828, %v2936
        %v2979 = vadd.f32 %v2829, %v2940
        %v2980 = vadd.f32 %v2830, %v2944
        %v2981 = vadd.f32 %v2831, %v2932
        %v2982 = vadd.f32 %v2832, %v2936
        %v2983 = vadd.f32 %v2833, %v2940
        %v2984 = vadd.f32 %v2834, %v2944
        %v2985 = vadd.f32 %v2835, %v2932
        %v2986 = vadd.f32 %v2836, %v2936
        %v2987 = vadd.f32 %v2837, %v2940
        %v2988 = vadd.f32 %v2838, %v2944
        %v2989 = vadd.f32 %v2839, %v2932
        %v2990 = vadd.f32 %v2840, %v2936
        %v2991 = vadd.f32 %v2841, %v2940
        %v2992 = vadd.f32 %v2842, %v2944
        %v2993 = vadd.f32 %v2843, %v2932
        %v2994 = vadd.f32 %v2844, %v2936
        %v2995 = vadd.f32 %v2845, %v2940
        %v2996 = vadd.f32 %v2846, %v2944
        %v2997 = vadd.f32 %v2847, %v2932
        %v2998 = vadd.f32 %v2848, %v2936
        %v2999 = vadd.f32 %v2849, %v2940
        %v3000 = vadd.f32 %v2850, %v2944
        %v3001 = vadd.f32 %v2851, %v2932
        %v3002 = vadd.f32 %v2852, %v2936
        %v3003 = vadd.f32 %v2853, %v2940
        %v3004 = vadd.f32 %v2854, %v2944
        %v3005 = vadd.f32 %v2855, %v2932
        %v3006 = vadd.f32 %v2856, %v2936
        %v3007 = vadd.f32 %v2857, %v2940
        %v3008 = vadd.f32 %v2858, %v2944
        %v3009 = vadd.f32 %v2859, %v2932
        %v3010 = vadd.f32 %v2860, %v2936
        %v3011 = vadd.f32 %v2861, %v2940
        %v3012 = vadd.f32 %v2862, %v2944
        %v3013 = vadd.f32 %v2863, %v2932
        %v3014 = vadd.f32 %v2864, %v2936
        %v3015 = vadd.f32 %v2865, %v2940
        %v3016 = vadd.f32 %v2866, %v2944
        %v3017 = vadd.f32 %v2867, %v2932
        %v3018 = vadd.f32 %v2868, %v2936
        %v3019 = vadd.f32 %v2869, %v2940
        %v3020 = vadd.f32 %v2870, %v2944
        %v3021 = vadd.f32 %v2871, %v2932
        %v3022 = vadd.f32 %v2872, %v2936
        %v3023 = vadd.f32 %v2873, %v2940
        %v3024 = vadd.f32 %v2874, %v2944
        %v3025 = vadd.f32 %v2875, %v2932
        %v3026 = vadd.f32 %v2876, %v2936
        %v3027 = vadd.f32 %v2877, %v2940
        %v3028 = vadd.f32 %v2878, %v2944
        %v3029 = vadd.f32 %v2879, %v2932
        %v3030 = vadd.f32 %v2880, %v2936
        %v3031 = vadd.f32 %v2881, %v2940
        %v3032 = vadd.f32 %v2882, %v2944
        %v3033 = vadd.f32 %v2883, %v2932
        %v3034 = vadd.f32 %v2884, %v2936
        %v3035 = vadd.f32 %v2885, %v2940
        %v3036 = vadd.f32 %v2886, %v2944
        %v3037 = vadd.f32 %v2887, %v2932
        %v3038 = vadd.f32 %v2888, %v2936
        %v3039 = vadd.f32 %v2889, %v2940
        %v3040 = vadd.f32 %v2890, %v2944
        %v3041 = vadd.f32 %v2891, %v2932
        %v3042 = vadd.f32 %v2892, %v2936
        %v3043 = vadd.f32 %v2893, %v2940
        %v3044 = vadd.f32 %v2894, %v2944
        %v3045 = vadd.f32 %v2895, %v2932
        %v3046 = vadd.f32 %v2896, %v2936
        %v3047 = vadd.f32 %v2897, %v2940
        %v3048 = vadd.f32 %v2898, %v2944
        %v3049 = vadd.f32 %v2899, %v2932
        %v3050 = vadd.f32 %v2900, %v2936
        %v3051 = vadd.f32 %v2901, %v2940
        %v3052 = vadd.f32 %v2902, %v2944
        %v3053 = vadd.f32 %v2903, %v2932
        %v3054 = vadd.f32 %v2904, %v2936
        %v3055 = vadd.f32 %v2905, %v2940
        %v3056 = vadd.f32 %v2906, %v2944
        %v3057 = vadd.f32 %v2907, %v2932
        %v3058 = vadd.f32 %v2908, %v2936
        %v3059 = vadd.f32 %v2909, %v2940
        %v3060 = vadd.f32 %v2910, %v2944
        %v3061 = vadd.f32 %v2911, %v2932
        %v3062 = vadd.f32 %v2912, %v2936
        %v3063 = vadd.f32 %v2913, %v2940
        %v3064 = vadd.f32 %v2914, %v2944
        %v3065 = vadd.f32 %v2915, %v2932
        %v3066 = vadd.f32 %v2916, %v2936
        %v3067 = vadd.f32 %v2917, %v2940
        %v3068 = vadd.f32 %v2918, %v2944
        %v3069 = vadd.f32 %v2919, %v2932
        %v3070 = vadd.f32 %v2920, %v2936
        %v3071 = vadd.f32 %v2921, %v2940
        %v3072 = vadd.f32 %v2922, %v2944
        %v3073 = vadd.f32 %v2923, %v2932
        %v3074 = vadd.f32 %v2924, %v2936
        %v3075 = vadd.f32 %v2925, %v2940
        %v3076 = vadd.f32 %v2926, %v2944
        %v3077 = vmax.f32 %v2949, 0.0
        %v3078 = vmax.f32 %v2950, 0.0
        %v3079 = vmax.f32 %v2951, 0.0
        %v3080 = vmax.f32 %v2952, 0.0
        %v3081 = vmax.f32 %v2953, 0.0
        %v3082 = vmax.f32 %v2954, 0.0
        %v3083 = vmax.f32 %v2955, 0.0
        %v3084 = vmax.f32 %v2956, 0.0
        %v3085 = vmax.f32 %v2957, 0.0
        %v3086 = vmax.f32 %v2958, 0.0
        %v3087 = vmax.f32 %v2959, 0.0
        %v3088 = vmax.f32 %v2960, 0.0
        %v3089 = vmax.f32 %v2961, 0.0
        %v3090 = vmax.f32 %v2962, 0.0
        %v3091 = vmax.f32 %v2963, 0.0
        %v3092 = vmax.f32 %v2964, 0.0
        %v3093 = vmax.f32 %v2965, 0.0
        %v3094 = vmax.f32 %v2966, 0.0
        %v3095 = vmax.f32 %v2967, 0.0
        %v3096 = vmax.f32 %v2968, 0.0
        %v3097 = vmax.f32 %v2969, 0.0
        %v3098 = vmax.f32 %v2970, 0.0
        %v3099 = vmax.f32 %v2971, 0.0
        %v3100 = vmax.f32 %v2972, 0.0
        %v3101 = vmax.f32 %v2973, 0.0
        %v3102 = vmax.f32 %v2974, 0.0
        %v3103 = vmax.f32 %v2975, 0.0
        %v3104 = vmax.f32 %v2976, 0.0
        %v3105 = vmax.f32 %v2977, 0.0
        %v3106 = vmax.f32 %v2978, 0.0
        %v3107 = vmax.f32 %v2979, 0.0
        %v3108 = vmax.f32 %v2980, 0.0
        %v3109 = vmax.f32 %v2981, 0.0
        %v3110 = vmax.f32 %v2982, 0.0
        %v3111 = vmax.f32 %v2983, 0.0
        %v3112 = vmax.f32 %v2984, 0.0
        %v3113 = vmax.f32 %v2985, 0.0
        %v3114 = vmax.f32 %v2986, 0.0
        %v3115 = vmax.f32 %v2987, 0.0
        %v3116 = vmax.f32 %v2988, 0.0
        %v3117 = vmax.f32 %v2989, 0.0
        %v3118 = vmax.f32 %v2990, 0.0
        %v3119 = vmax.f32 %v2991, 0.0
        %v3120 = vmax.f32 %v2992, 0.0
        %v3121 = vmax.f32 %v2993, 0.0
        %v3122 = vmax.f32 %v2994, 0.0
        %v3123 = vmax.f32 %v2995, 0.0
        %v3124 = vmax.f32 %v2996, 0.0
        %v3125 = vmax.f32 %v2997, 0.0
        %v3126 = vmax.f32 %v2998, 0.0
        %v3127 = vmax.f32 %v2999, 0.0
        %v3128 = vmax.f32 %v3000, 0.0
        %v3129 = vmax.f32 %v3001, 0.0
        %v3130 = vmax.f32 %v3002, 0.0
        %v3131 = vmax.f32 %v3003, 0.0
        %v3132 = vmax.f32 %v3004, 0.0
        %v3133 = vmax.f32 %v3005, 0.0
        %v3134 = vmax.f32 %v3006, 0.0
        %v3135 = vmax.f32 %v3007, 0.0
        %v3136 = vmax.f32 %v3008, 0.0
        %v3137 = vmax.f32 %v3009, 0.0
        %v3138 = vmax.f32 %v3010, 0.0
        %v3139 = vmax.f32 %v3011, 0.0
        %v3140 = vmax.f32 %v3012, 0.0
        %v3141 = vmax.f32 %v3013, 0.0
        %v3142 = vmax.f32 %v3014, 0.0
        %v3143 = vmax.f32 %v3015, 0.0
        %v3144 = vmax.f32 %v3016, 0.0
        %v3145 = vmax.f32 %v3017, 0.0
        %v3146 = vmax.f32 %v3018, 0.0
        %v3147 = vmax.f32 %v3019, 0.0
        %v3148 = vmax.f32 %v3020, 0.0
        %v3149 = vmax.f32 %v3021, 0.0
        %v3150 = vmax.f32 %v3022, 0.0
        %v3151 = vmax.f32 %v3023, 0.0
        %v3152 = vmax.f32 %v3024, 0.0
        %v3153 = vmax.f32 %v3025, 0.0
        %v3154 = vmax.f32 %v3026, 0.0
        %v3155 = vmax.f32 %v3027, 0.0
        %v3156 = vmax.f32 %v3028, 0.0
        %v3157 = vmax.f32 %v3029, 0.0
        %v3158 = vmax.f32 %v3030, 0.0
        %v3159 = vmax.f32 %v3031, 0.0
        %v3160 = vmax.f32 %v3032, 0.0
        %v3161 = vmax.f32 %v3033, 0.0
        %v3162 = vmax.f32 %v3034, 0.0
        %v3163 = vmax.f32 %v3035, 0.0
        %v3164 = vmax.f32 %v3036, 0.0
        %v3165 = vmax.f32 %v3037, 0.0
        %v3166 = vmax.f32 %v3038, 0.0
        %v3167 = vmax.f32 %v3039, 0.0
        %v3168 = vmax.f32 %v3040, 0.0
        %v3169 = vmax.f32 %v3041, 0.0
        %v3170 = vmax.f32 %v3042, 0.0
        %v3171 = vmax.f32 %v3043, 0.0
        %v3172 = vmax.f32 %v3044, 0.0
        %v3173 = vmax.f32 %v3045, 0.0
        %v3174 = vmax.f32 %v3046, 0.0
        %v3175 = vmax.f32 %v3047, 0.0
        %v3176 = vmax.f32 %v3048, 0.0
        %v3177 = vmax.f32 %v3049, 0.0
        %v3178 = vmax.f32 %v3050, 0.0
        %v3179 = vmax.f32 %v3051, 0.0
        %v3180 = vmax.f32 %v3052, 0.0
        %v3181 = vmax.f32 %v3053, 0.0
        %v3182 = vmax.f32 %v3054, 0.0
        %v3183 = vmax.f32 %v3055, 0.0
        %v3184 = vmax.f32 %v3056, 0.0
        %v3185 = vmax.f32 %v3057, 0.0
        %v3186 = vmax.f32 %v3058, 0.0
        %v3187 = vmax.f32 %v3059, 0.0
        %v3188 = vmax.f32 %v3060, 0.0
        %v3189 = vmax.f32 %v3061, 0.0
        %v3190 = vmax.f32 %v3062, 0.0
        %v3191 = vmax.f32 %v3063, 0.0
        %v3192 = vmax.f32 %v3064, 0.0
        %v3193 = vmax.f32 %v3065, 0.0
        %v3194 = vmax.f32 %v3066, 0.0
        %v3195 = vmax.f32 %v3067, 0.0
        %v3196 = vmax.f32 %v3068, 0.0
        %v3197 = vmax.f32 %v3069, 0.0
        %v3198 = vmax.f32 %v3070, 0.0
        %v3199 = vmax.f32 %v3071, 0.0
        %v3200 = vmax.f32 %v3072, 0.0
        %v3201 = vmax.f32 %v3073, 0.0
        %v3202 = vmax.f32 %v3074, 0.0
        %v3203 = vmax.f32 %v3075, 0.0
        %v3204 = vmax.f32 %v3076, 0.0
        %v3205 = vpack.c.bf16 %v3081, %v3077
        %v3206 = vpack.c.bf16 %v3082, %v3078
        %v3207 = vpack.c.bf16 %v3083, %v3079
        %v3208 = vpack.c.bf16 %v3084, %v3080
        %v3209 = vpack.c.bf16 %v3089, %v3085
        %v3210 = vpack.c.bf16 %v3090, %v3086
        %v3211 = vpack.c.bf16 %v3091, %v3087
        %v3212 = vpack.c.bf16 %v3092, %v3088
        %v3213 = vpack.c.bf16 %v3097, %v3093
        %v3214 = vpack.c.bf16 %v3098, %v3094
        %v3215 = vpack.c.bf16 %v3099, %v3095
        %v3216 = vpack.c.bf16 %v3100, %v3096
        %v3217 = vpack.c.bf16 %v3105, %v3101
        %v3218 = vpack.c.bf16 %v3106, %v3102
        %v3219 = vpack.c.bf16 %v3107, %v3103
        %v3220 = vpack.c.bf16 %v3108, %v3104
        %v3221 = vpack.c.bf16 %v3113, %v3109
        %v3222 = vpack.c.bf16 %v3114, %v3110
        %v3223 = vpack.c.bf16 %v3115, %v3111
        %v3224 = vpack.c.bf16 %v3116, %v3112
        %v3225 = vpack.c.bf16 %v3121, %v3117
        %v3226 = vpack.c.bf16 %v3122, %v3118
        %v3227 = vpack.c.bf16 %v3123, %v3119
        %v3228 = vpack.c.bf16 %v3124, %v3120
        %v3229 = vpack.c.bf16 %v3129, %v3125
        %v3230 = vpack.c.bf16 %v3130, %v3126
        %v3231 = vpack.c.bf16 %v3131, %v3127
        %v3232 = vpack.c.bf16 %v3132, %v3128
        %v3233 = vpack.c.bf16 %v3137, %v3133
        %v3234 = vpack.c.bf16 %v3138, %v3134
        %v3235 = vpack.c.bf16 %v3139, %v3135
        %v3236 = vpack.c.bf16 %v3140, %v3136
        %v3237 = vpack.c.bf16 %v3145, %v3141
        %v3238 = vpack.c.bf16 %v3146, %v3142
        %v3239 = vpack.c.bf16 %v3147, %v3143
        %v3240 = vpack.c.bf16 %v3148, %v3144
        %v3241 = vpack.c.bf16 %v3153, %v3149
        %v3242 = vpack.c.bf16 %v3154, %v3150
        %v3243 = vpack.c.bf16 %v3155, %v3151
        %v3244 = vpack.c.bf16 %v3156, %v3152
        %v3245 = vpack.c.bf16 %v3161, %v3157
        %v3246 = vpack.c.bf16 %v3162, %v3158
        %v3247 = vpack.c.bf16 %v3163, %v3159
        %v3248 = vpack.c.bf16 %v3164, %v3160
        %v3249 = vpack.c.bf16 %v3169, %v3165
        %v3250 = vpack.c.bf16 %v3170, %v3166
        %v3251 = vpack.c.bf16 %v3171, %v3167
        %v3252 = vpack.c.bf16 %v3172, %v3168
        %v3253 = vpack.c.bf16 %v3177, %v3173
        %v3254 = vpack.c.bf16 %v3178, %v3174
        %v3255 = vpack.c.bf16 %v3179, %v3175
        %v3256 = vpack.c.bf16 %v3180, %v3176
        %v3257 = vpack.c.bf16 %v3185, %v3181
        %v3258 = vpack.c.bf16 %v3186, %v3182
        %v3259 = vpack.c.bf16 %v3187, %v3183
        %v3260 = vpack.c.bf16 %v3188, %v3184
        %v3261 = vpack.c.bf16 %v3193, %v3189
        %v3262 = vpack.c.bf16 %v3194, %v3190
        %v3263 = vpack.c.bf16 %v3195, %v3191
        %v3264 = vpack.c.bf16 %v3196, %v3192
        %v3265 = vpack.c.bf16 %v3201, %v3197
        %v3266 = vpack.c.bf16 %v3202, %v3198
        %v3267 = vpack.c.bf16 %v3203, %v3199
        %v3268 = vpack.c.bf16 %v3204, %v3200
        %v3269 = vld [vmem:[%s3] sm:$0xf]
        %v3270 = vld [vmem:[%s3 + $0x4] sm:$0xf]
        %v3271 = vld [vmem:[%s3 + $0x8] sm:$0xf]
        %v3272 = vld [vmem:[%s3 + $0xc] sm:$0xf]
        %v3273 = vld [vmem:[%s3 + $0x10] sm:$0xf]
        %v3274 = vld [vmem:[%s3 + $0x14] sm:$0xf]
        %v3275 = vld [vmem:[%s3 + $0x18] sm:$0xf]
        %v3276 = vld [vmem:[%s3 + $0x1c] sm:$0xf]
        %v3277 = vld [vmem:[%s3 + $0x20] sm:$0xf]
        %v3278 = vld [vmem:[%s3 + $0x24] sm:$0xf]
        %v3279 = vld [vmem:[%s3 + $0x28] sm:$0xf]
        %v3280 = vld [vmem:[%s3 + $0x2c] sm:$0xf]
        %v3281 = vld [vmem:[%s3 + $0x30] sm:$0xf]
        %v3282 = vld [vmem:[%s3 + $0x34] sm:$0xf]
        %v3283 = vld [vmem:[%s3 + $0x38] sm:$0xf]
        %v3284 = vld [vmem:[%s3 + $0x3c] sm:$0xf]
        %v3285 = vld [vmem:[%s3 + $0x40] sm:$0xf]
        %v3286 = vld [vmem:[%s3 + $0x44] sm:$0xf]
        %v3287 = vld [vmem:[%s3 + $0x48] sm:$0xf]
        %v3288 = vld [vmem:[%s3 + $0x4c] sm:$0xf]
        %v3289 = vld [vmem:[%s3 + $0x50] sm:$0xf]
        %v3290 = vld [vmem:[%s3 + $0x54] sm:$0xf]
        %v3291 = vld [vmem:[%s3 + $0x58] sm:$0xf]
        %v3292 = vld [vmem:[%s3 + $0x5c] sm:$0xf]
        %v3293 = vld [vmem:[%s3 + $0x60] sm:$0xf]
        %v3294 = vld [vmem:[%s3 + $0x64] sm:$0xf]
        %v3295 = vld [vmem:[%s3 + $0x68] sm:$0xf]
        %v3296 = vld [vmem:[%s3 + $0x6c] sm:$0xf]
        %v3297 = vld [vmem:[%s3 + $0x70] sm:$0xf]
        %v3298 = vld [vmem:[%s3 + $0x74] sm:$0xf]
        %v3299 = vld [vmem:[%s3 + $0x78] sm:$0xf]
        %v3300 = vld [vmem:[%s3 + $0x7c] sm:$0xf]
        %v3301 = vld [vmem:[%s3 + $0x80] sm:$0xf]
        %v3302 = vld [vmem:[%s3 + $0x84] sm:$0xf]
        %v3303 = vld [vmem:[%s3 + $0x88] sm:$0xf]
        %v3304 = vld [vmem:[%s3 + $0x8c] sm:$0xf]
        %v3305 = vld [vmem:[%s3 + $0x90] sm:$0xf]
        %v3306 = vld [vmem:[%s3 + $0x94] sm:$0xf]
        %v3307 = vld [vmem:[%s3 + $0x98] sm:$0xf]
        %v3308 = vld [vmem:[%s3 + $0x9c] sm:$0xf]
        %v3309 = vld [vmem:[%s3 + $0xa0] sm:$0xf]
        %v3310 = vld [vmem:[%s3 + $0xa4] sm:$0xf]
        %v3311 = vld [vmem:[%s3 + $0xa8] sm:$0xf]
        %v3312 = vld [vmem:[%s3 + $0xac] sm:$0xf]
        %v3313 = vld [vmem:[%s3 + $0xb0] sm:$0xf]
        %v3314 = vld [vmem:[%s3 + $0xb4] sm:$0xf]
        %v3315 = vld [vmem:[%s3 + $0xb8] sm:$0xf]
        %v3316 = vld [vmem:[%s3 + $0xbc] sm:$0xf]
        %v3317 = vld [vmem:[%s3 + $0xc0] sm:$0xf]
        %v3318 = vld [vmem:[%s3 + $0xc4] sm:$0xf]
        %v3319 = vld [vmem:[%s3 + $0xc8] sm:$0xf]
        %v3320 = vld [vmem:[%s3 + $0xcc] sm:$0xf]
        %v3321 = vld [vmem:[%s3 + $0xd0] sm:$0xf]
        %v3322 = vld [vmem:[%s3 + $0xd4] sm:$0xf]
        %v3323 = vld [vmem:[%s3 + $0xd8] sm:$0xf]
        %v3324 = vld [vmem:[%s3 + $0xdc] sm:$0xf]
        %v3325 = vld [vmem:[%s3 + $0xe0] sm:$0xf]
        %v3326 = vld [vmem:[%s3 + $0xe4] sm:$0xf]
        %v3327 = vld [vmem:[%s3 + $0xe8] sm:$0xf]
        %v3328 = vld [vmem:[%s3 + $0xec] sm:$0xf]
        %v3329 = vld [vmem:[%s3 + $0xf0] sm:$0xf]
        %v3330 = vld [vmem:[%s3 + $0xf4] sm:$0xf]
        %v3331 = vld [vmem:[%s3 + $0xf8] sm:$0xf]
        %v3332 = vld [vmem:[%s3 + $0xfc] sm:$0xf]
        %v3333 = vld [vmem:[%s4] sm:$0x1]
        %v3335 = vlaneseq
        %v3336 = vshrl.u32 %v3335, 7
        %v3337 = vsub.s32 0, %v3336
        %v3338 = vrot.slane %v3333, %v3337
        %v3404 = vunpack.c.l.b16 %v3269
        %v3405 = vunpack.c.l.b16 %v3270
        %v3406 = vunpack.c.l.b16 %v3271
        %v3407 = vunpack.c.l.b16 %v3272
        %v3408 = vunpack.c.l.b16 %v3273
        %v3409 = vunpack.c.l.b16 %v3274
        %v3410 = vunpack.c.l.b16 %v3275
        %v3411 = vunpack.c.l.b16 %v3276
        %v3412 = vunpack.c.l.b16 %v3277
        %v3413 = vunpack.c.l.b16 %v3278
        %v3414 = vunpack.c.l.b16 %v3279
        %v3415 = vunpack.c.l.b16 %v3280
        %v3416 = vunpack.c.l.b16 %v3281
        %v3417 = vunpack.c.l.b16 %v3282
        %v3418 = vunpack.c.l.b16 %v3283
        %v3419 = vunpack.c.l.b16 %v3284
        %v3420 = vunpack.c.l.b16 %v3285
        %v3421 = vunpack.c.l.b16 %v3286
        %v3422 = vunpack.c.l.b16 %v3287
        %v3423 = vunpack.c.l.b16 %v3288
        %v3424 = vunpack.c.l.b16 %v3289
        %v3425 = vunpack.c.l.b16 %v3290
        %v3426 = vunpack.c.l.b16 %v3291
        %v3427 = vunpack.c.l.b16 %v3292
        %v3428 = vunpack.c.l.b16 %v3293
        %v3429 = vunpack.c.l.b16 %v3294
        %v3430 = vunpack.c.l.b16 %v3295
        %v3431 = vunpack.c.l.b16 %v3296
        %v3432 = vunpack.c.l.b16 %v3297
        %v3433 = vunpack.c.l.b16 %v3298
        %v3434 = vunpack.c.l.b16 %v3299
        %v3435 = vunpack.c.l.b16 %v3300
        %v3436 = vunpack.c.l.b16 %v3301
        %v3437 = vunpack.c.l.b16 %v3302
        %v3438 = vunpack.c.l.b16 %v3303
        %v3439 = vunpack.c.l.b16 %v3304
        %v3440 = vunpack.c.l.b16 %v3305
        %v3441 = vunpack.c.l.b16 %v3306
        %v3442 = vunpack.c.l.b16 %v3307
        %v3443 = vunpack.c.l.b16 %v3308
        %v3444 = vunpack.c.l.b16 %v3309
        %v3445 = vunpack.c.l.b16 %v3310
        %v3446 = vunpack.c.l.b16 %v3311
        %v3447 = vunpack.c.l.b16 %v3312
        %v3448 = vunpack.c.l.b16 %v3313
        %v3449 = vunpack.c.l.b16 %v3314
        %v3450 = vunpack.c.l.b16 %v3315
        %v3451 = vunpack.c.l.b16 %v3316
        %v3452 = vunpack.c.l.b16 %v3317
        %v3453 = vunpack.c.l.b16 %v3318
        %v3454 = vunpack.c.l.b16 %v3319
        %v3455 = vunpack.c.l.b16 %v3320
        %v3456 = vunpack.c.l.b16 %v3321
        %v3457 = vunpack.c.l.b16 %v3322
        %v3458 = vunpack.c.l.b16 %v3323
        %v3459 = vunpack.c.l.b16 %v3324
        %v3460 = vunpack.c.l.b16 %v3325
        %v3461 = vunpack.c.l.b16 %v3326
        %v3462 = vunpack.c.l.b16 %v3327
        %v3463 = vunpack.c.l.b16 %v3328
        %v3464 = vunpack.c.l.b16 %v3329
        %v3465 = vunpack.c.l.b16 %v3330
        %v3466 = vunpack.c.l.b16 %v3331
        %v3467 = vunpack.c.l.b16 %v3332
        %v3468 = vpack.c.b16 %v3405, %v3404
        %v3469 = vpack.c.b16 %v3407, %v3406
        %v3470 = vpack.c.b16 %v3409, %v3408
        %v3471 = vpack.c.b16 %v3411, %v3410
        %v3472 = vpack.c.b16 %v3413, %v3412
        %v3473 = vpack.c.b16 %v3415, %v3414
        %v3474 = vpack.c.b16 %v3417, %v3416
        %v3475 = vpack.c.b16 %v3419, %v3418
        %v3476 = vpack.c.b16 %v3421, %v3420
        %v3477 = vpack.c.b16 %v3423, %v3422
        %v3478 = vpack.c.b16 %v3425, %v3424
        %v3479 = vpack.c.b16 %v3427, %v3426
        %v3480 = vpack.c.b16 %v3429, %v3428
        %v3481 = vpack.c.b16 %v3431, %v3430
        %v3482 = vpack.c.b16 %v3433, %v3432
        %v3483 = vpack.c.b16 %v3435, %v3434
        %v3484 = vpack.c.b16 %v3437, %v3436
        %v3485 = vpack.c.b16 %v3439, %v3438
        %v3486 = vpack.c.b16 %v3441, %v3440
        %v3487 = vpack.c.b16 %v3443, %v3442
        %v3488 = vpack.c.b16 %v3445, %v3444
        %v3489 = vpack.c.b16 %v3447, %v3446
        %v3490 = vpack.c.b16 %v3449, %v3448
        %v3491 = vpack.c.b16 %v3451, %v3450
        %v3492 = vpack.c.b16 %v3453, %v3452
        %v3493 = vpack.c.b16 %v3455, %v3454
        %v3494 = vpack.c.b16 %v3457, %v3456
        %v3495 = vpack.c.b16 %v3459, %v3458
        %v3496 = vpack.c.b16 %v3461, %v3460
        %v3497 = vpack.c.b16 %v3463, %v3462
        %v3498 = vpack.c.b16 %v3465, %v3464
        %v3499 = vpack.c.b16 %v3467, %v3466
        %3532 = vmatprep.subr.bf16.mxu0 0
        %3533 = vmatpush1.bf16.msra.mxu0 %v3468
        %3534 = vmatprep.subr.bf16.mxu0 0
        %3535 = vmatpush1.bf16.msra.mxu0 %v3469
        %3536 = vmatprep.subr.bf16.mxu0 0
        %3537 = vmatpush1.bf16.msra.mxu0 %v3470
        %3538 = vmatprep.subr.bf16.mxu0 0
        %3539 = vmatpush1.bf16.msra.mxu0 %v3471
        %3540 = vmatprep.subr.bf16.mxu0 0
        %3541 = vmatpush1.bf16.msra.mxu0 %v3472
        %3542 = vmatprep.subr.bf16.mxu0 0
        %3543 = vmatpush1.bf16.msra.mxu0 %v3473
        %3544 = vmatprep.subr.bf16.mxu0 0
        %3545 = vmatpush1.bf16.msra.mxu0 %v3474
        %3546 = vmatprep.subr.bf16.mxu0 0
        %3547 = vmatpush1.bf16.msra.mxu0 %v3475
        %3548 = vmatprep.subr.bf16.mxu0 0
        %3549 = vmatpush1.bf16.msra.mxu0 %v3476
        %3550 = vmatprep.subr.bf16.mxu0 0
        %3551 = vmatpush1.bf16.msra.mxu0 %v3477
        %3552 = vmatprep.subr.bf16.mxu0 0
        %3553 = vmatpush1.bf16.msra.mxu0 %v3478
        %3554 = vmatprep.subr.bf16.mxu0 0
        %3555 = vmatpush1.bf16.msra.mxu0 %v3479
        %3556 = vmatprep.subr.bf16.mxu0 0
        %3557 = vmatpush1.bf16.msra.mxu0 %v3480
        %3558 = vmatprep.subr.bf16.mxu0 0
        %3559 = vmatpush1.bf16.msra.mxu0 %v3481
        %3560 = vmatprep.subr.bf16.mxu0 0
        %3561 = vmatpush1.bf16.msra.mxu0 %v3482
        %3562 = vmatprep.subr.bf16.mxu0 0
        %3563 = vmatpush1.bf16.msra.mxu0 %v3483
        %3564 = vmatprep.mubr.bf16.mxu0 %v3206
        %3565 = vmatmul.mubr.bf16.gmra.mrb[0].mxu0 %v3205
        %v3566 = vpop.f32.mrb[0].mxu0
        %v3567 = vadd.f32 %v3338, %v3566
        %v3568 = vpop.f32.mrb[0].mxu0
        %v3569 = vpop.f32.mrb[0].mxu0
        %v3570 = vadd.f32 %v3338, %v3569
        %v3571 = vpop.f32.mrb[0].mxu0
        %3572 = vmatprep.mubr.bf16.mxu0 %v3210
        %3573 = vmatmul.mubr.bf16.gmra.mrb[0].mxu0 %v3209
        %v3574 = vpop.f32.mrb[0].mxu0
        %v3575 = vadd.f32 %v3338, %v3574
        %v3576 = vpop.f32.mrb[0].mxu0
        %v3577 = vpop.f32.mrb[0].mxu0
        %v3578 = vadd.f32 %v3338, %v3577
        %v3579 = vpop.f32.mrb[0].mxu0
        %3580 = vmatprep.mubr.bf16.mxu0 %v3214
        %3581 = vmatmul.mubr.bf16.gmra.mrb[0].mxu0 %v3213
        %v3582 = vpop.f32.mrb[0].mxu0
        %v3583 = vadd.f32 %v3338, %v3582
        %v3584 = vpop.f32.mrb[0].mxu0
        %v3585 = vpop.f32.mrb[0].mxu0
        %v3586 = vadd.f32 %v3338, %v3585
        %v3587 = vpop.f32.mrb[0].mxu0
        %3588 = vmatprep.mubr.bf16.mxu0 %v3218
        %3589 = vmatmul.mubr.bf16.gmra.mrb[0].mxu0 %v3217
        %v3590 = vpop.f32.mrb[0].mxu0
        %v3591 = vadd.f32 %v3338, %v3590
        %v3592 = vpop.f32.mrb[0].mxu0
        %v3593 = vpop.f32.mrb[0].mxu0
        %v3594 = vadd.f32 %v3338, %v3593
        %v3595 = vpop.f32.mrb[0].mxu0
        %3596 = vmatprep.mubr.bf16.mxu0 %v3222
        %3597 = vmatmul.mubr.bf16.gmra.mrb[0].mxu0 %v3221
        %v3598 = vpop.f32.mrb[0].mxu0
        %v3599 = vadd.f32 %v3338, %v3598
        %v3600 = vpop.f32.mrb[0].mxu0
        %v3601 = vpop.f32.mrb[0].mxu0
        %v3602 = vadd.f32 %v3338, %v3601
        %v3603 = vpop.f32.mrb[0].mxu0
        %3604 = vmatprep.mubr.bf16.mxu0 %v3226
        %3605 = vmatmul.mubr.bf16.gmra.mrb[0].mxu0 %v3225
        %v3606 = vpop.f32.mrb[0].mxu0
        %v3607 = vadd.f32 %v3338, %v3606
        %v3608 = vpop.f32.mrb[0].mxu0
        %v3609 = vpop.f32.mrb[0].mxu0
        %v3610 = vadd.f32 %v3338, %v3609
        %v3611 = vpop.f32.mrb[0].mxu0
        %3612 = vmatprep.mubr.bf16.mxu0 %v3230
        %3613 = vmatmul.mubr.bf16.gmra.mrb[0].mxu0 %v3229
        %v3614 = vpop.f32.mrb[0].mxu0
        %v3615 = vadd.f32 %v3338, %v3614
        %v3616 = vpop.f32.mrb[0].mxu0
        %v3617 = vpop.f32.mrb[0].mxu0
        %v3618 = vadd.f32 %v3338, %v3617
        %v3619 = vpop.f32.mrb[0].mxu0
        %3620 = vmatprep.mubr.bf16.mxu0 %v3234
        %3621 = vmatmul.mubr.bf16.gmra.mrb[0].mxu0 %v3233
        %v3622 = vpop.f32.mrb[0].mxu0
        %v3623 = vadd.f32 %v3338, %v3622
        %v3624 = vpop.f32.mrb[0].mxu0
        %v3625 = vpop.f32.mrb[0].mxu0
        %v3626 = vadd.f32 %v3338, %v3625
        %v3627 = vpop.f32.mrb[0].mxu0
        %3628 = vmatprep.mubr.bf16.mxu0 %v3238
        %3629 = vmatmul.mubr.bf16.gmra.mrb[0].mxu0 %v3237
        %v3630 = vpop.f32.mrb[0].mxu0
        %v3631 = vadd.f32 %v3338, %v3630
        %v3632 = vpop.f32.mrb[0].mxu0
        %v3633 = vpop.f32.mrb[0].mxu0
        %v3634 = vadd.f32 %v3338, %v3633
        %v3635 = vpop.f32.mrb[0].mxu0
        %3636 = vmatprep.mubr.bf16.mxu0 %v3242
        %3637 = vmatmul.mubr.bf16.gmra.mrb[0].mxu0 %v3241
        %v3638 = vpop.f32.mrb[0].mxu0
        %v3639 = vadd.f32 %v3338, %v3638
        %v3640 = vpop.f32.mrb[0].mxu0
        %v3641 = vpop.f32.mrb[0].mxu0
        %v3642 = vadd.f32 %v3338, %v3641
        %v3643 = vpop.f32.mrb[0].mxu0
        %3644 = vmatprep.mubr.bf16.mxu0 %v3246
        %3645 = vmatmul.mubr.bf16.gmra.mrb[0].mxu0 %v3245
        %v3646 = vpop.f32.mrb[0].mxu0
        %v3647 = vadd.f32 %v3338, %v3646
        %v3648 = vpop.f32.mrb[0].mxu0
        %v3649 = vpop.f32.mrb[0].mxu0
        %v3650 = vadd.f32 %v3338, %v3649
        %v3651 = vpop.f32.mrb[0].mxu0
        %3652 = vmatprep.mubr.bf16.mxu0 %v3250
        %3653 = vmatmul.mubr.bf16.gmra.mrb[0].mxu0 %v3249
        %v3654 = vpop.f32.mrb[0].mxu0
        %v3655 = vadd.f32 %v3338, %v3654
        %v3656 = vpop.f32.mrb[0].mxu0
        %v3657 = vpop.f32.mrb[0].mxu0
        %v3658 = vadd.f32 %v3338, %v3657
        %v3659 = vpop.f32.mrb[0].mxu0
        %3660 = vmatprep.mubr.bf16.mxu0 %v3254
        %3661 = vmatmul.mubr.bf16.gmra.mrb[0].mxu0 %v3253
        %v3662 = vpop.f32.mrb[0].mxu0
        %v3663 = vadd.f32 %v3338, %v3662
        %v3664 = vpop.f32.mrb[0].mxu0
        %v3665 = vpop.f32.mrb[0].mxu0
        %v3666 = vadd.f32 %v3338, %v3665
        %v3667 = vpop.f32.mrb[0].mxu0
        %3668 = vmatprep.mubr.bf16.mxu0 %v3258
        %3669 = vmatmul.mubr.bf16.gmra.mrb[0].mxu0 %v3257
        %v3670 = vpop.f32.mrb[0].mxu0
        %v3671 = vadd.f32 %v3338, %v3670
        %v3672 = vpop.f32.mrb[0].mxu0
        %v3673 = vpop.f32.mrb[0].mxu0
        %v3674 = vadd.f32 %v3338, %v3673
        %v3675 = vpop.f32.mrb[0].mxu0
        %3676 = vmatprep.mubr.bf16.mxu0 %v3262
        %3677 = vmatmul.mubr.bf16.gmra.mrb[0].mxu0 %v3261
        %v3678 = vpop.f32.mrb[0].mxu0
        %v3679 = vadd.f32 %v3338, %v3678
        %v3680 = vpop.f32.mrb[0].mxu0
        %v3681 = vpop.f32.mrb[0].mxu0
        %v3682 = vadd.f32 %v3338, %v3681
        %v3683 = vpop.f32.mrb[0].mxu0
        %3684 = vmatprep.mubr.bf16.mxu0 %v3266
        %3685 = vmatmul.mubr.bf16.gmra.mrb[0].mxu0 %v3265
        %v3686 = vpop.f32.mrb[0].mxu0
        %v3687 = vadd.f32 %v3338, %v3686
        %v3688 = vpop.f32.mrb[0].mxu0
        %v3689 = vpop.f32.mrb[0].mxu0
        %v3690 = vadd.f32 %v3338, %v3689
        %v3691 = vpop.f32.mrb[0].mxu0
        %3692 = vdwg.mxu0
        %3693 = vmatprep.subr.bf16.mxu0 0
        %3694 = vmatpush1.bf16.msra.mxu0 %v3484
        %3695 = vmatprep.subr.bf16.mxu0 0
        %3696 = vmatpush1.bf16.msra.mxu0 %v3485
        %3697 = vmatprep.subr.bf16.mxu0 0
        %3698 = vmatpush1.bf16.msra.mxu0 %v3486
        %3699 = vmatprep.subr.bf16.mxu0 0
        %3700 = vmatpush1.bf16.msra.mxu0 %v3487
        %3701 = vmatprep.subr.bf16.mxu0 0
        %3702 = vmatpush1.bf16.msra.mxu0 %v3488
        %3703 = vmatprep.subr.bf16.mxu0 0
        %3704 = vmatpush1.bf16.msra.mxu0 %v3489
        %3705 = vmatprep.subr.bf16.mxu0 0
        %3706 = vmatpush1.bf16.msra.mxu0 %v3490
        %3707 = vmatprep.subr.bf16.mxu0 0
        %3708 = vmatpush1.bf16.msra.mxu0 %v3491
        %3709 = vmatprep.subr.bf16.mxu0 0
        %3710 = vmatpush1.bf16.msra.mxu0 %v3492
        %3711 = vmatprep.subr.bf16.mxu0 0
        %3712 = vmatpush1.bf16.msra.mxu0 %v3493
        %3713 = vmatprep.subr.bf16.mxu0 0
        %3714 = vmatpush1.bf16.msra.mxu0 %v3494
        %3715 = vmatprep.subr.bf16.mxu0 0
        %3716 = vmatpush1.bf16.msra.mxu0 %v3495
        %3717 = vmatprep.subr.bf16.mxu0 0
        %3718 = vmatpush1.bf16.msra.mxu0 %v3496
        %3719 = vmatprep.subr.bf16.mxu0 0
        %3720 = vmatpush1.bf16.msra.mxu0 %v3497
        %3721 = vmatprep.subr.bf16.mxu0 0
        %3722 = vmatpush1.bf16.msra.mxu0 %v3498
        %3723 = vmatprep.subr.bf16.mxu0 0
        %3724 = vmatpush1.bf16.msra.mxu0 %v3499
        %3725 = vmatprep.mubr.bf16.mxu0 %v3208
        %3726 = vmatmul.mubr.bf16.gmra.mrb[0].mxu0 %v3207
        %v3727 = vpop.f32.mrb[0].mxu0
        %v3728 = vadd.f32 %v3567, %v3727
        %v3729 = vpop.f32.mrb[0].mxu0
        %v3730 = vpop.f32.mrb[0].mxu0
        %v3731 = vadd.f32 %v3570, %v3730
        %v3732 = vpop.f32.mrb[0].mxu0
        %3733 = vmatprep.mubr.bf16.mxu0 %v3212
        %3734 = vmatmul.mubr.bf16.gmra.mrb[0].mxu0 %v3211
        %v3735 = vpop.f32.mrb[0].mxu0
        %v3736 = vadd.f32 %v3575, %v3735
        %v3737 = vpop.f32.mrb[0].mxu0
        %v3738 = vpop.f32.mrb[0].mxu0
        %v3739 = vadd.f32 %v3578, %v3738
        %v3740 = vpop.f32.mrb[0].mxu0
        %3741 = vmatprep.mubr.bf16.mxu0 %v3216
        %3742 = vmatmul.mubr.bf16.gmra.mrb[0].mxu0 %v3215
        %v3743 = vpop.f32.mrb[0].mxu0
        %v3744 = vadd.f32 %v3583, %v3743
        %v3745 = vpop.f32.mrb[0].mxu0
        %v3746 = vpop.f32.mrb[0].mxu0
        %v3747 = vadd.f32 %v3586, %v3746
        %v3748 = vpop.f32.mrb[0].mxu0
        %3749 = vmatprep.mubr.bf16.mxu0 %v3220
        %3750 = vmatmul.mubr.bf16.gmra.mrb[0].mxu0 %v3219
        %v3751 = vpop.f32.mrb[0].mxu0
        %v3752 = vadd.f32 %v3591, %v3751
        %v3753 = vpop.f32.mrb[0].mxu0
        %v3754 = vpop.f32.mrb[0].mxu0
        %v3755 = vadd.f32 %v3594, %v3754
        %v3756 = vpop.f32.mrb[0].mxu0
        %3757 = vmatprep.mubr.bf16.mxu0 %v3224
        %3758 = vmatmul.mubr.bf16.gmra.mrb[0].mxu0 %v3223
        %v3759 = vpop.f32.mrb[0].mxu0
        %v3760 = vadd.f32 %v3599, %v3759
        %v3761 = vpop.f32.mrb[0].mxu0
        %v3762 = vpop.f32.mrb[0].mxu0
        %v3763 = vadd.f32 %v3602, %v3762
        %v3764 = vpop.f32.mrb[0].mxu0
        %3765 = vmatprep.mubr.bf16.mxu0 %v3228
        %3766 = vmatmul.mubr.bf16.gmra.mrb[0].mxu0 %v3227
        %v3767 = vpop.f32.mrb[0].mxu0
        %v3768 = vadd.f32 %v3607, %v3767
        %v3769 = vpop.f32.mrb[0].mxu0
        %v3770 = vpop.f32.mrb[0].mxu0
        %v3771 = vadd.f32 %v3610, %v3770
        %v3772 = vpop.f32.mrb[0].mxu0
        %3773 = vmatprep.mubr.bf16.mxu0 %v3232
        %3774 = vmatmul.mubr.bf16.gmra.mrb[0].mxu0 %v3231
        %v3775 = vpop.f32.mrb[0].mxu0
        %v3776 = vadd.f32 %v3615, %v3775
        %v3777 = vpop.f32.mrb[0].mxu0
        %v3778 = vpop.f32.mrb[0].mxu0
        %v3779 = vadd.f32 %v3618, %v3778
        %v3780 = vpop.f32.mrb[0].mxu0
        %3781 = vmatprep.mubr.bf16.mxu0 %v3236
        %3782 = vmatmul.mubr.bf16.gmra.mrb[0].mxu0 %v3235
        %v3783 = vpop.f32.mrb[0].mxu0
        %v3784 = vadd.f32 %v3623, %v3783
        %v3785 = vpop.f32.mrb[0].mxu0
        %v3786 = vpop.f32.mrb[0].mxu0
        %v3787 = vadd.f32 %v3626, %v3786
        %v3788 = vpop.f32.mrb[0].mxu0
        %3789 = vmatprep.mubr.bf16.mxu0 %v3240
        %3790 = vmatmul.mubr.bf16.gmra.mrb[0].mxu0 %v3239
        %v3791 = vpop.f32.mrb[0].mxu0
        %v3792 = vadd.f32 %v3631, %v3791
        %v3793 = vpop.f32.mrb[0].mxu0
        %v3794 = vpop.f32.mrb[0].mxu0
        %v3795 = vadd.f32 %v3634, %v3794
        %v3796 = vpop.f32.mrb[0].mxu0
        %3797 = vmatprep.mubr.bf16.mxu0 %v3244
        %3798 = vmatmul.mubr.bf16.gmra.mrb[0].mxu0 %v3243
        %v3799 = vpop.f32.mrb[0].mxu0
        %v3800 = vadd.f32 %v3639, %v3799
        %v3801 = vpop.f32.mrb[0].mxu0
        %v3802 = vpop.f32.mrb[0].mxu0
        %v3803 = vadd.f32 %v3642, %v3802
        %v3804 = vpop.f32.mrb[0].mxu0
        %3805 = vmatprep.mubr.bf16.mxu0 %v3248
        %3806 = vmatmul.mubr.bf16.gmra.mrb[0].mxu0 %v3247
        %v3807 = vpop.f32.mrb[0].mxu0
        %v3808 = vadd.f32 %v3647, %v3807
        %v3809 = vpop.f32.mrb[0].mxu0
        %v3810 = vpop.f32.mrb[0].mxu0
        %v3811 = vadd.f32 %v3650, %v3810
        %v3812 = vpop.f32.mrb[0].mxu0
        %3813 = vmatprep.mubr.bf16.mxu0 %v3252
        %3814 = vmatmul.mubr.bf16.gmra.mrb[0].mxu0 %v3251
        %v3815 = vpop.f32.mrb[0].mxu0
        %v3816 = vadd.f32 %v3655, %v3815
        %v3817 = vpop.f32.mrb[0].mxu0
        %v3818 = vpop.f32.mrb[0].mxu0
        %v3819 = vadd.f32 %v3658, %v3818
        %v3820 = vpop.f32.mrb[0].mxu0
        %3821 = vmatprep.mubr.bf16.mxu0 %v3256
        %3822 = vmatmul.mubr.bf16.gmra.mrb[0].mxu0 %v3255
        %v3823 = vpop.f32.mrb[0].mxu0
        %v3824 = vadd.f32 %v3663, %v3823
        %v3825 = vpop.f32.mrb[0].mxu0
        %v3826 = vpop.f32.mrb[0].mxu0
        %v3827 = vadd.f32 %v3666, %v3826
        %v3828 = vpop.f32.mrb[0].mxu0
        %3829 = vmatprep.mubr.bf16.mxu0 %v3260
        %3830 = vmatmul.mubr.bf16.gmra.mrb[0].mxu0 %v3259
        %v3831 = vpop.f32.mrb[0].mxu0
        %v3832 = vadd.f32 %v3671, %v3831
        %v3833 = vpop.f32.mrb[0].mxu0
        %v3834 = vpop.f32.mrb[0].mxu0
        %v3835 = vadd.f32 %v3674, %v3834
        %v3836 = vpop.f32.mrb[0].mxu0
        %3837 = vmatprep.mubr.bf16.mxu0 %v3264
        %3838 = vmatmul.mubr.bf16.gmra.mrb[0].mxu0 %v3263
        %v3839 = vpop.f32.mrb[0].mxu0
        %v3840 = vadd.f32 %v3679, %v3839
        %v3841 = vpop.f32.mrb[0].mxu0
        %v3842 = vpop.f32.mrb[0].mxu0
        %v3843 = vadd.f32 %v3682, %v3842
        %v3844 = vpop.f32.mrb[0].mxu0
        %3845 = vmatprep.mubr.bf16.mxu0 %v3268
        %3846 = vmatmul.mubr.bf16.gmra.mrb[0].mxu0 %v3267
        %v3847 = vpop.f32.mrb[0].mxu0
        %v3848 = vadd.f32 %v3687, %v3847
        %v3849 = vpop.f32.mrb[0].mxu0
        %v3850 = vpop.f32.mrb[0].mxu0
        %v3851 = vadd.f32 %v3690, %v3850
        %v3852 = vpop.f32.mrb[0].mxu0
        %3853 = vdwg.mxu0
        %3886 = vrot.lane.b32.xlu0 %v3728, 125
        %v3887 = vpop.permute.xlu0 %3886
        %3888 = vrot.lane.b32.xlu0 %v3731, 125
        %v3889 = vpop.permute.xlu0 %3888
        %3890 = vrot.lane.b32.xlu0 %v3736, 125
        %v3891 = vpop.permute.xlu0 %3890
        %3892 = vrot.lane.b32.xlu0 %v3739, 125
        %v3893 = vpop.permute.xlu0 %3892
        %3894 = vrot.lane.b32.xlu0 %v3744, 125
        %v3895 = vpop.permute.xlu0 %3894
        %3896 = vrot.lane.b32.xlu0 %v3747, 125
        %v3897 = vpop.permute.xlu0 %3896
        %3898 = vrot.lane.b32.xlu0 %v3752, 125
        %v3899 = vpop.permute.xlu0 %3898
        %3900 = vrot.lane.b32.xlu0 %v3755, 125
        %v3901 = vpop.permute.xlu0 %3900
        %3902 = vrot.lane.b32.xlu0 %v3760, 125
        %v3903 = vpop.permute.xlu0 %3902
        %3904 = vrot.lane.b32.xlu0 %v3763, 125
        %v3905 = vpop.permute.xlu0 %3904
        %3906 = vrot.lane.b32.xlu0 %v3768, 125
        %v3907 = vpop.permute.xlu0 %3906
        %3908 = vrot.lane.b32.xlu0 %v3771, 125
        %v3909 = vpop.permute.xlu0 %3908
        %3910 = vrot.lane.b32.xlu0 %v3776, 125
        %v3911 = vpop.permute.xlu0 %3910
        %3912 = vrot.lane.b32.xlu0 %v3779, 125
        %v3913 = vpop.permute.xlu0 %3912
        %3914 = vrot.lane.b32.xlu0 %v3784, 125
        %v3915 = vpop.permute.xlu0 %3914
        %3916 = vrot.lane.b32.xlu0 %v3787, 125
        %v3917 = vpop.permute.xlu0 %3916
        %3918 = vrot.lane.b32.xlu0 %v3792, 125
        %v3919 = vpop.permute.xlu0 %3918
        %3920 = vrot.lane.b32.xlu0 %v3795, 125
        %v3921 = vpop.permute.xlu0 %3920
        %3922 = vrot.lane.b32.xlu0 %v3800, 125
        %v3923 = vpop.permute.xlu0 %3922
        %3924 = vrot.lane.b32.xlu0 %v3803, 125
        %v3925 = vpop.permute.xlu0 %3924
        %3926 = vrot.lane.b32.xlu0 %v3808, 125
        %v3927 = vpop.permute.xlu0 %3926
        %3928 = vrot.lane.b32.xlu0 %v3811, 125
        %v3929 = vpop.permute.xlu0 %3928
        %3930 = vrot.lane.b32.xlu0 %v3816, 125
        %v3931 = vpop.permute.xlu0 %3930
        %3932 = vrot.lane.b32.xlu0 %v3819, 125
        %v3933 = vpop.permute.xlu0 %3932
        %3934 = vrot.lane.b32.xlu0 %v3824, 125
        %v3935 = vpop.permute.xlu0 %3934
        %3936 = vrot.lane.b32.xlu0 %v3827, 125
        %v3937 = vpop.permute.xlu0 %3936
        %3938 = vrot.lane.b32.xlu0 %v3832, 125
        %v3939 = vpop.permute.xlu0 %3938
        %3940 = vrot.lane.b32.xlu0 %v3835, 125
        %v3941 = vpop.permute.xlu0 %3940
        %3942 = vrot.lane.b32.xlu0 %v3840, 125
        %v3943 = vpop.permute.xlu0 %3942
        %3944 = vrot.lane.b32.xlu0 %v3843, 125
        %v3945 = vpop.permute.xlu0 %3944
        %3946 = vrot.lane.b32.xlu0 %v3848, 125
        %v3947 = vpop.permute.xlu0 %3946
        %3948 = vrot.lane.b32.xlu0 %v3851, 125
        %v3949 = vpop.permute.xlu0 %3948
        %v3982 = vmax.f32 %v3728, %v3887
        %v3983 = vmax.f32 %v3731, %v3889
        %v3984 = vmax.f32 %v3736, %v3891
        %v3985 = vmax.f32 %v3739, %v3893
        %v3986 = vmax.f32 %v3744, %v3895
        %v3987 = vmax.f32 %v3747, %v3897
        %v3988 = vmax.f32 %v3752, %v3899
        %v3989 = vmax.f32 %v3755, %v3901
        %v3990 = vmax.f32 %v3760, %v3903
        %v3991 = vmax.f32 %v3763, %v3905
        %v3992 = vmax.f32 %v3768, %v3907
        %v3993 = vmax.f32 %v3771, %v3909
        %v3994 = vmax.f32 %v3776, %v3911
        %v3995 = vmax.f32 %v3779, %v3913
        %v3996 = vmax.f32 %v3784, %v3915
        %v3997 = vmax.f32 %v3787, %v3917
        %v3998 = vmax.f32 %v3792, %v3919
        %v3999 = vmax.f32 %v3795, %v3921
        %v4000 = vmax.f32 %v3800, %v3923
        %v4001 = vmax.f32 %v3803, %v3925
        %v4002 = vmax.f32 %v3808, %v3927
        %v4003 = vmax.f32 %v3811, %v3929
        %v4004 = vmax.f32 %v3816, %v3931
        %v4005 = vmax.f32 %v3819, %v3933
        %v4006 = vmax.f32 %v3824, %v3935
        %v4007 = vmax.f32 %v3827, %v3937
        %v4008 = vmax.f32 %v3832, %v3939
        %v4009 = vmax.f32 %v3835, %v3941
        %v4010 = vmax.f32 %v3840, %v3943
        %v4011 = vmax.f32 %v3843, %v3945
        %v4012 = vmax.f32 %v3848, %v3947
        %v4013 = vmax.f32 %v3851, %v3949
        %v4014 = vsub.f32 %v3728, %v3982
        %v4015 = vsub.f32 %v3731, %v3983
        %v4016 = vsub.f32 %v3736, %v3984
        %v4017 = vsub.f32 %v3739, %v3985
        %v4018 = vsub.f32 %v3744, %v3986
        %v4019 = vsub.f32 %v3747, %v3987
        %v4020 = vsub.f32 %v3752, %v3988
        %v4021 = vsub.f32 %v3755, %v3989
        %v4022 = vsub.f32 %v3760, %v3990
        %v4023 = vsub.f32 %v3763, %v3991
        %v4024 = vsub.f32 %v3768, %v3992
        %v4025 = vsub.f32 %v3771, %v3993
        %v4026 = vsub.f32 %v3776, %v3994
        %v4027 = vsub.f32 %v3779, %v3995
        %v4028 = vsub.f32 %v3784, %v3996
        %v4029 = vsub.f32 %v3787, %v3997
        %v4030 = vsub.f32 %v3792, %v3998
        %v4031 = vsub.f32 %v3795, %v3999
        %v4032 = vsub.f32 %v3800, %v4000
        %v4033 = vsub.f32 %v3803, %v4001
        %v4034 = vsub.f32 %v3808, %v4002
        %v4035 = vsub.f32 %v3811, %v4003
        %v4036 = vsub.f32 %v3816, %v4004
        %v4037 = vsub.f32 %v3819, %v4005
        %v4038 = vsub.f32 %v3824, %v4006
        %v4039 = vsub.f32 %v3827, %v4007
        %v4040 = vsub.f32 %v3832, %v4008
        %v4041 = vsub.f32 %v3835, %v4009
        %v4042 = vsub.f32 %v3840, %v4010
        %v4043 = vsub.f32 %v3843, %v4011
        %v4044 = vsub.f32 %v3848, %v4012
        %v4045 = vsub.f32 %v3851, %v4013
        %v4046 = vmul.f32 %v4014, 1.442695
        %v4047 = vpow.pop %v4046
        %v4048 = vmul.f32 %v4015, 1.442695
        %v4049 = vpow.pop %v4048
        %v4050 = vmul.f32 %v4016, 1.442695
        %v4051 = vpow.pop %v4050
        %v4052 = vmul.f32 %v4017, 1.442695
        %v4053 = vpow.pop %v4052
        %v4054 = vmul.f32 %v4018, 1.442695
        %v4055 = vpow.pop %v4054
        %v4056 = vmul.f32 %v4019, 1.442695
        %v4057 = vpow.pop %v4056
        %v4058 = vmul.f32 %v4020, 1.442695
        %v4059 = vpow.pop %v4058
        %v4060 = vmul.f32 %v4021, 1.442695
        %v4061 = vpow.pop %v4060
        %v4062 = vmul.f32 %v4022, 1.442695
        %v4063 = vpow.pop %v4062
        %v4064 = vmul.f32 %v4023, 1.442695
        %v4065 = vpow.pop %v4064
        %v4066 = vmul.f32 %v4024, 1.442695
        %v4067 = vpow.pop %v4066
        %v4068 = vmul.f32 %v4025, 1.442695
        %v4069 = vpow.pop %v4068
        %v4070 = vmul.f32 %v4026, 1.442695
        %v4071 = vpow.pop %v4070
        %v4072 = vmul.f32 %v4027, 1.442695
        %v4073 = vpow.pop %v4072
        %v4074 = vmul.f32 %v4028, 1.442695
        %v4075 = vpow.pop %v4074
        %v4076 = vmul.f32 %v4029, 1.442695
        %v4077 = vpow.pop %v4076
        %v4078 = vmul.f32 %v4030, 1.442695
        %v4079 = vpow.pop %v4078
        %v4080 = vmul.f32 %v4031, 1.442695
        %v4081 = vpow.pop %v4080
        %v4082 = vmul.f32 %v4032, 1.442695
        %v4083 = vpow.pop %v4082
        %v4084 = vmul.f32 %v4033, 1.442695
        %v4085 = vpow.pop %v4084
        %v4086 = vmul.f32 %v4034, 1.442695
        %v4087 = vpow.pop %v4086
        %v4088 = vmul.f32 %v4035, 1.442695
        %v4089 = vpow.pop %v4088
        %v4090 = vmul.f32 %v4036, 1.442695
        %v4091 = vpow.pop %v4090
        %v4092 = vmul.f32 %v4037, 1.442695
        %v4093 = vpow.pop %v4092
        %v4094 = vmul.f32 %v4038, 1.442695
        %v4095 = vpow.pop %v4094
        %v4096 = vmul.f32 %v4039, 1.442695
        %v4097 = vpow.pop %v4096
        %v4098 = vmul.f32 %v4040, 1.442695
        %v4099 = vpow.pop %v4098
        %v4100 = vmul.f32 %v4041, 1.442695
        %v4101 = vpow.pop %v4100
        %v4102 = vmul.f32 %v4042, 1.442695
        %v4103 = vpow.pop %v4102
        %v4104 = vmul.f32 %v4043, 1.442695
        %v4105 = vpow.pop %v4104
        %v4106 = vmul.f32 %v4044, 1.442695
        %v4107 = vpow.pop %v4106
        %v4108 = vmul.f32 %v4045, 1.442695
        %v4109 = vpow.pop %v4108
        %4142 = vrot.lane.b32.xlu0 %v3982, 3
        %v4143 = vpop.permute.xlu0 %4142
        %4144 = vrot.lane.b32.xlu0 %v3983, 3
        %v4145 = vpop.permute.xlu0 %4144
        %4146 = vrot.lane.b32.xlu0 %v3984, 3
        %v4147 = vpop.permute.xlu0 %4146
        %4148 = vrot.lane.b32.xlu0 %v3985, 3
        %v4149 = vpop.permute.xlu0 %4148
        %4150 = vrot.lane.b32.xlu0 %v3986, 3
        %v4151 = vpop.permute.xlu0 %4150
        %4152 = vrot.lane.b32.xlu0 %v3987, 3
        %v4153 = vpop.permute.xlu0 %4152
        %4154 = vrot.lane.b32.xlu0 %v3988, 3
        %v4155 = vpop.permute.xlu0 %4154
        %4156 = vrot.lane.b32.xlu0 %v3989, 3
        %v4157 = vpop.permute.xlu0 %4156
        %4158 = vrot.lane.b32.xlu0 %v3990, 3
        %v4159 = vpop.permute.xlu0 %4158
        %4160 = vrot.lane.b32.xlu0 %v3991, 3
        %v4161 = vpop.permute.xlu0 %4160
        %4162 = vrot.lane.b32.xlu0 %v3992, 3
        %v4163 = vpop.permute.xlu0 %4162
        %4164 = vrot.lane.b32.xlu0 %v3993, 3
        %v4165 = vpop.permute.xlu0 %4164
        %4166 = vrot.lane.b32.xlu0 %v3994, 3
        %v4167 = vpop.permute.xlu0 %4166
        %4168 = vrot.lane.b32.xlu0 %v3995, 3
        %v4169 = vpop.permute.xlu0 %4168
        %4170 = vrot.lane.b32.xlu0 %v3996, 3
        %v4171 = vpop.permute.xlu0 %4170
        %4172 = vrot.lane.b32.xlu0 %v3997, 3
        %v4173 = vpop.permute.xlu0 %4172
        %4174 = vrot.lane.b32.xlu0 %v3998, 3
        %v4175 = vpop.permute.xlu0 %4174
        %4176 = vrot.lane.b32.xlu0 %v3999, 3
        %v4177 = vpop.permute.xlu0 %4176
        %4178 = vrot.lane.b32.xlu0 %v4000, 3
        %v4179 = vpop.permute.xlu0 %4178
        %4180 = vrot.lane.b32.xlu0 %v4001, 3
        %v4181 = vpop.permute.xlu0 %4180
        %4182 = vrot.lane.b32.xlu0 %v4002, 3
        %v4183 = vpop.permute.xlu0 %4182
        %4184 = vrot.lane.b32.xlu0 %v4003, 3
        %v4185 = vpop.permute.xlu0 %4184
        %4186 = vrot.lane.b32.xlu0 %v4004, 3
        %v4187 = vpop.permute.xlu0 %4186
        %4188 = vrot.lane.b32.xlu0 %v4005, 3
        %v4189 = vpop.permute.xlu0 %4188
        %4190 = vrot.lane.b32.xlu0 %v4006, 3
        %v4191 = vpop.permute.xlu0 %4190
        %4192 = vrot.lane.b32.xlu0 %v4007, 3
        %v4193 = vpop.permute.xlu0 %4192
        %4194 = vrot.lane.b32.xlu0 %v4008, 3
        %v4195 = vpop.permute.xlu0 %4194
        %4196 = vrot.lane.b32.xlu0 %v4009, 3
        %v4197 = vpop.permute.xlu0 %4196
        %4198 = vrot.lane.b32.xlu0 %v4010, 3
        %v4199 = vpop.permute.xlu0 %4198
        %4200 = vrot.lane.b32.xlu0 %v4011, 3
        %v4201 = vpop.permute.xlu0 %4200
        %4202 = vrot.lane.b32.xlu0 %v4012, 3
        %v4203 = vpop.permute.xlu0 %4202
        %4204 = vrot.lane.b32.xlu0 %v4013, 3
        %v4205 = vpop.permute.xlu0 %4204
        %v4238 = vsub.f32 %v3728, %v4143
        %v4239 = vsub.f32 %v3731, %v4145
        %v4240 = vsub.f32 %v3736, %v4147
        %v4241 = vsub.f32 %v3739, %v4149
        %v4242 = vsub.f32 %v3744, %v4151
        %v4243 = vsub.f32 %v3747, %v4153
        %v4244 = vsub.f32 %v3752, %v4155
        %v4245 = vsub.f32 %v3755, %v4157
        %v4246 = vsub.f32 %v3760, %v4159
        %v4247 = vsub.f32 %v3763, %v4161
        %v4248 = vsub.f32 %v3768, %v4163
        %v4249 = vsub.f32 %v3771, %v4165
        %v4250 = vsub.f32 %v3776, %v4167
        %v4251 = vsub.f32 %v3779, %v4169
        %v4252 = vsub.f32 %v3784, %v4171
        %v4253 = vsub.f32 %v3787, %v4173
        %v4254 = vsub.f32 %v3792, %v4175
        %v4255 = vsub.f32 %v3795, %v4177
        %v4256 = vsub.f32 %v3800, %v4179
        %v4257 = vsub.f32 %v3803, %v4181
        %v4258 = vsub.f32 %v3808, %v4183
        %v4259 = vsub.f32 %v3811, %v4185
        %v4260 = vsub.f32 %v3816, %v4187
        %v4261 = vsub.f32 %v3819, %v4189
        %v4262 = vsub.f32 %v3824, %v4191
        %v4263 = vsub.f32 %v3827, %v4193
        %v4264 = vsub.f32 %v3832, %v4195
        %v4265 = vsub.f32 %v3835, %v4197
        %v4266 = vsub.f32 %v3840, %v4199
        %v4267 = vsub.f32 %v3843, %v4201
        %v4268 = vsub.f32 %v3848, %v4203
        %v4269 = vsub.f32 %v3851, %v4205
        %v4270 = vmul.f32 %v4238, 1.442695
        %v4271 = vpow.pop %v4270
        %v4272 = vmul.f32 %v4239, 1.442695
        %v4273 = vpow.pop %v4272
        %v4274 = vmul.f32 %v4240, 1.442695
        %v4275 = vpow.pop %v4274
        %v4276 = vmul.f32 %v4241, 1.442695
        %v4277 = vpow.pop %v4276
        %v4278 = vmul.f32 %v4242, 1.442695
        %v4279 = vpow.pop %v4278
        %v4280 = vmul.f32 %v4243, 1.442695
        %v4281 = vpow.pop %v4280
        %v4282 = vmul.f32 %v4244, 1.442695
        %v4283 = vpow.pop %v4282
        %v4284 = vmul.f32 %v4245, 1.442695
        %v4285 = vpow.pop %v4284
        %v4286 = vmul.f32 %v4246, 1.442695
        %v4287 = vpow.pop %v4286
        %v4288 = vmul.f32 %v4247, 1.442695
        %v4289 = vpow.pop %v4288
        %v4290 = vmul.f32 %v4248, 1.442695
        %v4291 = vpow.pop %v4290
        %v4292 = vmul.f32 %v4249, 1.442695
        %v4293 = vpow.pop %v4292
        %v4294 = vmul.f32 %v4250, 1.442695
        %v4295 = vpow.pop %v4294
        %v4296 = vmul.f32 %v4251, 1.442695
        %v4297 = vpow.pop %v4296
        %v4298 = vmul.f32 %v4252, 1.442695
        %v4299 = vpow.pop %v4298
        %v4300 = vmul.f32 %v4253, 1.442695
        %v4301 = vpow.pop %v4300
        %v4302 = vmul.f32 %v4254, 1.442695
        %v4303 = vpow.pop %v4302
        %v4304 = vmul.f32 %v4255, 1.442695
        %v4305 = vpow.pop %v4304
        %v4306 = vmul.f32 %v4256, 1.442695
        %v4307 = vpow.pop %v4306
        %v4308 = vmul.f32 %v4257, 1.442695
        %v4309 = vpow.pop %v4308
        %v4310 = vmul.f32 %v4258, 1.442695
        %v4311 = vpow.pop %v4310
        %v4312 = vmul.f32 %v4259, 1.442695
        %v4313 = vpow.pop %v4312
        %v4314 = vmul.f32 %v4260, 1.442695
        %v4315 = vpow.pop %v4314
        %v4316 = vmul.f32 %v4261, 1.442695
        %v4317 = vpow.pop %v4316
        %v4318 = vmul.f32 %v4262, 1.442695
        %v4319 = vpow.pop %v4318
        %v4320 = vmul.f32 %v4263, 1.442695
        %v4321 = vpow.pop %v4320
        %v4322 = vmul.f32 %v4264, 1.442695
        %v4323 = vpow.pop %v4322
        %v4324 = vmul.f32 %v4265, 1.442695
        %v4325 = vpow.pop %v4324
        %v4326 = vmul.f32 %v4266, 1.442695
        %v4327 = vpow.pop %v4326
        %v4328 = vmul.f32 %v4267, 1.442695
        %v4329 = vpow.pop %v4328
        %v4330 = vmul.f32 %v4268, 1.442695
        %v4331 = vpow.pop %v4330
        %v4332 = vmul.f32 %v4269, 1.442695
        %v4333 = vpow.pop %v4332
        %4366 = vrot.lane.b32.xlu0 %v4271, 125
        %v4367 = vpop.permute.xlu0 %4366
        %4368 = vrot.lane.b32.xlu0 %v4273, 125
        %v4369 = vpop.permute.xlu0 %4368
        %4370 = vrot.lane.b32.xlu0 %v4275, 125
        %v4371 = vpop.permute.xlu0 %4370
        %4372 = vrot.lane.b32.xlu0 %v4277, 125
        %v4373 = vpop.permute.xlu0 %4372
        %4374 = vrot.lane.b32.xlu0 %v4279, 125
        %v4375 = vpop.permute.xlu0 %4374
        %4376 = vrot.lane.b32.xlu0 %v4281, 125
        %v4377 = vpop.permute.xlu0 %4376
        %4378 = vrot.lane.b32.xlu0 %v4283, 125
        %v4379 = vpop.permute.xlu0 %4378
        %4380 = vrot.lane.b32.xlu0 %v4285, 125
        %v4381 = vpop.permute.xlu0 %4380
        %4382 = vrot.lane.b32.xlu0 %v4287, 125
        %v4383 = vpop.permute.xlu0 %4382
        %4384 = vrot.lane.b32.xlu0 %v4289, 125
        %v4385 = vpop.permute.xlu0 %4384
        %4386 = vrot.lane.b32.xlu0 %v4291, 125
        %v4387 = vpop.permute.xlu0 %4386
        %4388 = vrot.lane.b32.xlu0 %v4293, 125
        %v4389 = vpop.permute.xlu0 %4388
        %4390 = vrot.lane.b32.xlu0 %v4295, 125
        %v4391 = vpop.permute.xlu0 %4390
        %4392 = vrot.lane.b32.xlu0 %v4297, 125
        %v4393 = vpop.permute.xlu0 %4392
        %4394 = vrot.lane.b32.xlu0 %v4299, 125
        %v4395 = vpop.permute.xlu0 %4394
        %4396 = vrot.lane.b32.xlu0 %v4301, 125
        %v4397 = vpop.permute.xlu0 %4396
        %4398 = vrot.lane.b32.xlu0 %v4303, 125
        %v4399 = vpop.permute.xlu0 %4398
        %4400 = vrot.lane.b32.xlu0 %v4305, 125
        %v4401 = vpop.permute.xlu0 %4400
        %4402 = vrot.lane.b32.xlu0 %v4307, 125
        %v4403 = vpop.permute.xlu0 %4402
        %4404 = vrot.lane.b32.xlu0 %v4309, 125
        %v4405 = vpop.permute.xlu0 %4404
        %4406 = vrot.lane.b32.xlu0 %v4311, 125
        %v4407 = vpop.permute.xlu0 %4406
        %4408 = vrot.lane.b32.xlu0 %v4313, 125
        %v4409 = vpop.permute.xlu0 %4408
        %4410 = vrot.lane.b32.xlu0 %v4315, 125
        %v4411 = vpop.permute.xlu0 %4410
        %4412 = vrot.lane.b32.xlu0 %v4317, 125
        %v4413 = vpop.permute.xlu0 %4412
        %4414 = vrot.lane.b32.xlu0 %v4319, 125
        %v4415 = vpop.permute.xlu0 %4414
        %4416 = vrot.lane.b32.xlu0 %v4321, 125
        %v4417 = vpop.permute.xlu0 %4416
        %4418 = vrot.lane.b32.xlu0 %v4323, 125
        %v4419 = vpop.permute.xlu0 %4418
        %4420 = vrot.lane.b32.xlu0 %v4325, 125
        %v4421 = vpop.permute.xlu0 %4420
        %4422 = vrot.lane.b32.xlu0 %v4327, 125
        %v4423 = vpop.permute.xlu0 %4422
        %4424 = vrot.lane.b32.xlu0 %v4329, 125
        %v4425 = vpop.permute.xlu0 %4424
        %4426 = vrot.lane.b32.xlu0 %v4331, 125
        %v4427 = vpop.permute.xlu0 %4426
        %4428 = vrot.lane.b32.xlu0 %v4333, 125
        %v4429 = vpop.permute.xlu0 %4428
        %v4462 = vadd.f32 %v4047, %v4367
        %v4463 = vadd.f32 %v4049, %v4369
        %v4464 = vadd.f32 %v4051, %v4371
        %v4465 = vadd.f32 %v4053, %v4373
        %v4466 = vadd.f32 %v4055, %v4375
        %v4467 = vadd.f32 %v4057, %v4377
        %v4468 = vadd.f32 %v4059, %v4379
        %v4469 = vadd.f32 %v4061, %v4381
        %v4470 = vadd.f32 %v4063, %v4383
        %v4471 = vadd.f32 %v4065, %v4385
        %v4472 = vadd.f32 %v4067, %v4387
        %v4473 = vadd.f32 %v4069, %v4389
        %v4474 = vadd.f32 %v4071, %v4391
        %v4475 = vadd.f32 %v4073, %v4393
        %v4476 = vadd.f32 %v4075, %v4395
        %v4477 = vadd.f32 %v4077, %v4397
        %v4478 = vadd.f32 %v4079, %v4399
        %v4479 = vadd.f32 %v4081, %v4401
        %v4480 = vadd.f32 %v4083, %v4403
        %v4481 = vadd.f32 %v4085, %v4405
        %v4482 = vadd.f32 %v4087, %v4407
        %v4483 = vadd.f32 %v4089, %v4409
        %v4484 = vadd.f32 %v4091, %v4411
        %v4485 = vadd.f32 %v4093, %v4413
        %v4486 = vadd.f32 %v4095, %v4415
        %v4487 = vadd.f32 %v4097, %v4417
        %v4488 = vadd.f32 %v4099, %v4419
        %v4489 = vadd.f32 %v4101, %v4421
        %v4490 = vadd.f32 %v4103, %v4423
        %v4491 = vadd.f32 %v4105, %v4425
        %v4492 = vadd.f32 %v4107, %v4427
        %v4493 = vadd.f32 %v4109, %v4429
        %v4494 = vrcp.pop %v4462
        %v4495 = vrcp.pop %v4463
        %v4496 = vrcp.pop %v4464
        %v4497 = vrcp.pop %v4465
        %v4498 = vrcp.pop %v4466
        %v4499 = vrcp.pop %v4467
        %v4500 = vrcp.pop %v4468
        %v4501 = vrcp.pop %v4469
        %v4502 = vrcp.pop %v4470
        %v4503 = vrcp.pop %v4471
        %v4504 = vrcp.pop %v4472
        %v4505 = vrcp.pop %v4473
        %v4506 = vrcp.pop %v4474
        %v4507 = vrcp.pop %v4475
        %v4508 = vrcp.pop %v4476
        %v4509 = vrcp.pop %v4477
        %v4510 = vrcp.pop %v4478
        %v4511 = vrcp.pop %v4479
        %v4512 = vrcp.pop %v4480
        %v4513 = vrcp.pop %v4481
        %v4514 = vrcp.pop %v4482
        %v4515 = vrcp.pop %v4483
        %v4516 = vrcp.pop %v4484
        %v4517 = vrcp.pop %v4485
        %v4518 = vrcp.pop %v4486
        %v4519 = vrcp.pop %v4487
        %v4520 = vrcp.pop %v4488
        %v4521 = vrcp.pop %v4489
        %v4522 = vrcp.pop %v4490
        %v4523 = vrcp.pop %v4491
        %v4524 = vrcp.pop %v4492
        %v4525 = vrcp.pop %v4493
        %4526 = vst [vmem:[%s259] sm:$0xff] %v3728
        %4527 = vst [vmem:[%s259 + $0x8] sm:$0xff] %v3731
        %4528 = vst [vmem:[%s259 + $0x10] sm:$0xff] %v3736
        %4529 = vst [vmem:[%s259 + $0x18] sm:$0xff] %v3739
        %4530 = vst [vmem:[%s259 + $0x20] sm:$0xff] %v3744
        %4531 = vst [vmem:[%s259 + $0x28] sm:$0xff] %v3747
        %4532 = vst [vmem:[%s259 + $0x30] sm:$0xff] %v3752
        %4533 = vst [vmem:[%s259 + $0x38] sm:$0xff] %v3755
        %4534 = vst [vmem:[%s259 + $0x40] sm:$0xff] %v3760
        %4535 = vst [vmem:[%s259 + $0x48] sm:$0xff] %v3763
        %4536 = vst [vmem:[%s259 + $0x50] sm:$0xff] %v3768
        %4537 = vst [vmem:[%s259 + $0x58] sm:$0xff] %v3771
        %4538 = vst [vmem:[%s259 + $0x60] sm:$0xff] %v3776
        %4539 = vst [vmem:[%s259 + $0x68] sm:$0xff] %v3779
        %4540 = vst [vmem:[%s259 + $0x70] sm:$0xff] %v3784
        %4541 = vst [vmem:[%s259 + $0x78] sm:$0xff] %v3787
        %4542 = vst [vmem:[%s259 + $0x80] sm:$0xff] %v3792
        %4543 = vst [vmem:[%s259 + $0x88] sm:$0xff] %v3795
        %4544 = vst [vmem:[%s259 + $0x90] sm:$0xff] %v3800
        %4545 = vst [vmem:[%s259 + $0x98] sm:$0xff] %v3803
        %4546 = vst [vmem:[%s259 + $0xa0] sm:$0xff] %v3808
        %4547 = vst [vmem:[%s259 + $0xa8] sm:$0xff] %v3811
        %4548 = vst [vmem:[%s259 + $0xb0] sm:$0xff] %v3816
        %4549 = vst [vmem:[%s259 + $0xb8] sm:$0xff] %v3819
        %4550 = vst [vmem:[%s259 + $0xc0] sm:$0xff] %v3824
        %4551 = vst [vmem:[%s259 + $0xc8] sm:$0xff] %v3827
        %4552 = vst [vmem:[%s259 + $0xd0] sm:$0xff] %v3832
        %4553 = vst [vmem:[%s259 + $0xd8] sm:$0xff] %v3835
        %4554 = vst [vmem:[%s259 + $0xe0] sm:$0xff] %v3840
        %4555 = vst [vmem:[%s259 + $0xe8] sm:$0xff] %v3843
        %4556 = vst [vmem:[%s259 + $0xf0] sm:$0xff] %v3848
        %4557 = vst [vmem:[%s259 + $0xf8] sm:$0xff] %v3851
        %v4558 = vmul.f32 %v4047, %v4494
        %v4559 = vmul.f32 %v4049, %v4495
        %v4560 = vmul.f32 %v4051, %v4496
        %v4561 = vmul.f32 %v4053, %v4497
        %v4562 = vmul.f32 %v4055, %v4498
        %v4563 = vmul.f32 %v4057, %v4499
        %v4564 = vmul.f32 %v4059, %v4500
        %v4565 = vmul.f32 %v4061, %v4501
        %v4566 = vmul.f32 %v4063, %v4502
        %v4567 = vmul.f32 %v4065, %v4503
        %v4568 = vmul.f32 %v4067, %v4504
        %v4569 = vmul.f32 %v4069, %v4505
        %v4570 = vmul.f32 %v4071, %v4506
        %v4571 = vmul.f32 %v4073, %v4507
        %v4572 = vmul.f32 %v4075, %v4508
        %v4573 = vmul.f32 %v4077, %v4509
        %v4574 = vmul.f32 %v4079, %v4510
        %v4575 = vmul.f32 %v4081, %v4511
        %v4576 = vmul.f32 %v4083, %v4512
        %v4577 = vmul.f32 %v4085, %v4513
        %v4578 = vmul.f32 %v4087, %v4514
        %v4579 = vmul.f32 %v4089, %v4515
        %v4580 = vmul.f32 %v4091, %v4516
        %v4581 = vmul.f32 %v4093, %v4517
        %v4582 = vmul.f32 %v4095, %v4518
        %v4583 = vmul.f32 %v4097, %v4519
        %v4584 = vmul.f32 %v4099, %v4520
        %v4585 = vmul.f32 %v4101, %v4521
        %v4586 = vmul.f32 %v4103, %v4522
        %v4587 = vmul.f32 %v4105, %v4523
        %v4588 = vmul.f32 %v4107, %v4524
        %v4589 = vmul.f32 %v4109, %v4525
        %4622 = vrot.lane.b32.xlu0 %v4494, 3
        %v4623 = vpop.permute.xlu0 %4622
        %4624 = vrot.lane.b32.xlu0 %v4495, 3
        %v4625 = vpop.permute.xlu0 %4624
        %4626 = vrot.lane.b32.xlu0 %v4496, 3
        %v4627 = vpop.permute.xlu0 %4626
        %4628 = vrot.lane.b32.xlu0 %v4497, 3
        %v4629 = vpop.permute.xlu0 %4628
        %4630 = vrot.lane.b32.xlu0 %v4498, 3
        %v4631 = vpop.permute.xlu0 %4630
        %4632 = vrot.lane.b32.xlu0 %v4499, 3
        %v4633 = vpop.permute.xlu0 %4632
        %4634 = vrot.lane.b32.xlu0 %v4500, 3
        %v4635 = vpop.permute.xlu0 %4634
        %4636 = vrot.lane.b32.xlu0 %v4501, 3
        %v4637 = vpop.permute.xlu0 %4636
        %4638 = vrot.lane.b32.xlu0 %v4502, 3
        %v4639 = vpop.permute.xlu0 %4638
        %4640 = vrot.lane.b32.xlu0 %v4503, 3
        %v4641 = vpop.permute.xlu0 %4640
        %4642 = vrot.lane.b32.xlu0 %v4504, 3
        %v4643 = vpop.permute.xlu0 %4642
        %4644 = vrot.lane.b32.xlu0 %v4505, 3
        %v4645 = vpop.permute.xlu0 %4644
        %4646 = vrot.lane.b32.xlu0 %v4506, 3
        %v4647 = vpop.permute.xlu0 %4646
        %4648 = vrot.lane.b32.xlu0 %v4507, 3
        %v4649 = vpop.permute.xlu0 %4648
        %4650 = vrot.lane.b32.xlu0 %v4508, 3
        %v4651 = vpop.permute.xlu0 %4650
        %4652 = vrot.lane.b32.xlu0 %v4509, 3
        %v4653 = vpop.permute.xlu0 %4652
        %4654 = vrot.lane.b32.xlu0 %v4510, 3
        %v4655 = vpop.permute.xlu0 %4654
        %4656 = vrot.lane.b32.xlu0 %v4511, 3
        %v4657 = vpop.permute.xlu0 %4656
        %4658 = vrot.lane.b32.xlu0 %v4512, 3
        %v4659 = vpop.permute.xlu0 %4658
        %4660 = vrot.lane.b32.xlu0 %v4513, 3
        %v4661 = vpop.permute.xlu0 %4660
        %4662 = vrot.lane.b32.xlu0 %v4514, 3
        %v4663 = vpop.permute.xlu0 %4662
        %4664 = vrot.lane.b32.xlu0 %v4515, 3
        %v4665 = vpop.permute.xlu0 %4664
        %4666 = vrot.lane.b32.xlu0 %v4516, 3
        %v4667 = vpop.permute.xlu0 %4666
        %4668 = vrot.lane.b32.xlu0 %v4517, 3
        %v4669 = vpop.permute.xlu0 %4668
        %4670 = vrot.lane.b32.xlu0 %v4518, 3
        %v4671 = vpop.permute.xlu0 %4670
        %4672 = vrot.lane.b32.xlu0 %v4519, 3
        %v4673 = vpop.permute.xlu0 %4672
        %4674 = vrot.lane.b32.xlu0 %v4520, 3
        %v4675 = vpop.permute.xlu0 %4674
        %4676 = vrot.lane.b32.xlu0 %v4521, 3
        %v4677 = vpop.permute.xlu0 %4676
        %4678 = vrot.lane.b32.xlu0 %v4522, 3
        %v4679 = vpop.permute.xlu0 %4678
        %4680 = vrot.lane.b32.xlu0 %v4523, 3
        %v4681 = vpop.permute.xlu0 %4680
        %4682 = vrot.lane.b32.xlu0 %v4524, 3
        %v4683 = vpop.permute.xlu0 %4682
        %4684 = vrot.lane.b32.xlu0 %v4525, 3
        %v4685 = vpop.permute.xlu0 %4684
        %v4718 = vmul.f32 %v4271, %v4623
        %v4719 = vmul.f32 %v4273, %v4625
        %v4720 = vmul.f32 %v4275, %v4627
        %v4721 = vmul.f32 %v4277, %v4629
        %v4722 = vmul.f32 %v4279, %v4631
        %v4723 = vmul.f32 %v4281, %v4633
        %v4724 = vmul.f32 %v4283, %v4635
        %v4725 = vmul.f32 %v4285, %v4637
        %v4726 = vmul.f32 %v4287, %v4639
        %v4727 = vmul.f32 %v4289, %v4641
        %v4728 = vmul.f32 %v4291, %v4643
        %v4729 = vmul.f32 %v4293, %v4645
        %v4730 = vmul.f32 %v4295, %v4647
        %v4731 = vmul.f32 %v4297, %v4649
        %v4732 = vmul.f32 %v4299, %v4651
        %v4733 = vmul.f32 %v4301, %v4653
        %v4734 = vmul.f32 %v4303, %v4655
        %v4735 = vmul.f32 %v4305, %v4657
        %v4736 = vmul.f32 %v4307, %v4659
        %v4737 = vmul.f32 %v4309, %v4661
        %v4738 = vmul.f32 %v4311, %v4663
        %v4739 = vmul.f32 %v4313, %v4665
        %v4740 = vmul.f32 %v4315, %v4667
        %v4741 = vmul.f32 %v4317, %v4669
        %v4742 = vmul.f32 %v4319, %v4671
        %v4743 = vmul.f32 %v4321, %v4673
        %v4744 = vmul.f32 %v4323, %v4675
        %v4745 = vmul.f32 %v4325, %v4677
        %v4746 = vmul.f32 %v4327, %v4679
        %v4747 = vmul.f32 %v4329, %v4681
        %v4748 = vmul.f32 %v4331, %v4683
        %v4749 = vmul.f32 %v4333, %v4685
        %vm4750 = vcmask 23552
        %v4751 = vsel %vm4750, %v4558, %v4718
        %v4752 = vsel %vm4750, %v4559, %v4719
        %v4753 = vsel %vm4750, %v4560, %v4720
        %v4754 = vsel %vm4750, %v4561, %v4721
        %v4755 = vsel %vm4750, %v4562, %v4722
        %v4756 = vsel %vm4750, %v4563, %v4723
        %v4757 = vsel %vm4750, %v4564, %v4724
        %v4758 = vsel %vm4750, %v4565, %v4725
        %v4759 = vsel %vm4750, %v4566, %v4726
        %v4760 = vsel %vm4750, %v4567, %v4727
        %v4761 = vsel %vm4750, %v4568, %v4728
        %v4762 = vsel %vm4750, %v4569, %v4729
        %v4763 = vsel %vm4750, %v4570, %v4730
        %v4764 = vsel %vm4750, %v4571, %v4731
        %v4765 = vsel %vm4750, %v4572, %v4732
        %v4766 = vsel %vm4750, %v4573, %v4733
        %v4767 = vsel %vm4750, %v4574, %v4734
        %v4768 = vsel %vm4750, %v4575, %v4735
        %v4769 = vsel %vm4750, %v4576, %v4736
        %v4770 = vsel %vm4750, %v4577, %v4737
        %v4771 = vsel %vm4750, %v4578, %v4738
        %v4772 = vsel %vm4750, %v4579, %v4739
        %v4773 = vsel %vm4750, %v4580, %v4740
        %v4774 = vsel %vm4750, %v4581, %v4741
        %v4775 = vsel %vm4750, %v4582, %v4742
        %v4776 = vsel %vm4750, %v4583, %v4743
        %v4777 = vsel %vm4750, %v4584, %v4744
        %v4778 = vsel %vm4750, %v4585, %v4745
        %v4779 = vsel %vm4750, %v4586, %v4746
        %v4780 = vsel %vm4750, %v4587, %v4747
        %v4781 = vsel %vm4750, %v4588, %v4748
        %v4782 = vsel %vm4750, %v4589, %v4749
        %4815 = vrot.lane.b32.xlu0 %v4751, 18
        %v4816 = vpop.permute.xlu0 %4815
        %4817 = vrot.lane.b32.xlu0 %v4752, 18
        %v4818 = vpop.permute.xlu0 %4817
        %4819 = vrot.lane.b32.xlu0 %v4753, 18
        %v4820 = vpop.permute.xlu0 %4819
        %4821 = vrot.lane.b32.xlu0 %v4754, 18
        %v4822 = vpop.permute.xlu0 %4821
        %4823 = vrot.lane.b32.xlu0 %v4755, 18
        %v4824 = vpop.permute.xlu0 %4823
        %4825 = vrot.lane.b32.xlu0 %v4756, 18
        %v4826 = vpop.permute.xlu0 %4825
        %4827 = vrot.lane.b32.xlu0 %v4757, 18
        %v4828 = vpop.permute.xlu0 %4827
        %4829 = vrot.lane.b32.xlu0 %v4758, 18
        %v4830 = vpop.permute.xlu0 %4829
        %4831 = vrot.lane.b32.xlu0 %v4759, 18
        %v4832 = vpop.permute.xlu0 %4831
        %4833 = vrot.lane.b32.xlu0 %v4760, 18
        %v4834 = vpop.permute.xlu0 %4833
        %4835 = vrot.lane.b32.xlu0 %v4761, 18
        %v4836 = vpop.permute.xlu0 %4835
        %4837 = vrot.lane.b32.xlu0 %v4762, 18
        %v4838 = vpop.permute.xlu0 %4837
        %4839 = vrot.lane.b32.xlu0 %v4763, 18
        %v4840 = vpop.permute.xlu0 %4839
        %4841 = vrot.lane.b32.xlu0 %v4764, 18
        %v4842 = vpop.permute.xlu0 %4841
        %4843 = vrot.lane.b32.xlu0 %v4765, 18
        %v4844 = vpop.permute.xlu0 %4843
        %4845 = vrot.lane.b32.xlu0 %v4766, 18
        %v4846 = vpop.permute.xlu0 %4845
        %4847 = vrot.lane.b32.xlu0 %v4767, 18
        %v4848 = vpop.permute.xlu0 %4847
        %4849 = vrot.lane.b32.xlu0 %v4768, 18
        %v4850 = vpop.permute.xlu0 %4849
        %4851 = vrot.lane.b32.xlu0 %v4769, 18
        %v4852 = vpop.permute.xlu0 %4851
        %4853 = vrot.lane.b32.xlu0 %v4770, 18
        %v4854 = vpop.permute.xlu0 %4853
        %4855 = vrot.lane.b32.xlu0 %v4771, 18
        %v4856 = vpop.permute.xlu0 %4855
        %4857 = vrot.lane.b32.xlu0 %v4772, 18
        %v4858 = vpop.permute.xlu0 %4857
        %4859 = vrot.lane.b32.xlu0 %v4773, 18
        %v4860 = vpop.permute.xlu0 %4859
        %4861 = vrot.lane.b32.xlu0 %v4774, 18
        %v4862 = vpop.permute.xlu0 %4861
        %4863 = vrot.lane.b32.xlu0 %v4775, 18
        %v4864 = vpop.permute.xlu0 %4863
        %4865 = vrot.lane.b32.xlu0 %v4776, 18
        %v4866 = vpop.permute.xlu0 %4865
        %4867 = vrot.lane.b32.xlu0 %v4777, 18
        %v4868 = vpop.permute.xlu0 %4867
        %4869 = vrot.lane.b32.xlu0 %v4778, 18
        %v4870 = vpop.permute.xlu0 %4869
        %4871 = vrot.lane.b32.xlu0 %v4779, 18
        %v4872 = vpop.permute.xlu0 %4871
        %4873 = vrot.lane.b32.xlu0 %v4780, 18
        %v4874 = vpop.permute.xlu0 %4873
        %4875 = vrot.lane.b32.xlu0 %v4781, 18
        %v4876 = vpop.permute.xlu0 %4875
        %4877 = vrot.lane.b32.xlu0 %v4782, 18
        %v4878 = vpop.permute.xlu0 %4877
        %vm4911 = vcmask 195728
        %4912 = vst.msk [vmem:[%s259] sm:$0xff] %vm4911, %v4816
        %4913 = vst.msk [vmem:[%s259 + $0x8] sm:$0xff] %vm4911, %v4818
        %4914 = vst.msk [vmem:[%s259 + $0x10] sm:$0xff] %vm4911, %v4820
        %4915 = vst.msk [vmem:[%s259 + $0x18] sm:$0xff] %vm4911, %v4822
        %4916 = vst.msk [vmem:[%s259 + $0x20] sm:$0xff] %vm4911, %v4824
        %4917 = vst.msk [vmem:[%s259 + $0x28] sm:$0xff] %vm4911, %v4826
        %4918 = vst.msk [vmem:[%s259 + $0x30] sm:$0xff] %vm4911, %v4828
        %4919 = vst.msk [vmem:[%s259 + $0x38] sm:$0xff] %vm4911, %v4830
        %4920 = vst.msk [vmem:[%s259 + $0x40] sm:$0xff] %vm4911, %v4832
        %4921 = vst.msk [vmem:[%s259 + $0x48] sm:$0xff] %vm4911, %v4834
        %4922 = vst.msk [vmem:[%s259 + $0x50] sm:$0xff] %vm4911, %v4836
        %4923 = vst.msk [vmem:[%s259 + $0x58] sm:$0xff] %vm4911, %v4838
        %4924 = vst.msk [vmem:[%s259 + $0x60] sm:$0xff] %vm4911, %v4840
        %4925 = vst.msk [vmem:[%s259 + $0x68] sm:$0xff] %vm4911, %v4842
        %4926 = vst.msk [vmem:[%s259 + $0x70] sm:$0xff] %vm4911, %v4844
        %4927 = vst.msk [vmem:[%s259 + $0x78] sm:$0xff] %vm4911, %v4846
        %4928 = vst.msk [vmem:[%s259 + $0x80] sm:$0xff] %vm4911, %v4848
        %4929 = vst.msk [vmem:[%s259 + $0x88] sm:$0xff] %vm4911, %v4850
        %4930 = vst.msk [vmem:[%s259 + $0x90] sm:$0xff] %vm4911, %v4852
        %4931 = vst.msk [vmem:[%s259 + $0x98] sm:$0xff] %vm4911, %v4854
        %4932 = vst.msk [vmem:[%s259 + $0xa0] sm:$0xff] %vm4911, %v4856
        %4933 = vst.msk [vmem:[%s259 + $0xa8] sm:$0xff] %vm4911, %v4858
        %4934 = vst.msk [vmem:[%s259 + $0xb0] sm:$0xff] %vm4911, %v4860
        %4935 = vst.msk [vmem:[%s259 + $0xb8] sm:$0xff] %vm4911, %v4862
        %4936 = vst.msk [vmem:[%s259 + $0xc0] sm:$0xff] %vm4911, %v4864
        %4937 = vst.msk [vmem:[%s259 + $0xc8] sm:$0xff] %vm4911, %v4866
        %4938 = vst.msk [vmem:[%s259 + $0xd0] sm:$0xff] %vm4911, %v4868
        %4939 = vst.msk [vmem:[%s259 + $0xd8] sm:$0xff] %vm4911, %v4870
        %4940 = vst.msk [vmem:[%s259 + $0xe0] sm:$0xff] %vm4911, %v4872
        %4941 = vst.msk [vmem:[%s259 + $0xe8] sm:$0xff] %vm4911, %v4874
        %4942 = vst.msk [vmem:[%s259 + $0xf0] sm:$0xff] %vm4911, %v4876
        %4943 = vst.msk [vmem:[%s259 + $0xf8] sm:$0xff] %vm4911, %v4878
        %s4944 = sand.u32 %s154, 1
        %s4945 = scalar_lea.sflag [#allocation4], %s4944
        %s4946 = sand.u32 %s154, 1
        %s4947 = smul.addr %s4946, 256
        %s4948 = scalar_lea.vmem [#allocation5], %s4947
        // Predicated region
        $region45: #{tpu_custom_call.1} parent=39 // pred_check
          %p4949 = pneg %p164
        $region46: #{tpu_custom_call.1} parent=39 // pred_check_branch
          %4951 = sbr.rel (%p4949) target = $region48
        $region47: #{tpu_custom_call.1} parent=39 // pred_region
          %s4952 = smul.u32 32, %s25
          %s4954 = ssub.s32 4096, 4096
          %4955 = vsyncadd %s4945, %s4954
          %s4956 = smul.addr %s24, 32
          %s4957 = sadd.s32 %s4952, %s4956
          %s4958 = smul.addr %s4957, 128
          %s4959 = scalar_lea.hbm %s5, %s4958
          %s4960 = sshll.u32 %s4948, 4
          %s4961 = int_to_ptr.vmem [resolvable:$true] %s4960
          %4966 = dma.vmem_to_hbm [thread:$0]  %s4961, 4096, %s4959, %s4945, 128, 128, 8
        $region48: #{tpu_custom_call.1} parent=39 // pred_fallthru
          _
      $region40: #{tpu_custom_call.1} parent=5 // pred_fallthru
        _
      %p4967 = scmp.le.s32.totalorder 2, %s15
      // Predicated region
      $region49: #{tpu_custom_call.1} parent=5 // pred_check
        %p4968 = pneg %p4967
      $region50: #{tpu_custom_call.1} parent=5 // pred_check_branch
        %4970 = sbr.rel (%p4968) target = $region52
      $region51: #{tpu_custom_call.1} parent=5 // pred_region
        %s4971 = ssub.s32 %s15, 2
        // Predicated region
        $region53: #{tpu_custom_call.1} parent=51 // pred_check
          %p4972 = pneg %p170
        $region54: #{tpu_custom_call.1} parent=51 // pred_check_branch
          %4974 = sbr.rel (%p4972) target = $region56
        $region55: #{tpu_custom_call.1} parent=51 // pred_region
          %s4975 = sand.u32 %s155, 1
          %s4976 = scalar_lea.sflag [#allocation4], %s4975
          %s4977 = sand.u32 %s155, 1
          %s4978 = smul.addr %s4977, 256
          %s4979 = scalar_lea.vmem [#allocation5], %s4978
          %4980 = dma.done %s4976, 4096
        $region56: #{tpu_custom_call.1} parent=51 // pred_fallthru
          _
      $region52: #{tpu_custom_call.1} parent=5 // pred_fallthru
        _
    $region6: #{tpu_custom_call.1} parent=1 // loop_footer
      %s19 = sadd.s32 1, %s15
    $region7: #{tpu_custom_call.1} parent=1 // loop_footer_branch
      %14 = sbr.rel target = $region3
    $region8: #{tpu_custom_call.1} parent=1 // loop_exit
      _
    %4981 = vsyncpa [#allocation3], 1
    %s4982 = scalar_lea.sflag [#allocation3], 1
    %4983 = vsyncpa %s4982, 1
    %4984 = vsyncpa [#allocation4], 1
    %s4985 = scalar_lea.sflag [#allocation4], 1
    %4986 = vsyncpa %s4985, 1

// kernel: tpu_custom_call.1
$region0: #{tpu_custom_call.1}
  #allocation0 [shape = 'u32[]', space=smem, size = 0x4, offset = 0x4, fixed_abs, tag = 'smem constant byte address 0x4 - core index']
  #allocation1 [shape = 'u32[144,128]{1,0:T(1,128)}', space=vmem, size = 0x12000, scoped, tag = 'internal scratch']
  %s0 = inlined_call_operand.vmem [shape: bf16[2,16,18,128], index: 0, kind: input, shape index: {}]
  %s1 = inlined_call_operand.hbm [shape: bf16[3,128,512], index: 1, kind: input, shape index: {}]
  %s2 = inlined_call_operand.vmem [shape: f32[1,512], index: 2, kind: input, shape index: {}]
  %s3 = inlined_call_operand.vmem [shape: bf16[512,128], index: 3, kind: input, shape index: {}]
  %s4 = inlined_call_operand.vmem [shape: f32[1,128], index: 4, kind: input, shape index: {}]
  %s5 = inlined_call_operand.hbm [shape: f32[2,256,128], index: 5, kind: output, shape index: {}]
  %s6 = sld [smem:[#allocation0]]
  $region57: #{tpu_custom_call.1} parent=0
    _
  %s8 = ssub.s32 1, %s6
  %s9 = scalar_select 0, %s8, %s6
  $region1: #{tpu_custom_call.1} parent=0
    #allocation2 [shape = 'u8[393216]{0}', space=vmem, size = 0x60000, scoped, tag = 'input window, operand 1, single buffered']
    #allocation3 [shape = 's32[2]{0}', space=sflag, size = 0x8, scoped, tag = 'scoped memory for tpu_custom_call.1']
    #allocation4 [shape = 's32[2]{0}', space=sflag, size = 0x8, scoped, tag = 'scoped memory for tpu_custom_call.1']
    #allocation5 [shape = 'u8[262144]{0}', space=vmem, size = 0x40000, scoped, tag = 'output window, operand 0']
    %10 = vsyncpa [#allocation3], 0
    %11 = vsyncpa [#allocation4], 0
    %s12 = scalar_lea.sflag [#allocation4], 1
    %13 = vsyncpa %s12, 0
    loop: start=0, step=1, limit=4
    $region2: #{tpu_custom_call.1} parent=1 // loop_pre_header
      _
    $region3: #{tpu_custom_call.1} parent=1 // loop_header
      %s15 = sphi 0, %s19
      %p16 = scmp.ge.s32.totalorder %s15, 4
      %s22 = sphi 0, %s34
      %s23 = sphi 0, %s30
      %s24 = sphi 0, %s22
      %s25 = sphi 0, %s23
      %s26 = sphi 0, %s24
      %s27 = sphi 0, %s25
      %s39 = sphi 0, %s41
      %s42 = sphi 0, %s39
      %s43 = sphi 0, %s42
      %s59 = sphi 0, %s43
      %s63 = sphi 0, %s63
      %s65 = sphi 0, %s63
      %s66 = sphi 0, %s65
      %s80 = sphi 0, %s66
      %s84 = sphi 0, %s84
      %s86 = sphi 0, %s84
      %s87 = sphi 0, %s86
      %s101 = sphi 0, %s87
      %s105 = sphi 0, %s105
      %s107 = sphi 0, %s105
      %s108 = sphi 0, %s107
      %s122 = sphi 0, %s108
      %s126 = sphi 0, %s126
      %s128 = sphi 0, %s126
      %s129 = sphi 0, %s128
      %s143 = sphi 0, %s129
      %s151 = sphi 0, %s153
      %s154 = sphi 0, %s151
      %s155 = sphi 0, %s154
      %s171 = sphi 0, %s155
    $region4: #{tpu_custom_call.1} parent=1 // loop_header_branch
      %18 = sbr.rel (%p16) target = $region8
    $region5: #{tpu_custom_call.1} parent=1 // loop_body
      %s20 = ssub.s32 %s15, 1
      %s21 = ssub.s32 %s15, 2
      %s28 = sadd.s32 1, %s23
      %p29 = scmp.ge.s32.totalorder %s28, 1
      %s30 = scalar_select %p29, 0, %s28
      %s31 = sadd.s32 1, %s22
      %s32 = scalar_select %p29, %s31, %s22
      %p33 = scmp.ge.s32.totalorder %s32, 2
      %s34 = scalar_select %p33, 0, %s32
      %s35 = ssub.s32 %s22, %s34
      %s36 = ssub.s32 %s23, %s30
      %s37 = sor.u32 %s35, %s36
      %p38 = scmp.eq.s32.totalorder %s37, 0
      %s40 = sadd.s32 %s39, 1
      %s41 = scalar_select %p38, %s39, %s40
      %p44 = pneg %p38
      %p45 = scmp.eq.s32.totalorder %s15, 1
      %p46 = por %p44, %p45
      %p47 = scmp.ne.s32.totalorder %s39, %s42
      %p48 = scmp.eq.s32.totalorder %s15, 0
      %p49 = por %p47, %p48
      %p50 = scmp.ne.s32.totalorder %s39, %s42
      %p51 = scmp.eq.s32.totalorder %s20, 1
      %p52 = por %p50, %p51
      %p53 = scmp.ne.s32.totalorder %s42, %s43
      %p54 = scmp.eq.s32.totalorder %s20, 0
      %p55 = por %p53, %p54
      %p56 = scmp.ne.s32.totalorder %s42, %s43
      %p57 = scmp.eq.s32.totalorder %s21, 1
      %p58 = por %p56, %p57
      %p60 = scmp.ne.s32.totalorder %s43, %s59
      %p61 = scmp.eq.s32.totalorder %s21, 0
      %p62 = por %p60, %p61
      %s64 = sadd.s32 %s63, 1
      %p67 = scmp.eq.s32.totalorder %s15, 1
      %p68 = scmp.ne.s32.totalorder %s63, %s65
      %p69 = scmp.eq.s32.totalorder %s15, 0
      %p70 = por %p68, %p69
      %p71 = scmp.ne.s32.totalorder %s63, %s65
      %p72 = scmp.eq.s32.totalorder %s20, 1
      %p73 = por %p71, %p72
      %p74 = scmp.ne.s32.totalorder %s65, %s66
      %p75 = scmp.eq.s32.totalorder %s20, 0
      %p76 = por %p74, %p75
      %p77 = scmp.ne.s32.totalorder %s65, %s66
      %p78 = scmp.eq.s32.totalorder %s21, 1
      %p79 = por %p77, %p78
      %p81 = scmp.ne.s32.totalorder %s66, %s80
      %p82 = scmp.eq.s32.totalorder %s21, 0
      %p83 = por %p81, %p82
      %s85 = sadd.s32 %s84, 1
      %p88 = scmp.eq.s32.totalorder %s15, 1
      %p89 = scmp.ne.s32.totalorder %s84, %s86
      %p90 = scmp.eq.s32.totalorder %s15, 0
      %p91 = por %p89, %p90
      %p92 = scmp.ne.s32.totalorder %s84, %s86
      %p93 = scmp.eq.s32.totalorder %s20, 1
      %p94 = por %p92, %p93
      %p95 = scmp.ne.s32.totalorder %s86, %s87
      %p96 = scmp.eq.s32.totalorder %s20, 0
      %p97 = por %p95, %p96
      %p98 = scmp.ne.s32.totalorder %s86, %s87
      %p99 = scmp.eq.s32.totalorder %s21, 1
      %p100 = por %p98, %p99
      %p102 = scmp.ne.s32.totalorder %s87, %s101
      %p103 = scmp.eq.s32.totalorder %s21, 0
      %p104 = por %p102, %p103
      %s106 = sadd.s32 %s105, 1
      %p109 = scmp.eq.s32.totalorder %s15, 1
      %p110 = scmp.ne.s32.totalorder %s105, %s107
      %p111 = scmp.eq.s32.totalorder %s15, 0
      %p112 = por %p110, %p111
      %p113 = scmp.ne.s32.totalorder %s105, %s107
      %p114 = scmp.eq.s32.totalorder %s20, 1
      %p115 = por %p113, %p114
      %p116 = scmp.ne.s32.totalorder %s107, %s108
      %p117 = scmp.eq.s32.totalorder %s20, 0
      %p118 = por %p116, %p117
      %p119 = scmp.ne.s32.totalorder %s107, %s108
      %p120 = scmp.eq.s32.totalorder %s21, 1
      %p121 = por %p119, %p120
      %p123 = scmp.ne.s32.totalorder %s108, %s122
      %p124 = scmp.eq.s32.totalorder %s21, 0
      %p125 = por %p123, %p124
      %s127 = sadd.s32 %s126, 1
      %p130 = scmp.eq.s32.totalorder %s15, 1
      %p131 = scmp.ne.s32.totalorder %s126, %s128
      %p132 = scmp.eq.s32.totalorder %s15, 0
      %p133 = por %p131, %p132
      %p134 = scmp.ne.s32.totalorder %s126, %s128
      %p135 = scmp.eq.s32.totalorder %s20, 1
      %p136 = por %p134, %p135
      %p137 = scmp.ne.s32.totalorder %s128, %s129
      %p138 = scmp.eq.s32.totalorder %s20, 0
      %p139 = por %p137, %p138
      %p140 = scmp.ne.s32.totalorder %s128, %s129
      %p141 = scmp.eq.s32.totalorder %s21, 1
      %p142 = por %p140, %p141
      %p144 = scmp.ne.s32.totalorder %s129, %s143
      %p145 = scmp.eq.s32.totalorder %s21, 0
      %p146 = por %p144, %p145
      %s147 = ssub.s32 %s22, %s34
      %s148 = ssub.s32 %s23, %s30
      %s149 = sor.u32 %s147, %s148
      %p150 = scmp.eq.s32.totalorder %s149, 0
      %s152 = sadd.s32 %s151, 1
      %s153 = scalar_select %p150, %s151, %s152
      %p156 = pneg %p150
      %p157 = scmp.eq.s32.totalorder %s15, 1
      %p158 = por %p156, %p157
      %p159 = scmp.ne.s32.totalorder %s151, %s154
      %p160 = scmp.eq.s32.totalorder %s15, 0
      %p161 = por %p159, %p160
      %p162 = scmp.ne.s32.totalorder %s151, %s154
      %p163 = scmp.eq.s32.totalorder %s20, 1
      %p164 = por %p162, %p163
      %p165 = scmp.ne.s32.totalorder %s154, %s155
      %p166 = scmp.eq.s32.totalorder %s20, 0
      %p167 = por %p165, %p166
      %p168 = scmp.ne.s32.totalorder %s154, %s155
      %p169 = scmp.eq.s32.totalorder %s21, 1
      %p170 = por %p168, %p169
      %p172 = scmp.ne.s32.totalorder %s155, %s171
      %p173 = scmp.eq.s32.totalorder %s21, 0
      %p174 = por %p172, %p173
      %p175 = scmp.le.s32.totalorder 1, %s15
      %p176 = scmp.lt.s32.totalorder %s15, 3
      %p177 = pnand %p175, %p176
      %p178 = pneg %p177
      // Predicated region
      $region9: #{tpu_custom_call.1} parent=5 // pred_check
        _
      $region10: #{tpu_custom_call.1} parent=5 // pred_check_branch
        %180 = sbr.rel (%p177) target = $region12
      $region11: #{tpu_custom_call.1} parent=5 // pred_region
        %s181 = ssub.s32 %s15, 1
        // Predicated region
        $region13: #{tpu_custom_call.1} parent=11 // pred_check
          %p182 = pneg %p76
        $region14: #{tpu_custom_call.1} parent=11 // pred_check_branch
          %184 = sbr.rel (%p182) target = $region16
        $region15: #{tpu_custom_call.1} parent=11 // pred_region
          %s186 = ssub.s32 12288, 12288
          %187 = vsyncadd [#allocation3], %s186
          %s188 = sshll.u32 [#allocation2], 4
          %s189 = int_to_ptr.vmem [resolvable:$true] %s188
          %194 = dma.hbm_to_vmem [thread:$0]  %s1, 12288, %s189, [#allocation3], 256, 256, 16
        $region16: #{tpu_custom_call.1} parent=11 // pred_fallthru
          _
        // Predicated region
        $region17: #{tpu_custom_call.1} parent=11 // pred_check
          %p195 = pneg %p97
        $region18: #{tpu_custom_call.1} parent=11 // pred_check_branch
          %197 = sbr.rel (%p195) target = $region20
        $region19: #{tpu_custom_call.1} parent=11 // pred_region
          _
        $region20: #{tpu_custom_call.1} parent=11 // pred_fallthru
          _
        // Predicated region
        $region21: #{tpu_custom_call.1} parent=11 // pred_check
          %p198 = pneg %p118
        $region22: #{tpu_custom_call.1} parent=11 // pred_check_branch
          %200 = sbr.rel (%p198) target = $region24
        $region23: #{tpu_custom_call.1} parent=11 // pred_region
          _
        $region24: #{tpu_custom_call.1} parent=11 // pred_fallthru
          _
        // Predicated region
        $region25: #{tpu_custom_call.1} parent=11 // pred_check
          %p201 = pneg %p139
        $region26: #{tpu_custom_call.1} parent=11 // pred_check_branch
          %203 = sbr.rel (%p201) target = $region28
        $region27: #{tpu_custom_call.1} parent=11 // pred_region
          _
        $region28: #{tpu_custom_call.1} parent=11 // pred_fallthru
          _
      $region12: #{tpu_custom_call.1} parent=5 // pred_fallthru
        _
      %p204 = scmp.lt.s32.totalorder %s15, 2
      // Predicated region
      $region29: #{tpu_custom_call.1} parent=5 // pred_check
        %p205 = pneg %p204
      $region30: #{tpu_custom_call.1} parent=5 // pred_check_branch
        %207 = sbr.rel (%p205) target = $region32
      $region31: #{tpu_custom_call.1} parent=5 // pred_region
        // Predicated region
        $region33: #{tpu_custom_call.1} parent=31 // pred_check
          %p208 = pneg %p49
        $region34: #{tpu_custom_call.1} parent=31 // pred_check_branch
          %210 = sbr.rel (%p208) target = $region36
        $region35: #{tpu_custom_call.1} parent=31 // pred_region
          %s211 = smul.u32 16, %s23
          %p212 = scmp.lt.s32.totalorder %s22, 1
          %s213 = scalar_select %p212, %s22, 1
          %p214 = scmp.lt.s32.totalorder %s211, 15
          %s215 = scalar_select %p214, %s211, 15
          %s216 = smul.addr %s215, 3
          %s217 = smul.addr %s213, 48
          %s218 = sadd.s32 %s216, %s217
          %s219 = smul.addr %s218, 4
          %s220 = scalar_lea.vmem %s0, %s219
          %s221 = smul.u32 16, %s23
        $region36: #{tpu_custom_call.1} parent=31 // pred_fallthru
          _
      $region32: #{tpu_custom_call.1} parent=5 // pred_fallthru
        _
      %p222 = scmp.le.s32.totalorder 1, %s15
      %p223 = scmp.lt.s32.totalorder %s15, 3
      %p224 = pnand %p222, %p223
      %p225 = pneg %p224
      // Predicated region
      $region37: #{tpu_custom_call.1} parent=5 // pred_check
        _
      $region38: #{tpu_custom_call.1} parent=5 // pred_check_branch
        %227 = sbr.rel (%p224) target = $region40
      $region39: #{tpu_custom_call.1} parent=5 // pred_region
        %s228 = ssub.s32 %s15, 1
        // Predicated region
        $region41: #{tpu_custom_call.1} parent=39 // pred_check
          %p229 = pneg %p76
        $region42: #{tpu_custom_call.1} parent=39 // pred_check_branch
          %231 = sbr.rel (%p229) target = $region44
        $region43: #{tpu_custom_call.1} parent=39 // pred_region
          %232 = dma.done [#allocation3], 12288
        $region44: #{tpu_custom_call.1} parent=39 // pred_fallthru
          _
        %s233 = smul.u32 16, %s25
        %p234 = scmp.lt.s32.totalorder %s24, 1
        %s235 = scalar_select %p234, %s24, 1
        %p236 = scmp.lt.s32.totalorder %s233, 15
        %s237 = scalar_select %p236, %s233, 15
        %s238 = smul.addr %s237, 3
        %s239 = smul.addr %s235, 48
        %s240 = sadd.s32 %s238, %s239
        %s241 = smul.addr %s240, 4
        %s242 = scalar_lea.vmem %s0, %s241
        %p243 = pneg %p55
        %p244 = pneg %p52
        %p245 = pneg %p76
        %p246 = pneg %p73
        %p247 = pneg %p97
        %p248 = pneg %p94
        %p249 = pneg %p118
        %p250 = pneg %p115
        %p251 = pneg %p139
        %p252 = pneg %p136
        %p253 = pneg %p167
        %p254 = pneg %p164
        %s255 = sand.u32 %s154, 1
        %s256 = scalar_lea.sflag [#allocation4], %s255
        %s257 = sand.u32 %s154, 1
        %s258 = smul.addr %s257, 256
        %s259 = scalar_lea.vmem [#allocation5], %s258
        %s260 = smul.u32 16, %s25
        %p261 = scmp.lt.s32.totalorder %s24, 1
        %s262 = scalar_select %p261, %s24, 1
        %p263 = scmp.lt.s32.totalorder %s260, 15
        %s264 = scalar_select %p263, %s260, 15
        %s265 = smul.addr %s264, 3
        %s266 = smul.addr %s262, 48
        %s267 = sadd.s32 %s265, %s266
        %s268 = smul.addr %s267, 4
        %s269 = scalar_lea.vmem %s0, %s268
        %s270 = smul.u32 16, %s25
        %s271 = smul.u32 32, %s25
        %v273 = vld [vmem:[%s269] sm:$0xf]
        %v274 = vld [vmem:[%s269 + $0x4] sm:$0xf]
        %v275 = vld [vmem:[%s269 + $0x8] sm:$0x1]
        %v276 = vld [vmem:[%s269 + $0xc] sm:$0xf]
        %v277 = vld [vmem:[%s269 + $0x10] sm:$0xf]
        %v278 = vld [vmem:[%s269 + $0x14] sm:$0x1]
        %v279 = vld [vmem:[%s269 + $0x18] sm:$0xf]
        %v280 = vld [vmem:[%s269 + $0x1c] sm:$0xf]
        %v281 = vld [vmem:[%s269 + $0x20] sm:$0x1]
        %v282 = vld [vmem:[%s269 + $0x24] sm:$0xf]
        %v283 = vld [vmem:[%s269 + $0x28] sm:$0xf]
        %v284 = vld [vmem:[%s269 + $0x2c] sm:$0x1]
        %v285 = vld [vmem:[%s269 + $0x30] sm:$0xf]
        %v286 = vld [vmem:[%s269 + $0x34] sm:$0xf]
        %v287 = vld [vmem:[%s269 + $0x38] sm:$0x1]
        %v288 = vld [vmem:[%s269 + $0x3c] sm:$0xf]
        %v289 = vld [vmem:[%s269 + $0x40] sm:$0xf]
        %v290 = vld [vmem:[%s269 + $0x44] sm:$0x1]
        %v291 = vld [vmem:[%s269 + $0x48] sm:$0xf]
        %v292 = vld [vmem:[%s269 + $0x4c] sm:$0xf]
        %v293 = vld [vmem:[%s269 + $0x50] sm:$0x1]
        %v294 = vld [vmem:[%s269 + $0x54] sm:$0xf]
        %v295 = vld [vmem:[%s269 + $0x58] sm:$0xf]
        %v296 = vld [vmem:[%s269 + $0x5c] sm:$0x1]
        %v297 = vld [vmem:[%s269 + $0x60] sm:$0xf]
        %v298 = vld [vmem:[%s269 + $0x64] sm:$0xf]
        %v299 = vld [vmem:[%s269 + $0x68] sm:$0x1]
        %v300 = vld [vmem:[%s269 + $0x6c] sm:$0xf]
        %v301 = vld [vmem:[%s269 + $0x70] sm:$0xf]
        %v302 = vld [vmem:[%s269 + $0x74] sm:$0x1]
        %v303 = vld [vmem:[%s269 + $0x78] sm:$0xf]
        %v304 = vld [vmem:[%s269 + $0x7c] sm:$0xf]
        %v305 = vld [vmem:[%s269 + $0x80] sm:$0x1]
        %v306 = vld [vmem:[%s269 + $0x84] sm:$0xf]
        %v307 = vld [vmem:[%s269 + $0x88] sm:$0xf]
        %v308 = vld [vmem:[%s269 + $0x8c] sm:$0x1]
        %v309 = vld [vmem:[%s269 + $0x90] sm:$0xf]
        %v310 = vld [vmem:[%s269 + $0x94] sm:$0xf]
        %v311 = vld [vmem:[%s269 + $0x98] sm:$0x1]
        %v312 = vld [vmem:[%s269 + $0x9c] sm:$0xf]
        %v313 = vld [vmem:[%s269 + $0xa0] sm:$0xf]
        %v314 = vld [vmem:[%s269 + $0xa4] sm:$0x1]
        %v315 = vld [vmem:[%s269 + $0xa8] sm:$0xf]
        %v316 = vld [vmem:[%s269 + $0xac] sm:$0xf]
        %v317 = vld [vmem:[%s269 + $0xb0] sm:$0x1]
        %v318 = vld [vmem:[%s269 + $0xb4] sm:$0xf]
        %v319 = vld [vmem:[%s269 + $0xb8] sm:$0xf]
        %v320 = vld [vmem:[%s269 + $0xbc] sm:$0x1]
        %v321 = vld [vmem:[#allocation2] sm:$0xff]
        %v322 = vld [vmem:[#allocation2 + $0x8] sm:$0xff]
        %v323 = vld [vmem:[#allocation2 + $0x10] sm:$0xff]
        %v324 = vld [vmem:[#allocation2 + $0x18] sm:$0xff]
        %v325 = vld [vmem:[#allocation2 + $0x20] sm:$0xff]
        %v326 = vld [vmem:[#allocation2 + $0x28] sm:$0xff]
        %v327 = vld [vmem:[#allocation2 + $0x30] sm:$0xff]
        %v328 = vld [vmem:[#allocation2 + $0x38] sm:$0xff]
        %v329 = vld [vmem:[#allocation2 + $0x40] sm:$0xff]
        %v330 = vld [vmem:[#allocation2 + $0x48] sm:$0xff]
        %v331 = vld [vmem:[#allocation2 + $0x50] sm:$0xff]
        %v332 = vld [vmem:[#allocation2 + $0x58] sm:$0xff]
        %v333 = vld [vmem:[#allocation2 + $0x60] sm:$0xff]
        %v334 = vld [vmem:[#allocation2 + $0x68] sm:$0xff]
        %v335 = vld [vmem:[#allocation2 + $0x70] sm:$0xff]
        %v336 = vld [vmem:[#allocation2 + $0x78] sm:$0xff]
        %v337 = vld [vmem:[#allocation2 + $0x80] sm:$0xff]
        %v338 = vld [vmem:[#allocation2 + $0x88] sm:$0xff]
        %v339 = vld [vmem:[#allocation2 + $0x90] sm:$0xff]
        %v340 = vld [vmem:[#allocation2 + $0x98] sm:$0xff]
        %v341 = vld [vmem:[#allocation2 + $0xa0] sm:$0xff]
        %v342 = vld [vmem:[#allocation2 + $0xa8] sm:$0xff]
        %v343 = vld [vmem:[#allocation2 + $0xb0] sm:$0xff]
        %v344 = vld [vmem:[#allocation2 + $0xb8] sm:$0xff]
        %v345 = vld [vmem:[#allocation2 + $0xc0] sm:$0xff]
        %v346 = vld [vmem:[#allocation2 + $0xc8] sm:$0xff]
        %v347 = vld [vmem:[#allocation2 + $0xd0] sm:$0xff]
        %v348 = vld [vmem:[#allocation2 + $0xd8] sm:$0xff]
        %v349 = vld [vmem:[#allocation2 + $0xe0] sm:$0xff]
        %v350 = vld [vmem:[#allocation2 + $0xe8] sm:$0xff]
        %v351 = vld [vmem:[#allocation2 + $0xf0] sm:$0xff]
        %v352 = vld [vmem:[#allocation2 + $0xf8] sm:$0xff]
        %vm353 = vsmask.f32 3328
        %vm354 = vsmask.f32 7440
        %vm355 = vmor %vm353, %vm354
        %v357 = vshrl.u32 %v273, 16
        %v359 = vrot.slane %v357, 4
        %v360 = vshll.u32 %v273, 16
        %v362 = vrot.slane %v360, 5
        %v363 = vor.u32 %v359, %v362
        %v364 = vrot.slane %v363, 4
        %v366 = vshll.u32 %v274, 16
        %v368 = vrot.slane %v366, 5
        %v369 = vsel %vm355, %v364, %v368
        %v370 = vshrl.u32 %v274, 16
        %v372 = vrot.slane %v370, 4
        %v373 = vor.u32 %v372, %v368
        %v374 = vrot.slane %v373, 4
        %v376 = vshll.u32 %v275, 16
        %v378 = vrot.slane %v376, 5
        %v379 = vsel %vm355, %v374, %v378
        %v381 = vshrl.u32 %v276, 16
        %v383 = vrot.slane %v381, 4
        %v384 = vshll.u32 %v276, 16
        %v386 = vrot.slane %v384, 5
        %v387 = vor.u32 %v383, %v386
        %v388 = vrot.slane %v387, 4
        %v390 = vshll.u32 %v277, 16
        %v392 = vrot.slane %v390, 5
        %v393 = vsel %vm355, %v388, %v392
        %v394 = vshrl.u32 %v277, 16
        %v396 = vrot.slane %v394, 4
        %v397 = vor.u32 %v396, %v392
        %v398 = vrot.slane %v397, 4
        %v400 = vshll.u32 %v278, 16
        %v402 = vrot.slane %v400, 5
        %v403 = vsel %vm355, %v398, %v402
        %v405 = vshrl.u32 %v279, 16
        %v407 = vrot.slane %v405, 4
        %v408 = vshll.u32 %v279, 16
        %v410 = vrot.slane %v408, 5
        %v411 = vor.u32 %v407, %v410
        %v412 = vrot.slane %v411, 4
        %v414 = vshll.u32 %v280, 16
        %v416 = vrot.slane %v414, 5
        %v417 = vsel %vm355, %v412, %v416
        %v418 = vshrl.u32 %v280, 16
        %v420 = vrot.slane %v418, 4
        %v421 = vor.u32 %v420, %v416
        %v422 = vrot.slane %v421, 4
        %v424 = vshll.u32 %v281, 16
        %v426 = vrot.slane %v424, 5
        %v427 = vsel %vm355, %v422, %v426
        %v429 = vshrl.u32 %v282, 16
        %v431 = vrot.slane %v429, 4
        %v432 = vshll.u32 %v282, 16
        %v434 = vrot.slane %v432, 5
        %v435 = vor.u32 %v431, %v434
        %v436 = vrot.slane %v435, 4
        %v438 = vshll.u32 %v283, 16
        %v440 = vrot.slane %v438, 5
        %v441 = vsel %vm355, %v436, %v440
        %v442 = vshrl.u32 %v283, 16
        %v444 = vrot.slane %v442, 4
        %v445 = vor.u32 %v444, %v440
        %v446 = vrot.slane %v445, 4
        %v448 = vshll.u32 %v284, 16
        %v450 = vrot.slane %v448, 5
        %v451 = vsel %vm355, %v446, %v450
        %v453 = vshrl.u32 %v285, 16
        %v455 = vrot.slane %v453, 4
        %v456 = vshll.u32 %v285, 16
        %v458 = vrot.slane %v456, 5
        %v459 = vor.u32 %v455, %v458
        %v460 = vrot.slane %v459, 4
        %v462 = vshll.u32 %v286, 16
        %v464 = vrot.slane %v462, 5
        %v465 = vsel %vm355, %v460, %v464
        %v466 = vshrl.u32 %v286, 16
        %v468 = vrot.slane %v466, 4
        %v469 = vor.u32 %v468, %v464
        %v470 = vrot.slane %v469, 4
        %v472 = vshll.u32 %v287, 16
        %v474 = vrot.slane %v472, 5
        %v475 = vsel %vm355, %v470, %v474
        %v477 = vshrl.u32 %v288, 16
        %v479 = vrot.slane %v477, 4
        %v480 = vshll.u32 %v288, 16
        %v482 = vrot.slane %v480, 5
        %v483 = vor.u32 %v479, %v482
        %v484 = vrot.slane %v483, 4
        %v486 = vshll.u32 %v289, 16
        %v488 = vrot.slane %v486, 5
        %v489 = vsel %vm355, %v484, %v488
        %v490 = vshrl.u32 %v289, 16
        %v492 = vrot.slane %v490, 4
        %v493 = vor.u32 %v492, %v488
        %v494 = vrot.slane %v493, 4
        %v496 = vshll.u32 %v290, 16
        %v498 = vrot.slane %v496, 5
        %v499 = vsel %vm355, %v494, %v498
        %v501 = vshrl.u32 %v291, 16
        %v503 = vrot.slane %v501, 4
        %v504 = vshll.u32 %v291, 16
        %v506 = vrot.slane %v504, 5
        %v507 = vor.u32 %v503, %v506
        %v508 = vrot.slane %v507, 4
        %v510 = vshll.u32 %v292, 16
        %v512 = vrot.slane %v510, 5
        %v513 = vsel %vm355, %v508, %v512
        %v514 = vshrl.u32 %v292, 16
        %v516 = vrot.slane %v514, 4
        %v517 = vor.u32 %v516, %v512
        %v518 = vrot.slane %v517, 4
        %v520 = vshll.u32 %v293, 16
        %v522 = vrot.slane %v520, 5
        %v523 = vsel %vm355, %v518, %v522
        %v525 = vshrl.u32 %v294, 16
        %v527 = vrot.slane %v525, 4
        %v528 = vshll.u32 %v294, 16
        %v530 = vrot.slane %v528, 5
        %v531 = vor.u32 %v527, %v530
        %v532 = vrot.slane %v531, 4
        %v534 = vshll.u32 %v295, 16
        %v536 = vrot.slane %v534, 5
        %v537 = vsel %vm355, %v532, %v536
        %v538 = vshrl.u32 %v295, 16
        %v540 = vrot.slane %v538, 4
        %v541 = vor.u32 %v540, %v536
        %v542 = vrot.slane %v541, 4
        %v544 = vshll.u32 %v296, 16
        %v546 = vrot.slane %v544, 5
        %v547 = vsel %vm355, %v542, %v546
        %v549 = vshrl.u32 %v297, 16
        %v551 = vrot.slane %v549, 4
        %v552 = vshll.u32 %v297, 16
        %v554 = vrot.slane %v552, 5
        %v555 = vor.u32 %v551, %v554
        %v556 = vrot.slane %v555, 4
        %v558 = vshll.u32 %v298, 16
        %v560 = vrot.slane %v558, 5
        %v561 = vsel %vm355, %v556, %v560
        %v562 = vshrl.u32 %v298, 16
        %v564 = vrot.slane %v562, 4
        %v565 = vor.u32 %v564, %v560
        %v566 = vrot.slane %v565, 4
        %v568 = vshll.u32 %v299, 16
        %v570 = vrot.slane %v568, 5
        %v571 = vsel %vm355, %v566, %v570
        %v573 = vshrl.u32 %v300, 16
        %v575 = vrot.slane %v573, 4
        %v576 = vshll.u32 %v300, 16
        %v578 = vrot.slane %v576, 5
        %v579 = vor.u32 %v575, %v578
        %v580 = vrot.slane %v579, 4
        %v582 = vshll.u32 %v301, 16
        %v584 = vrot.slane %v582, 5
        %v585 = vsel %vm355, %v580, %v584
        %v586 = vshrl.u32 %v301, 16
        %v588 = vrot.slane %v586, 4
        %v589 = vor.u32 %v588, %v584
        %v590 = vrot.slane %v589, 4
        %v592 = vshll.u32 %v302, 16
        %v594 = vrot.slane %v592, 5
        %v595 = vsel %vm355, %v590, %v594
        %v597 = vshrl.u32 %v303, 16
        %v599 = vrot.slane %v597, 4
        %v600 = vshll.u32 %v303, 16
        %v602 = vrot.slane %v600, 5
        %v603 = vor.u32 %v599, %v602
        %v604 = vrot.slane %v603, 4
        %v606 = vshll.u32 %v304, 16
        %v608 = vrot.slane %v606, 5
        %v609 = vsel %vm355, %v604, %v608
        %v610 = vshrl.u32 %v304, 16
        %v612 = vrot.slane %v610, 4
        %v613 = vor.u32 %v612, %v608
        %v614 = vrot.slane %v613, 4
        %v616 = vshll.u32 %v305, 16
        %v618 = vrot.slane %v616, 5
        %v619 = vsel %vm355, %v614, %v618
        %v621 = vshrl.u32 %v306, 16
        %v623 = vrot.slane %v621, 4
        %v624 = vshll.u32 %v306, 16
        %v626 = vrot.slane %v624, 5
        %v627 = vor.u32 %v623, %v626
        %v628 = vrot.slane %v627, 4
        %v630 = vshll.u32 %v307, 16
        %v632 = vrot.slane %v630, 5
        %v633 = vsel %vm355, %v628, %v632
        %v634 = vshrl.u32 %v307, 16
        %v636 = vrot.slane %v634, 4
        %v637 = vor.u32 %v636, %v632
        %v638 = vrot.slane %v637, 4
        %v640 = vshll.u32 %v308, 16
        %v642 = vrot.slane %v640, 5
        %v643 = vsel %vm355, %v638, %v642
        %v645 = vshrl.u32 %v309, 16
        %v647 = vrot.slane %v645, 4
        %v648 = vshll.u32 %v309, 16
        %v650 = vrot.slane %v648, 5
        %v651 = vor.u32 %v647, %v650
        %v652 = vrot.slane %v651, 4
        %v654 = vshll.u32 %v310, 16
        %v656 = vrot.slane %v654, 5
        %v657 = vsel %vm355, %v652, %v656
        %v658 = vshrl.u32 %v310, 16
        %v660 = vrot.slane %v658, 4
        %v661 = vor.u32 %v660, %v656
        %v662 = vrot.slane %v661, 4
        %v664 = vshll.u32 %v311, 16
        %v666 = vrot.slane %v664, 5
        %v667 = vsel %vm355, %v662, %v666
        %v669 = vshrl.u32 %v312, 16
        %v671 = vrot.slane %v669, 4
        %v672 = vshll.u32 %v312, 16
        %v674 = vrot.slane %v672, 5
        %v675 = vor.u32 %v671, %v674
        %v676 = vrot.slane %v675, 4
        %v678 = vshll.u32 %v313, 16
        %v680 = vrot.slane %v678, 5
        %v681 = vsel %vm355, %v676, %v680
        %v682 = vshrl.u32 %v313, 16
        %v684 = vrot.slane %v682, 4
        %v685 = vor.u32 %v684, %v680
        %v686 = vrot.slane %v685, 4
        %v688 = vshll.u32 %v314, 16
        %v690 = vrot.slane %v688, 5
        %v691 = vsel %vm355, %v686, %v690
        %v693 = vshrl.u32 %v315, 16
        %v695 = vrot.slane %v693, 4
        %v696 = vshll.u32 %v315, 16
        %v698 = vrot.slane %v696, 5
        %v699 = vor.u32 %v695, %v698
        %v700 = vrot.slane %v699, 4
        %v702 = vshll.u32 %v316, 16
        %v704 = vrot.slane %v702, 5
        %v705 = vsel %vm355, %v700, %v704
        %v706 = vshrl.u32 %v316, 16
        %v708 = vrot.slane %v706, 4
        %v709 = vor.u32 %v708, %v704
        %v710 = vrot.slane %v709, 4
        %v712 = vshll.u32 %v317, 16
        %v714 = vrot.slane %v712, 5
        %v715 = vsel %vm355, %v710, %v714
        %v717 = vshrl.u32 %v318, 16
        %v719 = vrot.slane %v717, 4
        %v720 = vshll.u32 %v318, 16
        %v722 = vrot.slane %v720, 5
        %v723 = vor.u32 %v719, %v722
        %v724 = vrot.slane %v723, 4
        %v726 = vshll.u32 %v319, 16
        %v728 = vrot.slane %v726, 5
        %v729 = vsel %vm355, %v724, %v728
        %v730 = vshrl.u32 %v319, 16
        %v732 = vrot.slane %v730, 4
        %v733 = vor.u32 %v732, %v728
        %v734 = vrot.slane %v733, 4
        %v736 = vshll.u32 %v320, 16
        %v738 = vrot.slane %v736, 5
        %v739 = vsel %vm355, %v734, %v738
        %s740 = scalar_lea.vmem [#allocation2], 256
        %v741 = vld [vmem:[%s740] sm:$0xff]
        %v742 = vld [vmem:[%s740 + $0x8] sm:$0xff]
        %v743 = vld [vmem:[%s740 + $0x10] sm:$0xff]
        %v744 = vld [vmem:[%s740 + $0x18] sm:$0xff]
        %v745 = vld [vmem:[%s740 + $0x20] sm:$0xff]
        %v746 = vld [vmem:[%s740 + $0x28] sm:$0xff]
        %v747 = vld [vmem:[%s740 + $0x30] sm:$0xff]
        %v748 = vld [vmem:[%s740 + $0x38] sm:$0xff]
        %v749 = vld [vmem:[%s740 + $0x40] sm:$0xff]
        %v750 = vld [vmem:[%s740 + $0x48] sm:$0xff]
        %v751 = vld [vmem:[%s740 + $0x50] sm:$0xff]
        %v752 = vld [vmem:[%s740 + $0x58] sm:$0xff]
        %v753 = vld [vmem:[%s740 + $0x60] sm:$0xff]
        %v754 = vld [vmem:[%s740 + $0x68] sm:$0xff]
        %v755 = vld [vmem:[%s740 + $0x70] sm:$0xff]
        %v756 = vld [vmem:[%s740 + $0x78] sm:$0xff]
        %v757 = vld [vmem:[%s740 + $0x80] sm:$0xff]
        %v758 = vld [vmem:[%s740 + $0x88] sm:$0xff]
        %v759 = vld [vmem:[%s740 + $0x90] sm:$0xff]
        %v760 = vld [vmem:[%s740 + $0x98] sm:$0xff]
        %v761 = vld [vmem:[%s740 + $0xa0] sm:$0xff]
        %v762 = vld [vmem:[%s740 + $0xa8] sm:$0xff]
        %v763 = vld [vmem:[%s740 + $0xb0] sm:$0xff]
        %v764 = vld [vmem:[%s740 + $0xb8] sm:$0xff]
        %v765 = vld [vmem:[%s740 + $0xc0] sm:$0xff]
        %v766 = vld [vmem:[%s740 + $0xc8] sm:$0xff]
        %v767 = vld [vmem:[%s740 + $0xd0] sm:$0xff]
        %v768 = vld [vmem:[%s740 + $0xd8] sm:$0xff]
        %v769 = vld [vmem:[%s740 + $0xe0] sm:$0xff]
        %v770 = vld [vmem:[%s740 + $0xe8] sm:$0xff]
        %v771 = vld [vmem:[%s740 + $0xf0] sm:$0xff]
        %v772 = vld [vmem:[%s740 + $0xf8] sm:$0xff]
        %v773 = vunpack.c.l.b16 %v369
        %v774 = vunpack.c.l.b16 %v379
        %v775 = vunpack.c.l.b16 %v393
        %v776 = vunpack.c.l.b16 %v403
        %v777 = vunpack.c.l.b16 %v417
        %v778 = vunpack.c.l.b16 %v427
        %v779 = vunpack.c.l.b16 %v441
        %v780 = vunpack.c.l.b16 %v451
        %v781 = vunpack.c.l.b16 %v465
        %v782 = vunpack.c.l.b16 %v475
        %v783 = vunpack.c.l.b16 %v489
        %v784 = vunpack.c.l.b16 %v499
        %v785 = vunpack.c.l.b16 %v513
        %v786 = vunpack.c.l.b16 %v523
        %v787 = vunpack.c.l.b16 %v537
        %v788 = vunpack.c.l.b16 %v547
        %v789 = vunpack.c.l.b16 %v561
        %v790 = vunpack.c.l.b16 %v571
        %v791 = vunpack.c.l.b16 %v585
        %v792 = vunpack.c.l.b16 %v595
        %v793 = vunpack.c.l.b16 %v609
        %v794 = vunpack.c.l.b16 %v619
        %v795 = vunpack.c.l.b16 %v633
        %v796 = vunpack.c.l.b16 %v643
        %v797 = vunpack.c.l.b16 %v657
        %v798 = vunpack.c.l.b16 %v667
        %v799 = vunpack.c.l.b16 %v681
        %v800 = vunpack.c.l.b16 %v691
        %v801 = vunpack.c.l.b16 %v705
        %v802 = vunpack.c.l.b16 %v715
        %v803 = vunpack.c.l.b16 %v729
        %v804 = vunpack.c.l.b16 %v739
        %v805 = vpack.c.b16 %v774, %v773
        %v806 = vpack.c.b16 %v776, %v775
        %v807 = vpack.c.b16 %v778, %v777
        %v808 = vpack.c.b16 %v780, %v779
        %v809 = vpack.c.b16 %v782, %v781
        %v810 = vpack.c.b16 %v784, %v783
        %v811 = vpack.c.b16 %v786, %v785
        %v812 = vpack.c.b16 %v788, %v787
        %v813 = vpack.c.b16 %v790, %v789
        %v814 = vpack.c.b16 %v792, %v791
        %v815 = vpack.c.b16 %v794, %v793
        %v816 = vpack.c.b16 %v796, %v795
        %v817 = vpack.c.b16 %v798, %v797
        %v818 = vpack.c.b16 %v800, %v799
        %v819 = vpack.c.b16 %v802, %v801
        %v820 = vpack.c.b16 %v804, %v803
        %v869 = vunpack.c.l.b16 %v741
        %v870 = vunpack.c.h.b16 %v741
        %v871 = vunpack.c.l.b16 %v742
        %v872 = vunpack.c.h.b16 %v742
        %v873 = vunpack.c.l.b16 %v743
        %v874 = vunpack.c.h.b16 %v743
        %v875 = vunpack.c.l.b16 %v744
        %v876 = vunpack.c.h.b16 %v744
        %v877 = vunpack.c.l.b16 %v745
        %v878 = vunpack.c.h.b16 %v745
        %v879 = vunpack.c.l.b16 %v746
        %v880 = vunpack.c.h.b16 %v746
        %v881 = vunpack.c.l.b16 %v747
        %v882 = vunpack.c.h.b16 %v747
        %v883 = vunpack.c.l.b16 %v748
        %v884 = vunpack.c.h.b16 %v748
        %v885 = vunpack.c.l.b16 %v749
        %v886 = vunpack.c.h.b16 %v749
        %v887 = vunpack.c.l.b16 %v750
        %v888 = vunpack.c.h.b16 %v750
        %v889 = vunpack.c.l.b16 %v751
        %v890 = vunpack.c.h.b16 %v751
        %v891 = vunpack.c.l.b16 %v752
        %v892 = vunpack.c.h.b16 %v752
        %v893 = vunpack.c.l.b16 %v753
        %v894 = vunpack.c.h.b16 %v753
        %v895 = vunpack.c.l.b16 %v754
        %v896 = vunpack.c.h.b16 %v754
        %v897 = vunpack.c.l.b16 %v755
        %v898 = vunpack.c.h.b16 %v755
        %v899 = vunpack.c.l.b16 %v756
        %v900 = vunpack.c.h.b16 %v756
        %v901 = vunpack.c.l.b16 %v757
        %v902 = vunpack.c.h.b16 %v757
        %v903 = vunpack.c.l.b16 %v758
        %v904 = vunpack.c.h.b16 %v758
        %v905 = vunpack.c.l.b16 %v759
        %v906 = vunpack.c.h.b16 %v759
        %v907 = vunpack.c.l.b16 %v760
        %v908 = vunpack.c.h.b16 %v760
        %v909 = vunpack.c.l.b16 %v761
        %v910 = vunpack.c.h.b16 %v761
        %v911 = vunpack.c.l.b16 %v762
        %v912 = vunpack.c.h.b16 %v762
        %v913 = vunpack.c.l.b16 %v763
        %v914 = vunpack.c.h.b16 %v763
        %v915 = vunpack.c.l.b16 %v764
        %v916 = vunpack.c.h.b16 %v764
        %v917 = vunpack.c.l.b16 %v765
        %v918 = vunpack.c.h.b16 %v765
        %v919 = vunpack.c.l.b16 %v766
        %v920 = vunpack.c.h.b16 %v766
        %v921 = vunpack.c.l.b16 %v767
        %v922 = vunpack.c.h.b16 %v767
        %v923 = vunpack.c.l.b16 %v768
        %v924 = vunpack.c.h.b16 %v768
        %v925 = vunpack.c.l.b16 %v769
        %v926 = vunpack.c.h.b16 %v769
        %v927 = vunpack.c.l.b16 %v770
        %v928 = vunpack.c.h.b16 %v770
        %v929 = vunpack.c.l.b16 %v771
        %v930 = vunpack.c.h.b16 %v771
        %v931 = vunpack.c.l.b16 %v772
        %v932 = vunpack.c.h.b16 %v772
        %v933 = vpack.c.b16 %v873, %v869
        %v934 = vpack.c.b16 %v874, %v870
        %v935 = vpack.c.b16 %v875, %v871
        %v936 = vpack.c.b16 %v876, %v872
        %v937 = vpack.c.b16 %v881, %v877
        %v938 = vpack.c.b16 %v882, %v878
        %v939 = vpack.c.b16 %v883, %v879
        %v940 = vpack.c.b16 %v884, %v880
        %v941 = vpack.c.b16 %v889, %v885
        %v942 = vpack.c.b16 %v890, %v886
        %v943 = vpack.c.b16 %v891, %v887
        %v944 = vpack.c.b16 %v892, %v888
        %v945 = vpack.c.b16 %v897, %v893
        %v946 = vpack.c.b16 %v898, %v894
        %v947 = vpack.c.b16 %v899, %v895
        %v948 = vpack.c.b16 %v900, %v896
        %v949 = vpack.c.b16 %v905, %v901
        %v950 = vpack.c.b16 %v906, %v902
        %v951 = vpack.c.b16 %v907, %v903
        %v952 = vpack.c.b16 %v908, %v904
        %v953 = vpack.c.b16 %v913, %v909
        %v954 = vpack.c.b16 %v914, %v910
        %v955 = vpack.c.b16 %v915, %v911
        %v956 = vpack.c.b16 %v916, %v912
        %v957 = vpack.c.b16 %v921, %v917
        %v958 = vpack.c.b16 %v922, %v918
        %v959 = vpack.c.b16 %v923, %v919
        %v960 = vpack.c.b16 %v924, %v920
        %v961 = vpack.c.b16 %v929, %v925
        %v962 = vpack.c.b16 %v930, %v926
        %v963 = vpack.c.b16 %v931, %v927
        %v964 = vpack.c.b16 %v932, %v928
        %997 = vmatprep.subr.bf16.mxu0 %v934
        %998 = vmatpush1.bf16.msra.mxu0 %v933
        %999 = vmatprep.subr.bf16.mxu0 %v938
        %1000 = vmatpush1.bf16.msra.mxu0 %v937
        %1001 = vmatprep.subr.bf16.mxu0 %v942
        %1002 = vmatpush1.bf16.msra.mxu0 %v941
        %1003 = vmatprep.subr.bf16.mxu0 %v946
        %1004 = vmatpush1.bf16.msra.mxu0 %v945
        %1005 = vmatprep.subr.bf16.mxu0 %v950
        %1006 = vmatpush1.bf16.msra.mxu0 %v949
        %1007 = vmatprep.subr.bf16.mxu0 %v954
        %1008 = vmatpush1.bf16.msra.mxu0 %v953
        %1009 = vmatprep.subr.bf16.mxu0 %v958
        %1010 = vmatpush1.bf16.msra.mxu0 %v957
        %1011 = vmatprep.subr.bf16.mxu0 %v962
        %1012 = vmatpush1.bf16.msra.mxu0 %v961
        %1013 = vmatprep.subr.bf16.mxu0 0
        %1014 = vmatpush1.bf16.msra.mxu0 0
        %1015 = vmatprep.subr.bf16.mxu0 0
        %1016 = vmatpush1.bf16.msra.mxu0 0
        %1017 = vmatprep.subr.bf16.mxu0 0
        %1018 = vmatpush1.bf16.msra.mxu0 0
        %1019 = vmatprep.subr.bf16.mxu0 0
        %1020 = vmatpush1.bf16.msra.mxu0 0
        %1021 = vmatprep.subr.bf16.mxu0 0
        %1022 = vmatpush1.bf16.msra.mxu0 0
        %1023 = vmatprep.subr.bf16.mxu0 0
        %1024 = vmatpush1.bf16.msra.mxu0 0
        %1025 = vmatprep.subr.bf16.mxu0 0
        %1026 = vmatpush1.bf16.msra.mxu0 0
        %1027 = vmatprep.subr.bf16.mxu0 0
        %1028 = vmatpush1.bf16.msra.mxu0 0
        %1029 = vmatprep.mubr.bf16.mxu0 0
        %1030 = vmatmul.mubr.bf16.gmra.mrb[0].mxu0 %v805
        %v1031 = vpop.f32.mrb[0].mxu0
        %v1032 = vadd.f32 0.0, %v1031
        %v1033 = vpop.f32.mrb[0].mxu0
        %v1034 = vadd.f32 0.0, %v1033
        %v1035 = vpop.f32.mrb[0].mxu0
        %v1036 = vadd.f32 0.0, %v1035
        %v1037 = vpop.f32.mrb[0].mxu0
        %v1038 = vadd.f32 0.0, %v1037
        %1039 = vmatprep.mubr.bf16.mxu0 0
        %1040 = vmatmul.mubr.bf16.gmra.mrb[0].mxu0 %v806
        %v1041 = vpop.f32.mrb[0].mxu0
        %v1042 = vadd.f32 0.0, %v1041
        %v1043 = vpop.f32.mrb[0].mxu0
        %v1044 = vadd.f32 0.0, %v1043
        %v1045 = vpop.f32.mrb[0].mxu0
        %v1046 = vadd.f32 0.0, %v1045
        %v1047 = vpop.f32.mrb[0].mxu0
        %v1048 = vadd.f32 0.0, %v1047
        %1049 = vmatprep.mubr.bf16.mxu0 0
        %1050 = vmatmul.mubr.bf16.gmra.mrb[0].mxu0 %v807
        %v1051 = vpop.f32.mrb[0].mxu0
        %v1052 = vadd.f32 0.0, %v1051
        %v1053 = vpop.f32.mrb[0].mxu0
        %v1054 = vadd.f32 0.0, %v1053
        %v1055 = vpop.f32.mrb[0].mxu0
        %v1056 = vadd.f32 0.0, %v1055
        %v1057 = vpop.f32.mrb[0].mxu0
        %v1058 = vadd.f32 0.0, %v1057
        %1059 = vmatprep.mubr.bf16.mxu0 0
        %1060 = vmatmul.mubr.bf16.gmra.mrb[0].mxu0 %v808
        %v1061 = vpop.f32.mrb[0].mxu0
        %v1062 = vadd.f32 0.0, %v1061
        %v1063 = vpop.f32.mrb[0].mxu0
        %v1064 = vadd.f32 0.0, %v1063
        %v1065 = vpop.f32.mrb[0].mxu0
        %v1066 = vadd.f32 0.0, %v1065
        %v1067 = vpop.f32.mrb[0].mxu0
        %v1068 = vadd.f32 0.0, %v1067
        %1069 = vmatprep.mubr.bf16.mxu0 0
        %1070 = vmatmul.mubr.bf16.gmra.mrb[0].mxu0 %v809
        %v1071 = vpop.f32.mrb[0].mxu0
        %v1072 = vadd.f32 0.0, %v1071
        %v1073 = vpop.f32.mrb[0].mxu0
        %v1074 = vadd.f32 0.0, %v1073
        %v1075 = vpop.f32.mrb[0].mxu0
        %v1076 = vadd.f32 0.0, %v1075
        %v1077 = vpop.f32.mrb[0].mxu0
        %v1078 = vadd.f32 0.0, %v1077
        %1079 = vmatprep.mubr.bf16.mxu0 0
        %1080 = vmatmul.mubr.bf16.gmra.mrb[0].mxu0 %v810
        %v1081 = vpop.f32.mrb[0].mxu0
        %v1082 = vadd.f32 0.0, %v1081
        %v1083 = vpop.f32.mrb[0].mxu0
        %v1084 = vadd.f32 0.0, %v1083
        %v1085 = vpop.f32.mrb[0].mxu0
        %v1086 = vadd.f32 0.0, %v1085
        %v1087 = vpop.f32.mrb[0].mxu0
        %v1088 = vadd.f32 0.0, %v1087
        %1089 = vmatprep.mubr.bf16.mxu0 0
        %1090 = vmatmul.mubr.bf16.gmra.mrb[0].mxu0 %v811
        %v1091 = vpop.f32.mrb[0].mxu0
        %v1092 = vadd.f32 0.0, %v1091
        %v1093 = vpop.f32.mrb[0].mxu0
        %v1094 = vadd.f32 0.0, %v1093
        %v1095 = vpop.f32.mrb[0].mxu0
        %v1096 = vadd.f32 0.0, %v1095
        %v1097 = vpop.f32.mrb[0].mxu0
        %v1098 = vadd.f32 0.0, %v1097
        %1099 = vmatprep.mubr.bf16.mxu0 0
        %1100 = vmatmul.mubr.bf16.gmra.mrb[0].mxu0 %v812
        %v1101 = vpop.f32.mrb[0].mxu0
        %v1102 = vadd.f32 0.0, %v1101
        %v1103 = vpop.f32.mrb[0].mxu0
        %v1104 = vadd.f32 0.0, %v1103
        %v1105 = vpop.f32.mrb[0].mxu0
        %v1106 = vadd.f32 0.0, %v1105
        %v1107 = vpop.f32.mrb[0].mxu0
        %v1108 = vadd.f32 0.0, %v1107
        %1109 = vmatprep.mubr.bf16.mxu0 0
        %1110 = vmatmul.mubr.bf16.gmra.mrb[0].mxu0 %v813
        %v1111 = vpop.f32.mrb[0].mxu0
        %v1112 = vadd.f32 0.0, %v1111
        %v1113 = vpop.f32.mrb[0].mxu0
        %v1114 = vadd.f32 0.0, %v1113
        %v1115 = vpop.f32.mrb[0].mxu0
        %v1116 = vadd.f32 0.0, %v1115
        %v1117 = vpop.f32.mrb[0].mxu0
        %v1118 = vadd.f32 0.0, %v1117
        %1119 = vmatprep.mubr.bf16.mxu0 0
        %1120 = vmatmul.mubr.bf16.gmra.mrb[0].mxu0 %v814
        %v1121 = vpop.f32.mrb[0].mxu0
        %v1122 = vadd.f32 0.0, %v1121
        %v1123 = vpop.f32.mrb[0].mxu0
        %v1124 = vadd.f32 0.0, %v1123
        %v1125 = vpop.f32.mrb[0].mxu0
        %v1126 = vadd.f32 0.0, %v1125
        %v1127 = vpop.f32.mrb[0].mxu0
        %v1128 = vadd.f32 0.0, %v1127
        %1129 = vmatprep.mubr.bf16.mxu0 0
        %1130 = vmatmul.mubr.bf16.gmra.mrb[0].mxu0 %v815
        %v1131 = vpop.f32.mrb[0].mxu0
        %v1132 = vadd.f32 0.0, %v1131
        %v1133 = vpop.f32.mrb[0].mxu0
        %v1134 = vadd.f32 0.0, %v1133
        %v1135 = vpop.f32.mrb[0].mxu0
        %v1136 = vadd.f32 0.0, %v1135
        %v1137 = vpop.f32.mrb[0].mxu0
        %v1138 = vadd.f32 0.0, %v1137
        %1139 = vmatprep.mubr.bf16.mxu0 0
        %1140 = vmatmul.mubr.bf16.gmra.mrb[0].mxu0 %v816
        %v1141 = vpop.f32.mrb[0].mxu0
        %v1142 = vadd.f32 0.0, %v1141
        %v1143 = vpop.f32.mrb[0].mxu0
        %v1144 = vadd.f32 0.0, %v1143
        %v1145 = vpop.f32.mrb[0].mxu0
        %v1146 = vadd.f32 0.0, %v1145
        %v1147 = vpop.f32.mrb[0].mxu0
        %v1148 = vadd.f32 0.0, %v1147
        %1149 = vmatprep.mubr.bf16.mxu0 0
        %1150 = vmatmul.mubr.bf16.gmra.mrb[0].mxu0 %v817
        %v1151 = vpop.f32.mrb[0].mxu0
        %v1152 = vadd.f32 0.0, %v1151
        %v1153 = vpop.f32.mrb[0].mxu0
        %v1154 = vadd.f32 0.0, %v1153
        %v1155 = vpop.f32.mrb[0].mxu0
        %v1156 = vadd.f32 0.0, %v1155
        %v1157 = vpop.f32.mrb[0].mxu0
        %v1158 = vadd.f32 0.0, %v1157
        %1159 = vmatprep.mubr.bf16.mxu0 0
        %1160 = vmatmul.mubr.bf16.gmra.mrb[0].mxu0 %v818
        %v1161 = vpop.f32.mrb[0].mxu0
        %v1162 = vadd.f32 0.0, %v1161
        %v1163 = vpop.f32.mrb[0].mxu0
        %v1164 = vadd.f32 0.0, %v1163
        %v1165 = vpop.f32.mrb[0].mxu0
        %v1166 = vadd.f32 0.0, %v1165
        %v1167 = vpop.f32.mrb[0].mxu0
        %v1168 = vadd.f32 0.0, %v1167
        %1169 = vmatprep.mubr.bf16.mxu0 0
        %1170 = vmatmul.mubr.bf16.gmra.mrb[0].mxu0 %v819
        %v1171 = vpop.f32.mrb[0].mxu0
        %v1172 = vadd.f32 0.0, %v1171
        %v1173 = vpop.f32.mrb[0].mxu0
        %v1174 = vadd.f32 0.0, %v1173
        %v1175 = vpop.f32.mrb[0].mxu0
        %v1176 = vadd.f32 0.0, %v1175
        %v1177 = vpop.f32.mrb[0].mxu0
        %v1178 = vadd.f32 0.0, %v1177
        %1179 = vmatprep.mubr.bf16.mxu0 0
        %1180 = vmatmul.mubr.bf16.gmra.mrb[0].mxu0 %v820
        %v1181 = vpop.f32.mrb[0].mxu0
        %v1182 = vadd.f32 0.0, %v1181
        %v1183 = vpop.f32.mrb[0].mxu0
        %v1184 = vadd.f32 0.0, %v1183
        %v1185 = vpop.f32.mrb[0].mxu0
        %v1186 = vadd.f32 0.0, %v1185
        %v1187 = vpop.f32.mrb[0].mxu0
        %v1188 = vadd.f32 0.0, %v1187
        %1189 = vdwg.mxu0
        %1190 = vmatprep.subr.bf16.mxu0 %v936
        %1191 = vmatpush1.bf16.msra.mxu0 %v935
        %1192 = vmatprep.subr.bf16.mxu0 %v940
        %1193 = vmatpush1.bf16.msra.mxu0 %v939
        %1194 = vmatprep.subr.bf16.mxu0 %v944
        %1195 = vmatpush1.bf16.msra.mxu0 %v943
        %1196 = vmatprep.subr.bf16.mxu0 %v948
        %1197 = vmatpush1.bf16.msra.mxu0 %v947
        %1198 = vmatprep.subr.bf16.mxu0 %v952
        %1199 = vmatpush1.bf16.msra.mxu0 %v951
        %1200 = vmatprep.subr.bf16.mxu0 %v956
        %1201 = vmatpush1.bf16.msra.mxu0 %v955
        %1202 = vmatprep.subr.bf16.mxu0 %v960
        %1203 = vmatpush1.bf16.msra.mxu0 %v959
        %1204 = vmatprep.subr.bf16.mxu0 %v964
        %1205 = vmatpush1.bf16.msra.mxu0 %v963
        %1206 = vmatprep.subr.bf16.mxu0 0
        %1207 = vmatpush1.bf16.msra.mxu0 0
        %1208 = vmatprep.subr.bf16.mxu0 0
        %1209 = vmatpush1.bf16.msra.mxu0 0
        %1210 = vmatprep.subr.bf16.mxu0 0
        %1211 = vmatpush1.bf16.msra.mxu0 0
        %1212 = vmatprep.subr.bf16.mxu0 0
        %1213 = vmatpush1.bf16.msra.mxu0 0
        %1214 = vmatprep.subr.bf16.mxu0 0
        %1215 = vmatpush1.bf16.msra.mxu0 0
        %1216 = vmatprep.subr.bf16.mxu0 0
        %1217 = vmatpush1.bf16.msra.mxu0 0
        %1218 = vmatprep.subr.bf16.mxu0 0
        %1219 = vmatpush1.bf16.msra.mxu0 0
        %1220 = vmatprep.subr.bf16.mxu0 0
        %1221 = vmatpush1.bf16.msra.mxu0 0
        %1222 = vmatprep.mubr.bf16.mxu0 0
        %1223 = vmatmul.mubr.bf16.gmra.mrb[0].mxu0 %v805
        %v1224 = vpop.f32.mrb[0].mxu0
        %v1225 = vadd.f32 0.0, %v1224
        %v1226 = vpop.f32.mrb[0].mxu0
        %v1227 = vadd.f32 0.0, %v1226
        %v1228 = vpop.f32.mrb[0].mxu0
        %v1229 = vadd.f32 0.0, %v1228
        %v1230 = vpop.f32.mrb[0].mxu0
        %v1231 = vadd.f32 0.0, %v1230
        %1232 = vmatprep.mubr.bf16.mxu0 0
        %1233 = vmatmul.mubr.bf16.gmra.mrb[0].mxu0 %v806
        %v1234 = vpop.f32.mrb[0].mxu0
        %v1235 = vadd.f32 0.0, %v1234
        %v1236 = vpop.f32.mrb[0].mxu0
        %v1237 = vadd.f32 0.0, %v1236
        %v1238 = vpop.f32.mrb[0].mxu0
        %v1239 = vadd.f32 0.0, %v1238
        %v1240 = vpop.f32.mrb[0].mxu0
        %v1241 = vadd.f32 0.0, %v1240
        %1242 = vmatprep.mubr.bf16.mxu0 0
        %1243 = vmatmul.mubr.bf16.gmra.mrb[0].mxu0 %v807
        %v1244 = vpop.f32.mrb[0].mxu0
        %v1245 = vadd.f32 0.0, %v1244
        %v1246 = vpop.f32.mrb[0].mxu0
        %v1247 = vadd.f32 0.0, %v1246
        %v1248 = vpop.f32.mrb[0].mxu0
        %v1249 = vadd.f32 0.0, %v1248
        %v1250 = vpop.f32.mrb[0].mxu0
        %v1251 = vadd.f32 0.0, %v1250
        %1252 = vmatprep.mubr.bf16.mxu0 0
        %1253 = vmatmul.mubr.bf16.gmra.mrb[0].mxu0 %v808
        %v1254 = vpop.f32.mrb[0].mxu0
        %v1255 = vadd.f32 0.0, %v1254
        %v1256 = vpop.f32.mrb[0].mxu0
        %v1257 = vadd.f32 0.0, %v1256
        %v1258 = vpop.f32.mrb[0].mxu0
        %v1259 = vadd.f32 0.0, %v1258
        %v1260 = vpop.f32.mrb[0].mxu0
        %v1261 = vadd.f32 0.0, %v1260
        %1262 = vmatprep.mubr.bf16.mxu0 0
        %1263 = vmatmul.mubr.bf16.gmra.mrb[0].mxu0 %v809
        %v1264 = vpop.f32.mrb[0].mxu0
        %v1265 = vadd.f32 0.0, %v1264
        %v1266 = vpop.f32.mrb[0].mxu0
        %v1267 = vadd.f32 0.0, %v1266
        %v1268 = vpop.f32.mrb[0].mxu0
        %v1269 = vadd.f32 0.0, %v1268
        %v1270 = vpop.f32.mrb[0].mxu0
        %v1271 = vadd.f32 0.0, %v1270
        %1272 = vmatprep.mubr.bf16.mxu0 0
        %1273 = vmatmul.mubr.bf16.gmra.mrb[0].mxu0 %v810
        %v1274 = vpop.f32.mrb[0].mxu0
        %v1275 = vadd.f32 0.0, %v1274
        %v1276 = vpop.f32.mrb[0].mxu0
        %v1277 = vadd.f32 0.0, %v1276
        %v1278 = vpop.f32.mrb[0].mxu0
        %v1279 = vadd.f32 0.0, %v1278
        %v1280 = vpop.f32.mrb[0].mxu0
        %v1281 = vadd.f32 0.0, %v1280
        %1282 = vmatprep.mubr.bf16.mxu0 0
        %1283 = vmatmul.mubr.bf16.gmra.mrb[0].mxu0 %v811
        %v1284 = vpop.f32.mrb[0].mxu0
        %v1285 = vadd.f32 0.0, %v1284
        %v1286 = vpop.f32.mrb[0].mxu0
        %v1287 = vadd.f32 0.0, %v1286
        %v1288 = vpop.f32.mrb[0].mxu0
        %v1289 = vadd.f32 0.0, %v1288
        %v1290 = vpop.f32.mrb[0].mxu0
        %v1291 = vadd.f32 0.0, %v1290
        %1292 = vmatprep.mubr.bf16.mxu0 0
        %1293 = vmatmul.mubr.bf16.gmra.mrb[0].mxu0 %v812
        %v1294 = vpop.f32.mrb[0].mxu0
        %v1295 = vadd.f32 0.0, %v1294
        %v1296 = vpop.f32.mrb[0].mxu0
        %v1297 = vadd.f32 0.0, %v1296
        %v1298 = vpop.f32.mrb[0].mxu0
        %v1299 = vadd.f32 0.0, %v1298
        %v1300 = vpop.f32.mrb[0].mxu0
        %v1301 = vadd.f32 0.0, %v1300
        %1302 = vmatprep.mubr.bf16.mxu0 0
        %1303 = vmatmul.mubr.bf16.gmra.mrb[0].mxu0 %v813
        %v1304 = vpop.f32.mrb[0].mxu0
        %v1305 = vadd.f32 0.0, %v1304
        %v1306 = vpop.f32.mrb[0].mxu0
        %v1307 = vadd.f32 0.0, %v1306
        %v1308 = vpop.f32.mrb[0].mxu0
        %v1309 = vadd.f32 0.0, %v1308
        %v1310 = vpop.f32.mrb[0].mxu0
        %v1311 = vadd.f32 0.0, %v1310
        %1312 = vmatprep.mubr.bf16.mxu0 0
        %1313 = vmatmul.mubr.bf16.gmra.mrb[0].mxu0 %v814
        %v1314 = vpop.f32.mrb[0].mxu0
        %v1315 = vadd.f32 0.0, %v1314
        %v1316 = vpop.f32.mrb[0].mxu0
        %v1317 = vadd.f32 0.0, %v1316
        %v1318 = vpop.f32.mrb[0].mxu0
        %v1319 = vadd.f32 0.0, %v1318
        %v1320 = vpop.f32.mrb[0].mxu0
        %v1321 = vadd.f32 0.0, %v1320
        %1322 = vmatprep.mubr.bf16.mxu0 0
        %1323 = vmatmul.mubr.bf16.gmra.mrb[0].mxu0 %v815
        %v1324 = vpop.f32.mrb[0].mxu0
        %v1325 = vadd.f32 0.0, %v1324
        %v1326 = vpop.f32.mrb[0].mxu0
        %v1327 = vadd.f32 0.0, %v1326
        %v1328 = vpop.f32.mrb[0].mxu0
        %v1329 = vadd.f32 0.0, %v1328
        %v1330 = vpop.f32.mrb[0].mxu0
        %v1331 = vadd.f32 0.0, %v1330
        %1332 = vmatprep.mubr.bf16.mxu0 0
        %1333 = vmatmul.mubr.bf16.gmra.mrb[0].mxu0 %v816
        %v1334 = vpop.f32.mrb[0].mxu0
        %v1335 = vadd.f32 0.0, %v1334
        %v1336 = vpop.f32.mrb[0].mxu0
        %v1337 = vadd.f32 0.0, %v1336
        %v1338 = vpop.f32.mrb[0].mxu0
        %v1339 = vadd.f32 0.0, %v1338
        %v1340 = vpop.f32.mrb[0].mxu0
        %v1341 = vadd.f32 0.0, %v1340
        %1342 = vmatprep.mubr.bf16.mxu0 0
        %1343 = vmatmul.mubr.bf16.gmra.mrb[0].mxu0 %v817
        %v1344 = vpop.f32.mrb[0].mxu0
        %v1345 = vadd.f32 0.0, %v1344
        %v1346 = vpop.f32.mrb[0].mxu0
        %v1347 = vadd.f32 0.0, %v1346
        %v1348 = vpop.f32.mrb[0].mxu0
        %v1349 = vadd.f32 0.0, %v1348
        %v1350 = vpop.f32.mrb[0].mxu0
        %v1351 = vadd.f32 0.0, %v1350
        %1352 = vmatprep.mubr.bf16.mxu0 0
        %1353 = vmatmul.mubr.bf16.gmra.mrb[0].mxu0 %v818
        %v1354 = vpop.f32.mrb[0].mxu0
        %v1355 = vadd.f32 0.0, %v1354
        %v1356 = vpop.f32.mrb[0].mxu0
        %v1357 = vadd.f32 0.0, %v1356
        %v1358 = vpop.f32.mrb[0].mxu0
        %v1359 = vadd.f32 0.0, %v1358
        %v1360 = vpop.f32.mrb[0].mxu0
        %v1361 = vadd.f32 0.0, %v1360
        %1362 = vmatprep.mubr.bf16.mxu0 0
        %1363 = vmatmul.mubr.bf16.gmra.mrb[0].mxu0 %v819
        %v1364 = vpop.f32.mrb[0].mxu0
        %v1365 = vadd.f32 0.0, %v1364
        %v1366 = vpop.f32.mrb[0].mxu0
        %v1367 = vadd.f32 0.0, %v1366
        %v1368 = vpop.f32.mrb[0].mxu0
        %v1369 = vadd.f32 0.0, %v1368
        %v1370 = vpop.f32.mrb[0].mxu0
        %v1371 = vadd.f32 0.0, %v1370
        %1372 = vmatprep.mubr.bf16.mxu0 0
        %1373 = vmatmul.mubr.bf16.gmra.mrb[0].mxu0 %v820
        %v1374 = vpop.f32.mrb[0].mxu0
        %v1375 = vadd.f32 0.0, %v1374
        %v1376 = vpop.f32.mrb[0].mxu0
        %v1377 = vadd.f32 0.0, %v1376
        %v1378 = vpop.f32.mrb[0].mxu0
        %v1379 = vadd.f32 0.0, %v1378
        %v1380 = vpop.f32.mrb[0].mxu0
        %v1381 = vadd.f32 0.0, %v1380
        %1382 = vdwg.mxu0
        %v1415 = vunpack.c.l.b16 %v273
        %v1416 = vunpack.c.l.b16 %v274
        %v1417 = vunpack.c.l.b16 %v276
        %v1418 = vunpack.c.l.b16 %v277
        %v1419 = vunpack.c.l.b16 %v279
        %v1420 = vunpack.c.l.b16 %v280
        %v1421 = vunpack.c.l.b16 %v282
        %v1422 = vunpack.c.l.b16 %v283
        %v1423 = vunpack.c.l.b16 %v285
        %v1424 = vunpack.c.l.b16 %v286
        %v1425 = vunpack.c.l.b16 %v288
        %v1426 = vunpack.c.l.b16 %v289
        %v1427 = vunpack.c.l.b16 %v291
        %v1428 = vunpack.c.l.b16 %v292
        %v1429 = vunpack.c.l.b16 %v294
        %v1430 = vunpack.c.l.b16 %v295
        %v1431 = vunpack.c.l.b16 %v297
        %v1432 = vunpack.c.l.b16 %v298
        %v1433 = vunpack.c.l.b16 %v300
        %v1434 = vunpack.c.l.b16 %v301
        %v1435 = vunpack.c.l.b16 %v303
        %v1436 = vunpack.c.l.b16 %v304
        %v1437 = vunpack.c.l.b16 %v306
        %v1438 = vunpack.c.l.b16 %v307
        %v1439 = vunpack.c.l.b16 %v309
        %v1440 = vunpack.c.l.b16 %v310
        %v1441 = vunpack.c.l.b16 %v312
        %v1442 = vunpack.c.l.b16 %v313
        %v1443 = vunpack.c.l.b16 %v315
        %v1444 = vunpack.c.l.b16 %v316
        %v1445 = vunpack.c.l.b16 %v318
        %v1446 = vunpack.c.l.b16 %v319
        %v1447 = vpack.c.b16 %v1416, %v1415
        %v1448 = vpack.c.b16 %v1418, %v1417
        %v1449 = vpack.c.b16 %v1420, %v1419
        %v1450 = vpack.c.b16 %v1422, %v1421
        %v1451 = vpack.c.b16 %v1424, %v1423
        %v1452 = vpack.c.b16 %v1426, %v1425
        %v1453 = vpack.c.b16 %v1428, %v1427
        %v1454 = vpack.c.b16 %v1430, %v1429
        %v1455 = vpack.c.b16 %v1432, %v1431
        %v1456 = vpack.c.b16 %v1434, %v1433
        %v1457 = vpack.c.b16 %v1436, %v1435
        %v1458 = vpack.c.b16 %v1438, %v1437
        %v1459 = vpack.c.b16 %v1440, %v1439
        %v1460 = vpack.c.b16 %v1442, %v1441
        %v1461 = vpack.c.b16 %v1444, %v1443
        %v1462 = vpack.c.b16 %v1446, %v1445
        %v1511 = vunpack.c.l.b16 %v321
        %v1512 = vunpack.c.h.b16 %v321
        %v1513 = vunpack.c.l.b16 %v322
        %v1514 = vunpack.c.h.b16 %v322
        %v1515 = vunpack.c.l.b16 %v323
        %v1516 = vunpack.c.h.b16 %v323
        %v1517 = vunpack.c.l.b16 %v324
        %v1518 = vunpack.c.h.b16 %v324
        %v1519 = vunpack.c.l.b16 %v325
        %v1520 = vunpack.c.h.b16 %v325
        %v1521 = vunpack.c.l.b16 %v326
        %v1522 = vunpack.c.h.b16 %v326
        %v1523 = vunpack.c.l.b16 %v327
        %v1524 = vunpack.c.h.b16 %v327
        %v1525 = vunpack.c.l.b16 %v328
        %v1526 = vunpack.c.h.b16 %v328
        %v1527 = vunpack.c.l.b16 %v329
        %v1528 = vunpack.c.h.b16 %v329
        %v1529 = vunpack.c.l.b16 %v330
        %v1530 = vunpack.c.h.b16 %v330
        %v1531 = vunpack.c.l.b16 %v331
        %v1532 = vunpack.c.h.b16 %v331
        %v1533 = vunpack.c.l.b16 %v332
        %v1534 = vunpack.c.h.b16 %v332
        %v1535 = vunpack.c.l.b16 %v333
        %v1536 = vunpack.c.h.b16 %v333
        %v1537 = vunpack.c.l.b16 %v334
        %v1538 = vunpack.c.h.b16 %v334
        %v1539 = vunpack.c.l.b16 %v335
        %v1540 = vunpack.c.h.b16 %v335
        %v1541 = vunpack.c.l.b16 %v336
        %v1542 = vunpack.c.h.b16 %v336
        %v1543 = vunpack.c.l.b16 %v337
        %v1544 = vunpack.c.h.b16 %v337
        %v1545 = vunpack.c.l.b16 %v338
        %v1546 = vunpack.c.h.b16 %v338
        %v1547 = vunpack.c.l.b16 %v339
        %v1548 = vunpack.c.h.b16 %v339
        %v1549 = vunpack.c.l.b16 %v340
        %v1550 = vunpack.c.h.b16 %v340
        %v1551 = vunpack.c.l.b16 %v341
        %v1552 = vunpack.c.h.b16 %v341
        %v1553 = vunpack.c.l.b16 %v342
        %v1554 = vunpack.c.h.b16 %v342
        %v1555 = vunpack.c.l.b16 %v343
        %v1556 = vunpack.c.h.b16 %v343
        %v1557 = vunpack.c.l.b16 %v344
        %v1558 = vunpack.c.h.b16 %v344
        %v1559 = vunpack.c.l.b16 %v345
        %v1560 = vunpack.c.h.b16 %v345
        %v1561 = vunpack.c.l.b16 %v346
        %v1562 = vunpack.c.h.b16 %v346
        %v1563 = vunpack.c.l.b16 %v347
        %v1564 = vunpack.c.h.b16 %v347
        %v1565 = vunpack.c.l.b16 %v348
        %v1566 = vunpack.c.h.b16 %v348
        %v1567 = vunpack.c.l.b16 %v349
        %v1568 = vunpack.c.h.b16 %v349
        %v1569 = vunpack.c.l.b16 %v350
        %v1570 = vunpack.c.h.b16 %v350
        %v1571 = vunpack.c.l.b16 %v351
        %v1572 = vunpack.c.h.b16 %v351
        %v1573 = vunpack.c.l.b16 %v352
        %v1574 = vunpack.c.h.b16 %v352
        %v1575 = vpack.c.b16 %v1515, %v1511
        %v1576 = vpack.c.b16 %v1516, %v1512
        %v1577 = vpack.c.b16 %v1517, %v1513
        %v1578 = vpack.c.b16 %v1518, %v1514
        %v1579 = vpack.c.b16 %v1523, %v1519
        %v1580 = vpack.c.b16 %v1524, %v1520
        %v1581 = vpack.c.b16 %v1525, %v1521
        %v1582 = vpack.c.b16 %v1526, %v1522
        %v1583 = vpack.c.b16 %v1531, %v1527
        %v1584 = vpack.c.b16 %v1532, %v1528
        %v1585 = vpack.c.b16 %v1533, %v1529
        %v1586 = vpack.c.b16 %v1534, %v1530
        %v1587 = vpack.c.b16 %v1539, %v1535
        %v1588 = vpack.c.b16 %v1540, %v1536
        %v1589 = vpack.c.b16 %v1541, %v1537
        %v1590 = vpack.c.b16 %v1542, %v1538
        %v1591 = vpack.c.b16 %v1547, %v1543
        %v1592 = vpack.c.b16 %v1548, %v1544
        %v1593 = vpack.c.b16 %v1549, %v1545
        %v1594 = vpack.c.b16 %v1550, %v1546
        %v1595 = vpack.c.b16 %v1555, %v1551
        %v1596 = vpack.c.b16 %v1556, %v1552
        %v1597 = vpack.c.b16 %v1557, %v1553
        %v1598 = vpack.c.b16 %v1558, %v1554
        %v1599 = vpack.c.b16 %v1563, %v1559
        %v1600 = vpack.c.b16 %v1564, %v1560
        %v1601 = vpack.c.b16 %v1565, %v1561
        %v1602 = vpack.c.b16 %v1566, %v1562
        %v1603 = vpack.c.b16 %v1571, %v1567
        %v1604 = vpack.c.b16 %v1572, %v1568
        %v1605 = vpack.c.b16 %v1573, %v1569
        %v1606 = vpack.c.b16 %v1574, %v1570
        %1639 = vmatprep.subr.bf16.mxu0 %v1576
        %1640 = vmatpush1.bf16.msra.mxu0 %v1575
        %1641 = vmatprep.subr.bf16.mxu0 %v1580
        %1642 = vmatpush1.bf16.msra.mxu0 %v1579
        %1643 = vmatprep.subr.bf16.mxu0 %v1584
        %1644 = vmatpush1.bf16.msra.mxu0 %v1583
        %1645 = vmatprep.subr.bf16.mxu0 %v1588
        %1646 = vmatpush1.bf16.msra.mxu0 %v1587
        %1647 = vmatprep.subr.bf16.mxu0 %v1592
        %1648 = vmatpush1.bf16.msra.mxu0 %v1591
        %1649 = vmatprep.subr.bf16.mxu0 %v1596
        %1650 = vmatpush1.bf16.msra.mxu0 %v1595
        %1651 = vmatprep.subr.bf16.mxu0 %v1600
        %1652 = vmatpush1.bf16.msra.mxu0 %v1599
        %1653 = vmatprep.subr.bf16.mxu0 %v1604
        %1654 = vmatpush1.bf16.msra.mxu0 %v1603
        %1655 = vmatprep.subr.bf16.mxu0 0
        %1656 = vmatpush1.bf16.msra.mxu0 0
        %1657 = vmatprep.subr.bf16.mxu0 0
        %1658 = vmatpush1.bf16.msra.mxu0 0
        %1659 = vmatprep.subr.bf16.mxu0 0
        %1660 = vmatpush1.bf16.msra.mxu0 0
        %1661 = vmatprep.subr.bf16.mxu0 0
        %1662 = vmatpush1.bf16.msra.mxu0 0
        %1663 = vmatprep.subr.bf16.mxu0 0
        %1664 = vmatpush1.bf16.msra.mxu0 0
        %1665 = vmatprep.subr.bf16.mxu0 0
        %1666 = vmatpush1.bf16.msra.mxu0 0
        %1667 = vmatprep.subr.bf16.mxu0 0
        %1668 = vmatpush1.bf16.msra.mxu0 0
        %1669 = vmatprep.subr.bf16.mxu0 0
        %1670 = vmatpush1.bf16.msra.mxu0 0
        %1671 = vmatprep.mubr.bf16.mxu0 0
        %1672 = vmatmul.mubr.bf16.gmra.mrb[0].mxu0 %v1447
        %v1673 = vpop.f32.mrb[0].mxu0
        %v1674 = vadd.f32 %v1032, %v1673
        %v1675 = vpop.f32.mrb[0].mxu0
        %v1676 = vadd.f32 %v1034, %v1675
        %v1677 = vpop.f32.mrb[0].mxu0
        %v1678 = vadd.f32 %v1036, %v1677
        %v1679 = vpop.f32.mrb[0].mxu0
        %v1680 = vadd.f32 %v1038, %v1679
        %1681 = vmatprep.mubr.bf16.mxu0 0
        %1682 = vmatmul.mubr.bf16.gmra.mrb[0].mxu0 %v1448
        %v1683 = vpop.f32.mrb[0].mxu0
        %v1684 = vadd.f32 %v1042, %v1683
        %v1685 = vpop.f32.mrb[0].mxu0
        %v1686 = vadd.f32 %v1044, %v1685
        %v1687 = vpop.f32.mrb[0].mxu0
        %v1688 = vadd.f32 %v1046, %v1687
        %v1689 = vpop.f32.mrb[0].mxu0
        %v1690 = vadd.f32 %v1048, %v1689
        %1691 = vmatprep.mubr.bf16.mxu0 0
        %1692 = vmatmul.mubr.bf16.gmra.mrb[0].mxu0 %v1449
        %v1693 = vpop.f32.mrb[0].mxu0
        %v1694 = vadd.f32 %v1052, %v1693
        %v1695 = vpop.f32.mrb[0].mxu0
        %v1696 = vadd.f32 %v1054, %v1695
        %v1697 = vpop.f32.mrb[0].mxu0
        %v1698 = vadd.f32 %v1056, %v1697
        %v1699 = vpop.f32.mrb[0].mxu0
        %v1700 = vadd.f32 %v1058, %v1699
        %1701 = vmatprep.mubr.bf16.mxu0 0
        %1702 = vmatmul.mubr.bf16.gmra.mrb[0].mxu0 %v1450
        %v1703 = vpop.f32.mrb[0].mxu0
        %v1704 = vadd.f32 %v1062, %v1703
        %v1705 = vpop.f32.mrb[0].mxu0
        %v1706 = vadd.f32 %v1064, %v1705
        %v1707 = vpop.f32.mrb[0].mxu0
        %v1708 = vadd.f32 %v1066, %v1707
        %v1709 = vpop.f32.mrb[0].mxu0
        %v1710 = vadd.f32 %v1068, %v1709
        %1711 = vmatprep.mubr.bf16.mxu0 0
        %1712 = vmatmul.mubr.bf16.gmra.mrb[0].mxu0 %v1451
        %v1713 = vpop.f32.mrb[0].mxu0
        %v1714 = vadd.f32 %v1072, %v1713
        %v1715 = vpop.f32.mrb[0].mxu0
        %v1716 = vadd.f32 %v1074, %v1715
        %v1717 = vpop.f32.mrb[0].mxu0
        %v1718 = vadd.f32 %v1076, %v1717
        %v1719 = vpop.f32.mrb[0].mxu0
        %v1720 = vadd.f32 %v1078, %v1719
        %1721 = vmatprep.mubr.bf16.mxu0 0
        %1722 = vmatmul.mubr.bf16.gmra.mrb[0].mxu0 %v1452
        %v1723 = vpop.f32.mrb[0].mxu0
        %v1724 = vadd.f32 %v1082, %v1723
        %v1725 = vpop.f32.mrb[0].mxu0
        %v1726 = vadd.f32 %v1084, %v1725
        %v1727 = vpop.f32.mrb[0].mxu0
        %v1728 = vadd.f32 %v1086, %v1727
        %v1729 = vpop.f32.mrb[0].mxu0
        %v1730 = vadd.f32 %v1088, %v1729
        %1731 = vmatprep.mubr.bf16.mxu0 0
        %1732 = vmatmul.mubr.bf16.gmra.mrb[0].mxu0 %v1453
        %v1733 = vpop.f32.mrb[0].mxu0
        %v1734 = vadd.f32 %v1092, %v1733
        %v1735 = vpop.f32.mrb[0].mxu0
        %v1736 = vadd.f32 %v1094, %v1735
        %v1737 = vpop.f32.mrb[0].mxu0
        %v1738 = vadd.f32 %v1096, %v1737
        %v1739 = vpop.f32.mrb[0].mxu0
        %v1740 = vadd.f32 %v1098, %v1739
        %1741 = vmatprep.mubr.bf16.mxu0 0
        %1742 = vmatmul.mubr.bf16.gmra.mrb[0].mxu0 %v1454
        %v1743 = vpop.f32.mrb[0].mxu0
        %v1744 = vadd.f32 %v1102, %v1743
        %v1745 = vpop.f32.mrb[0].mxu0
        %v1746 = vadd.f32 %v1104, %v1745
        %v1747 = vpop.f32.mrb[0].mxu0
        %v1748 = vadd.f32 %v1106, %v1747
        %v1749 = vpop.f32.mrb[0].mxu0
        %v1750 = vadd.f32 %v1108, %v1749
        %1751 = vmatprep.mubr.bf16.mxu0 0
        %1752 = vmatmul.mubr.bf16.gmra.mrb[0].mxu0 %v1455
        %v1753 = vpop.f32.mrb[0].mxu0
        %v1754 = vadd.f32 %v1112, %v1753
        %v1755 = vpop.f32.mrb[0].mxu0
        %v1756 = vadd.f32 %v1114, %v1755
        %v1757 = vpop.f32.mrb[0].mxu0
        %v1758 = vadd.f32 %v1116, %v1757
        %v1759 = vpop.f32.mrb[0].mxu0
        %v1760 = vadd.f32 %v1118, %v1759
        %1761 = vmatprep.mubr.bf16.mxu0 0
        %1762 = vmatmul.mubr.bf16.gmra.mrb[0].mxu0 %v1456
        %v1763 = vpop.f32.mrb[0].mxu0
        %v1764 = vadd.f32 %v1122, %v1763
        %v1765 = vpop.f32.mrb[0].mxu0
        %v1766 = vadd.f32 %v1124, %v1765
        %v1767 = vpop.f32.mrb[0].mxu0
        %v1768 = vadd.f32 %v1126, %v1767
        %v1769 = vpop.f32.mrb[0].mxu0
        %v1770 = vadd.f32 %v1128, %v1769
        %1771 = vmatprep.mubr.bf16.mxu0 0
        %1772 = vmatmul.mubr.bf16.gmra.mrb[0].mxu0 %v1457
        %v1773 = vpop.f32.mrb[0].mxu0
        %v1774 = vadd.f32 %v1132, %v1773
        %v1775 = vpop.f32.mrb[0].mxu0
        %v1776 = vadd.f32 %v1134, %v1775
        %v1777 = vpop.f32.mrb[0].mxu0
        %v1778 = vadd.f32 %v1136, %v1777
        %v1779 = vpop.f32.mrb[0].mxu0
        %v1780 = vadd.f32 %v1138, %v1779
        %1781 = vmatprep.mubr.bf16.mxu0 0
        %1782 = vmatmul.mubr.bf16.gmra.mrb[0].mxu0 %v1458
        %v1783 = vpop.f32.mrb[0].mxu0
        %v1784 = vadd.f32 %v1142, %v1783
        %v1785 = vpop.f32.mrb[0].mxu0
        %v1786 = vadd.f32 %v1144, %v1785
        %v1787 = vpop.f32.mrb[0].mxu0
        %v1788 = vadd.f32 %v1146, %v1787
        %v1789 = vpop.f32.mrb[0].mxu0
        %v1790 = vadd.f32 %v1148, %v1789
        %1791 = vmatprep.mubr.bf16.mxu0 0
        %1792 = vmatmul.mubr.bf16.gmra.mrb[0].mxu0 %v1459
        %v1793 = vpop.f32.mrb[0].mxu0
        %v1794 = vadd.f32 %v1152, %v1793
        %v1795 = vpop.f32.mrb[0].mxu0
        %v1796 = vadd.f32 %v1154, %v1795
        %v1797 = vpop.f32.mrb[0].mxu0
        %v1798 = vadd.f32 %v1156, %v1797
        %v1799 = vpop.f32.mrb[0].mxu0
        %v1800 = vadd.f32 %v1158, %v1799
        %1801 = vmatprep.mubr.bf16.mxu0 0
        %1802 = vmatmul.mubr.bf16.gmra.mrb[0].mxu0 %v1460
        %v1803 = vpop.f32.mrb[0].mxu0
        %v1804 = vadd.f32 %v1162, %v1803
        %v1805 = vpop.f32.mrb[0].mxu0
        %v1806 = vadd.f32 %v1164, %v1805
        %v1807 = vpop.f32.mrb[0].mxu0
        %v1808 = vadd.f32 %v1166, %v1807
        %v1809 = vpop.f32.mrb[0].mxu0
        %v1810 = vadd.f32 %v1168, %v1809
        %1811 = vmatprep.mubr.bf16.mxu0 0
        %1812 = vmatmul.mubr.bf16.gmra.mrb[0].mxu0 %v1461
        %v1813 = vpop.f32.mrb[0].mxu0
        %v1814 = vadd.f32 %v1172, %v1813
        %v1815 = vpop.f32.mrb[0].mxu0
        %v1816 = vadd.f32 %v1174, %v1815
        %v1817 = vpop.f32.mrb[0].mxu0
        %v1818 = vadd.f32 %v1176, %v1817
        %v1819 = vpop.f32.mrb[0].mxu0
        %v1820 = vadd.f32 %v1178, %v1819
        %1821 = vmatprep.mubr.bf16.mxu0 0
        %1822 = vmatmul.mubr.bf16.gmra.mrb[0].mxu0 %v1462
        %v1823 = vpop.f32.mrb[0].mxu0
        %v1824 = vadd.f32 %v1182, %v1823
        %v1825 = vpop.f32.mrb[0].mxu0
        %v1826 = vadd.f32 %v1184, %v1825
        %v1827 = vpop.f32.mrb[0].mxu0
        %v1828 = vadd.f32 %v1186, %v1827
        %v1829 = vpop.f32.mrb[0].mxu0
        %v1830 = vadd.f32 %v1188, %v1829
        %1831 = vdwg.mxu0
        %1832 = vmatprep.subr.bf16.mxu0 %v1578
        %1833 = vmatpush1.bf16.msra.mxu0 %v1577
        %1834 = vmatprep.subr.bf16.mxu0 %v1582
        %1835 = vmatpush1.bf16.msra.mxu0 %v1581
        %1836 = vmatprep.subr.bf16.mxu0 %v1586
        %1837 = vmatpush1.bf16.msra.mxu0 %v1585
        %1838 = vmatprep.subr.bf16.mxu0 %v1590
        %1839 = vmatpush1.bf16.msra.mxu0 %v1589
        %1840 = vmatprep.subr.bf16.mxu0 %v1594
        %1841 = vmatpush1.bf16.msra.mxu0 %v1593
        %1842 = vmatprep.subr.bf16.mxu0 %v1598
        %1843 = vmatpush1.bf16.msra.mxu0 %v1597
        %1844 = vmatprep.subr.bf16.mxu0 %v1602
        %1845 = vmatpush1.bf16.msra.mxu0 %v1601
        %1846 = vmatprep.subr.bf16.mxu0 %v1606
        %1847 = vmatpush1.bf16.msra.mxu0 %v1605
        %1848 = vmatprep.subr.bf16.mxu0 0
        %1849 = vmatpush1.bf16.msra.mxu0 0
        %1850 = vmatprep.subr.bf16.mxu0 0
        %1851 = vmatpush1.bf16.msra.mxu0 0
        %1852 = vmatprep.subr.bf16.mxu0 0
        %1853 = vmatpush1.bf16.msra.mxu0 0
        %1854 = vmatprep.subr.bf16.mxu0 0
        %1855 = vmatpush1.bf16.msra.mxu0 0
        %1856 = vmatprep.subr.bf16.mxu0 0
        %1857 = vmatpush1.bf16.msra.mxu0 0
        %1858 = vmatprep.subr.bf16.mxu0 0
        %1859 = vmatpush1.bf16.msra.mxu0 0
        %1860 = vmatprep.subr.bf16.mxu0 0
        %1861 = vmatpush1.bf16.msra.mxu0 0
        %1862 = vmatprep.subr.bf16.mxu0 0
        %1863 = vmatpush1.bf16.msra.mxu0 0
        %1864 = vmatprep.mubr.bf16.mxu0 0
        %1865 = vmatmul.mubr.bf16.gmra.mrb[0].mxu0 %v1447
        %v1866 = vpop.f32.mrb[0].mxu0
        %v1867 = vadd.f32 %v1225, %v1866
        %v1868 = vpop.f32.mrb[0].mxu0
        %v1869 = vadd.f32 %v1227, %v1868
        %v1870 = vpop.f32.mrb[0].mxu0
        %v1871 = vadd.f32 %v1229, %v1870
        %v1872 = vpop.f32.mrb[0].mxu0
        %v1873 = vadd.f32 %v1231, %v1872
        %1874 = vmatprep.mubr.bf16.mxu0 0
        %1875 = vmatmul.mubr.bf16.gmra.mrb[0].mxu0 %v1448
        %v1876 = vpop.f32.mrb[0].mxu0
        %v1877 = vadd.f32 %v1235, %v1876
        %v1878 = vpop.f32.mrb[0].mxu0
        %v1879 = vadd.f32 %v1237, %v1878
        %v1880 = vpop.f32.mrb[0].mxu0
        %v1881 = vadd.f32 %v1239, %v1880
        %v1882 = vpop.f32.mrb[0].mxu0
        %v1883 = vadd.f32 %v1241, %v1882
        %1884 = vmatprep.mubr.bf16.mxu0 0
        %1885 = vmatmul.mubr.bf16.gmra.mrb[0].mxu0 %v1449
        %v1886 = vpop.f32.mrb[0].mxu0
        %v1887 = vadd.f32 %v1245, %v1886
        %v1888 = vpop.f32.mrb[0].mxu0
        %v1889 = vadd.f32 %v1247, %v1888
        %v1890 = vpop.f32.mrb[0].mxu0
        %v1891 = vadd.f32 %v1249, %v1890
        %v1892 = vpop.f32.mrb[0].mxu0
        %v1893 = vadd.f32 %v1251, %v1892
        %1894 = vmatprep.mubr.bf16.mxu0 0
        %1895 = vmatmul.mubr.bf16.gmra.mrb[0].mxu0 %v1450
        %v1896 = vpop.f32.mrb[0].mxu0
        %v1897 = vadd.f32 %v1255, %v1896
        %v1898 = vpop.f32.mrb[0].mxu0
        %v1899 = vadd.f32 %v1257, %v1898
        %v1900 = vpop.f32.mrb[0].mxu0
        %v1901 = vadd.f32 %v1259, %v1900
        %v1902 = vpop.f32.mrb[0].mxu0
        %v1903 = vadd.f32 %v1261, %v1902
        %1904 = vmatprep.mubr.bf16.mxu0 0
        %1905 = vmatmul.mubr.bf16.gmra.mrb[0].mxu0 %v1451
        %v1906 = vpop.f32.mrb[0].mxu0
        %v1907 = vadd.f32 %v1265, %v1906
        %v1908 = vpop.f32.mrb[0].mxu0
        %v1909 = vadd.f32 %v1267, %v1908
        %v1910 = vpop.f32.mrb[0].mxu0
        %v1911 = vadd.f32 %v1269, %v1910
        %v1912 = vpop.f32.mrb[0].mxu0
        %v1913 = vadd.f32 %v1271, %v1912
        %1914 = vmatprep.mubr.bf16.mxu0 0
        %1915 = vmatmul.mubr.bf16.gmra.mrb[0].mxu0 %v1452
        %v1916 = vpop.f32.mrb[0].mxu0
        %v1917 = vadd.f32 %v1275, %v1916
        %v1918 = vpop.f32.mrb[0].mxu0
        %v1919 = vadd.f32 %v1277, %v1918
        %v1920 = vpop.f32.mrb[0].mxu0
        %v1921 = vadd.f32 %v1279, %v1920
        %v1922 = vpop.f32.mrb[0].mxu0
        %v1923 = vadd.f32 %v1281, %v1922
        %1924 = vmatprep.mubr.bf16.mxu0 0
        %1925 = vmatmul.mubr.bf16.gmra.mrb[0].mxu0 %v1453
        %v1926 = vpop.f32.mrb[0].mxu0
        %v1927 = vadd.f32 %v1285, %v1926
        %v1928 = vpop.f32.mrb[0].mxu0
        %v1929 = vadd.f32 %v1287, %v1928
        %v1930 = vpop.f32.mrb[0].mxu0
        %v1931 = vadd.f32 %v1289, %v1930
        %v1932 = vpop.f32.mrb[0].mxu0
        %v1933 = vadd.f32 %v1291, %v1932
        %1934 = vmatprep.mubr.bf16.mxu0 0
        %1935 = vmatmul.mubr.bf16.gmra.mrb[0].mxu0 %v1454
        %v1936 = vpop.f32.mrb[0].mxu0
        %v1937 = vadd.f32 %v1295, %v1936
        %v1938 = vpop.f32.mrb[0].mxu0
        %v1939 = vadd.f32 %v1297, %v1938
        %v1940 = vpop.f32.mrb[0].mxu0
        %v1941 = vadd.f32 %v1299, %v1940
        %v1942 = vpop.f32.mrb[0].mxu0
        %v1943 = vadd.f32 %v1301, %v1942
        %1944 = vmatprep.mubr.bf16.mxu0 0
        %1945 = vmatmul.mubr.bf16.gmra.mrb[0].mxu0 %v1455
        %v1946 = vpop.f32.mrb[0].mxu0
        %v1947 = vadd.f32 %v1305, %v1946
        %v1948 = vpop.f32.mrb[0].mxu0
        %v1949 = vadd.f32 %v1307, %v1948
        %v1950 = vpop.f32.mrb[0].mxu0
        %v1951 = vadd.f32 %v1309, %v1950
        %v1952 = vpop.f32.mrb[0].mxu0
        %v1953 = vadd.f32 %v1311, %v1952
        %1954 = vmatprep.mubr.bf16.mxu0 0
        %1955 = vmatmul.mubr.bf16.gmra.mrb[0].mxu0 %v1456
        %v1956 = vpop.f32.mrb[0].mxu0
        %v1957 = vadd.f32 %v1315, %v1956
        %v1958 = vpop.f32.mrb[0].mxu0
        %v1959 = vadd.f32 %v1317, %v1958
        %v1960 = vpop.f32.mrb[0].mxu0
        %v1961 = vadd.f32 %v1319, %v1960
        %v1962 = vpop.f32.mrb[0].mxu0
        %v1963 = vadd.f32 %v1321, %v1962
        %1964 = vmatprep.mubr.bf16.mxu0 0
        %1965 = vmatmul.mubr.bf16.gmra.mrb[0].mxu0 %v1457
        %v1966 = vpop.f32.mrb[0].mxu0
        %v1967 = vadd.f32 %v1325, %v1966
        %v1968 = vpop.f32.mrb[0].mxu0
        %v1969 = vadd.f32 %v1327, %v1968
        %v1970 = vpop.f32.mrb[0].mxu0
        %v1971 = vadd.f32 %v1329, %v1970
        %v1972 = vpop.f32.mrb[0].mxu0
        %v1973 = vadd.f32 %v1331, %v1972
        %1974 = vmatprep.mubr.bf16.mxu0 0
        %1975 = vmatmul.mubr.bf16.gmra.mrb[0].mxu0 %v1458
        %v1976 = vpop.f32.mrb[0].mxu0
        %v1977 = vadd.f32 %v1335, %v1976
        %v1978 = vpop.f32.mrb[0].mxu0
        %v1979 = vadd.f32 %v1337, %v1978
        %v1980 = vpop.f32.mrb[0].mxu0
        %v1981 = vadd.f32 %v1339, %v1980
        %v1982 = vpop.f32.mrb[0].mxu0
        %v1983 = vadd.f32 %v1341, %v1982
        %1984 = vmatprep.mubr.bf16.mxu0 0
        %1985 = vmatmul.mubr.bf16.gmra.mrb[0].mxu0 %v1459
        %v1986 = vpop.f32.mrb[0].mxu0
        %v1987 = vadd.f32 %v1345, %v1986
        %v1988 = vpop.f32.mrb[0].mxu0
        %v1989 = vadd.f32 %v1347, %v1988
        %v1990 = vpop.f32.mrb[0].mxu0
        %v1991 = vadd.f32 %v1349, %v1990
        %v1992 = vpop.f32.mrb[0].mxu0
        %v1993 = vadd.f32 %v1351, %v1992
        %1994 = vmatprep.mubr.bf16.mxu0 0
        %1995 = vmatmul.mubr.bf16.gmra.mrb[0].mxu0 %v1460
        %v1996 = vpop.f32.mrb[0].mxu0
        %v1997 = vadd.f32 %v1355, %v1996
        %v1998 = vpop.f32.mrb[0].mxu0
        %v1999 = vadd.f32 %v1357, %v1998
        %v2000 = vpop.f32.mrb[0].mxu0
        %v2001 = vadd.f32 %v1359, %v2000
        %v2002 = vpop.f32.mrb[0].mxu0
        %v2003 = vadd.f32 %v1361, %v2002
        %2004 = vmatprep.mubr.bf16.mxu0 0
        %2005 = vmatmul.mubr.bf16.gmra.mrb[0].mxu0 %v1461
        %v2006 = vpop.f32.mrb[0].mxu0
        %v2007 = vadd.f32 %v1365, %v2006
        %v2008 = vpop.f32.mrb[0].mxu0
        %v2009 = vadd.f32 %v1367, %v2008
        %v2010 = vpop.f32.mrb[0].mxu0
        %v2011 = vadd.f32 %v1369, %v2010
        %v2012 = vpop.f32.mrb[0].mxu0
        %v2013 = vadd.f32 %v1371, %v2012
        %2014 = vmatprep.mubr.bf16.mxu0 0
        %2015 = vmatmul.mubr.bf16.gmra.mrb[0].mxu0 %v1462
        %v2016 = vpop.f32.mrb[0].mxu0
        %v2017 = vadd.f32 %v1375, %v2016
        %v2018 = vpop.f32.mrb[0].mxu0
        %v2019 = vadd.f32 %v1377, %v2018
        %v2020 = vpop.f32.mrb[0].mxu0
        %v2021 = vadd.f32 %v1379, %v2020
        %v2022 = vpop.f32.mrb[0].mxu0
        %v2023 = vadd.f32 %v1381, %v2022
        %2024 = vdwg.mxu0
        %vm2041 = vcmask 1042432
        %vm2042 = vcmask 1046532
        %vm2043 = vmor %vm2041, %vm2042
        %v2044 = vrot.slane %v273, 5
        %v2045 = vrot.slane %v2044, 4
        %v2046 = vrot.slane %v274, 5
        %v2047 = vsel %vm2043, %v2045, %v2046
        %v2048 = vrot.slane %v2046, 4
        %v2049 = vrot.slane %v275, 5
        %v2050 = vsel %vm2043, %v2048, %v2049
        %v2051 = vrot.slane %v276, 5
        %v2052 = vrot.slane %v2051, 4
        %v2053 = vrot.slane %v277, 5
        %v2054 = vsel %vm2043, %v2052, %v2053
        %v2055 = vrot.slane %v2053, 4
        %v2056 = vrot.slane %v278, 5
        %v2057 = vsel %vm2043, %v2055, %v2056
        %v2058 = vrot.slane %v279, 5
        %v2059 = vrot.slane %v2058, 4
        %v2060 = vrot.slane %v280, 5
        %v2061 = vsel %vm2043, %v2059, %v2060
        %v2062 = vrot.slane %v2060, 4
        %v2063 = vrot.slane %v281, 5
        %v2064 = vsel %vm2043, %v2062, %v2063
        %v2065 = vrot.slane %v282, 5
        %v2066 = vrot.slane %v2065, 4
        %v2067 = vrot.slane %v283, 5
        %v2068 = vsel %vm2043, %v2066, %v2067
        %v2069 = vrot.slane %v2067, 4
        %v2070 = vrot.slane %v284, 5
        %v2071 = vsel %vm2043, %v2069, %v2070
        %v2072 = vrot.slane %v285, 5
        %v2073 = vrot.slane %v2072, 4
        %v2074 = vrot.slane %v286, 5
        %v2075 = vsel %vm2043, %v2073, %v2074
        %v2076 = vrot.slane %v2074, 4
        %v2077 = vrot.slane %v287, 5
        %v2078 = vsel %vm2043, %v2076, %v2077
        %v2079 = vrot.slane %v288, 5
        %v2080 = vrot.slane %v2079, 4
        %v2081 = vrot.slane %v289, 5
        %v2082 = vsel %vm2043, %v2080, %v2081
        %v2083 = vrot.slane %v2081, 4
        %v2084 = vrot.slane %v290, 5
        %v2085 = vsel %vm2043, %v2083, %v2084
        %v2086 = vrot.slane %v291, 5
        %v2087 = vrot.slane %v2086, 4
        %v2088 = vrot.slane %v292, 5
        %v2089 = vsel %vm2043, %v2087, %v2088
        %v2090 = vrot.slane %v2088, 4
        %v2091 = vrot.slane %v293, 5
        %v2092 = vsel %vm2043, %v2090, %v2091
        %v2093 = vrot.slane %v294, 5
        %v2094 = vrot.slane %v2093, 4
        %v2095 = vrot.slane %v295, 5
        %v2096 = vsel %vm2043, %v2094, %v2095
        %v2097 = vrot.slane %v2095, 4
        %v2098 = vrot.slane %v296, 5
        %v2099 = vsel %vm2043, %v2097, %v2098
        %v2100 = vrot.slane %v297, 5
        %v2101 = vrot.slane %v2100, 4
        %v2102 = vrot.slane %v298, 5
        %v2103 = vsel %vm2043, %v2101, %v2102
        %v2104 = vrot.slane %v2102, 4
        %v2105 = vrot.slane %v299, 5
        %v2106 = vsel %vm2043, %v2104, %v2105
        %v2107 = vrot.slane %v300, 5
        %v2108 = vrot.slane %v2107, 4
        %v2109 = vrot.slane %v301, 5
        %v2110 = vsel %vm2043, %v2108, %v2109
        %v2111 = vrot.slane %v2109, 4
        %v2112 = vrot.slane %v302, 5
        %v2113 = vsel %vm2043, %v2111, %v2112
        %v2114 = vrot.slane %v303, 5
        %v2115 = vrot.slane %v2114, 4
        %v2116 = vrot.slane %v304, 5
        %v2117 = vsel %vm2043, %v2115, %v2116
        %v2118 = vrot.slane %v2116, 4
        %v2119 = vrot.slane %v305, 5
        %v2120 = vsel %vm2043, %v2118, %v2119
        %v2121 = vrot.slane %v306, 5
        %v2122 = vrot.slane %v2121, 4
        %v2123 = vrot.slane %v307, 5
        %v2124 = vsel %vm2043, %v2122, %v2123
        %v2125 = vrot.slane %v2123, 4
        %v2126 = vrot.slane %v308, 5
        %v2127 = vsel %vm2043, %v2125, %v2126
        %v2128 = vrot.slane %v309, 5
        %v2129 = vrot.slane %v2128, 4
        %v2130 = vrot.slane %v310, 5
        %v2131 = vsel %vm2043, %v2129, %v2130
        %v2132 = vrot.slane %v2130, 4
        %v2133 = vrot.slane %v311, 5
        %v2134 = vsel %vm2043, %v2132, %v2133
        %v2135 = vrot.slane %v312, 5
        %v2136 = vrot.slane %v2135, 4
        %v2137 = vrot.slane %v313, 5
        %v2138 = vsel %vm2043, %v2136, %v2137
        %v2139 = vrot.slane %v2137, 4
        %v2140 = vrot.slane %v314, 5
        %v2141 = vsel %vm2043, %v2139, %v2140
        %v2142 = vrot.slane %v315, 5
        %v2143 = vrot.slane %v2142, 4
        %v2144 = vrot.slane %v316, 5
        %v2145 = vsel %vm2043, %v2143, %v2144
        %v2146 = vrot.slane %v2144, 4
        %v2147 = vrot.slane %v317, 5
        %v2148 = vsel %vm2043, %v2146, %v2147
        %v2149 = vrot.slane %v318, 5
        %v2150 = vrot.slane %v2149, 4
        %v2151 = vrot.slane %v319, 5
        %v2152 = vsel %vm2043, %v2150, %v2151
        %v2153 = vrot.slane %v2151, 4
        %v2154 = vrot.slane %v320, 5
        %v2155 = vsel %vm2043, %v2153, %v2154
        %s2156 = scalar_lea.vmem [#allocation2], 512
        %v2157 = vld [vmem:[%s2156] sm:$0xff]
        %v2158 = vld [vmem:[%s2156 + $0x8] sm:$0xff]
        %v2159 = vld [vmem:[%s2156 + $0x10] sm:$0xff]
        %v2160 = vld [vmem:[%s2156 + $0x18] sm:$0xff]
        %v2161 = vld [vmem:[%s2156 + $0x20] sm:$0xff]
        %v2162 = vld [vmem:[%s2156 + $0x28] sm:$0xff]
        %v2163 = vld [vmem:[%s2156 + $0x30] sm:$0xff]
        %v2164 = vld [vmem:[%s2156 + $0x38] sm:$0xff]
        %v2165 = vld [vmem:[%s2156 + $0x40] sm:$0xff]
        %v2166 = vld [vmem:[%s2156 + $0x48] sm:$0xff]
        %v2167 = vld [vmem:[%s2156 + $0x50] sm:$0xff]
        %v2168 = vld [vmem:[%s2156 + $0x58] sm:$0xff]
        %v2169 = vld [vmem:[%s2156 + $0x60] sm:$0xff]
        %v2170 = vld [vmem:[%s2156 + $0x68] sm:$0xff]
        %v2171 = vld [vmem:[%s2156 + $0x70] sm:$0xff]
        %v2172 = vld [vmem:[%s2156 + $0x78] sm:$0xff]
        %v2173 = vld [vmem:[%s2156 + $0x80] sm:$0xff]
        %v2174 = vld [vmem:[%s2156 + $0x88] sm:$0xff]
        %v2175 = vld [vmem:[%s2156 + $0x90] sm:$0xff]
        %v2176 = vld [vmem:[%s2156 + $0x98] sm:$0xff]
        %v2177 = vld [vmem:[%s2156 + $0xa0] sm:$0xff]
        %v2178 = vld [vmem:[%s2156 + $0xa8] sm:$0xff]
        %v2179 = vld [vmem:[%s2156 + $0xb0] sm:$0xff]
        %v2180 = vld [vmem:[%s2156 + $0xb8] sm:$0xff]
        %v2181 = vld [vmem:[%s2156 + $0xc0] sm:$0xff]
        %v2182 = vld [vmem:[%s2156 + $0xc8] sm:$0xff]
        %v2183 = vld [vmem:[%s2156 + $0xd0] sm:$0xff]
        %v2184 = vld [vmem:[%s2156 + $0xd8] sm:$0xff]
        %v2185 = vld [vmem:[%s2156 + $0xe0] sm:$0xff]
        %v2186 = vld [vmem:[%s2156 + $0xe8] sm:$0xff]
        %v2187 = vld [vmem:[%s2156 + $0xf0] sm:$0xff]
        %v2188 = vld [vmem:[%s2156 + $0xf8] sm:$0xff]
        %v2189 = vunpack.c.l.b16 %v2047
        %v2190 = vunpack.c.l.b16 %v2050
        %v2191 = vunpack.c.l.b16 %v2054
        %v2192 = vunpack.c.l.b16 %v2057
        %v2193 = vunpack.c.l.b16 %v2061
        %v2194 = vunpack.c.l.b16 %v2064
        %v2195 = vunpack.c.l.b16 %v2068
        %v2196 = vunpack.c.l.b16 %v2071
        %v2197 = vunpack.c.l.b16 %v2075
        %v2198 = vunpack.c.l.b16 %v2078
        %v2199 = vunpack.c.l.b16 %v2082
        %v2200 = vunpack.c.l.b16 %v2085
        %v2201 = vunpack.c.l.b16 %v2089
        %v2202 = vunpack.c.l.b16 %v2092
        %v2203 = vunpack.c.l.b16 %v2096
        %v2204 = vunpack.c.l.b16 %v2099
        %v2205 = vunpack.c.l.b16 %v2103
        %v2206 = vunpack.c.l.b16 %v2106
        %v2207 = vunpack.c.l.b16 %v2110
        %v2208 = vunpack.c.l.b16 %v2113
        %v2209 = vunpack.c.l.b16 %v2117
        %v2210 = vunpack.c.l.b16 %v2120
        %v2211 = vunpack.c.l.b16 %v2124
        %v2212 = vunpack.c.l.b16 %v2127
        %v2213 = vunpack.c.l.b16 %v2131
        %v2214 = vunpack.c.l.b16 %v2134
        %v2215 = vunpack.c.l.b16 %v2138
        %v2216 = vunpack.c.l.b16 %v2141
        %v2217 = vunpack.c.l.b16 %v2145
        %v2218 = vunpack.c.l.b16 %v2148
        %v2219 = vunpack.c.l.b16 %v2152
        %v2220 = vunpack.c.l.b16 %v2155
        %v2221 = vpack.c.b16 %v2190, %v2189
        %v2222 = vpack.c.b16 %v2192, %v2191
        %v2223 = vpack.c.b16 %v2194, %v2193
        %v2224 = vpack.c.b16 %v2196, %v2195
        %v2225 = vpack.c.b16 %v2198, %v2197
        %v2226 = vpack.c.b16 %v2200, %v2199
        %v2227 = vpack.c.b16 %v2202, %v2201
        %v2228 = vpack.c.b16 %v2204, %v2203
        %v2229 = vpack.c.b16 %v2206, %v2205
        %v2230 = vpack.c.b16 %v2208, %v2207
        %v2231 = vpack.c.b16 %v2210, %v2209
        %v2232 = vpack.c.b16 %v2212, %v2211
        %v2233 = vpack.c.b16 %v2214, %v2213
        %v2234 = vpack.c.b16 %v2216, %v2215
        %v2235 = vpack.c.b16 %v2218, %v2217
        %v2236 = vpack.c.b16 %v2220, %v2219
        %v2285 = vunpack.c.l.b16 %v2157
        %v2286 = vunpack.c.h.b16 %v2157
        %v2287 = vunpack.c.l.b16 %v2158
        %v2288 = vunpack.c.h.b16 %v2158
        %v2289 = vunpack.c.l.b16 %v2159
        %v2290 = vunpack.c.h.b16 %v2159
        %v2291 = vunpack.c.l.b16 %v2160
        %v2292 = vunpack.c.h.b16 %v2160
        %v2293 = vunpack.c.l.b16 %v2161
        %v2294 = vunpack.c.h.b16 %v2161
        %v2295 = vunpack.c.l.b16 %v2162
        %v2296 = vunpack.c.h.b16 %v2162
        %v2297 = vunpack.c.l.b16 %v2163
        %v2298 = vunpack.c.h.b16 %v2163
        %v2299 = vunpack.c.l.b16 %v2164
        %v2300 = vunpack.c.h.b16 %v2164
        %v2301 = vunpack.c.l.b16 %v2165
        %v2302 = vunpack.c.h.b16 %v2165
        %v2303 = vunpack.c.l.b16 %v2166
        %v2304 = vunpack.c.h.b16 %v2166
        %v2305 = vunpack.c.l.b16 %v2167
        %v2306 = vunpack.c.h.b16 %v2167
        %v2307 = vunpack.c.l.b16 %v2168
        %v2308 = vunpack.c.h.b16 %v2168
        %v2309 = vunpack.c.l.b16 %v2169
        %v2310 = vunpack.c.h.b16 %v2169
        %v2311 = vunpack.c.l.b16 %v2170
        %v2312 = vunpack.c.h.b16 %v2170
        %v2313 = vunpack.c.l.b16 %v2171
        %v2314 = vunpack.c.h.b16 %v2171
        %v2315 = vunpack.c.l.b16 %v2172
        %v2316 = vunpack.c.h.b16 %v2172
        %v2317 = vunpack.c.l.b16 %v2173
        %v2318 = vunpack.c.h.b16 %v2173
        %v2319 = vunpack.c.l.b16 %v2174
        %v2320 = vunpack.c.h.b16 %v2174
        %v2321 = vunpack.c.l.b16 %v2175
        %v2322 = vunpack.c.h.b16 %v2175
        %v2323 = vunpack.c.l.b16 %v2176
        %v2324 = vunpack.c.h.b16 %v2176
        %v2325 = vunpack.c.l.b16 %v2177
        %v2326 = vunpack.c.h.b16 %v2177
        %v2327 = vunpack.c.l.b16 %v2178
        %v2328 = vunpack.c.h.b16 %v2178
        %v2329 = vunpack.c.l.b16 %v2179
        %v2330 = vunpack.c.h.b16 %v2179
        %v2331 = vunpack.c.l.b16 %v2180
        %v2332 = vunpack.c.h.b16 %v2180
        %v2333 = vunpack.c.l.b16 %v2181
        %v2334 = vunpack.c.h.b16 %v2181
        %v2335 = vunpack.c.l.b16 %v2182
        %v2336 = vunpack.c.h.b16 %v2182
        %v2337 = vunpack.c.l.b16 %v2183
        %v2338 = vunpack.c.h.b16 %v2183
        %v2339 = vunpack.c.l.b16 %v2184
        %v2340 = vunpack.c.h.b16 %v2184
        %v2341 = vunpack.c.l.b16 %v2185
        %v2342 = vunpack.c.h.b16 %v2185
        %v2343 = vunpack.c.l.b16 %v2186
        %v2344 = vunpack.c.h.b16 %v2186
        %v2345 = vunpack.c.l.b16 %v2187
        %v2346 = vunpack.c.h.b16 %v2187
        %v2347 = vunpack.c.l.b16 %v2188
        %v2348 = vunpack.c.h.b16 %v2188
        %v2349 = vpack.c.b16 %v2289, %v2285
        %v2350 = vpack.c.b16 %v2290, %v2286
        %v2351 = vpack.c.b16 %v2291, %v2287
        %v2352 = vpack.c.b16 %v2292, %v2288
        %v2353 = vpack.c.b16 %v2297, %v2293
        %v2354 = vpack.c.b16 %v2298, %v2294
        %v2355 = vpack.c.b16 %v2299, %v2295
        %v2356 = vpack.c.b16 %v2300, %v2296
        %v2357 = vpack.c.b16 %v2305, %v2301
        %v2358 = vpack.c.b16 %v2306, %v2302
        %v2359 = vpack.c.b16 %v2307, %v2303
        %v2360 = vpack.c.b16 %v2308, %v2304
        %v2361 = vpack.c.b16 %v2313, %v2309
        %v2362 = vpack.c.b16 %v2314, %v2310
        %v2363 = vpack.c.b16 %v2315, %v2311
        %v2364 = vpack.c.b16 %v2316, %v2312
        %v2365 = vpack.c.b16 %v2321, %v2317
        %v2366 = vpack.c.b16 %v2322, %v2318
        %v2367 = vpack.c.b16 %v2323, %v2319
        %v2368 = vpack.c.b16 %v2324, %v2320
        %v2369 = vpack.c.b16 %v2329, %v2325
        %v2370 = vpack.c.b16 %v2330, %v2326
        %v2371 = vpack.c.b16 %v2331, %v2327
        %v2372 = vpack.c.b16 %v2332, %v2328
        %v2373 = vpack.c.b16 %v2337, %v2333
        %v2374 = vpack.c.b16 %v2338, %v2334
        %v2375 = vpack.c.b16 %v2339, %v2335
        %v2376 = vpack.c.b16 %v2340, %v2336
        %v2377 = vpack.c.b16 %v2345, %v2341
        %v2378 = vpack.c.b16 %v2346, %v2342
        %v2379 = vpack.c.b16 %v2347, %v2343
        %v2380 = vpack.c.b16 %v2348, %v2344
        %2413 = vmatprep.subr.bf16.mxu0 %v2350
        %2414 = vmatpush1.bf16.msra.mxu0 %v2349
        %2415 = vmatprep.subr.bf16.mxu0 %v2354
        %2416 = vmatpush1.bf16.msra.mxu0 %v2353
        %2417 = vmatprep.subr.bf16.mxu0 %v2358
        %2418 = vmatpush1.bf16.msra.mxu0 %v2357
        %2419 = vmatprep.subr.bf16.mxu0 %v2362
        %2420 = vmatpush1.bf16.msra.mxu0 %v2361
        %2421 = vmatprep.subr.bf16.mxu0 %v2366
        %2422 = vmatpush1.bf16.msra.mxu0 %v2365
        %2423 = vmatprep.subr.bf16.mxu0 %v2370
        %2424 = vmatpush1.bf16.msra.mxu0 %v2369
        %2425 = vmatprep.subr.bf16.mxu0 %v2374
        %2426 = vmatpush1.bf16.msra.mxu0 %v2373
        %2427 = vmatprep.subr.bf16.mxu0 %v2378
        %2428 = vmatpush1.bf16.msra.mxu0 %v2377
        %2429 = vmatprep.subr.bf16.mxu0 0
        %2430 = vmatpush1.bf16.msra.mxu0 0
        %2431 = vmatprep.subr.bf16.mxu0 0
        %2432 = vmatpush1.bf16.msra.mxu0 0
        %2433 = vmatprep.subr.bf16.mxu0 0
        %2434 = vmatpush1.bf16.msra.mxu0 0
        %2435 = vmatprep.subr.bf16.mxu0 0
        %2436 = vmatpush1.bf16.msra.mxu0 0
        %2437 = vmatprep.subr.bf16.mxu0 0
        %2438 = vmatpush1.bf16.msra.mxu0 0
        %2439 = vmatprep.subr.bf16.mxu0 0
        %2440 = vmatpush1.bf16.msra.mxu0 0
        %2441 = vmatprep.subr.bf16.mxu0 0
        %2442 = vmatpush1.bf16.msra.mxu0 0
        %2443 = vmatprep.subr.bf16.mxu0 0
        %2444 = vmatpush1.bf16.msra.mxu0 0
        %2445 = vmatprep.mubr.bf16.mxu0 0
        %2446 = vmatmul.mubr.bf16.gmra.mrb[0].mxu0 %v2221
        %v2447 = vpop.f32.mrb[0].mxu0
        %v2448 = vadd.f32 0.0, %v2447
        %v2449 = vpop.f32.mrb[0].mxu0
        %v2450 = vadd.f32 0.0, %v2449
        %v2451 = vpop.f32.mrb[0].mxu0
        %v2452 = vadd.f32 0.0, %v2451
        %v2453 = vpop.f32.mrb[0].mxu0
        %v2454 = vadd.f32 0.0, %v2453
        %2455 = vmatprep.mubr.bf16.mxu0 0
        %2456 = vmatmul.mubr.bf16.gmra.mrb[0].mxu0 %v2222
        %v2457 = vpop.f32.mrb[0].mxu0
        %v2458 = vadd.f32 0.0, %v2457
        %v2459 = vpop.f32.mrb[0].mxu0
        %v2460 = vadd.f32 0.0, %v2459
        %v2461 = vpop.f32.mrb[0].mxu0
        %v2462 = vadd.f32 0.0, %v2461
        %v2463 = vpop.f32.mrb[0].mxu0
        %v2464 = vadd.f32 0.0, %v2463
        %2465 = vmatprep.mubr.bf16.mxu0 0
        %2466 = vmatmul.mubr.bf16.gmra.mrb[0].mxu0 %v2223
        %v2467 = vpop.f32.mrb[0].mxu0
        %v2468 = vadd.f32 0.0, %v2467
        %v2469 = vpop.f32.mrb[0].mxu0
        %v2470 = vadd.f32 0.0, %v2469
        %v2471 = vpop.f32.mrb[0].mxu0
        %v2472 = vadd.f32 0.0, %v2471
        %v2473 = vpop.f32.mrb[0].mxu0
        %v2474 = vadd.f32 0.0, %v2473
        %2475 = vmatprep.mubr.bf16.mxu0 0
        %2476 = vmatmul.mubr.bf16.gmra.mrb[0].mxu0 %v2224
        %v2477 = vpop.f32.mrb[0].mxu0
        %v2478 = vadd.f32 0.0, %v2477
        %v2479 = vpop.f32.mrb[0].mxu0
        %v2480 = vadd.f32 0.0, %v2479
        %v2481 = vpop.f32.mrb[0].mxu0
        %v2482 = vadd.f32 0.0, %v2481
        %v2483 = vpop.f32.mrb[0].mxu0
        %v2484 = vadd.f32 0.0, %v2483
        %2485 = vmatprep.mubr.bf16.mxu0 0
        %2486 = vmatmul.mubr.bf16.gmra.mrb[0].mxu0 %v2225
        %v2487 = vpop.f32.mrb[0].mxu0
        %v2488 = vadd.f32 0.0, %v2487
        %v2489 = vpop.f32.mrb[0].mxu0
        %v2490 = vadd.f32 0.0, %v2489
        %v2491 = vpop.f32.mrb[0].mxu0
        %v2492 = vadd.f32 0.0, %v2491
        %v2493 = vpop.f32.mrb[0].mxu0
        %v2494 = vadd.f32 0.0, %v2493
        %2495 = vmatprep.mubr.bf16.mxu0 0
        %2496 = vmatmul.mubr.bf16.gmra.mrb[0].mxu0 %v2226
        %v2497 = vpop.f32.mrb[0].mxu0
        %v2498 = vadd.f32 0.0, %v2497
        %v2499 = vpop.f32.mrb[0].mxu0
        %v2500 = vadd.f32 0.0, %v2499
        %v2501 = vpop.f32.mrb[0].mxu0
        %v2502 = vadd.f32 0.0, %v2501
        %v2503 = vpop.f32.mrb[0].mxu0
        %v2504 = vadd.f32 0.0, %v2503
        %2505 = vmatprep.mubr.bf16.mxu0 0
        %2506 = vmatmul.mubr.bf16.gmra.mrb[0].mxu0 %v2227
        %v2507 = vpop.f32.mrb[0].mxu0
        %v2508 = vadd.f32 0.0, %v2507
        %v2509 = vpop.f32.mrb[0].mxu0
        %v2510 = vadd.f32 0.0, %v2509
        %v2511 = vpop.f32.mrb[0].mxu0
        %v2512 = vadd.f32 0.0, %v2511
        %v2513 = vpop.f32.mrb[0].mxu0
        %v2514 = vadd.f32 0.0, %v2513
        %2515 = vmatprep.mubr.bf16.mxu0 0
        %2516 = vmatmul.mubr.bf16.gmra.mrb[0].mxu0 %v2228
        %v2517 = vpop.f32.mrb[0].mxu0
        %v2518 = vadd.f32 0.0, %v2517
        %v2519 = vpop.f32.mrb[0].mxu0
        %v2520 = vadd.f32 0.0, %v2519
        %v2521 = vpop.f32.mrb[0].mxu0
        %v2522 = vadd.f32 0.0, %v2521
        %v2523 = vpop.f32.mrb[0].mxu0
        %v2524 = vadd.f32 0.0, %v2523
        %2525 = vmatprep.mubr.bf16.mxu0 0
        %2526 = vmatmul.mubr.bf16.gmra.mrb[0].mxu0 %v2229
        %v2527 = vpop.f32.mrb[0].mxu0
        %v2528 = vadd.f32 0.0, %v2527
        %v2529 = vpop.f32.mrb[0].mxu0
        %v2530 = vadd.f32 0.0, %v2529
        %v2531 = vpop.f32.mrb[0].mxu0
        %v2532 = vadd.f32 0.0, %v2531
        %v2533 = vpop.f32.mrb[0].mxu0
        %v2534 = vadd.f32 0.0, %v2533
        %2535 = vmatprep.mubr.bf16.mxu0 0
        %2536 = vmatmul.mubr.bf16.gmra.mrb[0].mxu0 %v2230
        %v2537 = vpop.f32.mrb[0].mxu0
        %v2538 = vadd.f32 0.0, %v2537
        %v2539 = vpop.f32.mrb[0].mxu0
        %v2540 = vadd.f32 0.0, %v2539
        %v2541 = vpop.f32.mrb[0].mxu0
        %v2542 = vadd.f32 0.0, %v2541
        %v2543 = vpop.f32.mrb[0].mxu0
        %v2544 = vadd.f32 0.0, %v2543
        %2545 = vmatprep.mubr.bf16.mxu0 0
        %2546 = vmatmul.mubr.bf16.gmra.mrb[0].mxu0 %v2231
        %v2547 = vpop.f32.mrb[0].mxu0
        %v2548 = vadd.f32 0.0, %v2547
        %v2549 = vpop.f32.mrb[0].mxu0
        %v2550 = vadd.f32 0.0, %v2549
        %v2551 = vpop.f32.mrb[0].mxu0
        %v2552 = vadd.f32 0.0, %v2551
        %v2553 = vpop.f32.mrb[0].mxu0
        %v2554 = vadd.f32 0.0, %v2553
        %2555 = vmatprep.mubr.bf16.mxu0 0
        %2556 = vmatmul.mubr.bf16.gmra.mrb[0].mxu0 %v2232
        %v2557 = vpop.f32.mrb[0].mxu0
        %v2558 = vadd.f32 0.0, %v2557
        %v2559 = vpop.f32.mrb[0].mxu0
        %v2560 = vadd.f32 0.0, %v2559
        %v2561 = vpop.f32.mrb[0].mxu0
        %v2562 = vadd.f32 0.0, %v2561
        %v2563 = vpop.f32.mrb[0].mxu0
        %v2564 = vadd.f32 0.0, %v2563
        %2565 = vmatprep.mubr.bf16.mxu0 0
        %2566 = vmatmul.mubr.bf16.gmra.mrb[0].mxu0 %v2233
        %v2567 = vpop.f32.mrb[0].mxu0
        %v2568 = vadd.f32 0.0, %v2567
        %v2569 = vpop.f32.mrb[0].mxu0
        %v2570 = vadd.f32 0.0, %v2569
        %v2571 = vpop.f32.mrb[0].mxu0
        %v2572 = vadd.f32 0.0, %v2571
        %v2573 = vpop.f32.mrb[0].mxu0
        %v2574 = vadd.f32 0.0, %v2573
        %2575 = vmatprep.mubr.bf16.mxu0 0
        %2576 = vmatmul.mubr.bf16.gmra.mrb[0].mxu0 %v2234
        %v2577 = vpop.f32.mrb[0].mxu0
        %v2578 = vadd.f32 0.0, %v2577
        %v2579 = vpop.f32.mrb[0].mxu0
        %v2580 = vadd.f32 0.0, %v2579
        %v2581 = vpop.f32.mrb[0].mxu0
        %v2582 = vadd.f32 0.0, %v2581
        %v2583 = vpop.f32.mrb[0].mxu0
        %v2584 = vadd.f32 0.0, %v2583
        %2585 = vmatprep.mubr.bf16.mxu0 0
        %2586 = vmatmul.mubr.bf16.gmra.mrb[0].mxu0 %v2235
        %v2587 = vpop.f32.mrb[0].mxu0
        %v2588 = vadd.f32 0.0, %v2587
        %v2589 = vpop.f32.mrb[0].mxu0
        %v2590 = vadd.f32 0.0, %v2589
        %v2591 = vpop.f32.mrb[0].mxu0
        %v2592 = vadd.f32 0.0, %v2591
        %v2593 = vpop.f32.mrb[0].mxu0
        %v2594 = vadd.f32 0.0, %v2593
        %2595 = vmatprep.mubr.bf16.mxu0 0
        %2596 = vmatmul.mubr.bf16.gmra.mrb[0].mxu0 %v2236
        %v2597 = vpop.f32.mrb[0].mxu0
        %v2598 = vadd.f32 0.0, %v2597
        %v2599 = vpop.f32.mrb[0].mxu0
        %v2600 = vadd.f32 0.0, %v2599
        %v2601 = vpop.f32.mrb[0].mxu0
        %v2602 = vadd.f32 0.0, %v2601
        %v2603 = vpop.f32.mrb[0].mxu0
        %v2604 = vadd.f32 0.0, %v2603
        %2605 = vdwg.mxu0
        %2606 = vmatprep.subr.bf16.mxu0 %v2352
        %2607 = vmatpush1.bf16.msra.mxu0 %v2351
        %2608 = vmatprep.subr.bf16.mxu0 %v2356
        %2609 = vmatpush1.bf16.msra.mxu0 %v2355
        %2610 = vmatprep.subr.bf16.mxu0 %v2360
        %2611 = vmatpush1.bf16.msra.mxu0 %v2359
        %2612 = vmatprep.subr.bf16.mxu0 %v2364
        %2613 = vmatpush1.bf16.msra.mxu0 %v2363
        %2614 = vmatprep.subr.bf16.mxu0 %v2368
        %2615 = vmatpush1.bf16.msra.mxu0 %v2367
        %2616 = vmatprep.subr.bf16.mxu0 %v2372
        %2617 = vmatpush1.bf16.msra.mxu0 %v2371
        %2618 = vmatprep.subr.bf16.mxu0 %v2376
        %2619 = vmatpush1.bf16.msra.mxu0 %v2375
        %2620 = vmatprep.subr.bf16.mxu0 %v2380
        %2621 = vmatpush1.bf16.msra.mxu0 %v2379
        %2622 = vmatprep.subr.bf16.mxu0 0
        %2623 = vmatpush1.bf16.msra.mxu0 0
        %2624 = vmatprep.subr.bf16.mxu0 0
        %2625 = vmatpush1.bf16.msra.mxu0 0
        %2626 = vmatprep.subr.bf16.mxu0 0
        %2627 = vmatpush1.bf16.msra.mxu0 0
        %2628 = vmatprep.subr.bf16.mxu0 0
        %2629 = vmatpush1.bf16.msra.mxu0 0
        %2630 = vmatprep.subr.bf16.mxu0 0
        %2631 = vmatpush1.bf16.msra.mxu0 0
        %2632 = vmatprep.subr.bf16.mxu0 0
        %2633 = vmatpush1.bf16.msra.mxu0 0
        %2634 = vmatprep.subr.bf16.mxu0 0
        %2635 = vmatpush1.bf16.msra.mxu0 0
        %2636 = vmatprep.subr.bf16.mxu0 0
        %2637 = vmatpush1.bf16.msra.mxu0 0
        %2638 = vmatprep.mubr.bf16.mxu0 0
        %2639 = vmatmul.mubr.bf16.gmra.mrb[0].mxu0 %v2221
        %v2640 = vpop.f32.mrb[0].mxu0
        %v2641 = vadd.f32 0.0, %v2640
        %v2642 = vpop.f32.mrb[0].mxu0
        %v2643 = vadd.f32 0.0, %v2642
        %v2644 = vpop.f32.mrb[0].mxu0
        %v2645 = vadd.f32 0.0, %v2644
        %v2646 = vpop.f32.mrb[0].mxu0
        %v2647 = vadd.f32 0.0, %v2646
        %2648 = vmatprep.mubr.bf16.mxu0 0
        %2649 = vmatmul.mubr.bf16.gmra.mrb[0].mxu0 %v2222
        %v2650 = vpop.f32.mrb[0].mxu0
        %v2651 = vadd.f32 0.0, %v2650
        %v2652 = vpop.f32.mrb[0].mxu0
        %v2653 = vadd.f32 0.0, %v2652
        %v2654 = vpop.f32.mrb[0].mxu0
        %v2655 = vadd.f32 0.0, %v2654
        %v2656 = vpop.f32.mrb[0].mxu0
        %v2657 = vadd.f32 0.0, %v2656
        %2658 = vmatprep.mubr.bf16.mxu0 0
        %2659 = vmatmul.mubr.bf16.gmra.mrb[0].mxu0 %v2223
        %v2660 = vpop.f32.mrb[0].mxu0
        %v2661 = vadd.f32 0.0, %v2660
        %v2662 = vpop.f32.mrb[0].mxu0
        %v2663 = vadd.f32 0.0, %v2662
        %v2664 = vpop.f32.mrb[0].mxu0
        %v2665 = vadd.f32 0.0, %v2664
        %v2666 = vpop.f32.mrb[0].mxu0
        %v2667 = vadd.f32 0.0, %v2666
        %2668 = vmatprep.mubr.bf16.mxu0 0
        %2669 = vmatmul.mubr.bf16.gmra.mrb[0].mxu0 %v2224
        %v2670 = vpop.f32.mrb[0].mxu0
        %v2671 = vadd.f32 0.0, %v2670
        %v2672 = vpop.f32.mrb[0].mxu0
        %v2673 = vadd.f32 0.0, %v2672
        %v2674 = vpop.f32.mrb[0].mxu0
        %v2675 = vadd.f32 0.0, %v2674
        %v2676 = vpop.f32.mrb[0].mxu0
        %v2677 = vadd.f32 0.0, %v2676
        %2678 = vmatprep.mubr.bf16.mxu0 0
        %2679 = vmatmul.mubr.bf16.gmra.mrb[0].mxu0 %v2225
        %v2680 = vpop.f32.mrb[0].mxu0
        %v2681 = vadd.f32 0.0, %v2680
        %v2682 = vpop.f32.mrb[0].mxu0
        %v2683 = vadd.f32 0.0, %v2682
        %v2684 = vpop.f32.mrb[0].mxu0
        %v2685 = vadd.f32 0.0, %v2684
        %v2686 = vpop.f32.mrb[0].mxu0
        %v2687 = vadd.f32 0.0, %v2686
        %2688 = vmatprep.mubr.bf16.mxu0 0
        %2689 = vmatmul.mubr.bf16.gmra.mrb[0].mxu0 %v2226
        %v2690 = vpop.f32.mrb[0].mxu0
        %v2691 = vadd.f32 0.0, %v2690
        %v2692 = vpop.f32.mrb[0].mxu0
        %v2693 = vadd.f32 0.0, %v2692
        %v2694 = vpop.f32.mrb[0].mxu0
        %v2695 = vadd.f32 0.0, %v2694
        %v2696 = vpop.f32.mrb[0].mxu0
        %v2697 = vadd.f32 0.0, %v2696
        %2698 = vmatprep.mubr.bf16.mxu0 0
        %2699 = vmatmul.mubr.bf16.gmra.mrb[0].mxu0 %v2227
        %v2700 = vpop.f32.mrb[0].mxu0
        %v2701 = vadd.f32 0.0, %v2700
        %v2702 = vpop.f32.mrb[0].mxu0
        %v2703 = vadd.f32 0.0, %v2702
        %v2704 = vpop.f32.mrb[0].mxu0
        %v2705 = vadd.f32 0.0, %v2704
        %v2706 = vpop.f32.mrb[0].mxu0
        %v2707 = vadd.f32 0.0, %v2706
        %2708 = vmatprep.mubr.bf16.mxu0 0
        %2709 = vmatmul.mubr.bf16.gmra.mrb[0].mxu0 %v2228
        %v2710 = vpop.f32.mrb[0].mxu0
        %v2711 = vadd.f32 0.0, %v2710
        %v2712 = vpop.f32.mrb[0].mxu0
        %v2713 = vadd.f32 0.0, %v2712
        %v2714 = vpop.f32.mrb[0].mxu0
        %v2715 = vadd.f32 0.0, %v2714
        %v2716 = vpop.f32.mrb[0].mxu0
        %v2717 = vadd.f32 0.0, %v2716
        %2718 = vmatprep.mubr.bf16.mxu0 0
        %2719 = vmatmul.mubr.bf16.gmra.mrb[0].mxu0 %v2229
        %v2720 = vpop.f32.mrb[0].mxu0
        %v2721 = vadd.f32 0.0, %v2720
        %v2722 = vpop.f32.mrb[0].mxu0
        %v2723 = vadd.f32 0.0, %v2722
        %v2724 = vpop.f32.mrb[0].mxu0
        %v2725 = vadd.f32 0.0, %v2724
        %v2726 = vpop.f32.mrb[0].mxu0
        %v2727 = vadd.f32 0.0, %v2726
        %2728 = vmatprep.mubr.bf16.mxu0 0
        %2729 = vmatmul.mubr.bf16.gmra.mrb[0].mxu0 %v2230
        %v2730 = vpop.f32.mrb[0].mxu0
        %v2731 = vadd.f32 0.0, %v2730
        %v2732 = vpop.f32.mrb[0].mxu0
        %v2733 = vadd.f32 0.0, %v2732
        %v2734 = vpop.f32.mrb[0].mxu0
        %v2735 = vadd.f32 0.0, %v2734
        %v2736 = vpop.f32.mrb[0].mxu0
        %v2737 = vadd.f32 0.0, %v2736
        %2738 = vmatprep.mubr.bf16.mxu0 0
        %2739 = vmatmul.mubr.bf16.gmra.mrb[0].mxu0 %v2231
        %v2740 = vpop.f32.mrb[0].mxu0
        %v2741 = vadd.f32 0.0, %v2740
        %v2742 = vpop.f32.mrb[0].mxu0
        %v2743 = vadd.f32 0.0, %v2742
        %v2744 = vpop.f32.mrb[0].mxu0
        %v2745 = vadd.f32 0.0, %v2744
        %v2746 = vpop.f32.mrb[0].mxu0
        %v2747 = vadd.f32 0.0, %v2746
        %2748 = vmatprep.mubr.bf16.mxu0 0
        %2749 = vmatmul.mubr.bf16.gmra.mrb[0].mxu0 %v2232
        %v2750 = vpop.f32.mrb[0].mxu0
        %v2751 = vadd.f32 0.0, %v2750
        %v2752 = vpop.f32.mrb[0].mxu0
        %v2753 = vadd.f32 0.0, %v2752
        %v2754 = vpop.f32.mrb[0].mxu0
        %v2755 = vadd.f32 0.0, %v2754
        %v2756 = vpop.f32.mrb[0].mxu0
        %v2757 = vadd.f32 0.0, %v2756
        %2758 = vmatprep.mubr.bf16.mxu0 0
        %2759 = vmatmul.mubr.bf16.gmra.mrb[0].mxu0 %v2233
        %v2760 = vpop.f32.mrb[0].mxu0
        %v2761 = vadd.f32 0.0, %v2760
        %v2762 = vpop.f32.mrb[0].mxu0
        %v2763 = vadd.f32 0.0, %v2762
        %v2764 = vpop.f32.mrb[0].mxu0
        %v2765 = vadd.f32 0.0, %v2764
        %v2766 = vpop.f32.mrb[0].mxu0
        %v2767 = vadd.f32 0.0, %v2766
        %2768 = vmatprep.mubr.bf16.mxu0 0
        %2769 = vmatmul.mubr.bf16.gmra.mrb[0].mxu0 %v2234
        %v2770 = vpop.f32.mrb[0].mxu0
        %v2771 = vadd.f32 0.0, %v2770
        %v2772 = vpop.f32.mrb[0].mxu0
        %v2773 = vadd.f32 0.0, %v2772
        %v2774 = vpop.f32.mrb[0].mxu0
        %v2775 = vadd.f32 0.0, %v2774
        %v2776 = vpop.f32.mrb[0].mxu0
        %v2777 = vadd.f32 0.0, %v2776
        %2778 = vmatprep.mubr.bf16.mxu0 0
        %2779 = vmatmul.mubr.bf16.gmra.mrb[0].mxu0 %v2235
        %v2780 = vpop.f32.mrb[0].mxu0
        %v2781 = vadd.f32 0.0, %v2780
        %v2782 = vpop.f32.mrb[0].mxu0
        %v2783 = vadd.f32 0.0, %v2782
        %v2784 = vpop.f32.mrb[0].mxu0
        %v2785 = vadd.f32 0.0, %v2784
        %v2786 = vpop.f32.mrb[0].mxu0
        %v2787 = vadd.f32 0.0, %v2786
        %2788 = vmatprep.mubr.bf16.mxu0 0
        %2789 = vmatmul.mubr.bf16.gmra.mrb[0].mxu0 %v2236
        %v2790 = vpop.f32.mrb[0].mxu0
        %v2791 = vadd.f32 0.0, %v2790
        %v2792 = vpop.f32.mrb[0].mxu0
        %v2793 = vadd.f32 0.0, %v2792
        %v2794 = vpop.f32.mrb[0].mxu0
        %v2795 = vadd.f32 0.0, %v2794
        %v2796 = vpop.f32.mrb[0].mxu0
        %v2797 = vadd.f32 0.0, %v2796
        %2798 = vdwg.mxu0
        %v2799 = vadd.f32 %v1674, %v2448
        %v2800 = vadd.f32 %v1676, %v2450
        %v2801 = vadd.f32 %v1867, %v2641
        %v2802 = vadd.f32 %v1869, %v2643
        %v2803 = vadd.f32 %v1678, %v2452
        %v2804 = vadd.f32 %v1680, %v2454
        %v2805 = vadd.f32 %v1871, %v2645
        %v2806 = vadd.f32 %v1873, %v2647
        %v2807 = vadd.f32 %v1684, %v2458
        %v2808 = vadd.f32 %v1686, %v2460
        %v2809 = vadd.f32 %v1877, %v2651
        %v2810 = vadd.f32 %v1879, %v2653
        %v2811 = vadd.f32 %v1688, %v2462
        %v2812 = vadd.f32 %v1690, %v2464
        %v2813 = vadd.f32 %v1881, %v2655
        %v2814 = vadd.f32 %v1883, %v2657
        %v2815 = vadd.f32 %v1694, %v2468
        %v2816 = vadd.f32 %v1696, %v2470
        %v2817 = vadd.f32 %v1887, %v2661
        %v2818 = vadd.f32 %v1889, %v2663
        %v2819 = vadd.f32 %v1698, %v2472
        %v2820 = vadd.f32 %v1700, %v2474
        %v2821 = vadd.f32 %v1891, %v2665
        %v2822 = vadd.f32 %v1893, %v2667
        %v2823 = vadd.f32 %v1704, %v2478
        %v2824 = vadd.f32 %v1706, %v2480
        %v2825 = vadd.f32 %v1897, %v2671
        %v2826 = vadd.f32 %v1899, %v2673
        %v2827 = vadd.f32 %v1708, %v2482
        %v2828 = vadd.f32 %v1710, %v2484
        %v2829 = vadd.f32 %v1901, %v2675
        %v2830 = vadd.f32 %v1903, %v2677
        %v2831 = vadd.f32 %v1714, %v2488
        %v2832 = vadd.f32 %v1716, %v2490
        %v2833 = vadd.f32 %v1907, %v2681
        %v2834 = vadd.f32 %v1909, %v2683
        %v2835 = vadd.f32 %v1718, %v2492
        %v2836 = vadd.f32 %v1720, %v2494
        %v2837 = vadd.f32 %v1911, %v2685
        %v2838 = vadd.f32 %v1913, %v2687
        %v2839 = vadd.f32 %v1724, %v2498
        %v2840 = vadd.f32 %v1726, %v2500
        %v2841 = vadd.f32 %v1917, %v2691
        %v2842 = vadd.f32 %v1919, %v2693
        %v2843 = vadd.f32 %v1728, %v2502
        %v2844 = vadd.f32 %v1730, %v2504
        %v2845 = vadd.f32 %v1921, %v2695
        %v2846 = vadd.f32 %v1923, %v2697
        %v2847 = vadd.f32 %v1734, %v2508
        %v2848 = vadd.f32 %v1736, %v2510
        %v2849 = vadd.f32 %v1927, %v2701
        %v2850 = vadd.f32 %v1929, %v2703
        %v2851 = vadd.f32 %v1738, %v2512
        %v2852 = vadd.f32 %v1740, %v2514
        %v2853 = vadd.f32 %v1931, %v2705
        %v2854 = vadd.f32 %v1933, %v2707
        %v2855 = vadd.f32 %v1744, %v2518
        %v2856 = vadd.f32 %v1746, %v2520
        %v2857 = vadd.f32 %v1937, %v2711
        %v2858 = vadd.f32 %v1939, %v2713
        %v2859 = vadd.f32 %v1748, %v2522
        %v2860 = vadd.f32 %v1750, %v2524
        %v2861 = vadd.f32 %v1941, %v2715
        %v2862 = vadd.f32 %v1943, %v2717
        %v2863 = vadd.f32 %v1754, %v2528
        %v2864 = vadd.f32 %v1756, %v2530
        %v2865 = vadd.f32 %v1947, %v2721
        %v2866 = vadd.f32 %v1949, %v2723
        %v2867 = vadd.f32 %v1758, %v2532
        %v2868 = vadd.f32 %v1760, %v2534
        %v2869 = vadd.f32 %v1951, %v2725
        %v2870 = vadd.f32 %v1953, %v2727
        %v2871 = vadd.f32 %v1764, %v2538
        %v2872 = vadd.f32 %v1766, %v2540
        %v2873 = vadd.f32 %v1957, %v2731
        %v2874 = vadd.f32 %v1959, %v2733
        %v2875 = vadd.f32 %v1768, %v2542
        %v2876 = vadd.f32 %v1770, %v2544
        %v2877 = vadd.f32 %v1961, %v2735
        %v2878 = vadd.f32 %v1963, %v2737
        %v2879 = vadd.f32 %v1774, %v2548
        %v2880 = vadd.f32 %v1776, %v2550
        %v2881 = vadd.f32 %v1967, %v2741
        %v2882 = vadd.f32 %v1969, %v2743
        %v2883 = vadd.f32 %v1778, %v2552
        %v2884 = vadd.f32 %v1780, %v2554
        %v2885 = vadd.f32 %v1971, %v2745
        %v2886 = vadd.f32 %v1973, %v2747
        %v2887 = vadd.f32 %v1784, %v2558
        %v2888 = vadd.f32 %v1786, %v2560
        %v2889 = vadd.f32 %v1977, %v2751
        %v2890 = vadd.f32 %v1979, %v2753
        %v2891 = vadd.f32 %v1788, %v2562
        %v2892 = vadd.f32 %v1790, %v2564
        %v2893 = vadd.f32 %v1981, %v2755
        %v2894 = vadd.f32 %v1983, %v2757
        %v2895 = vadd.f32 %v1794, %v2568
        %v2896 = vadd.f32 %v1796, %v2570
        %v2897 = vadd.f32 %v1987, %v2761
        %v2898 = vadd.f32 %v1989, %v2763
        %v2899 = vadd.f32 %v1798, %v2572
        %v2900 = vadd.f32 %v1800, %v2574
        %v2901 = vadd.f32 %v1991, %v2765
        %v2902 = vadd.f32 %v1993, %v2767
        %v2903 = vadd.f32 %v1804, %v2578
        %v2904 = vadd.f32 %v1806, %v2580
        %v2905 = vadd.f32 %v1997, %v2771
        %v2906 = vadd.f32 %v1999, %v2773
        %v2907 = vadd.f32 %v1808, %v2582
        %v2908 = vadd.f32 %v1810, %v2584
        %v2909 = vadd.f32 %v2001, %v2775
        %v2910 = vadd.f32 %v2003, %v2777
        %v2911 = vadd.f32 %v1814, %v2588
        %v2912 = vadd.f32 %v1816, %v2590
        %v2913 = vadd.f32 %v2007, %v2781
        %v2914 = vadd.f32 %v2009, %v2783
        %v2915 = vadd.f32 %v1818, %v2592
        %v2916 = vadd.f32 %v1820, %v2594
        %v2917 = vadd.f32 %v2011, %v2785
        %v2918 = vadd.f32 %v2013, %v2787
        %v2919 = vadd.f32 %v1824, %v2598
        %v2920 = vadd.f32 %v1826, %v2600
        %v2921 = vadd.f32 %v2017, %v2791
        %v2922 = vadd.f32 %v2019, %v2793
        %v2923 = vadd.f32 %v1828, %v2602
        %v2924 = vadd.f32 %v1830, %v2604
        %v2925 = vadd.f32 %v2021, %v2795
        %v2926 = vadd.f32 %v2023, %v2797
        %v2927 = vld [vmem:[%s2] sm:$0xf]
        %v2929 = vlaneseq
        %v2930 = vshrl.u32 %v2929, 7
        %v2931 = vsub.s32 0, %v2930
        %v2932 = vrot.slane %v2927, %v2931
        %v2933 = vlaneseq
        %v2934 = vshrl.u32 %v2933, 7
        %v2935 = vsub.s32 1, %v2934
        %v2936 = vrot.slane %v2927, %v2935
        %v2937 = vlaneseq
        %v2938 = vshrl.u32 %v2937, 7
        %v2939 = vsub.s32 2, %v2938
        %v2940 = vrot.slane %v2927, %v2939
        %v2941 = vlaneseq
        %v2942 = vshrl.u32 %v2941, 7
        %v2943 = vsub.s32 3, %v2942
        %v2944 = vrot.slane %v2927, %v2943
        %v2949 = vadd.f32 %v2799, %v2932
        %v2950 = vadd.f32 %v2800, %v2936
        %v2951 = vadd.f32 %v2801, %v2940
        %v2952 = vadd.f32 %v2802, %v2944
        %v2953 = vadd.f32 %v2803, %v2932
        %v2954 = vadd.f32 %v2804, %v2936
        %v2955 = vadd.f32 %v2805, %v2940
        %v2956 = vadd.f32 %v2806, %v2944
        %v2957 = vadd.f32 %v2807, %v2932
        %v2958 = vadd.f32 %v2808, %v2936
        %v2959 = vadd.f32 %v2809, %v2940
        %v2960 = vadd.f32 %v2810, %v2944
        %v2961 = vadd.f32 %v2811, %v2932
        %v2962 = vadd.f32 %v2812, %v2936
        %v2963 = vadd.f32 %v2813, %v2940
        %v2964 = vadd.f32 %v2814, %v2944
        %v2965 = vadd.f32 %v2815, %v2932
        %v2966 = vadd.f32 %v2816, %v2936
        %v2967 = vadd.f32 %v2817, %v2940
        %v2968 = vadd.f32 %v2818, %v2944
        %v2969 = vadd.f32 %v2819, %v2932
        %v2970 = vadd.f32 %v2820, %v2936
        %v2971 = vadd.f32 %v2821, %v2940
        %v2972 = vadd.f32 %v2822, %v2944
        %v2973 = vadd.f32 %v2823, %v2932
        %v2974 = vadd.f32 %v2824, %v2936
        %v2975 = vadd.f32 %v2825, %v2940
        %v2976 = vadd.f32 %v2826, %v2944
        %v2977 = vadd.f32 %v2827, %v2932
        %v2978 = vadd.f32 %v2828, %v2936
        %v2979 = vadd.f32 %v2829, %v2940
        %v2980 = vadd.f32 %v2830, %v2944
        %v2981 = vadd.f32 %v2831, %v2932
        %v2982 = vadd.f32 %v2832, %v2936
        %v2983 = vadd.f32 %v2833, %v2940
        %v2984 = vadd.f32 %v2834, %v2944
        %v2985 = vadd.f32 %v2835, %v2932
        %v2986 = vadd.f32 %v2836, %v2936
        %v2987 = vadd.f32 %v2837, %v2940
        %v2988 = vadd.f32 %v2838, %v2944
        %v2989 = vadd.f32 %v2839, %v2932
        %v2990 = vadd.f32 %v2840, %v2936
        %v2991 = vadd.f32 %v2841, %v2940
        %v2992 = vadd.f32 %v2842, %v2944
        %v2993 = vadd.f32 %v2843, %v2932
        %v2994 = vadd.f32 %v2844, %v2936
        %v2995 = vadd.f32 %v2845, %v2940
        %v2996 = vadd.f32 %v2846, %v2944
        %v2997 = vadd.f32 %v2847, %v2932
        %v2998 = vadd.f32 %v2848, %v2936
        %v2999 = vadd.f32 %v2849, %v2940
        %v3000 = vadd.f32 %v2850, %v2944
        %v3001 = vadd.f32 %v2851, %v2932
        %v3002 = vadd.f32 %v2852, %v2936
        %v3003 = vadd.f32 %v2853, %v2940
        %v3004 = vadd.f32 %v2854, %v2944
        %v3005 = vadd.f32 %v2855, %v2932
        %v3006 = vadd.f32 %v2856, %v2936
        %v3007 = vadd.f32 %v2857, %v2940
        %v3008 = vadd.f32 %v2858, %v2944
        %v3009 = vadd.f32 %v2859, %v2932
        %v3010 = vadd.f32 %v2860, %v2936
        %v3011 = vadd.f32 %v2861, %v2940
        %v3012 = vadd.f32 %v2862, %v2944
        %v3013 = vadd.f32 %v2863, %v2932
        %v3014 = vadd.f32 %v2864, %v2936
        %v3015 = vadd.f32 %v2865, %v2940
        %v3016 = vadd.f32 %v2866, %v2944
        %v3017 = vadd.f32 %v2867, %v2932
        %v3018 = vadd.f32 %v2868, %v2936
        %v3019 = vadd.f32 %v2869, %v2940
        %v3020 = vadd.f32 %v2870, %v2944
        %v3021 = vadd.f32 %v2871, %v2932
        %v3022 = vadd.f32 %v2872, %v2936
        %v3023 = vadd.f32 %v2873, %v2940
        %v3024 = vadd.f32 %v2874, %v2944
        %v3025 = vadd.f32 %v2875, %v2932
        %v3026 = vadd.f32 %v2876, %v2936
        %v3027 = vadd.f32 %v2877, %v2940
        %v3028 = vadd.f32 %v2878, %v2944
        %v3029 = vadd.f32 %v2879, %v2932
        %v3030 = vadd.f32 %v2880, %v2936
        %v3031 = vadd.f32 %v2881, %v2940
        %v3032 = vadd.f32 %v2882, %v2944
        %v3033 = vadd.f32 %v2883, %v2932
        %v3034 = vadd.f32 %v2884, %v2936
        %v3035 = vadd.f32 %v2885, %v2940
        %v3036 = vadd.f32 %v2886, %v2944
        %v3037 = vadd.f32 %v2887, %v2932
        %v3038 = vadd.f32 %v2888, %v2936
        %v3039 = vadd.f32 %v2889, %v2940
        %v3040 = vadd.f32 %v2890, %v2944
        %v3041 = vadd.f32 %v2891, %v2932
        %v3042 = vadd.f32 %v2892, %v2936
        %v3043 = vadd.f32 %v2893, %v2940
        %v3044 = vadd.f32 %v2894, %v2944
        %v3045 = vadd.f32 %v2895, %v2932
        %v3046 = vadd.f32 %v2896, %v2936
        %v3047 = vadd.f32 %v2897, %v2940
        %v3048 = vadd.f32 %v2898, %v2944
        %v3049 = vadd.f32 %v2899, %v2932
        %v3050 = vadd.f32 %v2900, %v2936
        %v3051 = vadd.f32 %v2901, %v2940
        %v3052 = vadd.f32 %v2902, %v2944
        %v3053 = vadd.f32 %v2903, %v2932
        %v3054 = vadd.f32 %v2904, %v2936
        %v3055 = vadd.f32 %v2905, %v2940
        %v3056 = vadd.f32 %v2906, %v2944
        %v3057 = vadd.f32 %v2907, %v2932
        %v3058 = vadd.f32 %v2908, %v2936
        %v3059 = vadd.f32 %v2909, %v2940
        %v3060 = vadd.f32 %v2910, %v2944
        %v3061 = vadd.f32 %v2911, %v2932
        %v3062 = vadd.f32 %v2912, %v2936
        %v3063 = vadd.f32 %v2913, %v2940
        %v3064 = vadd.f32 %v2914, %v2944
        %v3065 = vadd.f32 %v2915, %v2932
        %v3066 = vadd.f32 %v2916, %v2936
        %v3067 = vadd.f32 %v2917, %v2940
        %v3068 = vadd.f32 %v2918, %v2944
        %v3069 = vadd.f32 %v2919, %v2932
        %v3070 = vadd.f32 %v2920, %v2936
        %v3071 = vadd.f32 %v2921, %v2940
        %v3072 = vadd.f32 %v2922, %v2944
        %v3073 = vadd.f32 %v2923, %v2932
        %v3074 = vadd.f32 %v2924, %v2936
        %v3075 = vadd.f32 %v2925, %v2940
        %v3076 = vadd.f32 %v2926, %v2944
        %v3077 = vmax.f32 %v2949, 0.0
        %v3078 = vmax.f32 %v2950, 0.0
        %v3079 = vmax.f32 %v2951, 0.0
        %v3080 = vmax.f32 %v2952, 0.0
        %v3081 = vmax.f32 %v2953, 0.0
        %v3082 = vmax.f32 %v2954, 0.0
        %v3083 = vmax.f32 %v2955, 0.0
        %v3084 = vmax.f32 %v2956, 0.0
        %v3085 = vmax.f32 %v2957, 0.0
        %v3086 = vmax.f32 %v2958, 0.0
        %v3087 = vmax.f32 %v2959, 0.0
        %v3088 = vmax.f32 %v2960, 0.0
        %v3089 = vmax.f32 %v2961, 0.0
        %v3090 = vmax.f32 %v2962, 0.0
        %v3091 = vmax.f32 %v2963, 0.0
        %v3092 = vmax.f32 %v2964, 0.0
        %v3093 = vmax.f32 %v2965, 0.0
        %v3094 = vmax.f32 %v2966, 0.0
        %v3095 = vmax.f32 %v2967, 0.0
        %v3096 = vmax.f32 %v2968, 0.0
        %v3097 = vmax.f32 %v2969, 0.0
        %v3098 = vmax.f32 %v2970, 0.0
        %v3099 = vmax.f32 %v2971, 0.0
        %v3100 = vmax.f32 %v2972, 0.0
        %v3101 = vmax.f32 %v2973, 0.0
        %v3102 = vmax.f32 %v2974, 0.0
        %v3103 = vmax.f32 %v2975, 0.0
        %v3104 = vmax.f32 %v2976, 0.0
        %v3105 = vmax.f32 %v2977, 0.0
        %v3106 = vmax.f32 %v2978, 0.0
        %v3107 = vmax.f32 %v2979, 0.0
        %v3108 = vmax.f32 %v2980, 0.0
        %v3109 = vmax.f32 %v2981, 0.0
        %v3110 = vmax.f32 %v2982, 0.0
        %v3111 = vmax.f32 %v2983, 0.0
        %v3112 = vmax.f32 %v2984, 0.0
        %v3113 = vmax.f32 %v2985, 0.0
        %v3114 = vmax.f32 %v2986, 0.0
        %v3115 = vmax.f32 %v2987, 0.0
        %v3116 = vmax.f32 %v2988, 0.0
        %v3117 = vmax.f32 %v2989, 0.0
        %v3118 = vmax.f32 %v2990, 0.0
        %v3119 = vmax.f32 %v2991, 0.0
        %v3120 = vmax.f32 %v2992, 0.0
        %v3121 = vmax.f32 %v2993, 0.0
        %v3122 = vmax.f32 %v2994, 0.0
        %v3123 = vmax.f32 %v2995, 0.0
        %v3124 = vmax.f32 %v2996, 0.0
        %v3125 = vmax.f32 %v2997, 0.0
        %v3126 = vmax.f32 %v2998, 0.0
        %v3127 = vmax.f32 %v2999, 0.0
        %v3128 = vmax.f32 %v3000, 0.0
        %v3129 = vmax.f32 %v3001, 0.0
        %v3130 = vmax.f32 %v3002, 0.0
        %v3131 = vmax.f32 %v3003, 0.0
        %v3132 = vmax.f32 %v3004, 0.0
        %v3133 = vmax.f32 %v3005, 0.0
        %v3134 = vmax.f32 %v3006, 0.0
        %v3135 = vmax.f32 %v3007, 0.0
        %v3136 = vmax.f32 %v3008, 0.0
        %v3137 = vmax.f32 %v3009, 0.0
        %v3138 = vmax.f32 %v3010, 0.0
        %v3139 = vmax.f32 %v3011, 0.0
        %v3140 = vmax.f32 %v3012, 0.0
        %v3141 = vmax.f32 %v3013, 0.0
        %v3142 = vmax.f32 %v3014, 0.0
        %v3143 = vmax.f32 %v3015, 0.0
        %v3144 = vmax.f32 %v3016, 0.0
        %v3145 = vmax.f32 %v3017, 0.0
        %v3146 = vmax.f32 %v3018, 0.0
        %v3147 = vmax.f32 %v3019, 0.0
        %v3148 = vmax.f32 %v3020, 0.0
        %v3149 = vmax.f32 %v3021, 0.0
        %v3150 = vmax.f32 %v3022, 0.0
        %v3151 = vmax.f32 %v3023, 0.0
        %v3152 = vmax.f32 %v3024, 0.0
        %v3153 = vmax.f32 %v3025, 0.0
        %v3154 = vmax.f32 %v3026, 0.0
        %v3155 = vmax.f32 %v3027, 0.0
        %v3156 = vmax.f32 %v3028, 0.0
        %v3157 = vmax.f32 %v3029, 0.0
        %v3158 = vmax.f32 %v3030, 0.0
        %v3159 = vmax.f32 %v3031, 0.0
        %v3160 = vmax.f32 %v3032, 0.0
        %v3161 = vmax.f32 %v3033, 0.0
        %v3162 = vmax.f32 %v3034, 0.0
        %v3163 = vmax.f32 %v3035, 0.0
        %v3164 = vmax.f32 %v3036, 0.0
        %v3165 = vmax.f32 %v3037, 0.0
        %v3166 = vmax.f32 %v3038, 0.0
        %v3167 = vmax.f32 %v3039, 0.0
        %v3168 = vmax.f32 %v3040, 0.0
        %v3169 = vmax.f32 %v3041, 0.0
        %v3170 = vmax.f32 %v3042, 0.0
        %v3171 = vmax.f32 %v3043, 0.0
        %v3172 = vmax.f32 %v3044, 0.0
        %v3173 = vmax.f32 %v3045, 0.0
        %v3174 = vmax.f32 %v3046, 0.0
        %v3175 = vmax.f32 %v3047, 0.0
        %v3176 = vmax.f32 %v3048, 0.0
        %v3177 = vmax.f32 %v3049, 0.0
        %v3178 = vmax.f32 %v3050, 0.0
        %v3179 = vmax.f32 %v3051, 0.0
        %v3180 = vmax.f32 %v3052, 0.0
        %v3181 = vmax.f32 %v3053, 0.0
        %v3182 = vmax.f32 %v3054, 0.0
        %v3183 = vmax.f32 %v3055, 0.0
        %v3184 = vmax.f32 %v3056, 0.0
        %v3185 = vmax.f32 %v3057, 0.0
        %v3186 = vmax.f32 %v3058, 0.0
        %v3187 = vmax.f32 %v3059, 0.0
        %v3188 = vmax.f32 %v3060, 0.0
        %v3189 = vmax.f32 %v3061, 0.0
        %v3190 = vmax.f32 %v3062, 0.0
        %v3191 = vmax.f32 %v3063, 0.0
        %v3192 = vmax.f32 %v3064, 0.0
        %v3193 = vmax.f32 %v3065, 0.0
        %v3194 = vmax.f32 %v3066, 0.0
        %v3195 = vmax.f32 %v3067, 0.0
        %v3196 = vmax.f32 %v3068, 0.0
        %v3197 = vmax.f32 %v3069, 0.0
        %v3198 = vmax.f32 %v3070, 0.0
        %v3199 = vmax.f32 %v3071, 0.0
        %v3200 = vmax.f32 %v3072, 0.0
        %v3201 = vmax.f32 %v3073, 0.0
        %v3202 = vmax.f32 %v3074, 0.0
        %v3203 = vmax.f32 %v3075, 0.0
        %v3204 = vmax.f32 %v3076, 0.0
        %v3205 = vpack.c.bf16 %v3081, %v3077
        %v3206 = vpack.c.bf16 %v3082, %v3078
        %v3207 = vpack.c.bf16 %v3083, %v3079
        %v3208 = vpack.c.bf16 %v3084, %v3080
        %v3209 = vpack.c.bf16 %v3089, %v3085
        %v3210 = vpack.c.bf16 %v3090, %v3086
        %v3211 = vpack.c.bf16 %v3091, %v3087
        %v3212 = vpack.c.bf16 %v3092, %v3088
        %v3213 = vpack.c.bf16 %v3097, %v3093
        %v3214 = vpack.c.bf16 %v3098, %v3094
        %v3215 = vpack.c.bf16 %v3099, %v3095
        %v3216 = vpack.c.bf16 %v3100, %v3096
        %v3217 = vpack.c.bf16 %v3105, %v3101
        %v3218 = vpack.c.bf16 %v3106, %v3102
        %v3219 = vpack.c.bf16 %v3107, %v3103
        %v3220 = vpack.c.bf16 %v3108, %v3104
        %v3221 = vpack.c.bf16 %v3113, %v3109
        %v3222 = vpack.c.bf16 %v3114, %v3110
        %v3223 = vpack.c.bf16 %v3115, %v3111
        %v3224 = vpack.c.bf16 %v3116, %v3112
        %v3225 = vpack.c.bf16 %v3121, %v3117
        %v3226 = vpack.c.bf16 %v3122, %v3118
        %v3227 = vpack.c.bf16 %v3123, %v3119
        %v3228 = vpack.c.bf16 %v3124, %v3120
        %v3229 = vpack.c.bf16 %v3129, %v3125
        %v3230 = vpack.c.bf16 %v3130, %v3126
        %v3231 = vpack.c.bf16 %v3131, %v3127
        %v3232 = vpack.c.bf16 %v3132, %v3128
        %v3233 = vpack.c.bf16 %v3137, %v3133
        %v3234 = vpack.c.bf16 %v3138, %v3134
        %v3235 = vpack.c.bf16 %v3139, %v3135
        %v3236 = vpack.c.bf16 %v3140, %v3136
        %v3237 = vpack.c.bf16 %v3145, %v3141
        %v3238 = vpack.c.bf16 %v3146, %v3142
        %v3239 = vpack.c.bf16 %v3147, %v3143
        %v3240 = vpack.c.bf16 %v3148, %v3144
        %v3241 = vpack.c.bf16 %v3153, %v3149
        %v3242 = vpack.c.bf16 %v3154, %v3150
        %v3243 = vpack.c.bf16 %v3155, %v3151
        %v3244 = vpack.c.bf16 %v3156, %v3152
        %v3245 = vpack.c.bf16 %v3161, %v3157
        %v3246 = vpack.c.bf16 %v3162, %v3158
        %v3247 = vpack.c.bf16 %v3163, %v3159
        %v3248 = vpack.c.bf16 %v3164, %v3160
        %v3249 = vpack.c.bf16 %v3169, %v3165
        %v3250 = vpack.c.bf16 %v3170, %v3166
        %v3251 = vpack.c.bf16 %v3171, %v3167
        %v3252 = vpack.c.bf16 %v3172, %v3168
        %v3253 = vpack.c.bf16 %v3177, %v3173
        %v3254 = vpack.c.bf16 %v3178, %v3174
        %v3255 = vpack.c.bf16 %v3179, %v3175
        %v3256 = vpack.c.bf16 %v3180, %v3176
        %v3257 = vpack.c.bf16 %v3185, %v3181
        %v3258 = vpack.c.bf16 %v3186, %v3182
        %v3259 = vpack.c.bf16 %v3187, %v3183
        %v3260 = vpack.c.bf16 %v3188, %v3184
        %v3261 = vpack.c.bf16 %v3193, %v3189
        %v3262 = vpack.c.bf16 %v3194, %v3190
        %v3263 = vpack.c.bf16 %v3195, %v3191
        %v3264 = vpack.c.bf16 %v3196, %v3192
        %v3265 = vpack.c.bf16 %v3201, %v3197
        %v3266 = vpack.c.bf16 %v3202, %v3198
        %v3267 = vpack.c.bf16 %v3203, %v3199
        %v3268 = vpack.c.bf16 %v3204, %v3200
        %v3269 = vld [vmem:[%s3] sm:$0xf]
        %v3270 = vld [vmem:[%s3 + $0x4] sm:$0xf]
        %v3271 = vld [vmem:[%s3 + $0x8] sm:$0xf]
        %v3272 = vld [vmem:[%s3 + $0xc] sm:$0xf]
        %v3273 = vld [vmem:[%s3 + $0x10] sm:$0xf]
        %v3274 = vld [vmem:[%s3 + $0x14] sm:$0xf]
        %v3275 = vld [vmem:[%s3 + $0x18] sm:$0xf]
        %v3276 = vld [vmem:[%s3 + $0x1c] sm:$0xf]
        %v3277 = vld [vmem:[%s3 + $0x20] sm:$0xf]
        %v3278 = vld [vmem:[%s3 + $0x24] sm:$0xf]
        %v3279 = vld [vmem:[%s3 + $0x28] sm:$0xf]
        %v3280 = vld [vmem:[%s3 + $0x2c] sm:$0xf]
        %v3281 = vld [vmem:[%s3 + $0x30] sm:$0xf]
        %v3282 = vld [vmem:[%s3 + $0x34] sm:$0xf]
        %v3283 = vld [vmem:[%s3 + $0x38] sm:$0xf]
        %v3284 = vld [vmem:[%s3 + $0x3c] sm:$0xf]
        %v3285 = vld [vmem:[%s3 + $0x40] sm:$0xf]
        %v3286 = vld [vmem:[%s3 + $0x44] sm:$0xf]
        %v3287 = vld [vmem:[%s3 + $0x48] sm:$0xf]
        %v3288 = vld [vmem:[%s3 + $0x4c] sm:$0xf]
        %v3289 = vld [vmem:[%s3 + $0x50] sm:$0xf]
        %v3290 = vld [vmem:[%s3 + $0x54] sm:$0xf]
        %v3291 = vld [vmem:[%s3 + $0x58] sm:$0xf]
        %v3292 = vld [vmem:[%s3 + $0x5c] sm:$0xf]
        %v3293 = vld [vmem:[%s3 + $0x60] sm:$0xf]
        %v3294 = vld [vmem:[%s3 + $0x64] sm:$0xf]
        %v3295 = vld [vmem:[%s3 + $0x68] sm:$0xf]
        %v3296 = vld [vmem:[%s3 + $0x6c] sm:$0xf]
        %v3297 = vld [vmem:[%s3 + $0x70] sm:$0xf]
        %v3298 = vld [vmem:[%s3 + $0x74] sm:$0xf]
        %v3299 = vld [vmem:[%s3 + $0x78] sm:$0xf]
        %v3300 = vld [vmem:[%s3 + $0x7c] sm:$0xf]
        %v3301 = vld [vmem:[%s3 + $0x80] sm:$0xf]
        %v3302 = vld [vmem:[%s3 + $0x84] sm:$0xf]
        %v3303 = vld [vmem:[%s3 + $0x88] sm:$0xf]
        %v3304 = vld [vmem:[%s3 + $0x8c] sm:$0xf]
        %v3305 = vld [vmem:[%s3 + $0x90] sm:$0xf]
        %v3306 = vld [vmem:[%s3 + $0x94] sm:$0xf]
        %v3307 = vld [vmem:[%s3 + $0x98] sm:$0xf]
        %v3308 = vld [vmem:[%s3 + $0x9c] sm:$0xf]
        %v3309 = vld [vmem:[%s3 + $0xa0] sm:$0xf]
        %v3310 = vld [vmem:[%s3 + $0xa4] sm:$0xf]
        %v3311 = vld [vmem:[%s3 + $0xa8] sm:$0xf]
        %v3312 = vld [vmem:[%s3 + $0xac] sm:$0xf]
        %v3313 = vld [vmem:[%s3 + $0xb0] sm:$0xf]
        %v3314 = vld [vmem:[%s3 + $0xb4] sm:$0xf]
        %v3315 = vld [vmem:[%s3 + $0xb8] sm:$0xf]
        %v3316 = vld [vmem:[%s3 + $0xbc] sm:$0xf]
        %v3317 = vld [vmem:[%s3 + $0xc0] sm:$0xf]
        %v3318 = vld [vmem:[%s3 + $0xc4] sm:$0xf]
        %v3319 = vld [vmem:[%s3 + $0xc8] sm:$0xf]
        %v3320 = vld [vmem:[%s3 + $0xcc] sm:$0xf]
        %v3321 = vld [vmem:[%s3 + $0xd0] sm:$0xf]
        %v3322 = vld [vmem:[%s3 + $0xd4] sm:$0xf]
        %v3323 = vld [vmem:[%s3 + $0xd8] sm:$0xf]
        %v3324 = vld [vmem:[%s3 + $0xdc] sm:$0xf]
        %v3325 = vld [vmem:[%s3 + $0xe0] sm:$0xf]
        %v3326 = vld [vmem:[%s3 + $0xe4] sm:$0xf]
        %v3327 = vld [vmem:[%s3 + $0xe8] sm:$0xf]
        %v3328 = vld [vmem:[%s3 + $0xec] sm:$0xf]
        %v3329 = vld [vmem:[%s3 + $0xf0] sm:$0xf]
        %v3330 = vld [vmem:[%s3 + $0xf4] sm:$0xf]
        %v3331 = vld [vmem:[%s3 + $0xf8] sm:$0xf]
        %v3332 = vld [vmem:[%s3 + $0xfc] sm:$0xf]
        %v3333 = vld [vmem:[%s4] sm:$0x1]
        %v3335 = vlaneseq
        %v3336 = vshrl.u32 %v3335, 7
        %v3337 = vsub.s32 0, %v3336
        %v3338 = vrot.slane %v3333, %v3337
        %v3404 = vunpack.c.l.b16 %v3269
        %v3405 = vunpack.c.l.b16 %v3270
        %v3406 = vunpack.c.l.b16 %v3271
        %v3407 = vunpack.c.l.b16 %v3272
        %v3408 = vunpack.c.l.b16 %v3273
        %v3409 = vunpack.c.l.b16 %v3274
        %v3410 = vunpack.c.l.b16 %v3275
        %v3411 = vunpack.c.l.b16 %v3276
        %v3412 = vunpack.c.l.b16 %v3277
        %v3413 = vunpack.c.l.b16 %v3278
        %v3414 = vunpack.c.l.b16 %v3279
        %v3415 = vunpack.c.l.b16 %v3280
        %v3416 = vunpack.c.l.b16 %v3281
        %v3417 = vunpack.c.l.b16 %v3282
        %v3418 = vunpack.c.l.b16 %v3283
        %v3419 = vunpack.c.l.b16 %v3284
        %v3420 = vunpack.c.l.b16 %v3285
        %v3421 = vunpack.c.l.b16 %v3286
        %v3422 = vunpack.c.l.b16 %v3287
        %v3423 = vunpack.c.l.b16 %v3288
        %v3424 = vunpack.c.l.b16 %v3289
        %v3425 = vunpack.c.l.b16 %v3290
        %v3426 = vunpack.c.l.b16 %v3291
        %v3427 = vunpack.c.l.b16 %v3292
        %v3428 = vunpack.c.l.b16 %v3293
        %v3429 = vunpack.c.l.b16 %v3294
        %v3430 = vunpack.c.l.b16 %v3295
        %v3431 = vunpack.c.l.b16 %v3296
        %v3432 = vunpack.c.l.b16 %v3297
        %v3433 = vunpack.c.l.b16 %v3298
        %v3434 = vunpack.c.l.b16 %v3299
        %v3435 = vunpack.c.l.b16 %v3300
        %v3436 = vunpack.c.l.b16 %v3301
        %v3437 = vunpack.c.l.b16 %v3302
        %v3438 = vunpack.c.l.b16 %v3303
        %v3439 = vunpack.c.l.b16 %v3304
        %v3440 = vunpack.c.l.b16 %v3305
        %v3441 = vunpack.c.l.b16 %v3306
        %v3442 = vunpack.c.l.b16 %v3307
        %v3443 = vunpack.c.l.b16 %v3308
        %v3444 = vunpack.c.l.b16 %v3309
        %v3445 = vunpack.c.l.b16 %v3310
        %v3446 = vunpack.c.l.b16 %v3311
        %v3447 = vunpack.c.l.b16 %v3312
        %v3448 = vunpack.c.l.b16 %v3313
        %v3449 = vunpack.c.l.b16 %v3314
        %v3450 = vunpack.c.l.b16 %v3315
        %v3451 = vunpack.c.l.b16 %v3316
        %v3452 = vunpack.c.l.b16 %v3317
        %v3453 = vunpack.c.l.b16 %v3318
        %v3454 = vunpack.c.l.b16 %v3319
        %v3455 = vunpack.c.l.b16 %v3320
        %v3456 = vunpack.c.l.b16 %v3321
        %v3457 = vunpack.c.l.b16 %v3322
        %v3458 = vunpack.c.l.b16 %v3323
        %v3459 = vunpack.c.l.b16 %v3324
        %v3460 = vunpack.c.l.b16 %v3325
        %v3461 = vunpack.c.l.b16 %v3326
        %v3462 = vunpack.c.l.b16 %v3327
        %v3463 = vunpack.c.l.b16 %v3328
        %v3464 = vunpack.c.l.b16 %v3329
        %v3465 = vunpack.c.l.b16 %v3330
        %v3466 = vunpack.c.l.b16 %v3331
        %v3467 = vunpack.c.l.b16 %v3332
        %v3468 = vpack.c.b16 %v3405, %v3404
        %v3469 = vpack.c.b16 %v3407, %v3406
        %v3470 = vpack.c.b16 %v3409, %v3408
        %v3471 = vpack.c.b16 %v3411, %v3410
        %v3472 = vpack.c.b16 %v3413, %v3412
        %v3473 = vpack.c.b16 %v3415, %v3414
        %v3474 = vpack.c.b16 %v3417, %v3416
        %v3475 = vpack.c.b16 %v3419, %v3418
        %v3476 = vpack.c.b16 %v3421, %v3420
        %v3477 = vpack.c.b16 %v3423, %v3422
        %v3478 = vpack.c.b16 %v3425, %v3424
        %v3479 = vpack.c.b16 %v3427, %v3426
        %v3480 = vpack.c.b16 %v3429, %v3428
        %v3481 = vpack.c.b16 %v3431, %v3430
        %v3482 = vpack.c.b16 %v3433, %v3432
        %v3483 = vpack.c.b16 %v3435, %v3434
        %v3484 = vpack.c.b16 %v3437, %v3436
        %v3485 = vpack.c.b16 %v3439, %v3438
        %v3486 = vpack.c.b16 %v3441, %v3440
        %v3487 = vpack.c.b16 %v3443, %v3442
        %v3488 = vpack.c.b16 %v3445, %v3444
        %v3489 = vpack.c.b16 %v3447, %v3446
        %v3490 = vpack.c.b16 %v3449, %v3448
        %v3491 = vpack.c.b16 %v3451, %v3450
        %v3492 = vpack.c.b16 %v3453, %v3452
        %v3493 = vpack.c.b16 %v3455, %v3454
        %v3494 = vpack.c.b16 %v3457, %v3456
        %v3495 = vpack.c.b16 %v3459, %v3458
        %v3496 = vpack.c.b16 %v3461, %v3460
        %v3497 = vpack.c.b16 %v3463, %v3462
        %v3498 = vpack.c.b16 %v3465, %v3464
        %v3499 = vpack.c.b16 %v3467, %v3466
        %3532 = vmatprep.subr.bf16.mxu0 0
        %3533 = vmatpush1.bf16.msra.mxu0 %v3468
        %3534 = vmatprep.subr.bf16.mxu0 0
        %3535 = vmatpush1.bf16.msra.mxu0 %v3469
        %3536 = vmatprep.subr.bf16.mxu0 0
        %3537 = vmatpush1.bf16.msra.mxu0 %v3470
        %3538 = vmatprep.subr.bf16.mxu0 0
        %3539 = vmatpush1.bf16.msra.mxu0 %v3471
        %3540 = vmatprep.subr.bf16.mxu0 0
        %3541 = vmatpush1.bf16.msra.mxu0 %v3472
        %3542 = vmatprep.subr.bf16.mxu0 0
        %3543 = vmatpush1.bf16.msra.mxu0 %v3473
        %3544 = vmatprep.subr.bf16.mxu0 0
        %3545 = vmatpush1.bf16.msra.mxu0 %v3474
        %3546 = vmatprep.subr.bf16.mxu0 0
        %3547 = vmatpush1.bf16.msra.mxu0 %v3475
        %3548 = vmatprep.subr.bf16.mxu0 0
        %3549 = vmatpush1.bf16.msra.mxu0 %v3476
        %3550 = vmatprep.subr.bf16.mxu0 0
        %3551 = vmatpush1.bf16.msra.mxu0 %v3477
        %3552 = vmatprep.subr.bf16.mxu0 0
        %3553 = vmatpush1.bf16.msra.mxu0 %v3478
        %3554 = vmatprep.subr.bf16.mxu0 0
        %3555 = vmatpush1.bf16.msra.mxu0 %v3479
        %3556 = vmatprep.subr.bf16.mxu0 0
        %3557 = vmatpush1.bf16.msra.mxu0 %v3480
        %3558 = vmatprep.subr.bf16.mxu0 0
        %3559 = vmatpush1.bf16.msra.mxu0 %v3481
        %3560 = vmatprep.subr.bf16.mxu0 0
        %3561 = vmatpush1.bf16.msra.mxu0 %v3482
        %3562 = vmatprep.subr.bf16.mxu0 0
        %3563 = vmatpush1.bf16.msra.mxu0 %v3483
        %3564 = vmatprep.mubr.bf16.mxu0 %v3206
        %3565 = vmatmul.mubr.bf16.gmra.mrb[0].mxu0 %v3205
        %v3566 = vpop.f32.mrb[0].mxu0
        %v3567 = vadd.f32 %v3338, %v3566
        %v3568 = vpop.f32.mrb[0].mxu0
        %v3569 = vpop.f32.mrb[0].mxu0
        %v3570 = vadd.f32 %v3338, %v3569
        %v3571 = vpop.f32.mrb[0].mxu0
        %3572 = vmatprep.mubr.bf16.mxu0 %v3210
        %3573 = vmatmul.mubr.bf16.gmra.mrb[0].mxu0 %v3209
        %v3574 = vpop.f32.mrb[0].mxu0
        %v3575 = vadd.f32 %v3338, %v3574
        %v3576 = vpop.f32.mrb[0].mxu0
        %v3577 = vpop.f32.mrb[0].mxu0
        %v3578 = vadd.f32 %v3338, %v3577
        %v3579 = vpop.f32.mrb[0].mxu0
        %3580 = vmatprep.mubr.bf16.mxu0 %v3214
        %3581 = vmatmul.mubr.bf16.gmra.mrb[0].mxu0 %v3213
        %v3582 = vpop.f32.mrb[0].mxu0
        %v3583 = vadd.f32 %v3338, %v3582
        %v3584 = vpop.f32.mrb[0].mxu0
        %v3585 = vpop.f32.mrb[0].mxu0
        %v3586 = vadd.f32 %v3338, %v3585
        %v3587 = vpop.f32.mrb[0].mxu0
        %3588 = vmatprep.mubr.bf16.mxu0 %v3218
        %3589 = vmatmul.mubr.bf16.gmra.mrb[0].mxu0 %v3217
        %v3590 = vpop.f32.mrb[0].mxu0
        %v3591 = vadd.f32 %v3338, %v3590
        %v3592 = vpop.f32.mrb[0].mxu0
        %v3593 = vpop.f32.mrb[0].mxu0
        %v3594 = vadd.f32 %v3338, %v3593
        %v3595 = vpop.f32.mrb[0].mxu0
        %3596 = vmatprep.mubr.bf16.mxu0 %v3222
        %3597 = vmatmul.mubr.bf16.gmra.mrb[0].mxu0 %v3221
        %v3598 = vpop.f32.mrb[0].mxu0
        %v3599 = vadd.f32 %v3338, %v3598
        %v3600 = vpop.f32.mrb[0].mxu0
        %v3601 = vpop.f32.mrb[0].mxu0
        %v3602 = vadd.f32 %v3338, %v3601
        %v3603 = vpop.f32.mrb[0].mxu0
        %3604 = vmatprep.mubr.bf16.mxu0 %v3226
        %3605 = vmatmul.mubr.bf16.gmra.mrb[0].mxu0 %v3225
        %v3606 = vpop.f32.mrb[0].mxu0
        %v3607 = vadd.f32 %v3338, %v3606
        %v3608 = vpop.f32.mrb[0].mxu0
        %v3609 = vpop.f32.mrb[0].mxu0
        %v3610 = vadd.f32 %v3338, %v3609
        %v3611 = vpop.f32.mrb[0].mxu0
        %3612 = vmatprep.mubr.bf16.mxu0 %v3230
        %3613 = vmatmul.mubr.bf16.gmra.mrb[0].mxu0 %v3229
        %v3614 = vpop.f32.mrb[0].mxu0
        %v3615 = vadd.f32 %v3338, %v3614
        %v3616 = vpop.f32.mrb[0].mxu0
        %v3617 = vpop.f32.mrb[0].mxu0
        %v3618 = vadd.f32 %v3338, %v3617
        %v3619 = vpop.f32.mrb[0].mxu0
        %3620 = vmatprep.mubr.bf16.mxu0 %v3234
        %3621 = vmatmul.mubr.bf16.gmra.mrb[0].mxu0 %v3233
        %v3622 = vpop.f32.mrb[0].mxu0
        %v3623 = vadd.f32 %v3338, %v3622
        %v3624 = vpop.f32.mrb[0].mxu0
        %v3625 = vpop.f32.mrb[0].mxu0
        %v3626 = vadd.f32 %v3338, %v3625
        %v3627 = vpop.f32.mrb[0].mxu0
        %3628 = vmatprep.mubr.bf16.mxu0 %v3238
        %3629 = vmatmul.mubr.bf16.gmra.mrb[0].mxu0 %v3237
        %v3630 = vpop.f32.mrb[0].mxu0
        %v3631 = vadd.f32 %v3338, %v3630
        %v3632 = vpop.f32.mrb[0].mxu0
        %v3633 = vpop.f32.mrb[0].mxu0
        %v3634 = vadd.f32 %v3338, %v3633
        %v3635 = vpop.f32.mrb[0].mxu0
        %3636 = vmatprep.mubr.bf16.mxu0 %v3242
        %3637 = vmatmul.mubr.bf16.gmra.mrb[0].mxu0 %v3241
        %v3638 = vpop.f32.mrb[0].mxu0
        %v3639 = vadd.f32 %v3338, %v3638
        %v3640 = vpop.f32.mrb[0].mxu0
        %v3641 = vpop.f32.mrb[0].mxu0
        %v3642 = vadd.f32 %v3338, %v3641
        %v3643 = vpop.f32.mrb[0].mxu0
        %3644 = vmatprep.mubr.bf16.mxu0 %v3246
        %3645 = vmatmul.mubr.bf16.gmra.mrb[0].mxu0 %v3245
        %v3646 = vpop.f32.mrb[0].mxu0
        %v3647 = vadd.f32 %v3338, %v3646
        %v3648 = vpop.f32.mrb[0].mxu0
        %v3649 = vpop.f32.mrb[0].mxu0
        %v3650 = vadd.f32 %v3338, %v3649
        %v3651 = vpop.f32.mrb[0].mxu0
        %3652 = vmatprep.mubr.bf16.mxu0 %v3250
        %3653 = vmatmul.mubr.bf16.gmra.mrb[0].mxu0 %v3249
        %v3654 = vpop.f32.mrb[0].mxu0
        %v3655 = vadd.f32 %v3338, %v3654
        %v3656 = vpop.f32.mrb[0].mxu0
        %v3657 = vpop.f32.mrb[0].mxu0
        %v3658 = vadd.f32 %v3338, %v3657
        %v3659 = vpop.f32.mrb[0].mxu0
        %3660 = vmatprep.mubr.bf16.mxu0 %v3254
        %3661 = vmatmul.mubr.bf16.gmra.mrb[0].mxu0 %v3253
        %v3662 = vpop.f32.mrb[0].mxu0
        %v3663 = vadd.f32 %v3338, %v3662
        %v3664 = vpop.f32.mrb[0].mxu0
        %v3665 = vpop.f32.mrb[0].mxu0
        %v3666 = vadd.f32 %v3338, %v3665
        %v3667 = vpop.f32.mrb[0].mxu0
        %3668 = vmatprep.mubr.bf16.mxu0 %v3258
        %3669 = vmatmul.mubr.bf16.gmra.mrb[0].mxu0 %v3257
        %v3670 = vpop.f32.mrb[0].mxu0
        %v3671 = vadd.f32 %v3338, %v3670
        %v3672 = vpop.f32.mrb[0].mxu0
        %v3673 = vpop.f32.mrb[0].mxu0
        %v3674 = vadd.f32 %v3338, %v3673
        %v3675 = vpop.f32.mrb[0].mxu0
        %3676 = vmatprep.mubr.bf16.mxu0 %v3262
        %3677 = vmatmul.mubr.bf16.gmra.mrb[0].mxu0 %v3261
        %v3678 = vpop.f32.mrb[0].mxu0
        %v3679 = vadd.f32 %v3338, %v3678
        %v3680 = vpop.f32.mrb[0].mxu0
        %v3681 = vpop.f32.mrb[0].mxu0
        %v3682 = vadd.f32 %v3338, %v3681
        %v3683 = vpop.f32.mrb[0].mxu0
        %3684 = vmatprep.mubr.bf16.mxu0 %v3266
        %3685 = vmatmul.mubr.bf16.gmra.mrb[0].mxu0 %v3265
        %v3686 = vpop.f32.mrb[0].mxu0
        %v3687 = vadd.f32 %v3338, %v3686
        %v3688 = vpop.f32.mrb[0].mxu0
        %v3689 = vpop.f32.mrb[0].mxu0
        %v3690 = vadd.f32 %v3338, %v3689
        %v3691 = vpop.f32.mrb[0].mxu0
        %3692 = vdwg.mxu0
        %3693 = vmatprep.subr.bf16.mxu0 0
        %3694 = vmatpush1.bf16.msra.mxu0 %v3484
        %3695 = vmatprep.subr.bf16.mxu0 0
        %3696 = vmatpush1.bf16.msra.mxu0 %v3485
        %3697 = vmatprep.subr.bf16.mxu0 0
        %3698 = vmatpush1.bf16.msra.mxu0 %v3486
        %3699 = vmatprep.subr.bf16.mxu0 0
        %3700 = vmatpush1.bf16.msra.mxu0 %v3487
        %3701 = vmatprep.subr.bf16.mxu0 0
        %3702 = vmatpush1.bf16.msra.mxu0 %v3488
        %3703 = vmatprep.subr.bf16.mxu0 0
        %3704 = vmatpush1.bf16.msra.mxu0 %v3489
        %3705 = vmatprep.subr.bf16.mxu0 0
        %3706 = vmatpush1.bf16.msra.mxu0 %v3490
        %3707 = vmatprep.subr.bf16.mxu0 0
        %3708 = vmatpush1.bf16.msra.mxu0 %v3491
        %3709 = vmatprep.subr.bf16.mxu0 0
        %3710 = vmatpush1.bf16.msra.mxu0 %v3492
        %3711 = vmatprep.subr.bf16.mxu0 0
        %3712 = vmatpush1.bf16.msra.mxu0 %v3493
        %3713 = vmatprep.subr.bf16.mxu0 0
        %3714 = vmatpush1.bf16.msra.mxu0 %v3494
        %3715 = vmatprep.subr.bf16.mxu0 0
        %3716 = vmatpush1.bf16.msra.mxu0 %v3495
        %3717 = vmatprep.subr.bf16.mxu0 0
        %3718 = vmatpush1.bf16.msra.mxu0 %v3496
        %3719 = vmatprep.subr.bf16.mxu0 0
        %3720 = vmatpush1.bf16.msra.mxu0 %v3497
        %3721 = vmatprep.subr.bf16.mxu0 0
        %3722 = vmatpush1.bf16.msra.mxu0 %v3498
        %3723 = vmatprep.subr.bf16.mxu0 0
        %3724 = vmatpush1.bf16.msra.mxu0 %v3499
        %3725 = vmatprep.mubr.bf16.mxu0 %v3208
        %3726 = vmatmul.mubr.bf16.gmra.mrb[0].mxu0 %v3207
        %v3727 = vpop.f32.mrb[0].mxu0
        %v3728 = vadd.f32 %v3567, %v3727
        %v3729 = vpop.f32.mrb[0].mxu0
        %v3730 = vpop.f32.mrb[0].mxu0
        %v3731 = vadd.f32 %v3570, %v3730
        %v3732 = vpop.f32.mrb[0].mxu0
        %3733 = vmatprep.mubr.bf16.mxu0 %v3212
        %3734 = vmatmul.mubr.bf16.gmra.mrb[0].mxu0 %v3211
        %v3735 = vpop.f32.mrb[0].mxu0
        %v3736 = vadd.f32 %v3575, %v3735
        %v3737 = vpop.f32.mrb[0].mxu0
        %v3738 = vpop.f32.mrb[0].mxu0
        %v3739 = vadd.f32 %v3578, %v3738
        %v3740 = vpop.f32.mrb[0].mxu0
        %3741 = vmatprep.mubr.bf16.mxu0 %v3216
        %3742 = vmatmul.mubr.bf16.gmra.mrb[0].mxu0 %v3215
        %v3743 = vpop.f32.mrb[0].mxu0
        %v3744 = vadd.f32 %v3583, %v3743
        %v3745 = vpop.f32.mrb[0].mxu0
        %v3746 = vpop.f32.mrb[0].mxu0
        %v3747 = vadd.f32 %v3586, %v3746
        %v3748 = vpop.f32.mrb[0].mxu0
        %3749 = vmatprep.mubr.bf16.mxu0 %v3220
        %3750 = vmatmul.mubr.bf16.gmra.mrb[0].mxu0 %v3219
        %v3751 = vpop.f32.mrb[0].mxu0
        %v3752 = vadd.f32 %v3591, %v3751
        %v3753 = vpop.f32.mrb[0].mxu0
        %v3754 = vpop.f32.mrb[0].mxu0
        %v3755 = vadd.f32 %v3594, %v3754
        %v3756 = vpop.f32.mrb[0].mxu0
        %3757 = vmatprep.mubr.bf16.mxu0 %v3224
        %3758 = vmatmul.mubr.bf16.gmra.mrb[0].mxu0 %v3223
        %v3759 = vpop.f32.mrb[0].mxu0
        %v3760 = vadd.f32 %v3599, %v3759
        %v3761 = vpop.f32.mrb[0].mxu0
        %v3762 = vpop.f32.mrb[0].mxu0
        %v3763 = vadd.f32 %v3602, %v3762
        %v3764 = vpop.f32.mrb[0].mxu0
        %3765 = vmatprep.mubr.bf16.mxu0 %v3228
        %3766 = vmatmul.mubr.bf16.gmra.mrb[0].mxu0 %v3227
        %v3767 = vpop.f32.mrb[0].mxu0
        %v3768 = vadd.f32 %v3607, %v3767
        %v3769 = vpop.f32.mrb[0].mxu0
        %v3770 = vpop.f32.mrb[0].mxu0
        %v3771 = vadd.f32 %v3610, %v3770
        %v3772 = vpop.f32.mrb[0].mxu0
        %3773 = vmatprep.mubr.bf16.mxu0 %v3232
        %3774 = vmatmul.mubr.bf16.gmra.mrb[0].mxu0 %v3231
        %v3775 = vpop.f32.mrb[0].mxu0
        %v3776 = vadd.f32 %v3615, %v3775
        %v3777 = vpop.f32.mrb[0].mxu0
        %v3778 = vpop.f32.mrb[0].mxu0
        %v3779 = vadd.f32 %v3618, %v3778
        %v3780 = vpop.f32.mrb[0].mxu0
        %3781 = vmatprep.mubr.bf16.mxu0 %v3236
        %3782 = vmatmul.mubr.bf16.gmra.mrb[0].mxu0 %v3235
        %v3783 = vpop.f32.mrb[0].mxu0
        %v3784 = vadd.f32 %v3623, %v3783
        %v3785 = vpop.f32.mrb[0].mxu0
        %v3786 = vpop.f32.mrb[0].mxu0
        %v3787 = vadd.f32 %v3626, %v3786
        %v3788 = vpop.f32.mrb[0].mxu0
        %3789 = vmatprep.mubr.bf16.mxu0 %v3240
        %3790 = vmatmul.mubr.bf16.gmra.mrb[0].mxu0 %v3239
        %v3791 = vpop.f32.mrb[0].mxu0
        %v3792 = vadd.f32 %v3631, %v3791
        %v3793 = vpop.f32.mrb[0].mxu0
        %v3794 = vpop.f32.mrb[0].mxu0
        %v3795 = vadd.f32 %v3634, %v3794
        %v3796 = vpop.f32.mrb[0].mxu0
        %3797 = vmatprep.mubr.bf16.mxu0 %v3244
        %3798 = vmatmul.mubr.bf16.gmra.mrb[0].mxu0 %v3243
        %v3799 = vpop.f32.mrb[0].mxu0
        %v3800 = vadd.f32 %v3639, %v3799
        %v3801 = vpop.f32.mrb[0].mxu0
        %v3802 = vpop.f32.mrb[0].mxu0
        %v3803 = vadd.f32 %v3642, %v3802
        %v3804 = vpop.f32.mrb[0].mxu0
        %3805 = vmatprep.mubr.bf16.mxu0 %v3248
        %3806 = vmatmul.mubr.bf16.gmra.mrb[0].mxu0 %v3247
        %v3807 = vpop.f32.mrb[0].mxu0
        %v3808 = vadd.f32 %v3647, %v3807
        %v3809 = vpop.f32.mrb[0].mxu0
        %v3810 = vpop.f32.mrb[0].mxu0
        %v3811 = vadd.f32 %v3650, %v3810
        %v3812 = vpop.f32.mrb[0].mxu0
        %3813 = vmatprep.mubr.bf16.mxu0 %v3252
        %3814 = vmatmul.mubr.bf16.gmra.mrb[0].mxu0 %v3251
        %v3815 = vpop.f32.mrb[0].mxu0
        %v3816 = vadd.f32 %v3655, %v3815
        %v3817 = vpop.f32.mrb[0].mxu0
        %v3818 = vpop.f32.mrb[0].mxu0
        %v3819 = vadd.f32 %v3658, %v3818
        %v3820 = vpop.f32.mrb[0].mxu0
        %3821 = vmatprep.mubr.bf16.mxu0 %v3256
        %3822 = vmatmul.mubr.bf16.gmra.mrb[0].mxu0 %v3255
        %v3823 = vpop.f32.mrb[0].mxu0
        %v3824 = vadd.f32 %v3663, %v3823
        %v3825 = vpop.f32.mrb[0].mxu0
        %v3826 = vpop.f32.mrb[0].mxu0
        %v3827 = vadd.f32 %v3666, %v3826
        %v3828 = vpop.f32.mrb[0].mxu0
        %3829 = vmatprep.mubr.bf16.mxu0 %v3260
        %3830 = vmatmul.mubr.bf16.gmra.mrb[0].mxu0 %v3259
        %v3831 = vpop.f32.mrb[0].mxu0
        %v3832 = vadd.f32 %v3671, %v3831
        %v3833 = vpop.f32.mrb[0].mxu0
        %v3834 = vpop.f32.mrb[0].mxu0
        %v3835 = vadd.f32 %v3674, %v3834
        %v3836 = vpop.f32.mrb[0].mxu0
        %3837 = vmatprep.mubr.bf16.mxu0 %v3264
        %3838 = vmatmul.mubr.bf16.gmra.mrb[0].mxu0 %v3263
        %v3839 = vpop.f32.mrb[0].mxu0
        %v3840 = vadd.f32 %v3679, %v3839
        %v3841 = vpop.f32.mrb[0].mxu0
        %v3842 = vpop.f32.mrb[0].mxu0
        %v3843 = vadd.f32 %v3682, %v3842
        %v3844 = vpop.f32.mrb[0].mxu0
        %3845 = vmatprep.mubr.bf16.mxu0 %v3268
        %3846 = vmatmul.mubr.bf16.gmra.mrb[0].mxu0 %v3267
        %v3847 = vpop.f32.mrb[0].mxu0
        %v3848 = vadd.f32 %v3687, %v3847
        %v3849 = vpop.f32.mrb[0].mxu0
        %v3850 = vpop.f32.mrb[0].mxu0
        %v3851 = vadd.f32 %v3690, %v3850
        %v3852 = vpop.f32.mrb[0].mxu0
        %3853 = vdwg.mxu0
        %3886 = vrot.lane.b32.xlu0 %v3728, 125
        %v3887 = vpop.permute.xlu0 %3886
        %3888 = vrot.lane.b32.xlu0 %v3731, 125
        %v3889 = vpop.permute.xlu0 %3888
        %3890 = vrot.lane.b32.xlu0 %v3736, 125
        %v3891 = vpop.permute.xlu0 %3890
        %3892 = vrot.lane.b32.xlu0 %v3739, 125
        %v3893 = vpop.permute.xlu0 %3892
        %3894 = vrot.lane.b32.xlu0 %v3744, 125
        %v3895 = vpop.permute.xlu0 %3894
        %3896 = vrot.lane.b32.xlu0 %v3747, 125
        %v3897 = vpop.permute.xlu0 %3896
        %3898 = vrot.lane.b32.xlu0 %v3752, 125
        %v3899 = vpop.permute.xlu0 %3898
        %3900 = vrot.lane.b32.xlu0 %v3755, 125
        %v3901 = vpop.permute.xlu0 %3900
        %3902 = vrot.lane.b32.xlu0 %v3760, 125
        %v3903 = vpop.permute.xlu0 %3902
        %3904 = vrot.lane.b32.xlu0 %v3763, 125
        %v3905 = vpop.permute.xlu0 %3904
        %3906 = vrot.lane.b32.xlu0 %v3768, 125
        %v3907 = vpop.permute.xlu0 %3906
        %3908 = vrot.lane.b32.xlu0 %v3771, 125
        %v3909 = vpop.permute.xlu0 %3908
        %3910 = vrot.lane.b32.xlu0 %v3776, 125
        %v3911 = vpop.permute.xlu0 %3910
        %3912 = vrot.lane.b32.xlu0 %v3779, 125
        %v3913 = vpop.permute.xlu0 %3912
        %3914 = vrot.lane.b32.xlu0 %v3784, 125
        %v3915 = vpop.permute.xlu0 %3914
        %3916 = vrot.lane.b32.xlu0 %v3787, 125
        %v3917 = vpop.permute.xlu0 %3916
        %3918 = vrot.lane.b32.xlu0 %v3792, 125
        %v3919 = vpop.permute.xlu0 %3918
        %3920 = vrot.lane.b32.xlu0 %v3795, 125
        %v3921 = vpop.permute.xlu0 %3920
        %3922 = vrot.lane.b32.xlu0 %v3800, 125
        %v3923 = vpop.permute.xlu0 %3922
        %3924 = vrot.lane.b32.xlu0 %v3803, 125
        %v3925 = vpop.permute.xlu0 %3924
        %3926 = vrot.lane.b32.xlu0 %v3808, 125
        %v3927 = vpop.permute.xlu0 %3926
        %3928 = vrot.lane.b32.xlu0 %v3811, 125
        %v3929 = vpop.permute.xlu0 %3928
        %3930 = vrot.lane.b32.xlu0 %v3816, 125
        %v3931 = vpop.permute.xlu0 %3930
        %3932 = vrot.lane.b32.xlu0 %v3819, 125
        %v3933 = vpop.permute.xlu0 %3932
        %3934 = vrot.lane.b32.xlu0 %v3824, 125
        %v3935 = vpop.permute.xlu0 %3934
        %3936 = vrot.lane.b32.xlu0 %v3827, 125
        %v3937 = vpop.permute.xlu0 %3936
        %3938 = vrot.lane.b32.xlu0 %v3832, 125
        %v3939 = vpop.permute.xlu0 %3938
        %3940 = vrot.lane.b32.xlu0 %v3835, 125
        %v3941 = vpop.permute.xlu0 %3940
        %3942 = vrot.lane.b32.xlu0 %v3840, 125
        %v3943 = vpop.permute.xlu0 %3942
        %3944 = vrot.lane.b32.xlu0 %v3843, 125
        %v3945 = vpop.permute.xlu0 %3944
        %3946 = vrot.lane.b32.xlu0 %v3848, 125
        %v3947 = vpop.permute.xlu0 %3946
        %3948 = vrot.lane.b32.xlu0 %v3851, 125
        %v3949 = vpop.permute.xlu0 %3948
        %v3982 = vmax.f32 %v3728, %v3887
        %v3983 = vmax.f32 %v3731, %v3889
        %v3984 = vmax.f32 %v3736, %v3891
        %v3985 = vmax.f32 %v3739, %v3893
        %v3986 = vmax.f32 %v3744, %v3895
        %v3987 = vmax.f32 %v3747, %v3897
        %v3988 = vmax.f32 %v3752, %v3899
        %v3989 = vmax.f32 %v3755, %v3901
        %v3990 = vmax.f32 %v3760, %v3903
        %v3991 = vmax.f32 %v3763, %v3905
        %v3992 = vmax.f32 %v3768, %v3907
        %v3993 = vmax.f32 %v3771, %v3909
        %v3994 = vmax.f32 %v3776, %v3911
        %v3995 = vmax.f32 %v3779, %v3913
        %v3996 = vmax.f32 %v3784, %v3915
        %v3997 = vmax.f32 %v3787, %v3917
        %v3998 = vmax.f32 %v3792, %v3919
        %v3999 = vmax.f32 %v3795, %v3921
        %v4000 = vmax.f32 %v3800, %v3923
        %v4001 = vmax.f32 %v3803, %v3925
        %v4002 = vmax.f32 %v3808, %v3927
        %v4003 = vmax.f32 %v3811, %v3929
        %v4004 = vmax.f32 %v3816, %v3931
        %v4005 = vmax.f32 %v3819, %v3933
        %v4006 = vmax.f32 %v3824, %v3935
        %v4007 = vmax.f32 %v3827, %v3937
        %v4008 = vmax.f32 %v3832, %v3939
        %v4009 = vmax.f32 %v3835, %v3941
        %v4010 = vmax.f32 %v3840, %v3943
        %v4011 = vmax.f32 %v3843, %v3945
        %v4012 = vmax.f32 %v3848, %v3947
        %v4013 = vmax.f32 %v3851, %v3949
        %v4014 = vsub.f32 %v3728, %v3982
        %v4015 = vsub.f32 %v3731, %v3983
        %v4016 = vsub.f32 %v3736, %v3984
        %v4017 = vsub.f32 %v3739, %v3985
        %v4018 = vsub.f32 %v3744, %v3986
        %v4019 = vsub.f32 %v3747, %v3987
        %v4020 = vsub.f32 %v3752, %v3988
        %v4021 = vsub.f32 %v3755, %v3989
        %v4022 = vsub.f32 %v3760, %v3990
        %v4023 = vsub.f32 %v3763, %v3991
        %v4024 = vsub.f32 %v3768, %v3992
        %v4025 = vsub.f32 %v3771, %v3993
        %v4026 = vsub.f32 %v3776, %v3994
        %v4027 = vsub.f32 %v3779, %v3995
        %v4028 = vsub.f32 %v3784, %v3996
        %v4029 = vsub.f32 %v3787, %v3997
        %v4030 = vsub.f32 %v3792, %v3998
        %v4031 = vsub.f32 %v3795, %v3999
        %v4032 = vsub.f32 %v3800, %v4000
        %v4033 = vsub.f32 %v3803, %v4001
        %v4034 = vsub.f32 %v3808, %v4002
        %v4035 = vsub.f32 %v3811, %v4003
        %v4036 = vsub.f32 %v3816, %v4004
        %v4037 = vsub.f32 %v3819, %v4005
        %v4038 = vsub.f32 %v3824, %v4006
        %v4039 = vsub.f32 %v3827, %v4007
        %v4040 = vsub.f32 %v3832, %v4008
        %v4041 = vsub.f32 %v3835, %v4009
        %v4042 = vsub.f32 %v3840, %v4010
        %v4043 = vsub.f32 %v3843, %v4011
        %v4044 = vsub.f32 %v3848, %v4012
        %v4045 = vsub.f32 %v3851, %v4013
        %v4046 = vmul.f32 %v4014, 1.442695
        %v4047 = vpow.pop %v4046
        %v4048 = vmul.f32 %v4015, 1.442695
        %v4049 = vpow.pop %v4048
        %v4050 = vmul.f32 %v4016, 1.442695
        %v4051 = vpow.pop %v4050
        %v4052 = vmul.f32 %v4017, 1.442695
        %v4053 = vpow.pop %v4052
        %v4054 = vmul.f32 %v4018, 1.442695
        %v4055 = vpow.pop %v4054
        %v4056 = vmul.f32 %v4019, 1.442695
        %v4057 = vpow.pop %v4056
        %v4058 = vmul.f32 %v4020, 1.442695
        %v4059 = vpow.pop %v4058
        %v4060 = vmul.f32 %v4021, 1.442695
        %v4061 = vpow.pop %v4060
        %v4062 = vmul.f32 %v4022, 1.442695
        %v4063 = vpow.pop %v4062
        %v4064 = vmul.f32 %v4023, 1.442695
        %v4065 = vpow.pop %v4064
        %v4066 = vmul.f32 %v4024, 1.442695
        %v4067 = vpow.pop %v4066
        %v4068 = vmul.f32 %v4025, 1.442695
        %v4069 = vpow.pop %v4068
        %v4070 = vmul.f32 %v4026, 1.442695
        %v4071 = vpow.pop %v4070
        %v4072 = vmul.f32 %v4027, 1.442695
        %v4073 = vpow.pop %v4072
        %v4074 = vmul.f32 %v4028, 1.442695
        %v4075 = vpow.pop %v4074
        %v4076 = vmul.f32 %v4029, 1.442695
        %v4077 = vpow.pop %v4076
        %v4078 = vmul.f32 %v4030, 1.442695
        %v4079 = vpow.pop %v4078
        %v4080 = vmul.f32 %v4031, 1.442695
        %v4081 = vpow.pop %v4080
        %v4082 = vmul.f32 %v4032, 1.442695
        %v4083 = vpow.pop %v4082
        %v4084 = vmul.f32 %v4033, 1.442695
        %v4085 = vpow.pop %v4084
        %v4086 = vmul.f32 %v4034, 1.442695
        %v4087 = vpow.pop %v4086
        %v4088 = vmul.f32 %v4035, 1.442695
        %v4089 = vpow.pop %v4088
        %v4090 = vmul.f32 %v4036, 1.442695
        %v4091 = vpow.pop %v4090
        %v4092 = vmul.f32 %v4037, 1.442695
        %v4093 = vpow.pop %v4092
        %v4094 = vmul.f32 %v4038, 1.442695
        %v4095 = vpow.pop %v4094
        %v4096 = vmul.f32 %v4039, 1.442695
        %v4097 = vpow.pop %v4096
        %v4098 = vmul.f32 %v4040, 1.442695
        %v4099 = vpow.pop %v4098
        %v4100 = vmul.f32 %v4041, 1.442695
        %v4101 = vpow.pop %v4100
        %v4102 = vmul.f32 %v4042, 1.442695
        %v4103 = vpow.pop %v4102
        %v4104 = vmul.f32 %v4043, 1.442695
        %v4105 = vpow.pop %v4104
        %v4106 = vmul.f32 %v4044, 1.442695
        %v4107 = vpow.pop %v4106
        %v4108 = vmul.f32 %v4045, 1.442695
        %v4109 = vpow.pop %v4108
        %4142 = vrot.lane.b32.xlu0 %v3982, 3
        %v4143 = vpop.permute.xlu0 %4142
        %4144 = vrot.lane.b32.xlu0 %v3983, 3
        %v4145 = vpop.permute.xlu0 %4144
        %4146 = vrot.lane.b32.xlu0 %v3984, 3
        %v4147 = vpop.permute.xlu0 %4146
        %4148 = vrot.lane.b32.xlu0 %v3985, 3
        %v4149 = vpop.permute.xlu0 %4148
        %4150 = vrot.lane.b32.xlu0 %v3986, 3
        %v4151 = vpop.permute.xlu0 %4150
        %4152 = vrot.lane.b32.xlu0 %v3987, 3
        %v4153 = vpop.permute.xlu0 %4152
        %4154 = vrot.lane.b32.xlu0 %v3988, 3
        %v4155 = vpop.permute.xlu0 %4154
        %4156 = vrot.lane.b32.xlu0 %v3989, 3
        %v4157 = vpop.permute.xlu0 %4156
        %4158 = vrot.lane.b32.xlu0 %v3990, 3
        %v4159 = vpop.permute.xlu0 %4158
        %4160 = vrot.lane.b32.xlu0 %v3991, 3
        %v4161 = vpop.permute.xlu0 %4160
        %4162 = vrot.lane.b32.xlu0 %v3992, 3
        %v4163 = vpop.permute.xlu0 %4162
        %4164 = vrot.lane.b32.xlu0 %v3993, 3
        %v4165 = vpop.permute.xlu0 %4164
        %4166 = vrot.lane.b32.xlu0 %v3994, 3
        %v4167 = vpop.permute.xlu0 %4166
        %4168 = vrot.lane.b32.xlu0 %v3995, 3
        %v4169 = vpop.permute.xlu0 %4168
        %4170 = vrot.lane.b32.xlu0 %v3996, 3
        %v4171 = vpop.permute.xlu0 %4170
        %4172 = vrot.lane.b32.xlu0 %v3997, 3
        %v4173 = vpop.permute.xlu0 %4172
        %4174 = vrot.lane.b32.xlu0 %v3998, 3
        %v4175 = vpop.permute.xlu0 %4174
        %4176 = vrot.lane.b32.xlu0 %v3999, 3
        %v4177 = vpop.permute.xlu0 %4176
        %4178 = vrot.lane.b32.xlu0 %v4000, 3
        %v4179 = vpop.permute.xlu0 %4178
        %4180 = vrot.lane.b32.xlu0 %v4001, 3
        %v4181 = vpop.permute.xlu0 %4180
        %4182 = vrot.lane.b32.xlu0 %v4002, 3
        %v4183 = vpop.permute.xlu0 %4182
        %4184 = vrot.lane.b32.xlu0 %v4003, 3
        %v4185 = vpop.permute.xlu0 %4184
        %4186 = vrot.lane.b32.xlu0 %v4004, 3
        %v4187 = vpop.permute.xlu0 %4186
        %4188 = vrot.lane.b32.xlu0 %v4005, 3
        %v4189 = vpop.permute.xlu0 %4188
        %4190 = vrot.lane.b32.xlu0 %v4006, 3
        %v4191 = vpop.permute.xlu0 %4190
        %4192 = vrot.lane.b32.xlu0 %v4007, 3
        %v4193 = vpop.permute.xlu0 %4192
        %4194 = vrot.lane.b32.xlu0 %v4008, 3
        %v4195 = vpop.permute.xlu0 %4194
        %4196 = vrot.lane.b32.xlu0 %v4009, 3
        %v4197 = vpop.permute.xlu0 %4196
        %4198 = vrot.lane.b32.xlu0 %v4010, 3
        %v4199 = vpop.permute.xlu0 %4198
        %4200 = vrot.lane.b32.xlu0 %v4011, 3
        %v4201 = vpop.permute.xlu0 %4200
        %4202 = vrot.lane.b32.xlu0 %v4012, 3
        %v4203 = vpop.permute.xlu0 %4202
        %4204 = vrot.lane.b32.xlu0 %v4013, 3
        %v4205 = vpop.permute.xlu0 %4204
        %v4238 = vsub.f32 %v3728, %v4143
        %v4239 = vsub.f32 %v3731, %v4145
        %v4240 = vsub.f32 %v3736, %v4147
        %v4241 = vsub.f32 %v3739, %v4149
        %v4242 = vsub.f32 %v3744, %v4151
        %v4243 = vsub.f32 %v3747, %v4153
        %v4244 = vsub.f32 %v3752, %v4155
        %v4245 = vsub.f32 %v3755, %v4157
        %v4246 = vsub.f32 %v3760, %v4159
        %v4247 = vsub.f32 %v3763, %v4161
        %v4248 = vsub.f32 %v3768, %v4163
        %v4249 = vsub.f32 %v3771, %v4165
        %v4250 = vsub.f32 %v3776, %v4167
        %v4251 = vsub.f32 %v3779, %v4169
        %v4252 = vsub.f32 %v3784, %v4171
        %v4253 = vsub.f32 %v3787, %v4173
        %v4254 = vsub.f32 %v3792, %v4175
        %v4255 = vsub.f32 %v3795, %v4177
        %v4256 = vsub.f32 %v3800, %v4179
        %v4257 = vsub.f32 %v3803, %v4181
        %v4258 = vsub.f32 %v3808, %v4183
        %v4259 = vsub.f32 %v3811, %v4185
        %v4260 = vsub.f32 %v3816, %v4187
        %v4261 = vsub.f32 %v3819, %v4189
        %v4262 = vsub.f32 %v3824, %v4191
        %v4263 = vsub.f32 %v3827, %v4193
        %v4264 = vsub.f32 %v3832, %v4195
        %v4265 = vsub.f32 %v3835, %v4197
        %v4266 = vsub.f32 %v3840, %v4199
        %v4267 = vsub.f32 %v3843, %v4201
        %v4268 = vsub.f32 %v3848, %v4203
        %v4269 = vsub.f32 %v3851, %v4205
        %v4270 = vmul.f32 %v4238, 1.442695
        %v4271 = vpow.pop %v4270
        %v4272 = vmul.f32 %v4239, 1.442695
        %v4273 = vpow.pop %v4272
        %v4274 = vmul.f32 %v4240, 1.442695
        %v4275 = vpow.pop %v4274
        %v4276 = vmul.f32 %v4241, 1.442695
        %v4277 = vpow.pop %v4276
        %v4278 = vmul.f32 %v4242, 1.442695
        %v4279 = vpow.pop %v4278
        %v4280 = vmul.f32 %v4243, 1.442695
        %v4281 = vpow.pop %v4280
        %v4282 = vmul.f32 %v4244, 1.442695
        %v4283 = vpow.pop %v4282
        %v4284 = vmul.f32 %v4245, 1.442695
        %v4285 = vpow.pop %v4284
        %v4286 = vmul.f32 %v4246, 1.442695
        %v4287 = vpow.pop %v4286
        %v4288 = vmul.f32 %v4247, 1.442695
        %v4289 = vpow.pop %v4288
        %v4290 = vmul.f32 %v4248, 1.442695
        %v4291 = vpow.pop %v4290
        %v4292 = vmul.f32 %v4249, 1.442695
        %v4293 = vpow.pop %v4292
        %v4294 = vmul.f32 %v4250, 1.442695
        %v4295 = vpow.pop %v4294
        %v4296 = vmul.f32 %v4251, 1.442695
        %v4297 = vpow.pop %v4296
        %v4298 = vmul.f32 %v4252, 1.442695
        %v4299 = vpow.pop %v4298
        %v4300 = vmul.f32 %v4253, 1.442695
        %v4301 = vpow.pop %v4300
        %v4302 = vmul.f32 %v4254, 1.442695
        %v4303 = vpow.pop %v4302
        %v4304 = vmul.f32 %v4255, 1.442695
        %v4305 = vpow.pop %v4304
        %v4306 = vmul.f32 %v4256, 1.442695
        %v4307 = vpow.pop %v4306
        %v4308 = vmul.f32 %v4257, 1.442695
        %v4309 = vpow.pop %v4308
        %v4310 = vmul.f32 %v4258, 1.442695
        %v4311 = vpow.pop %v4310
        %v4312 = vmul.f32 %v4259, 1.442695
        %v4313 = vpow.pop %v4312
        %v4314 = vmul.f32 %v4260, 1.442695
        %v4315 = vpow.pop %v4314
        %v4316 = vmul.f32 %v4261, 1.442695
        %v4317 = vpow.pop %v4316
        %v4318 = vmul.f32 %v4262, 1.442695
        %v4319 = vpow.pop %v4318
        %v4320 = vmul.f32 %v4263, 1.442695
        %v4321 = vpow.pop %v4320
        %v4322 = vmul.f32 %v4264, 1.442695
        %v4323 = vpow.pop %v4322
        %v4324 = vmul.f32 %v4265, 1.442695
        %v4325 = vpow.pop %v4324
        %v4326 = vmul.f32 %v4266, 1.442695
        %v4327 = vpow.pop %v4326
        %v4328 = vmul.f32 %v4267, 1.442695
        %v4329 = vpow.pop %v4328
        %v4330 = vmul.f32 %v4268, 1.442695
        %v4331 = vpow.pop %v4330
        %v4332 = vmul.f32 %v4269, 1.442695
        %v4333 = vpow.pop %v4332
        %4366 = vrot.lane.b32.xlu0 %v4271, 125
        %v4367 = vpop.permute.xlu0 %4366
        %4368 = vrot.lane.b32.xlu0 %v4273, 125
        %v4369 = vpop.permute.xlu0 %4368
        %4370 = vrot.lane.b32.xlu0 %v4275, 125
        %v4371 = vpop.permute.xlu0 %4370
        %4372 = vrot.lane.b32.xlu0 %v4277, 125
        %v4373 = vpop.permute.xlu0 %4372
        %4374 = vrot.lane.b32.xlu0 %v4279, 125
        %v4375 = vpop.permute.xlu0 %4374
        %4376 = vrot.lane.b32.xlu0 %v4281, 125
        %v4377 = vpop.permute.xlu0 %4376
        %4378 = vrot.lane.b32.xlu0 %v4283, 125
        %v4379 = vpop.permute.xlu0 %4378
        %4380 = vrot.lane.b32.xlu0 %v4285, 125
        %v4381 = vpop.permute.xlu0 %4380
        %4382 = vrot.lane.b32.xlu0 %v4287, 125
        %v4383 = vpop.permute.xlu0 %4382
        %4384 = vrot.lane.b32.xlu0 %v4289, 125
        %v4385 = vpop.permute.xlu0 %4384
        %4386 = vrot.lane.b32.xlu0 %v4291, 125
        %v4387 = vpop.permute.xlu0 %4386
        %4388 = vrot.lane.b32.xlu0 %v4293, 125
        %v4389 = vpop.permute.xlu0 %4388
        %4390 = vrot.lane.b32.xlu0 %v4295, 125
        %v4391 = vpop.permute.xlu0 %4390
        %4392 = vrot.lane.b32.xlu0 %v4297, 125
        %v4393 = vpop.permute.xlu0 %4392
        %4394 = vrot.lane.b32.xlu0 %v4299, 125
        %v4395 = vpop.permute.xlu0 %4394
        %4396 = vrot.lane.b32.xlu0 %v4301, 125
        %v4397 = vpop.permute.xlu0 %4396
        %4398 = vrot.lane.b32.xlu0 %v4303, 125
        %v4399 = vpop.permute.xlu0 %4398
        %4400 = vrot.lane.b32.xlu0 %v4305, 125
        %v4401 = vpop.permute.xlu0 %4400
        %4402 = vrot.lane.b32.xlu0 %v4307, 125
        %v4403 = vpop.permute.xlu0 %4402
        %4404 = vrot.lane.b32.xlu0 %v4309, 125
        %v4405 = vpop.permute.xlu0 %4404
        %4406 = vrot.lane.b32.xlu0 %v4311, 125
        %v4407 = vpop.permute.xlu0 %4406
        %4408 = vrot.lane.b32.xlu0 %v4313, 125
        %v4409 = vpop.permute.xlu0 %4408
        %4410 = vrot.lane.b32.xlu0 %v4315, 125
        %v4411 = vpop.permute.xlu0 %4410
        %4412 = vrot.lane.b32.xlu0 %v4317, 125
        %v4413 = vpop.permute.xlu0 %4412
        %4414 = vrot.lane.b32.xlu0 %v4319, 125
        %v4415 = vpop.permute.xlu0 %4414
        %4416 = vrot.lane.b32.xlu0 %v4321, 125
        %v4417 = vpop.permute.xlu0 %4416
        %4418 = vrot.lane.b32.xlu0 %v4323, 125
        %v4419 = vpop.permute.xlu0 %4418
        %4420 = vrot.lane.b32.xlu0 %v4325, 125
        %v4421 = vpop.permute.xlu0 %4420
        %4422 = vrot.lane.b32.xlu0 %v4327, 125
        %v4423 = vpop.permute.xlu0 %4422
        %4424 = vrot.lane.b32.xlu0 %v4329, 125
        %v4425 = vpop.permute.xlu0 %4424
        %4426 = vrot.lane.b32.xlu0 %v4331, 125
        %v4427 = vpop.permute.xlu0 %4426
        %4428 = vrot.lane.b32.xlu0 %v4333, 125
        %v4429 = vpop.permute.xlu0 %4428
        %v4462 = vadd.f32 %v4047, %v4367
        %v4463 = vadd.f32 %v4049, %v4369
        %v4464 = vadd.f32 %v4051, %v4371
        %v4465 = vadd.f32 %v4053, %v4373
        %v4466 = vadd.f32 %v4055, %v4375
        %v4467 = vadd.f32 %v4057, %v4377
        %v4468 = vadd.f32 %v4059, %v4379
        %v4469 = vadd.f32 %v4061, %v4381
        %v4470 = vadd.f32 %v4063, %v4383
        %v4471 = vadd.f32 %v4065, %v4385
        %v4472 = vadd.f32 %v4067, %v4387
        %v4473 = vadd.f32 %v4069, %v4389
        %v4474 = vadd.f32 %v4071, %v4391
        %v4475 = vadd.f32 %v4073, %v4393
        %v4476 = vadd.f32 %v4075, %v4395
        %v4477 = vadd.f32 %v4077, %v4397
        %v4478 = vadd.f32 %v4079, %v4399
        %v4479 = vadd.f32 %v4081, %v4401
        %v4480 = vadd.f32 %v4083, %v4403
        %v4481 = vadd.f32 %v4085, %v4405
        %v4482 = vadd.f32 %v4087, %v4407
        %v4483 = vadd.f32 %v4089, %v4409
        %v4484 = vadd.f32 %v4091, %v4411
        %v4485 = vadd.f32 %v4093, %v4413
        %v4486 = vadd.f32 %v4095, %v4415
        %v4487 = vadd.f32 %v4097, %v4417
        %v4488 = vadd.f32 %v4099, %v4419
        %v4489 = vadd.f32 %v4101, %v4421
        %v4490 = vadd.f32 %v4103, %v4423
        %v4491 = vadd.f32 %v4105, %v4425
        %v4492 = vadd.f32 %v4107, %v4427
        %v4493 = vadd.f32 %v4109, %v4429
        %v4494 = vrcp.pop %v4462
        %v4495 = vrcp.pop %v4463
        %v4496 = vrcp.pop %v4464
        %v4497 = vrcp.pop %v4465
        %v4498 = vrcp.pop %v4466
        %v4499 = vrcp.pop %v4467
        %v4500 = vrcp.pop %v4468
        %v4501 = vrcp.pop %v4469
        %v4502 = vrcp.pop %v4470
        %v4503 = vrcp.pop %v4471
        %v4504 = vrcp.pop %v4472
        %v4505 = vrcp.pop %v4473
        %v4506 = vrcp.pop %v4474
        %v4507 = vrcp.pop %v4475
        %v4508 = vrcp.pop %v4476
        %v4509 = vrcp.pop %v4477
        %v4510 = vrcp.pop %v4478
        %v4511 = vrcp.pop %v4479
        %v4512 = vrcp.pop %v4480
        %v4513 = vrcp.pop %v4481
        %v4514 = vrcp.pop %v4482
        %v4515 = vrcp.pop %v4483
        %v4516 = vrcp.pop %v4484
        %v4517 = vrcp.pop %v4485
        %v4518 = vrcp.pop %v4486
        %v4519 = vrcp.pop %v4487
        %v4520 = vrcp.pop %v4488
        %v4521 = vrcp.pop %v4489
        %v4522 = vrcp.pop %v4490
        %v4523 = vrcp.pop %v4491
        %v4524 = vrcp.pop %v4492
        %v4525 = vrcp.pop %v4493
        %4526 = vst [vmem:[%s259] sm:$0xff] %v3728
        %4527 = vst [vmem:[%s259 + $0x8] sm:$0xff] %v3731
        %4528 = vst [vmem:[%s259 + $0x10] sm:$0xff] %v3736
        %4529 = vst [vmem:[%s259 + $0x18] sm:$0xff] %v3739
        %4530 = vst [vmem:[%s259 + $0x20] sm:$0xff] %v3744
        %4531 = vst [vmem:[%s259 + $0x28] sm:$0xff] %v3747
        %4532 = vst [vmem:[%s259 + $0x30] sm:$0xff] %v3752
        %4533 = vst [vmem:[%s259 + $0x38] sm:$0xff] %v3755
        %4534 = vst [vmem:[%s259 + $0x40] sm:$0xff] %v3760
        %4535 = vst [vmem:[%s259 + $0x48] sm:$0xff] %v3763
        %4536 = vst [vmem:[%s259 + $0x50] sm:$0xff] %v3768
        %4537 = vst [vmem:[%s259 + $0x58] sm:$0xff] %v3771
        %4538 = vst [vmem:[%s259 + $0x60] sm:$0xff] %v3776
        %4539 = vst [vmem:[%s259 + $0x68] sm:$0xff] %v3779
        %4540 = vst [vmem:[%s259 + $0x70] sm:$0xff] %v3784
        %4541 = vst [vmem:[%s259 + $0x78] sm:$0xff] %v3787
        %4542 = vst [vmem:[%s259 + $0x80] sm:$0xff] %v3792
        %4543 = vst [vmem:[%s259 + $0x88] sm:$0xff] %v3795
        %4544 = vst [vmem:[%s259 + $0x90] sm:$0xff] %v3800
        %4545 = vst [vmem:[%s259 + $0x98] sm:$0xff] %v3803
        %4546 = vst [vmem:[%s259 + $0xa0] sm:$0xff] %v3808
        %4547 = vst [vmem:[%s259 + $0xa8] sm:$0xff] %v3811
        %4548 = vst [vmem:[%s259 + $0xb0] sm:$0xff] %v3816
        %4549 = vst [vmem:[%s259 + $0xb8] sm:$0xff] %v3819
        %4550 = vst [vmem:[%s259 + $0xc0] sm:$0xff] %v3824
        %4551 = vst [vmem:[%s259 + $0xc8] sm:$0xff] %v3827
        %4552 = vst [vmem:[%s259 + $0xd0] sm:$0xff] %v3832
        %4553 = vst [vmem:[%s259 + $0xd8] sm:$0xff] %v3835
        %4554 = vst [vmem:[%s259 + $0xe0] sm:$0xff] %v3840
        %4555 = vst [vmem:[%s259 + $0xe8] sm:$0xff] %v3843
        %4556 = vst [vmem:[%s259 + $0xf0] sm:$0xff] %v3848
        %4557 = vst [vmem:[%s259 + $0xf8] sm:$0xff] %v3851
        %v4558 = vmul.f32 %v4047, %v4494
        %v4559 = vmul.f32 %v4049, %v4495
        %v4560 = vmul.f32 %v4051, %v4496
        %v4561 = vmul.f32 %v4053, %v4497
        %v4562 = vmul.f32 %v4055, %v4498
        %v4563 = vmul.f32 %v4057, %v4499
        %v4564 = vmul.f32 %v4059, %v4500
        %v4565 = vmul.f32 %v4061, %v4501
        %v4566 = vmul.f32 %v4063, %v4502
        %v4567 = vmul.f32 %v4065, %v4503
        %v4568 = vmul.f32 %v4067, %v4504
        %v4569 = vmul.f32 %v4069, %v4505
        %v4570 = vmul.f32 %v4071, %v4506
        %v4571 = vmul.f32 %v4073, %v4507
        %v4572 = vmul.f32 %v4075, %v4508
        %v4573 = vmul.f32 %v4077, %v4509
        %v4574 = vmul.f32 %v4079, %v4510
        %v4575 = vmul.f32 %v4081, %v4511
        %v4576 = vmul.f32 %v4083, %v4512
        %v4577 = vmul.f32 %v4085, %v4513
        %v4578 = vmul.f32 %v4087, %v4514
        %v4579 = vmul.f32 %v4089, %v4515
        %v4580 = vmul.f32 %v4091, %v4516
        %v4581 = vmul.f32 %v4093, %v4517
        %v4582 = vmul.f32 %v4095, %v4518
        %v4583 = vmul.f32 %v4097, %v4519
        %v4584 = vmul.f32 %v4099, %v4520
        %v4585 = vmul.f32 %v4101, %v4521
        %v4586 = vmul.f32 %v4103, %v4522
        %v4587 = vmul.f32 %v4105, %v4523
        %v4588 = vmul.f32 %v4107, %v4524
        %v4589 = vmul.f32 %v4109, %v4525
        %4622 = vrot.lane.b32.xlu0 %v4494, 3
        %v4623 = vpop.permute.xlu0 %4622
        %4624 = vrot.lane.b32.xlu0 %v4495, 3
        %v4625 = vpop.permute.xlu0 %4624
        %4626 = vrot.lane.b32.xlu0 %v4496, 3
        %v4627 = vpop.permute.xlu0 %4626
        %4628 = vrot.lane.b32.xlu0 %v4497, 3
        %v4629 = vpop.permute.xlu0 %4628
        %4630 = vrot.lane.b32.xlu0 %v4498, 3
        %v4631 = vpop.permute.xlu0 %4630
        %4632 = vrot.lane.b32.xlu0 %v4499, 3
        %v4633 = vpop.permute.xlu0 %4632
        %4634 = vrot.lane.b32.xlu0 %v4500, 3
        %v4635 = vpop.permute.xlu0 %4634
        %4636 = vrot.lane.b32.xlu0 %v4501, 3
        %v4637 = vpop.permute.xlu0 %4636
        %4638 = vrot.lane.b32.xlu0 %v4502, 3
        %v4639 = vpop.permute.xlu0 %4638
        %4640 = vrot.lane.b32.xlu0 %v4503, 3
        %v4641 = vpop.permute.xlu0 %4640
        %4642 = vrot.lane.b32.xlu0 %v4504, 3
        %v4643 = vpop.permute.xlu0 %4642
        %4644 = vrot.lane.b32.xlu0 %v4505, 3
        %v4645 = vpop.permute.xlu0 %4644
        %4646 = vrot.lane.b32.xlu0 %v4506, 3
        %v4647 = vpop.permute.xlu0 %4646
        %4648 = vrot.lane.b32.xlu0 %v4507, 3
        %v4649 = vpop.permute.xlu0 %4648
        %4650 = vrot.lane.b32.xlu0 %v4508, 3
        %v4651 = vpop.permute.xlu0 %4650
        %4652 = vrot.lane.b32.xlu0 %v4509, 3
        %v4653 = vpop.permute.xlu0 %4652
        %4654 = vrot.lane.b32.xlu0 %v4510, 3
        %v4655 = vpop.permute.xlu0 %4654
        %4656 = vrot.lane.b32.xlu0 %v4511, 3
        %v4657 = vpop.permute.xlu0 %4656
        %4658 = vrot.lane.b32.xlu0 %v4512, 3
        %v4659 = vpop.permute.xlu0 %4658
        %4660 = vrot.lane.b32.xlu0 %v4513, 3
        %v4661 = vpop.permute.xlu0 %4660
        %4662 = vrot.lane.b32.xlu0 %v4514, 3
        %v4663 = vpop.permute.xlu0 %4662
        %4664 = vrot.lane.b32.xlu0 %v4515, 3
        %v4665 = vpop.permute.xlu0 %4664
        %4666 = vrot.lane.b32.xlu0 %v4516, 3
        %v4667 = vpop.permute.xlu0 %4666
        %4668 = vrot.lane.b32.xlu0 %v4517, 3
        %v4669 = vpop.permute.xlu0 %4668
        %4670 = vrot.lane.b32.xlu0 %v4518, 3
        %v4671 = vpop.permute.xlu0 %4670
        %4672 = vrot.lane.b32.xlu0 %v4519, 3
        %v4673 = vpop.permute.xlu0 %4672
        %4674 = vrot.lane.b32.xlu0 %v4520, 3
        %v4675 = vpop.permute.xlu0 %4674
        %4676 = vrot.lane.b32.xlu0 %v4521, 3
        %v4677 = vpop.permute.xlu0 %4676
        %4678 = vrot.lane.b32.xlu0 %v4522, 3
        %v4679 = vpop.permute.xlu0 %4678
        %4680 = vrot.lane.b32.xlu0 %v4523, 3
        %v4681 = vpop.permute.xlu0 %4680
        %4682 = vrot.lane.b32.xlu0 %v4524, 3
        %v4683 = vpop.permute.xlu0 %4682
        %4684 = vrot.lane.b32.xlu0 %v4525, 3
        %v4685 = vpop.permute.xlu0 %4684
        %v4718 = vmul.f32 %v4271, %v4623
        %v4719 = vmul.f32 %v4273, %v4625
        %v4720 = vmul.f32 %v4275, %v4627
        %v4721 = vmul.f32 %v4277, %v4629
        %v4722 = vmul.f32 %v4279, %v4631
        %v4723 = vmul.f32 %v4281, %v4633
        %v4724 = vmul.f32 %v4283, %v4635
        %v4725 = vmul.f32 %v4285, %v4637
        %v4726 = vmul.f32 %v4287, %v4639
        %v4727 = vmul.f32 %v4289, %v4641
        %v4728 = vmul.f32 %v4291, %v4643
        %v4729 = vmul.f32 %v4293, %v4645
        %v4730 = vmul.f32 %v4295, %v4647
        %v4731 = vmul.f32 %v4297, %v4649
        %v4732 = vmul.f32 %v4299, %v4651
        %v4733 = vmul.f32 %v4301, %v4653
        %v4734 = vmul.f32 %v4303, %v4655
        %v4735 = vmul.f32 %v4305, %v4657
        %v4736 = vmul.f32 %v4307, %v4659
        %v4737 = vmul.f32 %v4309, %v4661
        %v4738 = vmul.f32 %v4311, %v4663
        %v4739 = vmul.f32 %v4313, %v4665
        %v4740 = vmul.f32 %v4315, %v4667
        %v4741 = vmul.f32 %v4317, %v4669
        %v4742 = vmul.f32 %v4319, %v4671
        %v4743 = vmul.f32 %v4321, %v4673
        %v4744 = vmul.f32 %v4323, %v4675
        %v4745 = vmul.f32 %v4325, %v4677
        %v4746 = vmul.f32 %v4327, %v4679
        %v4747 = vmul.f32 %v4329, %v4681
        %v4748 = vmul.f32 %v4331, %v4683
        %v4749 = vmul.f32 %v4333, %v4685
        %vm4750 = vcmask 23552
        %v4751 = vsel %vm4750, %v4558, %v4718
        %v4752 = vsel %vm4750, %v4559, %v4719
        %v4753 = vsel %vm4750, %v4560, %v4720
        %v4754 = vsel %vm4750, %v4561, %v4721
        %v4755 = vsel %vm4750, %v4562, %v4722
        %v4756 = vsel %vm4750, %v4563, %v4723
        %v4757 = vsel %vm4750, %v4564, %v4724
        %v4758 = vsel %vm4750, %v4565, %v4725
        %v4759 = vsel %vm4750, %v4566, %v4726
        %v4760 = vsel %vm4750, %v4567, %v4727
        %v4761 = vsel %vm4750, %v4568, %v4728
        %v4762 = vsel %vm4750, %v4569, %v4729
        %v4763 = vsel %vm4750, %v4570, %v4730
        %v4764 = vsel %vm4750, %v4571, %v4731
        %v4765 = vsel %vm4750, %v4572, %v4732
        %v4766 = vsel %vm4750, %v4573, %v4733
        %v4767 = vsel %vm4750, %v4574, %v4734
        %v4768 = vsel %vm4750, %v4575, %v4735
        %v4769 = vsel %vm4750, %v4576, %v4736
        %v4770 = vsel %vm4750, %v4577, %v4737
        %v4771 = vsel %vm4750, %v4578, %v4738
        %v4772 = vsel %vm4750, %v4579, %v4739
        %v4773 = vsel %vm4750, %v4580, %v4740
        %v4774 = vsel %vm4750, %v4581, %v4741
        %v4775 = vsel %vm4750, %v4582, %v4742
        %v4776 = vsel %vm4750, %v4583, %v4743
        %v4777 = vsel %vm4750, %v4584, %v4744
        %v4778 = vsel %vm4750, %v4585, %v4745
        %v4779 = vsel %vm4750, %v4586, %v4746
        %v4780 = vsel %vm4750, %v4587, %v4747
        %v4781 = vsel %vm4750, %v4588, %v4748
        %v4782 = vsel %vm4750, %v4589, %v4749
        %4815 = vrot.lane.b32.xlu0 %v4751, 18
        %v4816 = vpop.permute.xlu0 %4815
        %4817 = vrot.lane.b32.xlu0 %v4752, 18
        %v4818 = vpop.permute.xlu0 %4817
        %4819 = vrot.lane.b32.xlu0 %v4753, 18
        %v4820 = vpop.permute.xlu0 %4819
        %4821 = vrot.lane.b32.xlu0 %v4754, 18
        %v4822 = vpop.permute.xlu0 %4821
        %4823 = vrot.lane.b32.xlu0 %v4755, 18
        %v4824 = vpop.permute.xlu0 %4823
        %4825 = vrot.lane.b32.xlu0 %v4756, 18
        %v4826 = vpop.permute.xlu0 %4825
        %4827 = vrot.lane.b32.xlu0 %v4757, 18
        %v4828 = vpop.permute.xlu0 %4827
        %4829 = vrot.lane.b32.xlu0 %v4758, 18
        %v4830 = vpop.permute.xlu0 %4829
        %4831 = vrot.lane.b32.xlu0 %v4759, 18
        %v4832 = vpop.permute.xlu0 %4831
        %4833 = vrot.lane.b32.xlu0 %v4760, 18
        %v4834 = vpop.permute.xlu0 %4833
        %4835 = vrot.lane.b32.xlu0 %v4761, 18
        %v4836 = vpop.permute.xlu0 %4835
        %4837 = vrot.lane.b32.xlu0 %v4762, 18
        %v4838 = vpop.permute.xlu0 %4837
        %4839 = vrot.lane.b32.xlu0 %v4763, 18
        %v4840 = vpop.permute.xlu0 %4839
        %4841 = vrot.lane.b32.xlu0 %v4764, 18
        %v4842 = vpop.permute.xlu0 %4841
        %4843 = vrot.lane.b32.xlu0 %v4765, 18
        %v4844 = vpop.permute.xlu0 %4843
        %4845 = vrot.lane.b32.xlu0 %v4766, 18
        %v4846 = vpop.permute.xlu0 %4845
        %4847 = vrot.lane.b32.xlu0 %v4767, 18
        %v4848 = vpop.permute.xlu0 %4847
        %4849 = vrot.lane.b32.xlu0 %v4768, 18
        %v4850 = vpop.permute.xlu0 %4849
        %4851 = vrot.lane.b32.xlu0 %v4769, 18
        %v4852 = vpop.permute.xlu0 %4851
        %4853 = vrot.lane.b32.xlu0 %v4770, 18
        %v4854 = vpop.permute.xlu0 %4853
        %4855 = vrot.lane.b32.xlu0 %v4771, 18
        %v4856 = vpop.permute.xlu0 %4855
        %4857 = vrot.lane.b32.xlu0 %v4772, 18
        %v4858 = vpop.permute.xlu0 %4857
        %4859 = vrot.lane.b32.xlu0 %v4773, 18
        %v4860 = vpop.permute.xlu0 %4859
        %4861 = vrot.lane.b32.xlu0 %v4774, 18
        %v4862 = vpop.permute.xlu0 %4861
        %4863 = vrot.lane.b32.xlu0 %v4775, 18
        %v4864 = vpop.permute.xlu0 %4863
        %4865 = vrot.lane.b32.xlu0 %v4776, 18
        %v4866 = vpop.permute.xlu0 %4865
        %4867 = vrot.lane.b32.xlu0 %v4777, 18
        %v4868 = vpop.permute.xlu0 %4867
        %4869 = vrot.lane.b32.xlu0 %v4778, 18
        %v4870 = vpop.permute.xlu0 %4869
        %4871 = vrot.lane.b32.xlu0 %v4779, 18
        %v4872 = vpop.permute.xlu0 %4871
        %4873 = vrot.lane.b32.xlu0 %v4780, 18
        %v4874 = vpop.permute.xlu0 %4873
        %4875 = vrot.lane.b32.xlu0 %v4781, 18
        %v4876 = vpop.permute.xlu0 %4875
        %4877 = vrot.lane.b32.xlu0 %v4782, 18
        %v4878 = vpop.permute.xlu0 %4877
        %vm4911 = vcmask 195728
        %4912 = vst.msk [vmem:[%s259] sm:$0xff] %vm4911, %v4816
        %4913 = vst.msk [vmem:[%s259 + $0x8] sm:$0xff] %vm4911, %v4818
        %4914 = vst.msk [vmem:[%s259 + $0x10] sm:$0xff] %vm4911, %v4820
        %4915 = vst.msk [vmem:[%s259 + $0x18] sm:$0xff] %vm4911, %v4822
        %4916 = vst.msk [vmem:[%s259 + $0x20] sm:$0xff] %vm4911, %v4824
        %4917 = vst.msk [vmem:[%s259 + $0x28] sm:$0xff] %vm4911, %v4826
        %4918 = vst.msk [vmem:[%s259 + $0x30] sm:$0xff] %vm4911, %v4828
        %4919 = vst.msk [vmem:[%s259 + $0x38] sm:$0xff] %vm4911, %v4830
        %4920 = vst.msk [vmem:[%s259 + $0x40] sm:$0xff] %vm4911, %v4832
        %4921 = vst.msk [vmem:[%s259 + $0x48] sm:$0xff] %vm4911, %v4834
        %4922 = vst.msk [vmem:[%s259 + $0x50] sm:$0xff] %vm4911, %v4836
        %4923 = vst.msk [vmem:[%s259 + $0x58] sm:$0xff] %vm4911, %v4838
        %4924 = vst.msk [vmem:[%s259 + $0x60] sm:$0xff] %vm4911, %v4840
        %4925 = vst.msk [vmem:[%s259 + $0x68] sm:$0xff] %vm4911, %v4842
        %4926 = vst.msk [vmem:[%s259 + $0x70] sm:$0xff] %vm4911, %v4844
        %4927 = vst.msk [vmem:[%s259 + $0x78] sm:$0xff] %vm4911, %v4846
        %4928 = vst.msk [vmem:[%s259 + $0x80] sm:$0xff] %vm4911, %v4848
        %4929 = vst.msk [vmem:[%s259 + $0x88] sm:$0xff] %vm4911, %v4850
        %4930 = vst.msk [vmem:[%s259 + $0x90] sm:$0xff] %vm4911, %v4852
        %4931 = vst.msk [vmem:[%s259 + $0x98] sm:$0xff] %vm4911, %v4854
        %4932 = vst.msk [vmem:[%s259 + $0xa0] sm:$0xff] %vm4911, %v4856
        %4933 = vst.msk [vmem:[%s259 + $0xa8] sm:$0xff] %vm4911, %v4858
        %4934 = vst.msk [vmem:[%s259 + $0xb0] sm:$0xff] %vm4911, %v4860
        %4935 = vst.msk [vmem:[%s259 + $0xb8] sm:$0xff] %vm4911, %v4862
        %4936 = vst.msk [vmem:[%s259 + $0xc0] sm:$0xff] %vm4911, %v4864
        %4937 = vst.msk [vmem:[%s259 + $0xc8] sm:$0xff] %vm4911, %v4866
        %4938 = vst.msk [vmem:[%s259 + $0xd0] sm:$0xff] %vm4911, %v4868
        %4939 = vst.msk [vmem:[%s259 + $0xd8] sm:$0xff] %vm4911, %v4870
        %4940 = vst.msk [vmem:[%s259 + $0xe0] sm:$0xff] %vm4911, %v4872
        %4941 = vst.msk [vmem:[%s259 + $0xe8] sm:$0xff] %vm4911, %v4874
        %4942 = vst.msk [vmem:[%s259 + $0xf0] sm:$0xff] %vm4911, %v4876
        %4943 = vst.msk [vmem:[%s259 + $0xf8] sm:$0xff] %vm4911, %v4878
        %s4944 = sand.u32 %s154, 1
        %s4945 = scalar_lea.sflag [#allocation4], %s4944
        %s4946 = sand.u32 %s154, 1
        %s4947 = smul.addr %s4946, 256
        %s4948 = scalar_lea.vmem [#allocation5], %s4947
        // Predicated region
        $region45: #{tpu_custom_call.1} parent=39 // pred_check
          %p4949 = pneg %p164
        $region46: #{tpu_custom_call.1} parent=39 // pred_check_branch
          %4951 = sbr.rel (%p4949) target = $region48
        $region47: #{tpu_custom_call.1} parent=39 // pred_region
          %s4952 = smul.u32 32, %s25
          %s4954 = ssub.s32 4096, 4096
          %4955 = vsyncadd %s4945, %s4954
          %s4956 = smul.addr %s24, 32
          %s4957 = sadd.s32 %s4952, %s4956
          %s4958 = smul.addr %s4957, 128
          %s4959 = scalar_lea.hbm %s5, %s4958
          %s4960 = sshll.u32 %s4948, 4
          %s4961 = int_to_ptr.vmem [resolvable:$true] %s4960
          %4966 = dma.vmem_to_hbm [thread:$0]  %s4961, 4096, %s4959, %s4945, 128, 128, 8
        $region48: #{tpu_custom_call.1} parent=39 // pred_fallthru
          _
      $region40: #{tpu_custom_call.1} parent=5 // pred_fallthru
        _
      %p4967 = scmp.le.s32.totalorder 2, %s15
      // Predicated region
      $region49: #{tpu_custom_call.1} parent=5 // pred_check
        %p4968 = pneg %p4967
      $region50: #{tpu_custom_call.1} parent=5 // pred_check_branch
        %4970 = sbr.rel (%p4968) target = $region52
      $region51: #{tpu_custom_call.1} parent=5 // pred_region
        %s4971 = ssub.s32 %s15, 2
        // Predicated region
        $region53: #{tpu_custom_call.1} parent=51 // pred_check
          %p4972 = pneg %p170
        $region54: #{tpu_custom_call.1} parent=51 // pred_check_branch
          %4974 = sbr.rel (%p4972) target = $region56
        $region55: #{tpu_custom_call.1} parent=51 // pred_region
          %s4975 = sand.u32 %s155, 1
          %s4976 = scalar_lea.sflag [#allocation4], %s4975
          %s4977 = sand.u32 %s155, 1
          %s4978 = smul.addr %s4977, 256
          %s4979 = scalar_lea.vmem [#allocation5], %s4978
          %4980 = dma.done %s4976, 4096
        $region56: #{tpu_custom_call.1} parent=51 // pred_fallthru
          _
      $region52: #{tpu_custom_call.1} parent=5 // pred_fallthru
        _
    $region6: #{tpu_custom_call.1} parent=1 // loop_footer
      %s19 = sadd.s32 1, %s15
    $region7: #{tpu_custom_call.1} parent=1 // loop_footer_branch
      %14 = sbr.rel target = $region3
    $region8: #{tpu_custom_call.1} parent=1 // loop_exit
      _
    %4981 = vsyncpa [#allocation3], 1
    %s4982 = scalar_lea.sflag [#allocation3], 1
    %4983 = vsyncpa %s4982, 1
    %4984 = vsyncpa [#allocation4], 1
    %s4985 = scalar_lea.sflag [#allocation4], 1
    %4986 = vsyncpa %s4985, 1

</llo_original>
